<compile_context>
chip_gen: v6e
topology: v6e:2x2x1
jax: 0.10.0
libtpu: 0.0.40
codegen_flags: <defaults>
</compile_context>

<pallas_src>
import math
from functools import partial

import jax
import jax.numpy as jnp
from jax import lax
from jax.experimental import pallas as pl
from jax.experimental.pallas import tpu as pltpu

DTYPE = jnp.bfloat16            # storage dtype for weights / activations
_NEG_INF = -1e30                # finite mask value; exp underflows to exactly 0


def _default_vmem_limit():
    try:
        info = pltpu.get_tpu_info()
        return int(info.vmem_capacity_bytes * 3 // 4)   # ~48MB v7x, ~96MB v5e/v6e
    except Exception:
        return 48 * 1024 * 1024                          # safe on every generation


VMEM_LIMIT = _default_vmem_limit()


def _round_up(x, m):
    return ((x + m - 1) // m) * m


def _tile(dim, target, align):
    """Largest divisor of `dim` that is a multiple of `align` and <= target.
    Falls back to align//2 alignment, then (last resort) the full dim, so a
    misaligned dim never silently produces a giant single block unless it has
    no usable divisor at all."""
    for a in (align, max(align // 2, 1)):
        if dim % a == 0:
            best = a
            t = a
            while t <= min(dim, target):
                if dim % t == 0:
                    best = t
                t += a
            return best
    return dim


# --------------------- tiled linear (LN / bias / GELU / residual fused) ------

def _make_linear_kernel(activation, has_ln, has_bias, has_residual, eps=1e-5):
    def kernel(*refs):
        it = iter(refs)
        x_ref = next(it)
        w_ref = next(it)
        g_ref = bln_ref = b_ref = r_ref = None
        if has_ln:
            g_ref = next(it)
            bln_ref = next(it)
        if has_bias:
            b_ref = next(it)
        if has_residual:
            r_ref = next(it)
        o_ref = next(it)
        acc_ref = next(it)

        @pl.when(pl.program_id(2) == 0)
        def _():
            acc_ref[...] = jnp.zeros_like(acc_ref)

        x = x_ref[...]                              # (tm, tk) bf16
        if has_ln:
            # tk == K here, so the full row is present: fuse LayerNorm into the
            # matmul prologue (x tile is deduped across j, only this VPU/XLU
            # recompute repeats; it hides under the MXU).
            xf = x.astype(jnp.float32)
            mean = jnp.mean(xf, axis=-1, keepdims=True)
            xc = xf - mean
            var = jnp.mean(xc * xc, axis=-1, keepdims=True)
            xn = xc * lax.rsqrt(var + eps)
            xn = xn * g_ref[...].astype(jnp.float32) + bln_ref[...].astype(jnp.float32)
            x = xn.astype(x_ref.dtype)

        acc_ref[...] += jnp.dot(x, w_ref[...], preferred_element_type=jnp.float32)

        @pl.when(pl.program_id(2) == pl.num_programs(2) - 1)
        def _():
            y = acc_ref[...]                        # f32 epilogue
            if has_bias:
                y = y + b_ref[...].astype(jnp.float32)
            if activation == "gelu_tanh":
                c = math.sqrt(2.0 / math.pi)
                y = 0.5 * y * (1.0 + jnp.tanh(c * (y + 0.044715 * y * y * y)))
            if has_residual:
                y = y + r_ref[...].astype(jnp.float32)
            o_ref[...] = y.astype(o_ref.dtype)

    return kernel


def linear(x, w, b=None, activation="none", residual=None, ln=None):
    """y = (LN(x)|x) @ w (+b) (+GELU) (+residual).  x:[M,K], w:[K,N].
    `ln=(gamma, beta)` fuses LayerNorm over K into the prologue (needs a
    single K tile, i.e. tk == K)."""
    M, K = x.shape
    Kw, N = w.shape
    assert Kw == K

    tm = _tile(M, 1024, 16)        # big M tile: weights streamed ~M/1024 times
    tn = _tile(N, 256, 128)
    tk = K if ln is not None else _tile(K, 1024, 128)
    assert ln is None or tk == K
    grid = (M // tm, N // tn, K // tk)

    in_specs = [pl.BlockSpec((tm, tk), lambda i, j, k: (i, k)),
                pl.BlockSpec((tk, tn), lambda i, j, k: (k, j))]
    args = [x, w]
    if ln is not None:
        g, bln = ln
        in_specs.append(pl.BlockSpec((1, tk), lambda i, j, k: (0, k)))
        in_specs.append(pl.BlockSpec((1, tk), lambda i, j, k: (0, k)))
        args += [g.reshape(1, K), bln.reshape(1, K)]
    if b is not None:
        in_specs.append(pl.BlockSpec((1, tn), lambda i, j, k: (0, j)))
        args.append(b.reshape(1, N))
    if residual is not None:
        in_specs.append(pl.BlockSpec((tm, tn), lambda i, j, k: (i, j)))
        args.append(residual)

    # TODO(synk): sweep pipeline_mode=pl.Buffered(3) on the weight spec for v5e.
    kernel = _make_linear_kernel(activation, ln is not None, b is not None,
                                 residual is not None)
    return pl.pallas_call(
        kernel,
        out_shape=jax.ShapeDtypeStruct((M, N), x.dtype),
        grid=grid,
        in_specs=in_specs,
        out_specs=pl.BlockSpec((tm, tn), lambda i, j, k: (i, j)),
        scratch_shapes=[pltpu.VMEM((tm, tn), jnp.float32)],
        compiler_params=pltpu.CompilerParams(
            dimension_semantics=("parallel", "parallel", "arbitrary"),
            vmem_limit_bytes=VMEM_LIMIT),
    )(*args)


# ----------------------- flash-style causal attention -----------------------

def _flash_attn_kernel(q_ref, k_ref, v_ref, o_ref, m_ref, l_ref, acc_ref,
                       *, n_head, scale):
    tq, C = q_ref.shape            # lane-dense (tile, C) slabs
    tk = k_ref.shape[0]
    D = C // n_head
    qi = pl.program_id(1)
    ki = pl.program_id(2)
    nk = pl.num_programs(2)

    @pl.when(ki == 0)
    def _():
        m_ref[...] = jnp.full(m_ref.shape, _NEG_INF, jnp.float32)
        l_ref[...] = jnp.zeros_like(l_ref)
        acc_ref[...] = jnp.zeros_like(acc_ref)

    def body(masked):
        # fold 1/sqrt(D) into q once per grid step (one (tq, C) multiply)
        q = (q_ref[...].astype(jnp.float32) * scale).astype(q_ref.dtype)
        k = k_ref[...]
        v = v_ref[...]
        if masked:
            row = qi * tq + lax.broadcasted_iota(jnp.int32, (tq, tk), 0)
            col = ki * tk + lax.broadcasted_iota(jnp.int32, (tq, tk), 1)
            causal = col <= row
        # TODO(synk): head-batched dot_general instead of a static unroll once
        # Mosaic handles the (tq, C)->(tq, H, D) lane-split reshape cheaply.
        for h in range(n_head):
            sl = slice(h * D, (h + 1) * D)          # static lane slice, no relayout
            s = lax.dot_general(q[:, sl], k[:, sl], (((1,), (1,)), ((), ())),
                                preferred_element_type=jnp.float32)
            if masked:
                s = jnp.where(causal, s, _NEG_INF)
            m_prev = m_ref[h]                        # (tq, 1)
            m_new = jnp.maximum(m_prev, jnp.max(s, axis=-1, keepdims=True))
            alpha = jnp.exp(m_prev - m_new)
            p = jnp.exp(s - m_new)
            l_ref[h] = alpha * l_ref[h] + jnp.sum(p, axis=-1, keepdims=True)
            acc_ref[:, sl] = alpha * acc_ref[:, sl] + jnp.dot(
                p.astype(v.dtype), v[:, sl], preferred_element_type=jnp.float32)
            m_ref[h] = m_new

    @pl.when(ki < qi)              # fully visible tile: no mask work at all
    def _():
        body(masked=False)

    @pl.when(ki == qi)             # diagonal tile: apply the causal mask
    def _():
        body(masked=True)
    # ki > qi: fully masked -> no compute (and the clamped index_map below
    # means the K/V tile was not even re-fetched).

    @pl.when(ki == nk - 1)
    def _():
        for h in range(n_head):
            sl = slice(h * D, (h + 1) * D)
            inv_l = pl.reciprocal(l_ref[h], approx=True)     # EUP slot
            acc_ref[:, sl] = acc_ref[:, sl] * inv_l
        o_ref[...] = acc_ref[...].astype(o_ref.dtype)        # one lane-dense store


def causal_attention(qkv, n_head):
    """qkv: [B, T, 3C] packed activation -> y: [B, T, C]."""
    B, T, C3 = qkv.shape
    C = C3 // 3
    D = C // n_head
    scale = 1.0 / math.sqrt(D)

    tile = 128 if T >= 128 else _round_up(T, 16)
    Tp = _round_up(T, tile)
    if Tp != T:
        qkv = jnp.pad(qkv, ((0, 0), (0, Tp - T), (0, 0)))
    nt = Tp // tile

    # last-dim block index selects the Q / K / V third of the packed 3C axis;
    # min(ki, qi) clamps future (fully causally masked) K/V tiles to the last
    # visible one so consecutive identical block indices dedup the DMA.
    q_spec = pl.BlockSpec((None, tile, C), lambda b, qi, ki: (b, qi, 0))
    k_spec = pl.BlockSpec((None, tile, C), lambda b, qi, ki: (b, jnp.minimum(ki, qi), 1))
    v_spec = pl.BlockSpec((None, tile, C), lambda b, qi, ki: (b, jnp.minimum(ki, qi), 2))
    o_spec = pl.BlockSpec((None, tile, C), lambda b, qi, ki: (b, qi, 0))

    out = pl.pallas_call(
        partial(_flash_attn_kernel, n_head=n_head, scale=scale),
        out_shape=jax.ShapeDtypeStruct((B, Tp, C), qkv.dtype),
        grid=(B, nt, nt),
        in_specs=[q_spec, k_spec, v_spec],
        out_specs=o_spec,
        scratch_shapes=[
            pltpu.VMEM((n_head, tile, 1), jnp.float32),   # running max m
            pltpu.VMEM((n_head, tile, 1), jnp.float32),   # running denom l
            pltpu.VMEM((tile, C), jnp.float32),           # lane-dense accumulator
        ],
        compiler_params=pltpu.CompilerParams(
            dimension_semantics=("parallel", "parallel", "arbitrary"),
            vmem_limit_bytes=VMEM_LIMIT),
    )(qkv, qkv, qkv)
    if Tp != T:
        out = out[:, :T]
    return out


# --------------- weight-tied lm_head with fused ln_f + cross-entropy ---------

def _lm_head_ce_kernel(x_ref, w_ref, g_ref, bln_ref, lbl_ref,
                       logits_ref, nll_ref,
                       acc_ref, m_ref, l_ref, p_ref, *, eps, vocab):
    j = pl.program_id(1)
    k = pl.program_id(2)
    nj = pl.num_programs(1)
    nk = pl.num_programs(2)

    @pl.when(k == 0)
    def _():
        acc_ref[...] = jnp.zeros_like(acc_ref)

    # fused ln_f (tk == C: full row present in the tile)
    xf = x_ref[...].astype(jnp.float32)
    mean = jnp.mean(xf, axis=-1, keepdims=True)
    xc = xf - mean
    var = jnp.mean(xc * xc, axis=-1, keepdims=True)
    xn = xc * lax.rsqrt(var + eps)
    xn = xn * g_ref[...].astype(jnp.float32) + bln_ref[...].astype(jnp.float32)
    x = xn.astype(x_ref.dtype)

    # logits tile = x @ wte_tile.T (weight-tied head; contract both last dims).
    # TODO(synk): confirm via pl.lower_as_mlir that this lowers to a native
    # transposed-RHS MXU matmul (no per-tile XLU transpose of the wte tile).
    acc_ref[...] += lax.dot_general(x, w_ref[...], (((1,), (1,)), ((), ())),
                                    preferred_element_type=jnp.float32)

    @pl.when(k == nk - 1)
    def _():
        logits = acc_ref[...]                       # (tm, tn) f32
        logits_ref[...] = logits.astype(logits_ref.dtype)

        @pl.when(j == 0)
        def _():
            m_ref[...] = jnp.full(m_ref.shape, _NEG_INF, jnp.float32)
            l_ref[...] = jnp.zeros_like(l_ref)
            p_ref[...] = jnp.zeros_like(p_ref)

        tm, tn = logits.shape
        col = j * tn + lax.broadcasted_iota(jnp.int32, (tm, tn), 1)
        lg = jnp.where(col < vocab, logits, _NEG_INF)   # mask padded vocab cols
        m_prev = m_ref[...]
        m_new = jnp.maximum(m_prev, jnp.max(lg, axis=-1, keepdims=True))
        l_ref[...] = (jnp.exp(m_prev - m_new) * l_ref[...]
                      + jnp.sum(jnp.exp(lg - m_new), axis=-1, keepdims=True))
        m_ref[...] = m_new
        p_ref[...] += jnp.sum(jnp.where(col == lbl_ref[...], logits, 0.0),
                              axis=-1, keepdims=True)

        @pl.when(j == nj - 1)
        def _():
            nll_ref[...] = m_ref[...] + jnp.log(l_ref[...]) - p_ref[...]


def lm_head_and_loss(x, wte, ln_g, ln_b, labels):
    """x:[M,C] pre-ln_f activations, wte:[V,C], labels:[M] int32.
    Returns (logits [M,V] bf16, per-row NLL [M,1] f32).  ln_f and the
    cross-entropy (online log-sum-exp across vocab tiles, f32 carry) are fused
    into the tiled lm_head, so logits are written once and never re-read."""
    M, C = x.shape
    V, Cw = wte.shape
    assert Cw == C
    tm = M if M <= 1024 else 1024
    tn = V if V <= 512 else 512
    tk = C                                 # single K tile -> ln_f fusable
    grid = (pl.cdiv(M, tm), pl.cdiv(V, tn), 1)
    labels2 = labels.reshape(M, 1).astype(jnp.int32)

    logits, nll = pl.pallas_call(
        partial(_lm_head_ce_kernel, eps=1e-5, vocab=V),
        out_shape=(jax.ShapeDtypeStruct((M, V), x.dtype),
                   jax.ShapeDtypeStruct((M, 1), jnp.float32)),
        grid=grid,
        in_specs=[
            pl.BlockSpec((tm, tk), lambda i, j, k: (i, k)),
            pl.BlockSpec((tn, tk), lambda i, j, k: (j, k)),
            pl.BlockSpec((1, tk), lambda i, j, k: (0, 0)),
            pl.BlockSpec((1, tk), lambda i, j, k: (0, 0)),
            pl.BlockSpec((tm, 1), lambda i, j, k: (i, 0)),
        ],
        out_specs=(
            pl.BlockSpec((tm, tn), lambda i, j, k: (i, j)),
            pl.BlockSpec((tm, 1), lambda i, j, k: (i, 0)),
        ),
        scratch_shapes=[
            pltpu.VMEM((tm, tn), jnp.float32),   # matmul K-accumulator
            pltpu.VMEM((tm, 1), jnp.float32),    # running max
            pltpu.VMEM((tm, 1), jnp.float32),    # running sum
            pltpu.VMEM((tm, 1), jnp.float32),    # picked (target) logit
        ],
        compiler_params=pltpu.CompilerParams(
            dimension_semantics=("parallel", "arbitrary", "arbitrary"),
            vmem_limit_bytes=VMEM_LIMIT),
    )(x, wte, ln_g.reshape(1, C), ln_b.reshape(1, C), labels2)
    return logits, nll


# ----------------------------- model (JAX glue) ------------------------------

def init_params(key, cfg):
    C, V, L, Bs = cfg["n_embd"], cfg["vocab_size"], cfg["n_layer"], cfg["block_size"]
    std = 0.02
    std_proj = 0.02 * (2 * L) ** -0.5  # NANOGPT_SCALE_INIT
    keys = iter(jax.random.split(key, 2 + 4 * L))

    def nrm(shape, s):
        return (s * jax.random.normal(next(keys), shape)).astype(DTYPE)

    params = {
        "wte": nrm((V, C), std),            # tied with lm_head
        "wpe": nrm((Bs, C), std),
        "ln_f_g": jnp.ones((C,), DTYPE),
        "ln_f_b": jnp.zeros((C,), DTYPE),
        "blocks": [],
    }
    for _ in range(L):
        params["blocks"].append({
            "ln1_g": jnp.ones((C,), DTYPE), "ln1_b": jnp.zeros((C,), DTYPE),
            "ln2_g": jnp.ones((C,), DTYPE), "ln2_b": jnp.zeros((C,), DTYPE),
            "attn_w": nrm((C, 3 * C), std), "attn_b": jnp.zeros((3 * C,), DTYPE),
            "attn_proj_w": nrm((C, C), std_proj),
            "attn_proj_b": jnp.zeros((C,), DTYPE),
            "fc_w": nrm((C, 4 * C), std), "fc_b": jnp.zeros((4 * C,), DTYPE),
            "mlp_proj_w": nrm((4 * C, C), std_proj),
            "mlp_proj_b": jnp.zeros((C,), DTYPE),
        })
    return params


def block_forward(blk, x, n_head):
    B, T, C = x.shape
    x2 = x.reshape(B * T, C)

    # attention sub-block: ln_1 fused into the qkv matmul prologue,
    # projection + residual fused into the second matmul epilogue
    qkv = linear(x2, blk["attn_w"], blk["attn_b"],
                 ln=(blk["ln1_g"], blk["ln1_b"]))            # [B*T, 3C]
    y = causal_attention(qkv.reshape(B, T, 3 * C), n_head)   # [B, T, C]
    x2 = linear(y.reshape(B * T, C), blk["attn_proj_w"], blk["attn_proj_b"],
                residual=x2)

    # MLP sub-block: ln_2 + GELU fused into fc, projection + residual fused
    h = linear(x2, blk["fc_w"], blk["fc_b"], activation="gelu_tanh",
               ln=(blk["ln2_g"], blk["ln2_b"]))
    x2 = linear(h, blk["mlp_proj_w"], blk["mlp_proj_b"], residual=x2)
    return x2.reshape(B, T, C)


def gpt_forward(params, cfg, input_ids, labels):
    # mirrors the PyTorch forward exactly (including its double label shift)
    input_ids = input_ids[:, :-1]
    labels = labels[:, 1:]
    B, T = input_ids.shape
    C, V = cfg["n_embd"], cfg["vocab_size"]
    assert T <= cfg["block_size"]

    pos_emb = params["wpe"][:T]                 # [T, C]
    tok_emb = params["wte"][input_ids]          # [B, T, C] (XLA gather)
    x = tok_emb + pos_emb[None, :, :]

    for blk in params["blocks"]:
        x = block_forward(blk, x, cfg["n_head"])

    # The reference drops the last position from both the returned logits and
    # the loss, so the lm_head only needs the first T-1 positions at all.
    xs = x[:, :T - 1, :].reshape(-1, C)                      # [B*(T-1), C]
    targets = labels[:, 1:].reshape(-1)                      # second shift
    logits_flat, nll = lm_head_and_loss(xs, params["wte"],
                                        params["ln_f_g"], params["ln_f_b"],
                                        targets)
    shift_logits = logits_flat.reshape(B, T - 1, V)
    loss = jnp.mean(nll)
    return shift_logits, loss


# --------------------------------- driver ------------------------------------

if __name__ == "__main__":
    # small, TPU-tiling-friendly config (C multiple of 128 so q/k/v slabs and
    # weight tiles are lane-dense)
    cfg = dict(block_size=32, vocab_size=256, n_layer=2, n_head=4, n_embd=128)

    key = jax.random.PRNGKey(0)
    k_params, k_ids = jax.random.split(key)
    params = init_params(k_params, cfg)

    B, T0 = 2, 17  # forward slices to T=16
    input_ids = jax.random.randint(k_ids, (B, T0), 0, cfg["vocab_size"],
                                   dtype=jnp.int32)
    labels = input_ids  # standard LM setup

    fwd = jax.jit(lambda p, ids, lab: gpt_forward(p, cfg, ids, lab))
    shift_logits, loss = fwd(params, input_ids, labels)
    jax.block_until_ready((shift_logits, loss))

    assert shift_logits.shape == (B, T0 - 2, cfg["vocab_size"])
    assert jnp.isfinite(jnp.float32(loss))
    print("KERNEL_OK")
</pallas_src>

<mosaic_0001>
module attributes {stable_mosaic.version = 11 : i64} {
  func.func @kernel(%arg0: i32, %arg1: i32, %arg2: i32, %arg3: memref<32x128xbf16, #tpu.memory_space<vmem>>, %arg4: memref<128x128xbf16, #tpu.memory_space<vmem>>, %arg5: memref<1x128xbf16, #tpu.memory_space<vmem>>, %arg6: memref<1x128xbf16, #tpu.memory_space<vmem>>, %arg7: memref<1x128xbf16, #tpu.memory_space<vmem>>, %arg8: memref<32x128xbf16, #tpu.memory_space<vmem>>, %arg9: memref<32x128xf32, #tpu.memory_space<vmem>>) attributes {dimension_semantics = [#tpu.dimension_semantics<parallel>, #tpu.dimension_semantics<parallel>, #tpu.dimension_semantics<arbitrary>], iteration_bounds = array<i64: 1, 3, 1>, scalar_prefetch = 0 : i64, scratch_operands = 1 : i64, tpu.core_type = #tpu.core_type<tc>, window_params = [{transform_indices = @transform_0, window_bounds = array<i64: 32, 128>}, {transform_indices = @transform_1, window_bounds = array<i64: 128, 128>}, {transform_indices = @transform_2, window_bounds = array<i64: 1, 128>}, {transform_indices = @transform_3, window_bounds = array<i64: 1, 128>}, {transform_indices = @transform_4, window_bounds = array<i64: 1, 128>}, {transform_indices = @transform_5, window_bounds = array<i64: 32, 128>}]} {
    %c0_i32 = arith.constant 0 : i32
    %0 = arith.cmpi eq, %arg2, %c0_i32 : i32
    %1 = arith.extui %0 : i1 to i32
    %c0_i32_0 = arith.constant 0 : i32
    %2 = arith.cmpi ne, %1, %c0_i32_0 : i32
    scf.if %2 {
      %cst_19 = arith.constant 0.000000e+00 : f32
      %38 = vector.broadcast %cst_19 : f32 to vector<32x128xf32>
      %c0_20 = arith.constant 0 : index
      %c0_21 = arith.constant 0 : index
      %39 = vector.load %arg9[%c0_20, %c0_21] : memref<32x128xf32, #tpu.memory_space<vmem>>, vector<32x128xf32>
      tpu.vector_store %arg9[%c0_20, %c0_21], %38 {strides = array<i32>} : memref<32x128xf32, #tpu.memory_space<vmem>>, vector<32x128xf32>,
    } else {
    }
    %c0 = arith.constant 0 : index
    %c0_1 = arith.constant 0 : index
    %3 = vector.load %arg3[%c0, %c0_1] : memref<32x128xbf16, #tpu.memory_space<vmem>>, vector<32x128xbf16>
    %4 = arith.extf %3 : vector<32x128xbf16> to vector<32x128xf32>
    %cst = arith.constant dense<0.000000e+00> : vector<32xf32>
    %5 = vector.multi_reduction <add>, %4, %cst [1] : vector<32x128xf32> to vector<32xf32>
    %6 = vector.shape_cast %5 : vector<32xf32> to vector<32x1xf32>
    %cst_2 = arith.constant 1.280000e+02 : f32
    %7 = vector.broadcast %cst_2 : f32 to vector<32x1xf32>
    %8 = arith.divf %6, %7 : vector<32x1xf32>
    %9 = vector.broadcast %8 : vector<32x1xf32> to vector<32x128xf32>
    %10 = arith.subf %4, %9 : vector<32x128xf32>
    %11 = arith.mulf %10, %10 : vector<32x128xf32>
    %cst_3 = arith.constant dense<0.000000e+00> : vector<32xf32>
    %12 = vector.multi_reduction <add>, %11, %cst_3 [1] : vector<32x128xf32> to vector<32xf32>
    %13 = vector.shape_cast %12 : vector<32xf32> to vector<32x1xf32>
    %cst_4 = arith.constant 1.280000e+02 : f32
    %14 = vector.broadcast %cst_4 : f32 to vector<32x1xf32>
    %15 = arith.divf %13, %14 : vector<32x1xf32>
    %cst_5 = arith.constant 9.99999974E-6 : f32
    %16 = vector.broadcast %cst_5 : f32 to vector<32x1xf32>
    %17 = arith.addf %15, %16 : vector<32x1xf32>
    %18 = math.rsqrt %17 : vector<32x1xf32>
    %19 = vector.broadcast %18 : vector<32x1xf32> to vector<32x128xf32>
    %20 = arith.mulf %10, %19 : vector<32x128xf32>
    %c0_6 = arith.constant 0 : index
    %c0_7 = arith.constant 0 : index
    %21 = vector.load %arg5[%c0_6, %c0_7] : memref<1x128xbf16, #tpu.memory_space<vmem>>, vector<1x128xbf16>
    %22 = arith.extf %21 : vector<1x128xbf16> to vector<1x128xf32>
    %23 = vector.broadcast %22 : vector<1x128xf32> to vector<32x128xf32>
    %24 = arith.mulf %20, %23 : vector<32x128xf32>
    %c0_8 = arith.constant 0 : index
    %c0_9 = arith.constant 0 : index
    %25 = vector.load %arg6[%c0_8, %c0_9] : memref<1x128xbf16, #tpu.memory_space<vmem>>, vector<1x128xbf16>
    %26 = arith.extf %25 : vector<1x128xbf16> to vector<1x128xf32>
    %27 = vector.broadcast %26 : vector<1x128xf32> to vector<32x128xf32>
    %28 = arith.addf %24, %27 : vector<32x128xf32>
    %29 = arith.truncf %28 : vector<32x128xf32> to vector<32x128xbf16>
    %c0_10 = arith.constant 0 : index
    %c0_11 = arith.constant 0 : index
    %30 = vector.load %arg9[%c0_10, %c0_11] : memref<32x128xf32, #tpu.memory_space<vmem>>, vector<32x128xf32>
    %c0_12 = arith.constant 0 : index
    %c0_13 = arith.constant 0 : index
    %31 = vector.load %arg4[%c0_12, %c0_13] : memref<128x128xbf16, #tpu.memory_space<vmem>>, vector<128x128xbf16>
    %cst_14 = arith.constant dense<0.000000e+00> : vector<32x128xf32>
    %32 = tpu.matmul %29, %31, %cst_14 {dimension_numbers = #tpu.dot_dimension_numbers<[1], [0], [0], [1], [0, 0, 1, 1], [], []>} : vector<32x128xbf16>, vector<128x128xbf16>, vector<32x128xf32> -> vector<32x128xf32>
    %33 = arith.addf %30, %32 : vector<32x128xf32>
    %c0_15 = arith.constant 0 : index
    %c0_16 = arith.constant 0 : index
    %34 = vector.load %arg9[%c0_15, %c0_16] : memref<32x128xf32, #tpu.memory_space<vmem>>, vector<32x128xf32>
    tpu.vector_store %arg9[%c0_15, %c0_16], %33 {strides = array<i32>} : memref<32x128xf32, #tpu.memory_space<vmem>>, vector<32x128xf32>,
    %c0_i32_17 = arith.constant 0 : i32
    %35 = arith.cmpi eq, %arg2, %c0_i32_17 : i32
    %36 = arith.extui %35 : i1 to i32
    %c0_i32_18 = arith.constant 0 : i32
    %37 = arith.cmpi ne, %36, %c0_i32_18 : i32
    scf.if %37 {
      %c0_19 = arith.constant 0 : index
      %c0_20 = arith.constant 0 : index
      %38 = vector.load %arg9[%c0_19, %c0_20] : memref<32x128xf32, #tpu.memory_space<vmem>>, vector<32x128xf32>
      %c0_21 = arith.constant 0 : index
      %c0_22 = arith.constant 0 : index
      %39 = vector.load %arg7[%c0_21, %c0_22] : memref<1x128xbf16, #tpu.memory_space<vmem>>, vector<1x128xbf16>
      %40 = arith.extf %39 : vector<1x128xbf16> to vector<1x128xf32>
      %41 = vector.broadcast %40 : vector<1x128xf32> to vector<32x128xf32>
      %42 = arith.addf %38, %41 : vector<32x128xf32>
      %43 = arith.truncf %42 : vector<32x128xf32> to vector<32x128xbf16>
      %c0_23 = arith.constant 0 : index
      %c0_24 = arith.constant 0 : index
      %44 = vector.load %arg8[%c0_23, %c0_24] : memref<32x128xbf16, #tpu.memory_space<vmem>>, vector<32x128xbf16>
      tpu.vector_store %arg8[%c0_23, %c0_24], %43 {strides = array<i32>} : memref<32x128xbf16, #tpu.memory_space<vmem>>, vector<32x128xbf16>,
    } else {
    }
    return
  }
  func.func @transform_0(%arg0: i32, %arg1: i32, %arg2: i32) -> (i32, i32) {
    %c0_i32 = arith.constant 0 : i32
    return %arg0, %arg2 : i32, i32
  }
  func.func @transform_1(%arg0: i32, %arg1: i32, %arg2: i32) -> (i32, i32) {
    %c0_i32 = arith.constant 0 : i32
    return %arg2, %arg1 : i32, i32
  }
  func.func @transform_2(%arg0: i32, %arg1: i32, %arg2: i32) -> (i32, i32) {
    %c0_i32 = arith.constant 0 : i32
    %c0_i32_0 = arith.constant 0 : i32
    return %c0_i32, %arg2 : i32, i32
  }
  func.func @transform_3(%arg0: i32, %arg1: i32, %arg2: i32) -> (i32, i32) {
    %c0_i32 = arith.constant 0 : i32
    %c0_i32_0 = arith.constant 0 : i32
    return %c0_i32, %arg2 : i32, i32
  }
  func.func @transform_4(%arg0: i32, %arg1: i32, %arg2: i32) -> (i32, i32) {
    %c0_i32 = arith.constant 0 : i32
    %c0_i32_0 = arith.constant 0 : i32
    return %c0_i32, %arg1 : i32, i32
  }
  func.func @transform_5(%arg0: i32, %arg1: i32, %arg2: i32) -> (i32, i32) {
    %c0_i32 = arith.constant 0 : i32
    return %arg0, %arg1 : i32, i32
  }
}

module attributes {stable_mosaic.version = 11 : i64} {
  func.func @kernel(%arg0: i32, %arg1: i32, %arg2: i32, %arg3: memref<32x128xbf16, #tpu.memory_space<vmem>>, %arg4: memref<128x128xbf16, #tpu.memory_space<vmem>>, %arg5: memref<1x128xbf16, #tpu.memory_space<vmem>>, %arg6: memref<32x128xbf16, #tpu.memory_space<vmem>>, %arg7: memref<32x128xbf16, #tpu.memory_space<vmem>>, %arg8: memref<32x128xf32, #tpu.memory_space<vmem>>) attributes {dimension_semantics = [#tpu.dimension_semantics<parallel>, #tpu.dimension_semantics<parallel>, #tpu.dimension_semantics<arbitrary>], iteration_bounds = array<i64: 1, 1, 1>, scalar_prefetch = 0 : i64, scratch_operands = 1 : i64, tpu.core_type = #tpu.core_type<tc>, window_params = [{transform_indices = @transform_0, window_bounds = array<i64: 32, 128>}, {transform_indices = @transform_1, window_bounds = array<i64: 128, 128>}, {transform_indices = @transform_2, window_bounds = array<i64: 1, 128>}, {transform_indices = @transform_3, window_bounds = array<i64: 32, 128>}, {transform_indices = @transform_4, window_bounds = array<i64: 32, 128>}]} {
    %c0_i32 = arith.constant 0 : i32
    %0 = arith.cmpi eq, %arg2, %c0_i32 : i32
    %1 = arith.extui %0 : i1 to i32
    %c0_i32_0 = arith.constant 0 : i32
    %2 = arith.cmpi ne, %1, %c0_i32_0 : i32
    scf.if %2 {
      %cst_10 = arith.constant 0.000000e+00 : f32
      %12 = vector.broadcast %cst_10 : f32 to vector<32x128xf32>
      %c0_11 = arith.constant 0 : index
      %c0_12 = arith.constant 0 : index
      %13 = vector.load %arg8[%c0_11, %c0_12] : memref<32x128xf32, #tpu.memory_space<vmem>>, vector<32x128xf32>
      tpu.vector_store %arg8[%c0_11, %c0_12], %12 {strides = array<i32>} : memref<32x128xf32, #tpu.memory_space<vmem>>, vector<32x128xf32>,
    } else {
    }
    %c0 = arith.constant 0 : index
    %c0_1 = arith.constant 0 : index
    %3 = vector.load %arg3[%c0, %c0_1] : memref<32x128xbf16, #tpu.memory_space<vmem>>, vector<32x128xbf16>
    %c0_2 = arith.constant 0 : index
    %c0_3 = arith.constant 0 : index
    %4 = vector.load %arg8[%c0_2, %c0_3] : memref<32x128xf32, #tpu.memory_space<vmem>>, vector<32x128xf32>
    %c0_4 = arith.constant 0 : index
    %c0_5 = arith.constant 0 : index
    %5 = vector.load %arg4[%c0_4, %c0_5] : memref<128x128xbf16, #tpu.memory_space<vmem>>, vector<128x128xbf16>
    %cst = arith.constant dense<0.000000e+00> : vector<32x128xf32>
    %6 = tpu.matmul %3, %5, %cst {dimension_numbers = #tpu.dot_dimension_numbers<[1], [0], [0], [1], [0, 0, 1, 1], [], []>} : vector<32x128xbf16>, vector<128x128xbf16>, vector<32x128xf32> -> vector<32x128xf32>
    %7 = arith.addf %4, %6 : vector<32x128xf32>
    %c0_6 = arith.constant 0 : index
    %c0_7 = arith.constant 0 : index
    %8 = vector.load %arg8[%c0_6, %c0_7] : memref<32x128xf32, #tpu.memory_space<vmem>>, vector<32x128xf32>
    tpu.vector_store %arg8[%c0_6, %c0_7], %7 {strides = array<i32>} : memref<32x128xf32, #tpu.memory_space<vmem>>, vector<32x128xf32>,
    %c0_i32_8 = arith.constant 0 : i32
    %9 = arith.cmpi eq, %arg2, %c0_i32_8 : i32
    %10 = arith.extui %9 : i1 to i32
    %c0_i32_9 = arith.constant 0 : i32
    %11 = arith.cmpi ne, %10, %c0_i32_9 : i32
    scf.if %11 {
      %c0_10 = arith.constant 0 : index
      %c0_11 = arith.constant 0 : index
      %12 = vector.load %arg8[%c0_10, %c0_11] : memref<32x128xf32, #tpu.memory_space<vmem>>, vector<32x128xf32>
      %c0_12 = arith.constant 0 : index
      %c0_13 = arith.constant 0 : index
      %13 = vector.load %arg5[%c0_12, %c0_13] : memref<1x128xbf16, #tpu.memory_space<vmem>>, vector<1x128xbf16>
      %14 = arith.extf %13 : vector<1x128xbf16> to vector<1x128xf32>
      %15 = vector.broadcast %14 : vector<1x128xf32> to vector<32x128xf32>
      %16 = arith.addf %12, %15 : vector<32x128xf32>
      %c0_14 = arith.constant 0 : index
      %c0_15 = arith.constant 0 : index
      %17 = vector.load %arg6[%c0_14, %c0_15] : memref<32x128xbf16, #tpu.memory_space<vmem>>, vector<32x128xbf16>
      %18 = arith.extf %17 : vector<32x128xbf16> to vector<32x128xf32>
      %19 = arith.addf %16, %18 : vector<32x128xf32>
      %20 = arith.truncf %19 : vector<32x128xf32> to vector<32x128xbf16>
      %c0_16 = arith.constant 0 : index
      %c0_17 = arith.constant 0 : index
      %21 = vector.load %arg7[%c0_16, %c0_17] : memref<32x128xbf16, #tpu.memory_space<vmem>>, vector<32x128xbf16>
      tpu.vector_store %arg7[%c0_16, %c0_17], %20 {strides = array<i32>} : memref<32x128xbf16, #tpu.memory_space<vmem>>, vector<32x128xbf16>,
    } else {
    }
    return
  }
  func.func @transform_0(%arg0: i32, %arg1: i32, %arg2: i32) -> (i32, i32) {
    %c0_i32 = arith.constant 0 : i32
    return %arg0, %arg2 : i32, i32
  }
  func.func @transform_1(%arg0: i32, %arg1: i32, %arg2: i32) -> (i32, i32) {
    %c0_i32 = arith.constant 0 : i32
    return %arg2, %arg1 : i32, i32
  }
  func.func @transform_2(%arg0: i32, %arg1: i32, %arg2: i32) -> (i32, i32) {
    %c0_i32 = arith.constant 0 : i32
    %c0_i32_0 = arith.constant 0 : i32
    return %c0_i32, %arg1 : i32, i32
  }
  func.func @transform_3(%arg0: i32, %arg1: i32, %arg2: i32) -> (i32, i32) {
    %c0_i32 = arith.constant 0 : i32
    return %arg0, %arg1 : i32, i32
  }
  func.func @transform_4(%arg0: i32, %arg1: i32, %arg2: i32) -> (i32, i32) {
    %c0_i32 = arith.constant 0 : i32
    return %arg0, %arg1 : i32, i32
  }
}

module attributes {stable_mosaic.version = 11 : i64} {
  func.func @_flash_attn_kernel(%arg0: i32, %arg1: i32, %arg2: i32, %arg3: memref<1x16x128xbf16, #tpu.memory_space<vmem>>, %arg4: memref<1x16x128xbf16, #tpu.memory_space<vmem>>, %arg5: memref<1x16x128xbf16, #tpu.memory_space<vmem>>, %arg6: memref<1x16x128xbf16, #tpu.memory_space<vmem>>, %arg7: memref<4x16x1xf32, #tpu.memory_space<vmem>>, %arg8: memref<4x16x1xf32, #tpu.memory_space<vmem>>, %arg9: memref<16x128xf32, #tpu.memory_space<vmem>>) attributes {dimension_semantics = [#tpu.dimension_semantics<parallel>, #tpu.dimension_semantics<parallel>, #tpu.dimension_semantics<arbitrary>], iteration_bounds = array<i64: 2, 1, 1>, scalar_prefetch = 0 : i64, scratch_operands = 3 : i64, tpu.core_type = #tpu.core_type<tc>, window_params = [{transform_indices = @transform_0, window_bounds = array<i64: 1, 16, 128>}, {transform_indices = @transform_1, window_bounds = array<i64: 1, 16, 128>}, {transform_indices = @transform_2, window_bounds = array<i64: 1, 16, 128>}, {transform_indices = @transform_3, window_bounds = array<i64: 1, 16, 128>}]} {
    %c0_i32 = arith.constant 0 : i32
    %0 = arith.cmpi eq, %arg2, %c0_i32 : i32
    %1 = arith.extui %0 : i1 to i32
    %c0_i32_0 = arith.constant 0 : i32
    %2 = arith.cmpi ne, %1, %c0_i32_0 : i32
    scf.if %2 {
      %cst = arith.constant -1.000000e+30 : f32
      %12 = vector.broadcast %cst : f32 to vector<4x16x1xf32>
      %c0 = arith.constant 0 : index
      %c0_5 = arith.constant 0 : index
      %c0_6 = arith.constant 0 : index
      %13 = vector.load %arg7[%c0, %c0_5, %c0_6] : memref<4x16x1xf32, #tpu.memory_space<vmem>>, vector<4x16x1xf32>
      tpu.vector_store %arg7[%c0, %c0_5, %c0_6], %12 {strides = array<i32>} : memref<4x16x1xf32, #tpu.memory_space<vmem>>, vector<4x16x1xf32>,
      %cst_7 = arith.constant 0.000000e+00 : f32
      %14 = vector.broadcast %cst_7 : f32 to vector<4x16x1xf32>
      %c0_8 = arith.constant 0 : index
      %c0_9 = arith.constant 0 : index
      %c0_10 = arith.constant 0 : index
      %15 = vector.load %arg8[%c0_8, %c0_9, %c0_10] : memref<4x16x1xf32, #tpu.memory_space<vmem>>, vector<4x16x1xf32>
      tpu.vector_store %arg8[%c0_8, %c0_9, %c0_10], %14 {strides = array<i32>} : memref<4x16x1xf32, #tpu.memory_space<vmem>>, vector<4x16x1xf32>,
      %cst_11 = arith.constant 0.000000e+00 : f32
      %16 = vector.broadcast %cst_11 : f32 to vector<16x128xf32>
      %c0_12 = arith.constant 0 : index
      %c0_13 = arith.constant 0 : index
      %17 = vector.load %arg9[%c0_12, %c0_13] : memref<16x128xf32, #tpu.memory_space<vmem>>, vector<16x128xf32>
      tpu.vector_store %arg9[%c0_12, %c0_13], %16 {strides = array<i32>} : memref<16x128xf32, #tpu.memory_space<vmem>>, vector<16x128xf32>,
    } else {
    }
    %3 = arith.cmpi slt, %arg2, %arg1 : i32
    %4 = arith.extui %3 : i1 to i32
    %c0_i32_1 = arith.constant 0 : i32
    %5 = arith.cmpi ne, %4, %c0_i32_1 : i32
    scf.if %5 {
      %c0 = arith.constant 0 : index
      %c0_5 = arith.constant 0 : index
      %c0_6 = arith.constant 0 : index
      %12 = vector.load %arg3[%c0, %c0_5, %c0_6] : memref<1x16x128xbf16, #tpu.memory_space<vmem>>, vector<1x16x128xbf16>
      %13 = vector.shape_cast %12 : vector<1x16x128xbf16> to vector<16x128xbf16>
      %14 = arith.extf %13 : vector<16x128xbf16> to vector<16x128xf32>
      %cst = arith.constant 0.176776692 : f32
      %15 = vector.broadcast %cst : f32 to vector<16x128xf32>
      %16 = arith.mulf %14, %15 : vector<16x128xf32>
      %17 = arith.truncf %16 : vector<16x128xf32> to vector<16x128xbf16>
      %c0_7 = arith.constant 0 : index
      %c0_8 = arith.constant 0 : index
      %c0_9 = arith.constant 0 : index
      %18 = vector.load %arg4[%c0_7, %c0_8, %c0_9] : memref<1x16x128xbf16, #tpu.memory_space<vmem>>, vector<1x16x128xbf16>
      %19 = vector.shape_cast %18 : vector<1x16x128xbf16> to vector<16x128xbf16>
      %c0_10 = arith.constant 0 : index
      %c0_11 = arith.constant 0 : index
      %c0_12 = arith.constant 0 : index
      %20 = vector.load %arg5[%c0_10, %c0_11, %c0_12] : memref<1x16x128xbf16, #tpu.memory_space<vmem>>, vector<1x16x128xbf16>
      %21 = vector.shape_cast %20 : vector<1x16x128xbf16> to vector<16x128xbf16>
      %22 = vector.extract_strided_slice %17 {offsets = [0, 0], sizes = [16, 32], strides = [1, 1]} : vector<16x128xbf16> to vector<16x32xbf16>
      %23 = vector.extract_strided_slice %19 {offsets = [0, 0], sizes = [16, 32], strides = [1, 1]} : vector<16x128xbf16> to vector<16x32xbf16>
      %cst_13 = arith.constant dense<0.000000e+00> : vector<16x16xf32>
      %24 = tpu.matmul %22, %23, %cst_13 {dimension_numbers = #tpu.dot_dimension_numbers<[1], [1], [0], [0], [0, 0, 1, 0], [], []>} : vector<16x32xbf16>, vector<16x32xbf16>, vector<16x16xf32> -> vector<16x16xf32>
      %c0_14 = arith.constant 0 : index
      %c0_15 = arith.constant 0 : index
      %c0_16 = arith.constant 0 : index
      %25 = vector.load %arg7[%c0_14, %c0_15, %c0_16] : memref<4x16x1xf32, #tpu.memory_space<vmem>>, vector<1x16x1xf32>
      %26 = vector.shape_cast %25 : vector<1x16x1xf32> to vector<16x1xf32>
      %cst_17 = arith.constant dense<0xFF800000> : vector<16xf32>
      %27 = vector.multi_reduction <maximumf>, %24, %cst_17 [1] : vector<16x16xf32> to vector<16xf32>
      %28 = vector.shape_cast %27 : vector<16xf32> to vector<16x1xf32>
      %29 = arith.maximumf %26, %28 : vector<16x1xf32>
      %30 = arith.subf %26, %29 : vector<16x1xf32>
      %31 = math.exp %30 : vector<16x1xf32>
      %32 = vector.broadcast %29 : vector<16x1xf32> to vector<16x16xf32>
      %33 = arith.subf %24, %32 : vector<16x16xf32>
      %34 = math.exp %33 : vector<16x16xf32>
      %c0_18 = arith.constant 0 : index
      %c0_19 = arith.constant 0 : index
      %c0_20 = arith.constant 0 : index
      %35 = vector.load %arg8[%c0_18, %c0_19, %c0_20] : memref<4x16x1xf32, #tpu.memory_space<vmem>>, vector<1x16x1xf32>
      %36 = vector.shape_cast %35 : vector<1x16x1xf32> to vector<16x1xf32>
      %37 = arith.mulf %31, %36 : vector<16x1xf32>
      %cst_21 = arith.constant dense<0.000000e+00> : vector<16xf32>
      %38 = vector.multi_reduction <add>, %34, %cst_21 [1] : vector<16x16xf32> to vector<16xf32>
      %39 = vector.shape_cast %38 : vector<16xf32> to vector<16x1xf32>
      %40 = arith.addf %37, %39 : vector<16x1xf32>
      %c0_22 = arith.constant 0 : index
      %c0_23 = arith.constant 0 : index
      %c0_24 = arith.constant 0 : index
      %41 = vector.load %arg8[%c0_22, %c0_23, %c0_24] : memref<4x16x1xf32, #tpu.memory_space<vmem>>, vector<1x16x1xf32>
      %42 = vector.shape_cast %41 : vector<1x16x1xf32> to vector<16x1xf32>
      %43 = vector.shape_cast %40 : vector<16x1xf32> to vector<1x16x1xf32>
      tpu.vector_store %arg8[%c0_22, %c0_23, %c0_24], %43 {strides = array<i32>} : memref<4x16x1xf32, #tpu.memory_space<vmem>>, vector<1x16x1xf32>,
      %c0_25 = arith.constant 0 : index
      %c0_26 = arith.constant 0 : index
      %44 = vector.load %arg9[%c0_25, %c0_26] : memref<16x128xf32, #tpu.memory_space<vmem>>, vector<16x32xf32>
      %45 = vector.broadcast %31 : vector<16x1xf32> to vector<16x32xf32>
      %46 = arith.mulf %45, %44 : vector<16x32xf32>
      %47 = arith.truncf %34 : vector<16x16xf32> to vector<16x16xbf16>
      %48 = vector.extract_strided_slice %21 {offsets = [0, 0], sizes = [16, 32], strides = [1, 1]} : vector<16x128xbf16> to vector<16x32xbf16>
      %cst_27 = arith.constant dense<0.000000e+00> : vector<16x32xf32>
      %49 = tpu.matmul %47, %48, %cst_27 {dimension_numbers = #tpu.dot_dimension_numbers<[1], [0], [0], [1], [0, 0, 1, 1], [], []>} : vector<16x16xbf16>, vector<16x32xbf16>, vector<16x32xf32> -> vector<16x32xf32>
      %50 = arith.addf %46, %49 : vector<16x32xf32>
      %c0_28 = arith.constant 0 : index
      %c0_29 = arith.constant 0 : index
      %51 = vector.load %arg9[%c0_28, %c0_29] : memref<16x128xf32, #tpu.memory_space<vmem>>, vector<16x32xf32>
      tpu.vector_store %arg9[%c0_28, %c0_29], %50 {strides = array<i32>} : memref<16x128xf32, #tpu.memory_space<vmem>>, vector<16x32xf32>,
      %c0_30 = arith.constant 0 : index
      %c0_31 = arith.constant 0 : index
      %c0_32 = arith.constant 0 : index
      %52 = vector.load %arg7[%c0_30, %c0_31, %c0_32] : memref<4x16x1xf32, #tpu.memory_space<vmem>>, vector<1x16x1xf32>
      %53 = vector.shape_cast %52 : vector<1x16x1xf32> to vector<16x1xf32>
      %54 = vector.shape_cast %29 : vector<16x1xf32> to vector<1x16x1xf32>
      tpu.vector_store %arg7[%c0_30, %c0_31, %c0_32], %54 {strides = array<i32>} : memref<4x16x1xf32, #tpu.memory_space<vmem>>, vector<1x16x1xf32>,
      %55 = vector.extract_strided_slice %17 {offsets = [0, 32], sizes = [16, 32], strides = [1, 1]} : vector<16x128xbf16> to vector<16x32xbf16>
      %56 = vector.extract_strided_slice %19 {offsets = [0, 32], sizes = [16, 32], strides = [1, 1]} : vector<16x128xbf16> to vector<16x32xbf16>
      %cst_33 = arith.constant dense<0.000000e+00> : vector<16x16xf32>
      %57 = tpu.matmul %55, %56, %cst_33 {dimension_numbers = #tpu.dot_dimension_numbers<[1], [1], [0], [0], [0, 0, 1, 0], [], []>} : vector<16x32xbf16>, vector<16x32xbf16>, vector<16x16xf32> -> vector<16x16xf32>
      %c1 = arith.constant 1 : index
      %c0_34 = arith.constant 0 : index
      %c0_35 = arith.constant 0 : index
      %58 = vector.load %arg7[%c1, %c0_34, %c0_35] : memref<4x16x1xf32, #tpu.memory_space<vmem>>, vector<1x16x1xf32>
      %59 = vector.shape_cast %58 : vector<1x16x1xf32> to vector<16x1xf32>
      %cst_36 = arith.constant dense<0xFF800000> : vector<16xf32>
      %60 = vector.multi_reduction <maximumf>, %57, %cst_36 [1] : vector<16x16xf32> to vector<16xf32>
      %61 = vector.shape_cast %60 : vector<16xf32> to vector<16x1xf32>
      %62 = arith.maximumf %59, %61 : vector<16x1xf32>
      %63 = arith.subf %59, %62 : vector<16x1xf32>
      %64 = math.exp %63 : vector<16x1xf32>
      %65 = vector.broadcast %62 : vector<16x1xf32> to vector<16x16xf32>
      %66 = arith.subf %57, %65 : vector<16x16xf32>
      %67 = math.exp %66 : vector<16x16xf32>
      %c1_37 = arith.constant 1 : index
      %c0_38 = arith.constant 0 : index
      %c0_39 = arith.constant 0 : index
      %68 = vector.load %arg8[%c1_37, %c0_38, %c0_39] : memref<4x16x1xf32, #tpu.memory_space<vmem>>, vector<1x16x1xf32>
      %69 = vector.shape_cast %68 : vector<1x16x1xf32> to vector<16x1xf32>
      %70 = arith.mulf %64, %69 : vector<16x1xf32>
      %cst_40 = arith.constant dense<0.000000e+00> : vector<16xf32>
      %71 = vector.multi_reduction <add>, %67, %cst_40 [1] : vector<16x16xf32> to vector<16xf32>
      %72 = vector.shape_cast %71 : vector<16xf32> to vector<16x1xf32>
      %73 = arith.addf %70, %72 : vector<16x1xf32>
      %c1_41 = arith.constant 1 : index
      %c0_42 = arith.constant 0 : index
      %c0_43 = arith.constant 0 : index
      %74 = vector.load %arg8[%c1_41, %c0_42, %c0_43] : memref<4x16x1xf32, #tpu.memory_space<vmem>>, vector<1x16x1xf32>
      %75 = vector.shape_cast %74 : vector<1x16x1xf32> to vector<16x1xf32>
      %76 = vector.shape_cast %73 : vector<16x1xf32> to vector<1x16x1xf32>
      tpu.vector_store %arg8[%c1_41, %c0_42, %c0_43], %76 {strides = array<i32>} : memref<4x16x1xf32, #tpu.memory_space<vmem>>, vector<1x16x1xf32>,
      %c0_44 = arith.constant 0 : index
      %c32 = arith.constant 32 : index
      %77 = vector.load %arg9[%c0_44, %c32] : memref<16x128xf32, #tpu.memory_space<vmem>>, vector<16x32xf32>
      %78 = vector.broadcast %64 : vector<16x1xf32> to vector<16x32xf32>
      %79 = arith.mulf %78, %77 : vector<16x32xf32>
      %80 = arith.truncf %67 : vector<16x16xf32> to vector<16x16xbf16>
      %81 = vector.extract_strided_slice %21 {offsets = [0, 32], sizes = [16, 32], strides = [1, 1]} : vector<16x128xbf16> to vector<16x32xbf16>
      %cst_45 = arith.constant dense<0.000000e+00> : vector<16x32xf32>
      %82 = tpu.matmul %80, %81, %cst_45 {dimension_numbers = #tpu.dot_dimension_numbers<[1], [0], [0], [1], [0, 0, 1, 1], [], []>} : vector<16x16xbf16>, vector<16x32xbf16>, vector<16x32xf32> -> vector<16x32xf32>
      %83 = arith.addf %79, %82 : vector<16x32xf32>
      %c0_46 = arith.constant 0 : index
      %c32_47 = arith.constant 32 : index
      %84 = vector.load %arg9[%c0_46, %c32_47] : memref<16x128xf32, #tpu.memory_space<vmem>>, vector<16x32xf32>
      tpu.vector_store %arg9[%c0_46, %c32_47], %83 {strides = array<i32>} : memref<16x128xf32, #tpu.memory_space<vmem>>, vector<16x32xf32>,
      %c1_48 = arith.constant 1 : index
      %c0_49 = arith.constant 0 : index
      %c0_50 = arith.constant 0 : index
      %85 = vector.load %arg7[%c1_48, %c0_49, %c0_50] : memref<4x16x1xf32, #tpu.memory_space<vmem>>, vector<1x16x1xf32>
      %86 = vector.shape_cast %85 : vector<1x16x1xf32> to vector<16x1xf32>
      %87 = vector.shape_cast %62 : vector<16x1xf32> to vector<1x16x1xf32>
      tpu.vector_store %arg7[%c1_48, %c0_49, %c0_50], %87 {strides = array<i32>} : memref<4x16x1xf32, #tpu.memory_space<vmem>>, vector<1x16x1xf32>,
      %88 = vector.extract_strided_slice %17 {offsets = [0, 64], sizes = [16, 32], strides = [1, 1]} : vector<16x128xbf16> to vector<16x32xbf16>
      %89 = vector.extract_strided_slice %19 {offsets = [0, 64], sizes = [16, 32], strides = [1, 1]} : vector<16x128xbf16> to vector<16x32xbf16>
      %cst_51 = arith.constant dense<0.000000e+00> : vector<16x16xf32>
      %90 = tpu.matmul %88, %89, %cst_51 {dimension_numbers = #tpu.dot_dimension_numbers<[1], [1], [0], [0], [0, 0, 1, 0], [], []>} : vector<16x32xbf16>, vector<16x32xbf16>, vector<16x16xf32> -> vector<16x16xf32>
      %c2 = arith.constant 2 : index
      %c0_52 = arith.constant 0 : index
      %c0_53 = arith.constant 0 : index
      %91 = vector.load %arg7[%c2, %c0_52, %c0_53] : memref<4x16x1xf32, #tpu.memory_space<vmem>>, vector<1x16x1xf32>
      %92 = vector.shape_cast %91 : vector<1x16x1xf32> to vector<16x1xf32>
      %cst_54 = arith.constant dense<0xFF800000> : vector<16xf32>
      %93 = vector.multi_reduction <maximumf>, %90, %cst_54 [1] : vector<16x16xf32> to vector<16xf32>
      %94 = vector.shape_cast %93 : vector<16xf32> to vector<16x1xf32>
      %95 = arith.maximumf %92, %94 : vector<16x1xf32>
      %96 = arith.subf %92, %95 : vector<16x1xf32>
      %97 = math.exp %96 : vector<16x1xf32>
      %98 = vector.broadcast %95 : vector<16x1xf32> to vector<16x16xf32>
      %99 = arith.subf %90, %98 : vector<16x16xf32>
      %100 = math.exp %99 : vector<16x16xf32>
      %c2_55 = arith.constant 2 : index
      %c0_56 = arith.constant 0 : index
      %c0_57 = arith.constant 0 : index
      %101 = vector.load %arg8[%c2_55, %c0_56, %c0_57] : memref<4x16x1xf32, #tpu.memory_space<vmem>>, vector<1x16x1xf32>
      %102 = vector.shape_cast %101 : vector<1x16x1xf32> to vector<16x1xf32>
      %103 = arith.mulf %97, %102 : vector<16x1xf32>
      %cst_58 = arith.constant dense<0.000000e+00> : vector<16xf32>
      %104 = vector.multi_reduction <add>, %100, %cst_58 [1] : vector<16x16xf32> to vector<16xf32>
      %105 = vector.shape_cast %104 : vector<16xf32> to vector<16x1xf32>
      %106 = arith.addf %103, %105 : vector<16x1xf32>
      %c2_59 = arith.constant 2 : index
      %c0_60 = arith.constant 0 : index
      %c0_61 = arith.constant 0 : index
      %107 = vector.load %arg8[%c2_59, %c0_60, %c0_61] : memref<4x16x1xf32, #tpu.memory_space<vmem>>, vector<1x16x1xf32>
      %108 = vector.shape_cast %107 : vector<1x16x1xf32> to vector<16x1xf32>
      %109 = vector.shape_cast %106 : vector<16x1xf32> to vector<1x16x1xf32>
      tpu.vector_store %arg8[%c2_59, %c0_60, %c0_61], %109 {strides = array<i32>} : memref<4x16x1xf32, #tpu.memory_space<vmem>>, vector<1x16x1xf32>,
      %c0_62 = arith.constant 0 : index
      %c64 = arith.constant 64 : index
      %110 = vector.load %arg9[%c0_62, %c64] : memref<16x128xf32, #tpu.memory_space<vmem>>, vector<16x32xf32>
      %111 = vector.broadcast %97 : vector<16x1xf32> to vector<16x32xf32>
      %112 = arith.mulf %111, %110 : vector<16x32xf32>
      %113 = arith.truncf %100 : vector<16x16xf32> to vector<16x16xbf16>
      %114 = vector.extract_strided_slice %21 {offsets = [0, 64], sizes = [16, 32], strides = [1, 1]} : vector<16x128xbf16> to vector<16x32xbf16>
      %cst_63 = arith.constant dense<0.000000e+00> : vector<16x32xf32>
      %115 = tpu.matmul %113, %114, %cst_63 {dimension_numbers = #tpu.dot_dimension_numbers<[1], [0], [0], [1], [0, 0, 1, 1], [], []>} : vector<16x16xbf16>, vector<16x32xbf16>, vector<16x32xf32> -> vector<16x32xf32>
      %116 = arith.addf %112, %115 : vector<16x32xf32>
      %c0_64 = arith.constant 0 : index
      %c64_65 = arith.constant 64 : index
      %117 = vector.load %arg9[%c0_64, %c64_65] : memref<16x128xf32, #tpu.memory_space<vmem>>, vector<16x32xf32>
      tpu.vector_store %arg9[%c0_64, %c64_65], %116 {strides = array<i32>} : memref<16x128xf32, #tpu.memory_space<vmem>>, vector<16x32xf32>,
      %c2_66 = arith.constant 2 : index
      %c0_67 = arith.constant 0 : index
      %c0_68 = arith.constant 0 : index
      %118 = vector.load %arg7[%c2_66, %c0_67, %c0_68] : memref<4x16x1xf32, #tpu.memory_space<vmem>>, vector<1x16x1xf32>
      %119 = vector.shape_cast %118 : vector<1x16x1xf32> to vector<16x1xf32>
      %120 = vector.shape_cast %95 : vector<16x1xf32> to vector<1x16x1xf32>
      tpu.vector_store %arg7[%c2_66, %c0_67, %c0_68], %120 {strides = array<i32>} : memref<4x16x1xf32, #tpu.memory_space<vmem>>, vector<1x16x1xf32>,
      %121 = vector.extract_strided_slice %17 {offsets = [0, 96], sizes = [16, 32], strides = [1, 1]} : vector<16x128xbf16> to vector<16x32xbf16>
      %122 = vector.extract_strided_slice %19 {offsets = [0, 96], sizes = [16, 32], strides = [1, 1]} : vector<16x128xbf16> to vector<16x32xbf16>
      %cst_69 = arith.constant dense<0.000000e+00> : vector<16x16xf32>
      %123 = tpu.matmul %121, %122, %cst_69 {dimension_numbers = #tpu.dot_dimension_numbers<[1], [1], [0], [0], [0, 0, 1, 0], [], []>} : vector<16x32xbf16>, vector<16x32xbf16>, vector<16x16xf32> -> vector<16x16xf32>
      %c3 = arith.constant 3 : index
      %c0_70 = arith.constant 0 : index
      %c0_71 = arith.constant 0 : index
      %124 = vector.load %arg7[%c3, %c0_70, %c0_71] : memref<4x16x1xf32, #tpu.memory_space<vmem>>, vector<1x16x1xf32>
      %125 = vector.shape_cast %124 : vector<1x16x1xf32> to vector<16x1xf32>
      %cst_72 = arith.constant dense<0xFF800000> : vector<16xf32>
      %126 = vector.multi_reduction <maximumf>, %123, %cst_72 [1] : vector<16x16xf32> to vector<16xf32>
      %127 = vector.shape_cast %126 : vector<16xf32> to vector<16x1xf32>
      %128 = arith.maximumf %125, %127 : vector<16x1xf32>
      %129 = arith.subf %125, %128 : vector<16x1xf32>
      %130 = math.exp %129 : vector<16x1xf32>
      %131 = vector.broadcast %128 : vector<16x1xf32> to vector<16x16xf32>
      %132 = arith.subf %123, %131 : vector<16x16xf32>
      %133 = math.exp %132 : vector<16x16xf32>
      %c3_73 = arith.constant 3 : index
      %c0_74 = arith.constant 0 : index
      %c0_75 = arith.constant 0 : index
      %134 = vector.load %arg8[%c3_73, %c0_74, %c0_75] : memref<4x16x1xf32, #tpu.memory_space<vmem>>, vector<1x16x1xf32>
      %135 = vector.shape_cast %134 : vector<1x16x1xf32> to vector<16x1xf32>
      %136 = arith.mulf %130, %135 : vector<16x1xf32>
      %cst_76 = arith.constant dense<0.000000e+00> : vector<16xf32>
      %137 = vector.multi_reduction <add>, %133, %cst_76 [1] : vector<16x16xf32> to vector<16xf32>
      %138 = vector.shape_cast %137 : vector<16xf32> to vector<16x1xf32>
      %139 = arith.addf %136, %138 : vector<16x1xf32>
      %c3_77 = arith.constant 3 : index
      %c0_78 = arith.constant 0 : index
      %c0_79 = arith.constant 0 : index
      %140 = vector.load %arg8[%c3_77, %c0_78, %c0_79] : memref<4x16x1xf32, #tpu.memory_space<vmem>>, vector<1x16x1xf32>
      %141 = vector.shape_cast %140 : vector<1x16x1xf32> to vector<16x1xf32>
      %142 = vector.shape_cast %139 : vector<16x1xf32> to vector<1x16x1xf32>
      tpu.vector_store %arg8[%c3_77, %c0_78, %c0_79], %142 {strides = array<i32>} : memref<4x16x1xf32, #tpu.memory_space<vmem>>, vector<1x16x1xf32>,
      %c0_80 = arith.constant 0 : index
      %c96 = arith.constant 96 : index
      %143 = vector.load %arg9[%c0_80, %c96] : memref<16x128xf32, #tpu.memory_space<vmem>>, vector<16x32xf32>
      %144 = vector.broadcast %130 : vector<16x1xf32> to vector<16x32xf32>
      %145 = arith.mulf %144, %143 : vector<16x32xf32>
      %146 = arith.truncf %133 : vector<16x16xf32> to vector<16x16xbf16>
      %147 = vector.extract_strided_slice %21 {offsets = [0, 96], sizes = [16, 32], strides = [1, 1]} : vector<16x128xbf16> to vector<16x32xbf16>
      %cst_81 = arith.constant dense<0.000000e+00> : vector<16x32xf32>
      %148 = tpu.matmul %146, %147, %cst_81 {dimension_numbers = #tpu.dot_dimension_numbers<[1], [0], [0], [1], [0, 0, 1, 1], [], []>} : vector<16x16xbf16>, vector<16x32xbf16>, vector<16x32xf32> -> vector<16x32xf32>
      %149 = arith.addf %145, %148 : vector<16x32xf32>
      %c0_82 = arith.constant 0 : index
      %c96_83 = arith.constant 96 : index
      %150 = vector.load %arg9[%c0_82, %c96_83] : memref<16x128xf32, #tpu.memory_space<vmem>>, vector<16x32xf32>
      tpu.vector_store %arg9[%c0_82, %c96_83], %149 {strides = array<i32>} : memref<16x128xf32, #tpu.memory_space<vmem>>, vector<16x32xf32>,
      %c3_84 = arith.constant 3 : index
      %c0_85 = arith.constant 0 : index
      %c0_86 = arith.constant 0 : index
      %151 = vector.load %arg7[%c3_84, %c0_85, %c0_86] : memref<4x16x1xf32, #tpu.memory_space<vmem>>, vector<1x16x1xf32>
      %152 = vector.shape_cast %151 : vector<1x16x1xf32> to vector<16x1xf32>
      %153 = vector.shape_cast %128 : vector<16x1xf32> to vector<1x16x1xf32>
      tpu.vector_store %arg7[%c3_84, %c0_85, %c0_86], %153 {strides = array<i32>} : memref<4x16x1xf32, #tpu.memory_space<vmem>>, vector<1x16x1xf32>,
    } else {
    }
    %6 = arith.cmpi eq, %arg2, %arg1 : i32
    %7 = arith.extui %6 : i1 to i32
    %c0_i32_2 = arith.constant 0 : i32
    %8 = arith.cmpi ne, %7, %c0_i32_2 : i32
    scf.if %8 {
      %c0 = arith.constant 0 : index
      %c0_5 = arith.constant 0 : index
      %c0_6 = arith.constant 0 : index
      %12 = vector.load %arg3[%c0, %c0_5, %c0_6] : memref<1x16x128xbf16, #tpu.memory_space<vmem>>, vector<1x16x128xbf16>
      %13 = vector.shape_cast %12 : vector<1x16x128xbf16> to vector<16x128xbf16>
      %14 = arith.extf %13 : vector<16x128xbf16> to vector<16x128xf32>
      %cst = arith.constant 0.176776692 : f32
      %15 = vector.broadcast %cst : f32 to vector<16x128xf32>
      %16 = arith.mulf %14, %15 : vector<16x128xf32>
      %17 = arith.truncf %16 : vector<16x128xf32> to vector<16x128xbf16>
      %c0_7 = arith.constant 0 : index
      %c0_8 = arith.constant 0 : index
      %c0_9 = arith.constant 0 : index
      %18 = vector.load %arg4[%c0_7, %c0_8, %c0_9] : memref<1x16x128xbf16, #tpu.memory_space<vmem>>, vector<1x16x128xbf16>
      %19 = vector.shape_cast %18 : vector<1x16x128xbf16> to vector<16x128xbf16>
      %c0_10 = arith.constant 0 : index
      %c0_11 = arith.constant 0 : index
      %c0_12 = arith.constant 0 : index
      %20 = vector.load %arg5[%c0_10, %c0_11, %c0_12] : memref<1x16x128xbf16, #tpu.memory_space<vmem>>, vector<1x16x128xbf16>
      %21 = vector.shape_cast %20 : vector<1x16x128xbf16> to vector<16x128xbf16>
      %c16_i32 = arith.constant 16 : i32
      %22 = arith.muli %arg1, %c16_i32 : i32
      %23 = tpu.iota {dimensions = array<i32: 0>} : vector<16x16xi32>
      %24 = vector.broadcast %22 : i32 to vector<16x16xi32>
      %25 = arith.addi %24, %23 : vector<16x16xi32>
      %c16_i32_13 = arith.constant 16 : i32
      %26 = arith.muli %arg2, %c16_i32_13 : i32
      %27 = tpu.iota {dimensions = array<i32: 1>} : vector<16x16xi32>
      %28 = vector.broadcast %26 : i32 to vector<16x16xi32>
      %29 = arith.addi %28, %27 : vector<16x16xi32>
      %30 = arith.cmpi sle, %29, %25 : vector<16x16xi32>
      %31 = vector.extract_strided_slice %17 {offsets = [0, 0], sizes = [16, 32], strides = [1, 1]} : vector<16x128xbf16> to vector<16x32xbf16>
      %32 = vector.extract_strided_slice %19 {offsets = [0, 0], sizes = [16, 32], strides = [1, 1]} : vector<16x128xbf16> to vector<16x32xbf16>
      %cst_14 = arith.constant dense<0.000000e+00> : vector<16x16xf32>
      %33 = tpu.matmul %31, %32, %cst_14 {dimension_numbers = #tpu.dot_dimension_numbers<[1], [1], [0], [0], [0, 0, 1, 0], [], []>} : vector<16x32xbf16>, vector<16x32xbf16>, vector<16x16xf32> -> vector<16x16xf32>
      %cst_15 = arith.constant -1.000000e+30 : f32
      %34 = vector.broadcast %cst_15 : f32 to vector<16x16xf32>
      %35 = arith.select %30, %33, %34 : vector<16x16xi1>, vector<16x16xf32>
      %c0_16 = arith.constant 0 : index
      %c0_17 = arith.constant 0 : index
      %c0_18 = arith.constant 0 : index
      %36 = vector.load %arg7[%c0_16, %c0_17, %c0_18] : memref<4x16x1xf32, #tpu.memory_space<vmem>>, vector<1x16x1xf32>
      %37 = vector.shape_cast %36 : vector<1x16x1xf32> to vector<16x1xf32>
      %cst_19 = arith.constant dense<0xFF800000> : vector<16xf32>
      %38 = vector.multi_reduction <maximumf>, %35, %cst_19 [1] : vector<16x16xf32> to vector<16xf32>
      %39 = vector.shape_cast %38 : vector<16xf32> to vector<16x1xf32>
      %40 = arith.maximumf %37, %39 : vector<16x1xf32>
      %41 = arith.subf %37, %40 : vector<16x1xf32>
      %42 = math.exp %41 : vector<16x1xf32>
      %43 = vector.broadcast %40 : vector<16x1xf32> to vector<16x16xf32>
      %44 = arith.subf %35, %43 : vector<16x16xf32>
      %45 = math.exp %44 : vector<16x16xf32>
      %c0_20 = arith.constant 0 : index
      %c0_21 = arith.constant 0 : index
      %c0_22 = arith.constant 0 : index
      %46 = vector.load %arg8[%c0_20, %c0_21, %c0_22] : memref<4x16x1xf32, #tpu.memory_space<vmem>>, vector<1x16x1xf32>
      %47 = vector.shape_cast %46 : vector<1x16x1xf32> to vector<16x1xf32>
      %48 = arith.mulf %42, %47 : vector<16x1xf32>
      %cst_23 = arith.constant dense<0.000000e+00> : vector<16xf32>
      %49 = vector.multi_reduction <add>, %45, %cst_23 [1] : vector<16x16xf32> to vector<16xf32>
      %50 = vector.shape_cast %49 : vector<16xf32> to vector<16x1xf32>
      %51 = arith.addf %48, %50 : vector<16x1xf32>
      %c0_24 = arith.constant 0 : index
      %c0_25 = arith.constant 0 : index
      %c0_26 = arith.constant 0 : index
      %52 = vector.load %arg8[%c0_24, %c0_25, %c0_26] : memref<4x16x1xf32, #tpu.memory_space<vmem>>, vector<1x16x1xf32>
      %53 = vector.shape_cast %52 : vector<1x16x1xf32> to vector<16x1xf32>
      %54 = vector.shape_cast %51 : vector<16x1xf32> to vector<1x16x1xf32>
      tpu.vector_store %arg8[%c0_24, %c0_25, %c0_26], %54 {strides = array<i32>} : memref<4x16x1xf32, #tpu.memory_space<vmem>>, vector<1x16x1xf32>,
      %c0_27 = arith.constant 0 : index
      %c0_28 = arith.constant 0 : index
      %55 = vector.load %arg9[%c0_27, %c0_28] : memref<16x128xf32, #tpu.memory_space<vmem>>, vector<16x32xf32>
      %56 = vector.broadcast %42 : vector<16x1xf32> to vector<16x32xf32>
      %57 = arith.mulf %56, %55 : vector<16x32xf32>
      %58 = arith.truncf %45 : vector<16x16xf32> to vector<16x16xbf16>
      %59 = vector.extract_strided_slice %21 {offsets = [0, 0], sizes = [16, 32], strides = [1, 1]} : vector<16x128xbf16> to vector<16x32xbf16>
      %cst_29 = arith.constant dense<0.000000e+00> : vector<16x32xf32>
      %60 = tpu.matmul %58, %59, %cst_29 {dimension_numbers = #tpu.dot_dimension_numbers<[1], [0], [0], [1], [0, 0, 1, 1], [], []>} : vector<16x16xbf16>, vector<16x32xbf16>, vector<16x32xf32> -> vector<16x32xf32>
      %61 = arith.addf %57, %60 : vector<16x32xf32>
      %c0_30 = arith.constant 0 : index
      %c0_31 = arith.constant 0 : index
      %62 = vector.load %arg9[%c0_30, %c0_31] : memref<16x128xf32, #tpu.memory_space<vmem>>, vector<16x32xf32>
      tpu.vector_store %arg9[%c0_30, %c0_31], %61 {strides = array<i32>} : memref<16x128xf32, #tpu.memory_space<vmem>>, vector<16x32xf32>,
      %c0_32 = arith.constant 0 : index
      %c0_33 = arith.constant 0 : index
      %c0_34 = arith.constant 0 : index
      %63 = vector.load %arg7[%c0_32, %c0_33, %c0_34] : memref<4x16x1xf32, #tpu.memory_space<vmem>>, vector<1x16x1xf32>
      %64 = vector.shape_cast %63 : vector<1x16x1xf32> to vector<16x1xf32>
      %65 = vector.shape_cast %40 : vector<16x1xf32> to vector<1x16x1xf32>
      tpu.vector_store %arg7[%c0_32, %c0_33, %c0_34], %65 {strides = array<i32>} : memref<4x16x1xf32, #tpu.memory_space<vmem>>, vector<1x16x1xf32>,
      %66 = vector.extract_strided_slice %17 {offsets = [0, 32], sizes = [16, 32], strides = [1, 1]} : vector<16x128xbf16> to vector<16x32xbf16>
      %67 = vector.extract_strided_slice %19 {offsets = [0, 32], sizes = [16, 32], strides = [1, 1]} : vector<16x128xbf16> to vector<16x32xbf16>
      %cst_35 = arith.constant dense<0.000000e+00> : vector<16x16xf32>
      %68 = tpu.matmul %66, %67, %cst_35 {dimension_numbers = #tpu.dot_dimension_numbers<[1], [1], [0], [0], [0, 0, 1, 0], [], []>} : vector<16x32xbf16>, vector<16x32xbf16>, vector<16x16xf32> -> vector<16x16xf32>
      %cst_36 = arith.constant -1.000000e+30 : f32
      %69 = vector.broadcast %cst_36 : f32 to vector<16x16xf32>
      %70 = arith.select %30, %68, %69 : vector<16x16xi1>, vector<16x16xf32>
      %c1 = arith.constant 1 : index
      %c0_37 = arith.constant 0 : index
      %c0_38 = arith.constant 0 : index
      %71 = vector.load %arg7[%c1, %c0_37, %c0_38] : memref<4x16x1xf32, #tpu.memory_space<vmem>>, vector<1x16x1xf32>
      %72 = vector.shape_cast %71 : vector<1x16x1xf32> to vector<16x1xf32>
      %cst_39 = arith.constant dense<0xFF800000> : vector<16xf32>
      %73 = vector.multi_reduction <maximumf>, %70, %cst_39 [1] : vector<16x16xf32> to vector<16xf32>
      %74 = vector.shape_cast %73 : vector<16xf32> to vector<16x1xf32>
      %75 = arith.maximumf %72, %74 : vector<16x1xf32>
      %76 = arith.subf %72, %75 : vector<16x1xf32>
      %77 = math.exp %76 : vector<16x1xf32>
      %78 = vector.broadcast %75 : vector<16x1xf32> to vector<16x16xf32>
      %79 = arith.subf %70, %78 : vector<16x16xf32>
      %80 = math.exp %79 : vector<16x16xf32>
      %c1_40 = arith.constant 1 : index
      %c0_41 = arith.constant 0 : index
      %c0_42 = arith.constant 0 : index
      %81 = vector.load %arg8[%c1_40, %c0_41, %c0_42] : memref<4x16x1xf32, #tpu.memory_space<vmem>>, vector<1x16x1xf32>
      %82 = vector.shape_cast %81 : vector<1x16x1xf32> to vector<16x1xf32>
      %83 = arith.mulf %77, %82 : vector<16x1xf32>
      %cst_43 = arith.constant dense<0.000000e+00> : vector<16xf32>
      %84 = vector.multi_reduction <add>, %80, %cst_43 [1] : vector<16x16xf32> to vector<16xf32>
      %85 = vector.shape_cast %84 : vector<16xf32> to vector<16x1xf32>
      %86 = arith.addf %83, %85 : vector<16x1xf32>
      %c1_44 = arith.constant 1 : index
      %c0_45 = arith.constant 0 : index
      %c0_46 = arith.constant 0 : index
      %87 = vector.load %arg8[%c1_44, %c0_45, %c0_46] : memref<4x16x1xf32, #tpu.memory_space<vmem>>, vector<1x16x1xf32>
      %88 = vector.shape_cast %87 : vector<1x16x1xf32> to vector<16x1xf32>
      %89 = vector.shape_cast %86 : vector<16x1xf32> to vector<1x16x1xf32>
      tpu.vector_store %arg8[%c1_44, %c0_45, %c0_46], %89 {strides = array<i32>} : memref<4x16x1xf32, #tpu.memory_space<vmem>>, vector<1x16x1xf32>,
      %c0_47 = arith.constant 0 : index
      %c32 = arith.constant 32 : index
      %90 = vector.load %arg9[%c0_47, %c32] : memref<16x128xf32, #tpu.memory_space<vmem>>, vector<16x32xf32>
      %91 = vector.broadcast %77 : vector<16x1xf32> to vector<16x32xf32>
      %92 = arith.mulf %91, %90 : vector<16x32xf32>
      %93 = arith.truncf %80 : vector<16x16xf32> to vector<16x16xbf16>
      %94 = vector.extract_strided_slice %21 {offsets = [0, 32], sizes = [16, 32], strides = [1, 1]} : vector<16x128xbf16> to vector<16x32xbf16>
      %cst_48 = arith.constant dense<0.000000e+00> : vector<16x32xf32>
      %95 = tpu.matmul %93, %94, %cst_48 {dimension_numbers = #tpu.dot_dimension_numbers<[1], [0], [0], [1], [0, 0, 1, 1], [], []>} : vector<16x16xbf16>, vector<16x32xbf16>, vector<16x32xf32> -> vector<16x32xf32>
      %96 = arith.addf %92, %95 : vector<16x32xf32>
      %c0_49 = arith.constant 0 : index
      %c32_50 = arith.constant 32 : index
      %97 = vector.load %arg9[%c0_49, %c32_50] : memref<16x128xf32, #tpu.memory_space<vmem>>, vector<16x32xf32>
      tpu.vector_store %arg9[%c0_49, %c32_50], %96 {strides = array<i32>} : memref<16x128xf32, #tpu.memory_space<vmem>>, vector<16x32xf32>,
      %c1_51 = arith.constant 1 : index
      %c0_52 = arith.constant 0 : index
      %c0_53 = arith.constant 0 : index
      %98 = vector.load %arg7[%c1_51, %c0_52, %c0_53] : memref<4x16x1xf32, #tpu.memory_space<vmem>>, vector<1x16x1xf32>
      %99 = vector.shape_cast %98 : vector<1x16x1xf32> to vector<16x1xf32>
      %100 = vector.shape_cast %75 : vector<16x1xf32> to vector<1x16x1xf32>
      tpu.vector_store %arg7[%c1_51, %c0_52, %c0_53], %100 {strides = array<i32>} : memref<4x16x1xf32, #tpu.memory_space<vmem>>, vector<1x16x1xf32>,
      %101 = vector.extract_strided_slice %17 {offsets = [0, 64], sizes = [16, 32], strides = [1, 1]} : vector<16x128xbf16> to vector<16x32xbf16>
      %102 = vector.extract_strided_slice %19 {offsets = [0, 64], sizes = [16, 32], strides = [1, 1]} : vector<16x128xbf16> to vector<16x32xbf16>
      %cst_54 = arith.constant dense<0.000000e+00> : vector<16x16xf32>
      %103 = tpu.matmul %101, %102, %cst_54 {dimension_numbers = #tpu.dot_dimension_numbers<[1], [1], [0], [0], [0, 0, 1, 0], [], []>} : vector<16x32xbf16>, vector<16x32xbf16>, vector<16x16xf32> -> vector<16x16xf32>
      %cst_55 = arith.constant -1.000000e+30 : f32
      %104 = vector.broadcast %cst_55 : f32 to vector<16x16xf32>
      %105 = arith.select %30, %103, %104 : vector<16x16xi1>, vector<16x16xf32>
      %c2 = arith.constant 2 : index
      %c0_56 = arith.constant 0 : index
      %c0_57 = arith.constant 0 : index
      %106 = vector.load %arg7[%c2, %c0_56, %c0_57] : memref<4x16x1xf32, #tpu.memory_space<vmem>>, vector<1x16x1xf32>
      %107 = vector.shape_cast %106 : vector<1x16x1xf32> to vector<16x1xf32>
      %cst_58 = arith.constant dense<0xFF800000> : vector<16xf32>
      %108 = vector.multi_reduction <maximumf>, %105, %cst_58 [1] : vector<16x16xf32> to vector<16xf32>
      %109 = vector.shape_cast %108 : vector<16xf32> to vector<16x1xf32>
      %110 = arith.maximumf %107, %109 : vector<16x1xf32>
      %111 = arith.subf %107, %110 : vector<16x1xf32>
      %112 = math.exp %111 : vector<16x1xf32>
      %113 = vector.broadcast %110 : vector<16x1xf32> to vector<16x16xf32>
      %114 = arith.subf %105, %113 : vector<16x16xf32>
      %115 = math.exp %114 : vector<16x16xf32>
      %c2_59 = arith.constant 2 : index
      %c0_60 = arith.constant 0 : index
      %c0_61 = arith.constant 0 : index
      %116 = vector.load %arg8[%c2_59, %c0_60, %c0_61] : memref<4x16x1xf32, #tpu.memory_space<vmem>>, vector<1x16x1xf32>
      %117 = vector.shape_cast %116 : vector<1x16x1xf32> to vector<16x1xf32>
      %118 = arith.mulf %112, %117 : vector<16x1xf32>
      %cst_62 = arith.constant dense<0.000000e+00> : vector<16xf32>
      %119 = vector.multi_reduction <add>, %115, %cst_62 [1] : vector<16x16xf32> to vector<16xf32>
      %120 = vector.shape_cast %119 : vector<16xf32> to vector<16x1xf32>
      %121 = arith.addf %118, %120 : vector<16x1xf32>
      %c2_63 = arith.constant 2 : index
      %c0_64 = arith.constant 0 : index
      %c0_65 = arith.constant 0 : index
      %122 = vector.load %arg8[%c2_63, %c0_64, %c0_65] : memref<4x16x1xf32, #tpu.memory_space<vmem>>, vector<1x16x1xf32>
      %123 = vector.shape_cast %122 : vector<1x16x1xf32> to vector<16x1xf32>
      %124 = vector.shape_cast %121 : vector<16x1xf32> to vector<1x16x1xf32>
      tpu.vector_store %arg8[%c2_63, %c0_64, %c0_65], %124 {strides = array<i32>} : memref<4x16x1xf32, #tpu.memory_space<vmem>>, vector<1x16x1xf32>,
      %c0_66 = arith.constant 0 : index
      %c64 = arith.constant 64 : index
      %125 = vector.load %arg9[%c0_66, %c64] : memref<16x128xf32, #tpu.memory_space<vmem>>, vector<16x32xf32>
      %126 = vector.broadcast %112 : vector<16x1xf32> to vector<16x32xf32>
      %127 = arith.mulf %126, %125 : vector<16x32xf32>
      %128 = arith.truncf %115 : vector<16x16xf32> to vector<16x16xbf16>
      %129 = vector.extract_strided_slice %21 {offsets = [0, 64], sizes = [16, 32], strides = [1, 1]} : vector<16x128xbf16> to vector<16x32xbf16>
      %cst_67 = arith.constant dense<0.000000e+00> : vector<16x32xf32>
      %130 = tpu.matmul %128, %129, %cst_67 {dimension_numbers = #tpu.dot_dimension_numbers<[1], [0], [0], [1], [0, 0, 1, 1], [], []>} : vector<16x16xbf16>, vector<16x32xbf16>, vector<16x32xf32> -> vector<16x32xf32>
      %131 = arith.addf %127, %130 : vector<16x32xf32>
      %c0_68 = arith.constant 0 : index
      %c64_69 = arith.constant 64 : index
      %132 = vector.load %arg9[%c0_68, %c64_69] : memref<16x128xf32, #tpu.memory_space<vmem>>, vector<16x32xf32>
      tpu.vector_store %arg9[%c0_68, %c64_69], %131 {strides = array<i32>} : memref<16x128xf32, #tpu.memory_space<vmem>>, vector<16x32xf32>,
      %c2_70 = arith.constant 2 : index
      %c0_71 = arith.constant 0 : index
      %c0_72 = arith.constant 0 : index
      %133 = vector.load %arg7[%c2_70, %c0_71, %c0_72] : memref<4x16x1xf32, #tpu.memory_space<vmem>>, vector<1x16x1xf32>
      %134 = vector.shape_cast %133 : vector<1x16x1xf32> to vector<16x1xf32>
      %135 = vector.shape_cast %110 : vector<16x1xf32> to vector<1x16x1xf32>
      tpu.vector_store %arg7[%c2_70, %c0_71, %c0_72], %135 {strides = array<i32>} : memref<4x16x1xf32, #tpu.memory_space<vmem>>, vector<1x16x1xf32>,
      %136 = vector.extract_strided_slice %17 {offsets = [0, 96], sizes = [16, 32], strides = [1, 1]} : vector<16x128xbf16> to vector<16x32xbf16>
      %137 = vector.extract_strided_slice %19 {offsets = [0, 96], sizes = [16, 32], strides = [1, 1]} : vector<16x128xbf16> to vector<16x32xbf16>
      %cst_73 = arith.constant dense<0.000000e+00> : vector<16x16xf32>
      %138 = tpu.matmul %136, %137, %cst_73 {dimension_numbers = #tpu.dot_dimension_numbers<[1], [1], [0], [0], [0, 0, 1, 0], [], []>} : vector<16x32xbf16>, vector<16x32xbf16>, vector<16x16xf32> -> vector<16x16xf32>
      %cst_74 = arith.constant -1.000000e+30 : f32
      %139 = vector.broadcast %cst_74 : f32 to vector<16x16xf32>
      %140 = arith.select %30, %138, %139 : vector<16x16xi1>, vector<16x16xf32>
      %c3 = arith.constant 3 : index
      %c0_75 = arith.constant 0 : index
      %c0_76 = arith.constant 0 : index
      %141 = vector.load %arg7[%c3, %c0_75, %c0_76] : memref<4x16x1xf32, #tpu.memory_space<vmem>>, vector<1x16x1xf32>
      %142 = vector.shape_cast %141 : vector<1x16x1xf32> to vector<16x1xf32>
      %cst_77 = arith.constant dense<0xFF800000> : vector<16xf32>
      %143 = vector.multi_reduction <maximumf>, %140, %cst_77 [1] : vector<16x16xf32> to vector<16xf32>
      %144 = vector.shape_cast %143 : vector<16xf32> to vector<16x1xf32>
      %145 = arith.maximumf %142, %144 : vector<16x1xf32>
      %146 = arith.subf %142, %145 : vector<16x1xf32>
      %147 = math.exp %146 : vector<16x1xf32>
      %148 = vector.broadcast %145 : vector<16x1xf32> to vector<16x16xf32>
      %149 = arith.subf %140, %148 : vector<16x16xf32>
      %150 = math.exp %149 : vector<16x16xf32>
      %c3_78 = arith.constant 3 : index
      %c0_79 = arith.constant 0 : index
      %c0_80 = arith.constant 0 : index
      %151 = vector.load %arg8[%c3_78, %c0_79, %c0_80] : memref<4x16x1xf32, #tpu.memory_space<vmem>>, vector<1x16x1xf32>
      %152 = vector.shape_cast %151 : vector<1x16x1xf32> to vector<16x1xf32>
      %153 = arith.mulf %147, %152 : vector<16x1xf32>
      %cst_81 = arith.constant dense<0.000000e+00> : vector<16xf32>
      %154 = vector.multi_reduction <add>, %150, %cst_81 [1] : vector<16x16xf32> to vector<16xf32>
      %155 = vector.shape_cast %154 : vector<16xf32> to vector<16x1xf32>
      %156 = arith.addf %153, %155 : vector<16x1xf32>
      %c3_82 = arith.constant 3 : index
      %c0_83 = arith.constant 0 : index
      %c0_84 = arith.constant 0 : index
      %157 = vector.load %arg8[%c3_82, %c0_83, %c0_84] : memref<4x16x1xf32, #tpu.memory_space<vmem>>, vector<1x16x1xf32>
      %158 = vector.shape_cast %157 : vector<1x16x1xf32> to vector<16x1xf32>
      %159 = vector.shape_cast %156 : vector<16x1xf32> to vector<1x16x1xf32>
      tpu.vector_store %arg8[%c3_82, %c0_83, %c0_84], %159 {strides = array<i32>} : memref<4x16x1xf32, #tpu.memory_space<vmem>>, vector<1x16x1xf32>,
      %c0_85 = arith.constant 0 : index
      %c96 = arith.constant 96 : index
      %160 = vector.load %arg9[%c0_85, %c96] : memref<16x128xf32, #tpu.memory_space<vmem>>, vector<16x32xf32>
      %161 = vector.broadcast %147 : vector<16x1xf32> to vector<16x32xf32>
      %162 = arith.mulf %161, %160 : vector<16x32xf32>
      %163 = arith.truncf %150 : vector<16x16xf32> to vector<16x16xbf16>
      %164 = vector.extract_strided_slice %21 {offsets = [0, 96], sizes = [16, 32], strides = [1, 1]} : vector<16x128xbf16> to vector<16x32xbf16>
      %cst_86 = arith.constant dense<0.000000e+00> : vector<16x32xf32>
      %165 = tpu.matmul %163, %164, %cst_86 {dimension_numbers = #tpu.dot_dimension_numbers<[1], [0], [0], [1], [0, 0, 1, 1], [], []>} : vector<16x16xbf16>, vector<16x32xbf16>, vector<16x32xf32> -> vector<16x32xf32>
      %166 = arith.addf %162, %165 : vector<16x32xf32>
      %c0_87 = arith.constant 0 : index
      %c96_88 = arith.constant 96 : index
      %167 = vector.load %arg9[%c0_87, %c96_88] : memref<16x128xf32, #tpu.memory_space<vmem>>, vector<16x32xf32>
      tpu.vector_store %arg9[%c0_87, %c96_88], %166 {strides = array<i32>} : memref<16x128xf32, #tpu.memory_space<vmem>>, vector<16x32xf32>,
      %c3_89 = arith.constant 3 : index
      %c0_90 = arith.constant 0 : index
      %c0_91 = arith.constant 0 : index
      %168 = vector.load %arg7[%c3_89, %c0_90, %c0_91] : memref<4x16x1xf32, #tpu.memory_space<vmem>>, vector<1x16x1xf32>
      %169 = vector.shape_cast %168 : vector<1x16x1xf32> to vector<16x1xf32>
      %170 = vector.shape_cast %145 : vector<16x1xf32> to vector<1x16x1xf32>
      tpu.vector_store %arg7[%c3_89, %c0_90, %c0_91], %170 {strides = array<i32>} : memref<4x16x1xf32, #tpu.memory_space<vmem>>, vector<1x16x1xf32>,
    } else {
    }
    %c0_i32_3 = arith.constant 0 : i32
    %9 = arith.cmpi eq, %arg2, %c0_i32_3 : i32
    %10 = arith.extui %9 : i1 to i32
    %c0_i32_4 = arith.constant 0 : i32
    %11 = arith.cmpi ne, %10, %c0_i32_4 : i32
    scf.if %11 {
      %c0 = arith.constant 0 : index
      %c0_5 = arith.constant 0 : index
      %c0_6 = arith.constant 0 : index
      %12 = vector.load %arg8[%c0, %c0_5, %c0_6] : memref<4x16x1xf32, #tpu.memory_space<vmem>>, vector<1x16x1xf32>
      %13 = vector.shape_cast %12 : vector<1x16x1xf32> to vector<16x1xf32>
      %14 = tpu.reciprocal %13 {approx = true} : vector<16x1xf32> -> vector<16x1xf32>
      %c0_7 = arith.constant 0 : index
      %c0_8 = arith.constant 0 : index
      %15 = vector.load %arg9[%c0_7, %c0_8] : memref<16x128xf32, #tpu.memory_space<vmem>>, vector<16x32xf32>
      %16 = vector.broadcast %14 : vector<16x1xf32> to vector<16x32xf32>
      %17 = arith.mulf %15, %16 : vector<16x32xf32>
      %c0_9 = arith.constant 0 : index
      %c0_10 = arith.constant 0 : index
      %18 = vector.load %arg9[%c0_9, %c0_10] : memref<16x128xf32, #tpu.memory_space<vmem>>, vector<16x32xf32>
      tpu.vector_store %arg9[%c0_9, %c0_10], %17 {strides = array<i32>} : memref<16x128xf32, #tpu.memory_space<vmem>>, vector<16x32xf32>,
      %c1 = arith.constant 1 : index
      %c0_11 = arith.constant 0 : index
      %c0_12 = arith.constant 0 : index
      %19 = vector.load %arg8[%c1, %c0_11, %c0_12] : memref<4x16x1xf32, #tpu.memory_space<vmem>>, vector<1x16x1xf32>
      %20 = vector.shape_cast %19 : vector<1x16x1xf32> to vector<16x1xf32>
      %21 = tpu.reciprocal %20 {approx = true} : vector<16x1xf32> -> vector<16x1xf32>
      %c0_13 = arith.constant 0 : index
      %c32 = arith.constant 32 : index
      %22 = vector.load %arg9[%c0_13, %c32] : memref<16x128xf32, #tpu.memory_space<vmem>>, vector<16x32xf32>
      %23 = vector.broadcast %21 : vector<16x1xf32> to vector<16x32xf32>
      %24 = arith.mulf %22, %23 : vector<16x32xf32>
      %c0_14 = arith.constant 0 : index
      %c32_15 = arith.constant 32 : index
      %25 = vector.load %arg9[%c0_14, %c32_15] : memref<16x128xf32, #tpu.memory_space<vmem>>, vector<16x32xf32>
      tpu.vector_store %arg9[%c0_14, %c32_15], %24 {strides = array<i32>} : memref<16x128xf32, #tpu.memory_space<vmem>>, vector<16x32xf32>,
      %c2 = arith.constant 2 : index
      %c0_16 = arith.constant 0 : index
      %c0_17 = arith.constant 0 : index
      %26 = vector.load %arg8[%c2, %c0_16, %c0_17] : memref<4x16x1xf32, #tpu.memory_space<vmem>>, vector<1x16x1xf32>
      %27 = vector.shape_cast %26 : vector<1x16x1xf32> to vector<16x1xf32>
      %28 = tpu.reciprocal %27 {approx = true} : vector<16x1xf32> -> vector<16x1xf32>
      %c0_18 = arith.constant 0 : index
      %c64 = arith.constant 64 : index
      %29 = vector.load %arg9[%c0_18, %c64] : memref<16x128xf32, #tpu.memory_space<vmem>>, vector<16x32xf32>
      %30 = vector.broadcast %28 : vector<16x1xf32> to vector<16x32xf32>
      %31 = arith.mulf %29, %30 : vector<16x32xf32>
      %c0_19 = arith.constant 0 : index
      %c64_20 = arith.constant 64 : index
      %32 = vector.load %arg9[%c0_19, %c64_20] : memref<16x128xf32, #tpu.memory_space<vmem>>, vector<16x32xf32>
      tpu.vector_store %arg9[%c0_19, %c64_20], %31 {strides = array<i32>} : memref<16x128xf32, #tpu.memory_space<vmem>>, vector<16x32xf32>,
      %c3 = arith.constant 3 : index
      %c0_21 = arith.constant 0 : index
      %c0_22 = arith.constant 0 : index
      %33 = vector.load %arg8[%c3, %c0_21, %c0_22] : memref<4x16x1xf32, #tpu.memory_space<vmem>>, vector<1x16x1xf32>
      %34 = vector.shape_cast %33 : vector<1x16x1xf32> to vector<16x1xf32>
      %35 = tpu.reciprocal %34 {approx = true} : vector<16x1xf32> -> vector<16x1xf32>
      %c0_23 = arith.constant 0 : index
      %c96 = arith.constant 96 : index
      %36 = vector.load %arg9[%c0_23, %c96] : memref<16x128xf32, #tpu.memory_space<vmem>>, vector<16x32xf32>
      %37 = vector.broadcast %35 : vector<16x1xf32> to vector<16x32xf32>
      %38 = arith.mulf %36, %37 : vector<16x32xf32>
      %c0_24 = arith.constant 0 : index
      %c96_25 = arith.constant 96 : index
      %39 = vector.load %arg9[%c0_24, %c96_25] : memref<16x128xf32, #tpu.memory_space<vmem>>, vector<16x32xf32>
      tpu.vector_store %arg9[%c0_24, %c96_25], %38 {strides = array<i32>} : memref<16x128xf32, #tpu.memory_space<vmem>>, vector<16x32xf32>,
      %c0_26 = arith.constant 0 : index
      %c0_27 = arith.constant 0 : index
      %40 = vector.load %arg9[%c0_26, %c0_27] : memref<16x128xf32, #tpu.memory_space<vmem>>, vector<16x128xf32>
      %41 = arith.truncf %40 : vector<16x128xf32> to vector<16x128xbf16>
      %c0_28 = arith.constant 0 : index
      %c0_29 = arith.constant 0 : index
      %c0_30 = arith.constant 0 : index
      %42 = vector.load %arg6[%c0_28, %c0_29, %c0_30] : memref<1x16x128xbf16, #tpu.memory_space<vmem>>, vector<1x16x128xbf16>
      %43 = vector.shape_cast %42 : vector<1x16x128xbf16> to vector<16x128xbf16>
      %44 = vector.shape_cast %41 : vector<16x128xbf16> to vector<1x16x128xbf16>
      tpu.vector_store %arg6[%c0_28, %c0_29, %c0_30], %44 {strides = array<i32>} : memref<1x16x128xbf16, #tpu.memory_space<vmem>>, vector<1x16x128xbf16>,
    } else {
    }
    return
  }
  func.func @transform_0(%arg0: i32, %arg1: i32, %arg2: i32) -> (i32, i32, i32) {
    %c0_i32 = arith.constant 0 : i32
    %c0_i32_0 = arith.constant 0 : i32
    return %arg0, %arg1, %c0_i32 : i32, i32, i32
  }
  func.func @transform_1(%arg0: i32, %arg1: i32, %arg2: i32) -> (i32, i32, i32) {
    %0 = arith.minsi %arg2, %arg1 : i32
    %c1_i32 = arith.constant 1 : i32
    %c0_i32 = arith.constant 0 : i32
    return %arg0, %0, %c1_i32 : i32, i32, i32
  }
  func.func @transform_2(%arg0: i32, %arg1: i32, %arg2: i32) -> (i32, i32, i32) {
    %0 = arith.minsi %arg2, %arg1 : i32
    %c2_i32 = arith.constant 2 : i32
    %c0_i32 = arith.constant 0 : i32
    return %arg0, %0, %c2_i32 : i32, i32, i32
  }
  func.func @transform_3(%arg0: i32, %arg1: i32, %arg2: i32) -> (i32, i32, i32) {
    %c0_i32 = arith.constant 0 : i32
    %c0_i32_0 = arith.constant 0 : i32
    return %arg0, %arg1, %c0_i32 : i32, i32, i32
  }
}

module attributes {stable_mosaic.version = 11 : i64} {
  func.func @kernel(%arg0: i32, %arg1: i32, %arg2: i32, %arg3: memref<32x128xbf16, #tpu.memory_space<vmem>>, %arg4: memref<128x256xbf16, #tpu.memory_space<vmem>>, %arg5: memref<1x128xbf16, #tpu.memory_space<vmem>>, %arg6: memref<1x128xbf16, #tpu.memory_space<vmem>>, %arg7: memref<1x256xbf16, #tpu.memory_space<vmem>>, %arg8: memref<32x256xbf16, #tpu.memory_space<vmem>>, %arg9: memref<32x256xf32, #tpu.memory_space<vmem>>) attributes {dimension_semantics = [#tpu.dimension_semantics<parallel>, #tpu.dimension_semantics<parallel>, #tpu.dimension_semantics<arbitrary>], iteration_bounds = array<i64: 1, 2, 1>, scalar_prefetch = 0 : i64, scratch_operands = 1 : i64, tpu.core_type = #tpu.core_type<tc>, window_params = [{transform_indices = @transform_0, window_bounds = array<i64: 32, 128>}, {transform_indices = @transform_1, window_bounds = array<i64: 128, 256>}, {transform_indices = @transform_2, window_bounds = array<i64: 1, 128>}, {transform_indices = @transform_3, window_bounds = array<i64: 1, 128>}, {transform_indices = @transform_4, window_bounds = array<i64: 1, 256>}, {transform_indices = @transform_5, window_bounds = array<i64: 32, 256>}]} {
    %c0_i32 = arith.constant 0 : i32
    %0 = arith.cmpi eq, %arg2, %c0_i32 : i32
    %1 = arith.extui %0 : i1 to i32
    %c0_i32_0 = arith.constant 0 : i32
    %2 = arith.cmpi ne, %1, %c0_i32_0 : i32
    scf.if %2 {
      %cst_19 = arith.constant 0.000000e+00 : f32
      %38 = vector.broadcast %cst_19 : f32 to vector<32x256xf32>
      %c0_20 = arith.constant 0 : index
      %c0_21 = arith.constant 0 : index
      %39 = vector.load %arg9[%c0_20, %c0_21] : memref<32x256xf32, #tpu.memory_space<vmem>>, vector<32x256xf32>
      tpu.vector_store %arg9[%c0_20, %c0_21], %38 {strides = array<i32>} : memref<32x256xf32, #tpu.memory_space<vmem>>, vector<32x256xf32>,
    } else {
    }
    %c0 = arith.constant 0 : index
    %c0_1 = arith.constant 0 : index
    %3 = vector.load %arg3[%c0, %c0_1] : memref<32x128xbf16, #tpu.memory_space<vmem>>, vector<32x128xbf16>
    %4 = arith.extf %3 : vector<32x128xbf16> to vector<32x128xf32>
    %cst = arith.constant dense<0.000000e+00> : vector<32xf32>
    %5 = vector.multi_reduction <add>, %4, %cst [1] : vector<32x128xf32> to vector<32xf32>
    %6 = vector.shape_cast %5 : vector<32xf32> to vector<32x1xf32>
    %cst_2 = arith.constant 1.280000e+02 : f32
    %7 = vector.broadcast %cst_2 : f32 to vector<32x1xf32>
    %8 = arith.divf %6, %7 : vector<32x1xf32>
    %9 = vector.broadcast %8 : vector<32x1xf32> to vector<32x128xf32>
    %10 = arith.subf %4, %9 : vector<32x128xf32>
    %11 = arith.mulf %10, %10 : vector<32x128xf32>
    %cst_3 = arith.constant dense<0.000000e+00> : vector<32xf32>
    %12 = vector.multi_reduction <add>, %11, %cst_3 [1] : vector<32x128xf32> to vector<32xf32>
    %13 = vector.shape_cast %12 : vector<32xf32> to vector<32x1xf32>
    %cst_4 = arith.constant 1.280000e+02 : f32
    %14 = vector.broadcast %cst_4 : f32 to vector<32x1xf32>
    %15 = arith.divf %13, %14 : vector<32x1xf32>
    %cst_5 = arith.constant 9.99999974E-6 : f32
    %16 = vector.broadcast %cst_5 : f32 to vector<32x1xf32>
    %17 = arith.addf %15, %16 : vector<32x1xf32>
    %18 = math.rsqrt %17 : vector<32x1xf32>
    %19 = vector.broadcast %18 : vector<32x1xf32> to vector<32x128xf32>
    %20 = arith.mulf %10, %19 : vector<32x128xf32>
    %c0_6 = arith.constant 0 : index
    %c0_7 = arith.constant 0 : index
    %21 = vector.load %arg5[%c0_6, %c0_7] : memref<1x128xbf16, #tpu.memory_space<vmem>>, vector<1x128xbf16>
    %22 = arith.extf %21 : vector<1x128xbf16> to vector<1x128xf32>
    %23 = vector.broadcast %22 : vector<1x128xf32> to vector<32x128xf32>
    %24 = arith.mulf %20, %23 : vector<32x128xf32>
    %c0_8 = arith.constant 0 : index
    %c0_9 = arith.constant 0 : index
    %25 = vector.load %arg6[%c0_8, %c0_9] : memref<1x128xbf16, #tpu.memory_space<vmem>>, vector<1x128xbf16>
    %26 = arith.extf %25 : vector<1x128xbf16> to vector<1x128xf32>
    %27 = vector.broadcast %26 : vector<1x128xf32> to vector<32x128xf32>
    %28 = arith.addf %24, %27 : vector<32x128xf32>
    %29 = arith.truncf %28 : vector<32x128xf32> to vector<32x128xbf16>
    %c0_10 = arith.constant 0 : index
    %c0_11 = arith.constant 0 : index
    %30 = vector.load %arg9[%c0_10, %c0_11] : memref<32x256xf32, #tpu.memory_space<vmem>>, vector<32x256xf32>
    %c0_12 = arith.constant 0 : index
    %c0_13 = arith.constant 0 : index
    %31 = vector.load %arg4[%c0_12, %c0_13] : memref<128x256xbf16, #tpu.memory_space<vmem>>, vector<128x256xbf16>
    %cst_14 = arith.constant dense<0.000000e+00> : vector<32x256xf32>
    %32 = tpu.matmul %29, %31, %cst_14 {dimension_numbers = #tpu.dot_dimension_numbers<[1], [0], [0], [1], [0, 0, 1, 1], [], []>} : vector<32x128xbf16>, vector<128x256xbf16>, vector<32x256xf32> -> vector<32x256xf32>
    %33 = arith.addf %30, %32 : vector<32x256xf32>
    %c0_15 = arith.constant 0 : index
    %c0_16 = arith.constant 0 : index
    %34 = vector.load %arg9[%c0_15, %c0_16] : memref<32x256xf32, #tpu.memory_space<vmem>>, vector<32x256xf32>
    tpu.vector_store %arg9[%c0_15, %c0_16], %33 {strides = array<i32>} : memref<32x256xf32, #tpu.memory_space<vmem>>, vector<32x256xf32>,
    %c0_i32_17 = arith.constant 0 : i32
    %35 = arith.cmpi eq, %arg2, %c0_i32_17 : i32
    %36 = arith.extui %35 : i1 to i32
    %c0_i32_18 = arith.constant 0 : i32
    %37 = arith.cmpi ne, %36, %c0_i32_18 : i32
    scf.if %37 {
      %c0_19 = arith.constant 0 : index
      %c0_20 = arith.constant 0 : index
      %38 = vector.load %arg9[%c0_19, %c0_20] : memref<32x256xf32, #tpu.memory_space<vmem>>, vector<32x256xf32>
      %c0_21 = arith.constant 0 : index
      %c0_22 = arith.constant 0 : index
      %39 = vector.load %arg7[%c0_21, %c0_22] : memref<1x256xbf16, #tpu.memory_space<vmem>>, vector<1x256xbf16>
      %40 = arith.extf %39 : vector<1x256xbf16> to vector<1x256xf32>
      %41 = vector.broadcast %40 : vector<1x256xf32> to vector<32x256xf32>
      %42 = arith.addf %38, %41 : vector<32x256xf32>
      %cst_23 = arith.constant 5.000000e-01 : f32
      %43 = vector.broadcast %cst_23 : f32 to vector<32x256xf32>
      %44 = arith.mulf %43, %42 : vector<32x256xf32>
      %cst_24 = arith.constant 4.471500e-02 : f32
      %45 = vector.broadcast %cst_24 : f32 to vector<32x256xf32>
      %46 = arith.mulf %45, %42 : vector<32x256xf32>
      %47 = arith.mulf %46, %42 : vector<32x256xf32>
      %48 = arith.mulf %47, %42 : vector<32x256xf32>
      %49 = arith.addf %42, %48 : vector<32x256xf32>
      %cst_25 = arith.constant 0.797884583 : f32
      %50 = vector.broadcast %cst_25 : f32 to vector<32x256xf32>
      %51 = arith.mulf %50, %49 : vector<32x256xf32>
      %52 = math.tanh %51 : vector<32x256xf32>
      %cst_26 = arith.constant 1.000000e+00 : f32
      %53 = vector.broadcast %cst_26 : f32 to vector<32x256xf32>
      %54 = arith.addf %53, %52 : vector<32x256xf32>
      %55 = arith.mulf %44, %54 : vector<32x256xf32>
      %56 = arith.truncf %55 : vector<32x256xf32> to vector<32x256xbf16>
      %c0_27 = arith.constant 0 : index
      %c0_28 = arith.constant 0 : index
      %57 = vector.load %arg8[%c0_27, %c0_28] : memref<32x256xbf16, #tpu.memory_space<vmem>>, vector<32x256xbf16>
      tpu.vector_store %arg8[%c0_27, %c0_28], %56 {strides = array<i32>} : memref<32x256xbf16, #tpu.memory_space<vmem>>, vector<32x256xbf16>,
    } else {
    }
    return
  }
  func.func @transform_0(%arg0: i32, %arg1: i32, %arg2: i32) -> (i32, i32) {
    %c0_i32 = arith.constant 0 : i32
    return %arg0, %arg2 : i32, i32
  }
  func.func @transform_1(%arg0: i32, %arg1: i32, %arg2: i32) -> (i32, i32) {
    %c0_i32 = arith.constant 0 : i32
    return %arg2, %arg1 : i32, i32
  }
  func.func @transform_2(%arg0: i32, %arg1: i32, %arg2: i32) -> (i32, i32) {
    %c0_i32 = arith.constant 0 : i32
    %c0_i32_0 = arith.constant 0 : i32
    return %c0_i32, %arg2 : i32, i32
  }
  func.func @transform_3(%arg0: i32, %arg1: i32, %arg2: i32) -> (i32, i32) {
    %c0_i32 = arith.constant 0 : i32
    %c0_i32_0 = arith.constant 0 : i32
    return %c0_i32, %arg2 : i32, i32
  }
  func.func @transform_4(%arg0: i32, %arg1: i32, %arg2: i32) -> (i32, i32) {
    %c0_i32 = arith.constant 0 : i32
    %c0_i32_0 = arith.constant 0 : i32
    return %c0_i32, %arg1 : i32, i32
  }
  func.func @transform_5(%arg0: i32, %arg1: i32, %arg2: i32) -> (i32, i32) {
    %c0_i32 = arith.constant 0 : i32
    return %arg0, %arg1 : i32, i32
  }
}

module attributes {stable_mosaic.version = 11 : i64} {
  func.func @kernel(%arg0: i32, %arg1: i32, %arg2: i32, %arg3: memref<32x512xbf16, #tpu.memory_space<vmem>>, %arg4: memref<512x128xbf16, #tpu.memory_space<vmem>>, %arg5: memref<1x128xbf16, #tpu.memory_space<vmem>>, %arg6: memref<32x128xbf16, #tpu.memory_space<vmem>>, %arg7: memref<32x128xbf16, #tpu.memory_space<vmem>>, %arg8: memref<32x128xf32, #tpu.memory_space<vmem>>) attributes {dimension_semantics = [#tpu.dimension_semantics<parallel>, #tpu.dimension_semantics<parallel>, #tpu.dimension_semantics<arbitrary>], iteration_bounds = array<i64: 1, 1, 1>, scalar_prefetch = 0 : i64, scratch_operands = 1 : i64, tpu.core_type = #tpu.core_type<tc>, window_params = [{transform_indices = @transform_0, window_bounds = array<i64: 32, 512>}, {transform_indices = @transform_1, window_bounds = array<i64: 512, 128>}, {transform_indices = @transform_2, window_bounds = array<i64: 1, 128>}, {transform_indices = @transform_3, window_bounds = array<i64: 32, 128>}, {transform_indices = @transform_4, window_bounds = array<i64: 32, 128>}]} {
    %c0_i32 = arith.constant 0 : i32
    %0 = arith.cmpi eq, %arg2, %c0_i32 : i32
    %1 = arith.extui %0 : i1 to i32
    %c0_i32_0 = arith.constant 0 : i32
    %2 = arith.cmpi ne, %1, %c0_i32_0 : i32
    scf.if %2 {
      %cst_10 = arith.constant 0.000000e+00 : f32
      %12 = vector.broadcast %cst_10 : f32 to vector<32x128xf32>
      %c0_11 = arith.constant 0 : index
      %c0_12 = arith.constant 0 : index
      %13 = vector.load %arg8[%c0_11, %c0_12] : memref<32x128xf32, #tpu.memory_space<vmem>>, vector<32x128xf32>
      tpu.vector_store %arg8[%c0_11, %c0_12], %12 {strides = array<i32>} : memref<32x128xf32, #tpu.memory_space<vmem>>, vector<32x128xf32>,
    } else {
    }
    %c0 = arith.constant 0 : index
    %c0_1 = arith.constant 0 : index
    %3 = vector.load %arg3[%c0, %c0_1] : memref<32x512xbf16, #tpu.memory_space<vmem>>, vector<32x512xbf16>
    %c0_2 = arith.constant 0 : index
    %c0_3 = arith.constant 0 : index
    %4 = vector.load %arg8[%c0_2, %c0_3] : memref<32x128xf32, #tpu.memory_space<vmem>>, vector<32x128xf32>
    %c0_4 = arith.constant 0 : index
    %c0_5 = arith.constant 0 : index
    %5 = vector.load %arg4[%c0_4, %c0_5] : memref<512x128xbf16, #tpu.memory_space<vmem>>, vector<512x128xbf16>
    %cst = arith.constant dense<0.000000e+00> : vector<32x128xf32>
    %6 = tpu.matmul %3, %5, %cst {dimension_numbers = #tpu.dot_dimension_numbers<[1], [0], [0], [1], [0, 0, 1, 1], [], []>} : vector<32x512xbf16>, vector<512x128xbf16>, vector<32x128xf32> -> vector<32x128xf32>
    %7 = arith.addf %4, %6 : vector<32x128xf32>
    %c0_6 = arith.constant 0 : index
    %c0_7 = arith.constant 0 : index
    %8 = vector.load %arg8[%c0_6, %c0_7] : memref<32x128xf32, #tpu.memory_space<vmem>>, vector<32x128xf32>
    tpu.vector_store %arg8[%c0_6, %c0_7], %7 {strides = array<i32>} : memref<32x128xf32, #tpu.memory_space<vmem>>, vector<32x128xf32>,
    %c0_i32_8 = arith.constant 0 : i32
    %9 = arith.cmpi eq, %arg2, %c0_i32_8 : i32
    %10 = arith.extui %9 : i1 to i32
    %c0_i32_9 = arith.constant 0 : i32
    %11 = arith.cmpi ne, %10, %c0_i32_9 : i32
    scf.if %11 {
      %c0_10 = arith.constant 0 : index
      %c0_11 = arith.constant 0 : index
      %12 = vector.load %arg8[%c0_10, %c0_11] : memref<32x128xf32, #tpu.memory_space<vmem>>, vector<32x128xf32>
      %c0_12 = arith.constant 0 : index
      %c0_13 = arith.constant 0 : index
      %13 = vector.load %arg5[%c0_12, %c0_13] : memref<1x128xbf16, #tpu.memory_space<vmem>>, vector<1x128xbf16>
      %14 = arith.extf %13 : vector<1x128xbf16> to vector<1x128xf32>
      %15 = vector.broadcast %14 : vector<1x128xf32> to vector<32x128xf32>
      %16 = arith.addf %12, %15 : vector<32x128xf32>
      %c0_14 = arith.constant 0 : index
      %c0_15 = arith.constant 0 : index
      %17 = vector.load %arg6[%c0_14, %c0_15] : memref<32x128xbf16, #tpu.memory_space<vmem>>, vector<32x128xbf16>
      %18 = arith.extf %17 : vector<32x128xbf16> to vector<32x128xf32>
      %19 = arith.addf %16, %18 : vector<32x128xf32>
      %20 = arith.truncf %19 : vector<32x128xf32> to vector<32x128xbf16>
      %c0_16 = arith.constant 0 : index
      %c0_17 = arith.constant 0 : index
      %21 = vector.load %arg7[%c0_16, %c0_17] : memref<32x128xbf16, #tpu.memory_space<vmem>>, vector<32x128xbf16>
      tpu.vector_store %arg7[%c0_16, %c0_17], %20 {strides = array<i32>} : memref<32x128xbf16, #tpu.memory_space<vmem>>, vector<32x128xbf16>,
    } else {
    }
    return
  }
  func.func @transform_0(%arg0: i32, %arg1: i32, %arg2: i32) -> (i32, i32) {
    %c0_i32 = arith.constant 0 : i32
    return %arg0, %arg2 : i32, i32
  }
  func.func @transform_1(%arg0: i32, %arg1: i32, %arg2: i32) -> (i32, i32) {
    %c0_i32 = arith.constant 0 : i32
    return %arg2, %arg1 : i32, i32
  }
  func.func @transform_2(%arg0: i32, %arg1: i32, %arg2: i32) -> (i32, i32) {
    %c0_i32 = arith.constant 0 : i32
    %c0_i32_0 = arith.constant 0 : i32
    return %c0_i32, %arg1 : i32, i32
  }
  func.func @transform_3(%arg0: i32, %arg1: i32, %arg2: i32) -> (i32, i32) {
    %c0_i32 = arith.constant 0 : i32
    return %arg0, %arg1 : i32, i32
  }
  func.func @transform_4(%arg0: i32, %arg1: i32, %arg2: i32) -> (i32, i32) {
    %c0_i32 = arith.constant 0 : i32
    return %arg0, %arg1 : i32, i32
  }
}

module attributes {stable_mosaic.version = 11 : i64} {
  func.func @_lm_head_ce_kernel(%arg0: i32, %arg1: i32, %arg2: i32, %arg3: memref<30x128xbf16, #tpu.memory_space<vmem>>, %arg4: memref<256x128xbf16, #tpu.memory_space<vmem>>, %arg5: memref<1x128xbf16, #tpu.memory_space<vmem>>, %arg6: memref<1x128xbf16, #tpu.memory_space<vmem>>, %arg7: memref<30x1xi32, #tpu.memory_space<vmem>>, %arg8: memref<30x256xbf16, #tpu.memory_space<vmem>>, %arg9: memref<30x1xf32, #tpu.memory_space<vmem>>, %arg10: memref<30x256xf32, #tpu.memory_space<vmem>>, %arg11: memref<30x1xf32, #tpu.memory_space<vmem>>, %arg12: memref<30x1xf32, #tpu.memory_space<vmem>>, %arg13: memref<30x1xf32, #tpu.memory_space<vmem>>) attributes {dimension_semantics = [#tpu.dimension_semantics<parallel>, #tpu.dimension_semantics<arbitrary>, #tpu.dimension_semantics<arbitrary>], iteration_bounds = array<i64: 1, 1, 1>, scalar_prefetch = 0 : i64, scratch_operands = 4 : i64, tpu.core_type = #tpu.core_type<tc>, window_params = [{transform_indices = @transform_0, window_bounds = array<i64: 30, 128>}, {transform_indices = @transform_1, window_bounds = array<i64: 256, 128>}, {pipeline_mode = #tpu.pipeline_mode<synchronous>, transform_indices = @transform_2, window_bounds = array<i64: 1, 128>}, {pipeline_mode = #tpu.pipeline_mode<synchronous>, transform_indices = @transform_3, window_bounds = array<i64: 1, 128>}, {transform_indices = @transform_4, window_bounds = array<i64: 30, 1>}, {transform_indices = @transform_5, window_bounds = array<i64: 30, 256>}, {transform_indices = @transform_6, window_bounds = array<i64: 30, 1>}]} {
    %c0_i32 = arith.constant 0 : i32
    %0 = arith.cmpi eq, %arg2, %c0_i32 : i32
    %1 = arith.extui %0 : i1 to i32
    %c0_i32_0 = arith.constant 0 : i32
    %2 = arith.cmpi ne, %1, %c0_i32_0 : i32
    scf.if %2 {
      %cst_19 = arith.constant 0.000000e+00 : f32
      %38 = vector.broadcast %cst_19 : f32 to vector<30x256xf32>
      %c0_20 = arith.constant 0 : index
      %c0_21 = arith.constant 0 : index
      %39 = vector.load %arg10[%c0_20, %c0_21] : memref<30x256xf32, #tpu.memory_space<vmem>>, vector<30x256xf32>
      tpu.vector_store %arg10[%c0_20, %c0_21], %38 {strides = array<i32>} : memref<30x256xf32, #tpu.memory_space<vmem>>, vector<30x256xf32>,
    } else {
    }
    %c0 = arith.constant 0 : index
    %c0_1 = arith.constant 0 : index
    %3 = vector.load %arg3[%c0, %c0_1] : memref<30x128xbf16, #tpu.memory_space<vmem>>, vector<30x128xbf16>
    %4 = arith.extf %3 : vector<30x128xbf16> to vector<30x128xf32>
    %cst = arith.constant dense<0.000000e+00> : vector<30xf32>
    %5 = vector.multi_reduction <add>, %4, %cst [1] : vector<30x128xf32> to vector<30xf32>
    %6 = vector.shape_cast %5 : vector<30xf32> to vector<30x1xf32>
    %cst_2 = arith.constant 1.280000e+02 : f32
    %7 = vector.broadcast %cst_2 : f32 to vector<30x1xf32>
    %8 = arith.divf %6, %7 : vector<30x1xf32>
    %9 = vector.broadcast %8 : vector<30x1xf32> to vector<30x128xf32>
    %10 = arith.subf %4, %9 : vector<30x128xf32>
    %11 = arith.mulf %10, %10 : vector<30x128xf32>
    %cst_3 = arith.constant dense<0.000000e+00> : vector<30xf32>
    %12 = vector.multi_reduction <add>, %11, %cst_3 [1] : vector<30x128xf32> to vector<30xf32>
    %13 = vector.shape_cast %12 : vector<30xf32> to vector<30x1xf32>
    %cst_4 = arith.constant 1.280000e+02 : f32
    %14 = vector.broadcast %cst_4 : f32 to vector<30x1xf32>
    %15 = arith.divf %13, %14 : vector<30x1xf32>
    %cst_5 = arith.constant 9.99999974E-6 : f32
    %16 = vector.broadcast %cst_5 : f32 to vector<30x1xf32>
    %17 = arith.addf %15, %16 : vector<30x1xf32>
    %18 = math.rsqrt %17 : vector<30x1xf32>
    %19 = vector.broadcast %18 : vector<30x1xf32> to vector<30x128xf32>
    %20 = arith.mulf %10, %19 : vector<30x128xf32>
    %c0_6 = arith.constant 0 : index
    %c0_7 = arith.constant 0 : index
    %21 = vector.load %arg5[%c0_6, %c0_7] : memref<1x128xbf16, #tpu.memory_space<vmem>>, vector<1x128xbf16>
    %22 = arith.extf %21 : vector<1x128xbf16> to vector<1x128xf32>
    %23 = vector.broadcast %22 : vector<1x128xf32> to vector<30x128xf32>
    %24 = arith.mulf %20, %23 : vector<30x128xf32>
    %c0_8 = arith.constant 0 : index
    %c0_9 = arith.constant 0 : index
    %25 = vector.load %arg6[%c0_8, %c0_9] : memref<1x128xbf16, #tpu.memory_space<vmem>>, vector<1x128xbf16>
    %26 = arith.extf %25 : vector<1x128xbf16> to vector<1x128xf32>
    %27 = vector.broadcast %26 : vector<1x128xf32> to vector<30x128xf32>
    %28 = arith.addf %24, %27 : vector<30x128xf32>
    %29 = arith.truncf %28 : vector<30x128xf32> to vector<30x128xbf16>
    %c0_10 = arith.constant 0 : index
    %c0_11 = arith.constant 0 : index
    %30 = vector.load %arg10[%c0_10, %c0_11] : memref<30x256xf32, #tpu.memory_space<vmem>>, vector<30x256xf32>
    %c0_12 = arith.constant 0 : index
    %c0_13 = arith.constant 0 : index
    %31 = vector.load %arg4[%c0_12, %c0_13] : memref<256x128xbf16, #tpu.memory_space<vmem>>, vector<256x128xbf16>
    %cst_14 = arith.constant dense<0.000000e+00> : vector<30x256xf32>
    %32 = tpu.matmul %29, %31, %cst_14 {dimension_numbers = #tpu.dot_dimension_numbers<[1], [1], [0], [0], [0, 0, 1, 0], [], []>} : vector<30x128xbf16>, vector<256x128xbf16>, vector<30x256xf32> -> vector<30x256xf32>
    %33 = arith.addf %30, %32 : vector<30x256xf32>
    %c0_15 = arith.constant 0 : index
    %c0_16 = arith.constant 0 : index
    %34 = vector.load %arg10[%c0_15, %c0_16] : memref<30x256xf32, #tpu.memory_space<vmem>>, vector<30x256xf32>
    tpu.vector_store %arg10[%c0_15, %c0_16], %33 {strides = array<i32>} : memref<30x256xf32, #tpu.memory_space<vmem>>, vector<30x256xf32>,
    %c0_i32_17 = arith.constant 0 : i32
    %35 = arith.cmpi eq, %arg2, %c0_i32_17 : i32
    %36 = arith.extui %35 : i1 to i32
    %c0_i32_18 = arith.constant 0 : i32
    %37 = arith.cmpi ne, %36, %c0_i32_18 : i32
    scf.if %37 {
      %c0_19 = arith.constant 0 : index
      %c0_20 = arith.constant 0 : index
      %38 = vector.load %arg10[%c0_19, %c0_20] : memref<30x256xf32, #tpu.memory_space<vmem>>, vector<30x256xf32>
      %39 = arith.truncf %38 : vector<30x256xf32> to vector<30x256xbf16>
      %c0_21 = arith.constant 0 : index
      %c0_22 = arith.constant 0 : index
      %40 = vector.load %arg8[%c0_21, %c0_22] : memref<30x256xbf16, #tpu.memory_space<vmem>>, vector<30x256xbf16>
      tpu.vector_store %arg8[%c0_21, %c0_22], %39 {strides = array<i32>} : memref<30x256xbf16, #tpu.memory_space<vmem>>, vector<30x256xbf16>,
      %c0_i32_23 = arith.constant 0 : i32
      %41 = arith.cmpi eq, %arg1, %c0_i32_23 : i32
      %42 = arith.extui %41 : i1 to i32
      %c0_i32_24 = arith.constant 0 : i32
      %43 = arith.cmpi ne, %42, %c0_i32_24 : i32
      scf.if %43 {
        %cst_47 = arith.constant -1.000000e+30 : f32
        %81 = vector.broadcast %cst_47 : f32 to vector<30x1xf32>
        %c0_48 = arith.constant 0 : index
        %c0_49 = arith.constant 0 : index
        %82 = vector.load %arg11[%c0_48, %c0_49] : memref<30x1xf32, #tpu.memory_space<vmem>>, vector<30x1xf32>
        tpu.vector_store %arg11[%c0_48, %c0_49], %81 {strides = array<i32>} : memref<30x1xf32, #tpu.memory_space<vmem>>, vector<30x1xf32>,
        %cst_50 = arith.constant 0.000000e+00 : f32
        %83 = vector.broadcast %cst_50 : f32 to vector<30x1xf32>
        %c0_51 = arith.constant 0 : index
        %c0_52 = arith.constant 0 : index
        %84 = vector.load %arg12[%c0_51, %c0_52] : memref<30x1xf32, #tpu.memory_space<vmem>>, vector<30x1xf32>
        tpu.vector_store %arg12[%c0_51, %c0_52], %83 {strides = array<i32>} : memref<30x1xf32, #tpu.memory_space<vmem>>, vector<30x1xf32>,
        %cst_53 = arith.constant 0.000000e+00 : f32
        %85 = vector.broadcast %cst_53 : f32 to vector<30x1xf32>
        %c0_54 = arith.constant 0 : index
        %c0_55 = arith.constant 0 : index
        %86 = vector.load %arg13[%c0_54, %c0_55] : memref<30x1xf32, #tpu.memory_space<vmem>>, vector<30x1xf32>
        tpu.vector_store %arg13[%c0_54, %c0_55], %85 {strides = array<i32>} : memref<30x1xf32, #tpu.memory_space<vmem>>, vector<30x1xf32>,
      } else {
      }
      %c256_i32 = arith.constant 256 : i32
      %44 = arith.muli %arg1, %c256_i32 : i32
      %45 = tpu.iota {dimensions = array<i32: 1>} : vector<30x256xi32>
      %46 = vector.broadcast %44 : i32 to vector<30x256xi32>
      %47 = arith.addi %46, %45 : vector<30x256xi32>
      %c256_i32_25 = arith.constant 256 : i32
      %48 = vector.broadcast %c256_i32_25 : i32 to vector<30x256xi32>
      %49 = arith.cmpi slt, %47, %48 : vector<30x256xi32>
      %cst_26 = arith.constant -1.000000e+30 : f32
      %50 = vector.broadcast %cst_26 : f32 to vector<30x256xf32>
      %51 = arith.select %49, %38, %50 : vector<30x256xi1>, vector<30x256xf32>
      %c0_27 = arith.constant 0 : index
      %c0_28 = arith.constant 0 : index
      %52 = vector.load %arg11[%c0_27, %c0_28] : memref<30x1xf32, #tpu.memory_space<vmem>>, vector<30x1xf32>
      %cst_29 = arith.constant dense<0xFF800000> : vector<30xf32>
      %53 = vector.multi_reduction <maximumf>, %51, %cst_29 [1] : vector<30x256xf32> to vector<30xf32>
      %54 = vector.shape_cast %53 : vector<30xf32> to vector<30x1xf32>
      %55 = arith.maximumf %52, %54 : vector<30x1xf32>
      %56 = arith.subf %52, %55 : vector<30x1xf32>
      %57 = math.exp %56 : vector<30x1xf32>
      %c0_30 = arith.constant 0 : index
      %c0_31 = arith.constant 0 : index
      %58 = vector.load %arg12[%c0_30, %c0_31] : memref<30x1xf32, #tpu.memory_space<vmem>>, vector<30x1xf32>
      %59 = arith.mulf %57, %58 : vector<30x1xf32>
      %60 = vector.broadcast %55 : vector<30x1xf32> to vector<30x256xf32>
      %61 = arith.subf %51, %60 : vector<30x256xf32>
      %62 = math.exp %61 : vector<30x256xf32>
      %cst_32 = arith.constant dense<0.000000e+00> : vector<30xf32>
      %63 = vector.multi_reduction <add>, %62, %cst_32 [1] : vector<30x256xf32> to vector<30xf32>
      %64 = vector.shape_cast %63 : vector<30xf32> to vector<30x1xf32>
      %65 = arith.addf %59, %64 : vector<30x1xf32>
      %c0_33 = arith.constant 0 : index
      %c0_34 = arith.constant 0 : index
      %66 = vector.load %arg12[%c0_33, %c0_34] : memref<30x1xf32, #tpu.memory_space<vmem>>, vector<30x1xf32>
      tpu.vector_store %arg12[%c0_33, %c0_34], %65 {strides = array<i32>} : memref<30x1xf32, #tpu.memory_space<vmem>>, vector<30x1xf32>,
      %c0_35 = arith.constant 0 : index
      %c0_36 = arith.constant 0 : index
      %67 = vector.load %arg11[%c0_35, %c0_36] : memref<30x1xf32, #tpu.memory_space<vmem>>, vector<30x1xf32>
      tpu.vector_store %arg11[%c0_35, %c0_36], %55 {strides = array<i32>} : memref<30x1xf32, #tpu.memory_space<vmem>>, vector<30x1xf32>,
      %c0_37 = arith.constant 0 : index
      %c0_38 = arith.constant 0 : index
      %68 = vector.load %arg13[%c0_37, %c0_38] : memref<30x1xf32, #tpu.memory_space<vmem>>, vector<30x1xf32>
      %c0_39 = arith.constant 0 : index
      %c0_40 = arith.constant 0 : index
      %69 = vector.load %arg7[%c0_39, %c0_40] : memref<30x1xi32, #tpu.memory_space<vmem>>, vector<30x1xi32>
      %70 = vector.broadcast %69 : vector<30x1xi32> to vector<30x256xi32>
      %71 = arith.cmpi eq, %47, %70 : vector<30x256xi32>
      %cst_41 = arith.constant 0.000000e+00 : f32
      %72 = vector.broadcast %cst_41 : f32 to vector<30x256xf32>
      %73 = arith.select %71, %38, %72 : vector<30x256xi1>, vector<30x256xf32>
      %cst_42 = arith.constant dense<0.000000e+00> : vector<30xf32>
      %74 = vector.multi_reduction <add>, %73, %cst_42 [1] : vector<30x256xf32> to vector<30xf32>
      %75 = vector.shape_cast %74 : vector<30xf32> to vector<30x1xf32>
      %76 = arith.addf %68, %75 : vector<30x1xf32>
      %c0_43 = arith.constant 0 : index
      %c0_44 = arith.constant 0 : index
      %77 = vector.load %arg13[%c0_43, %c0_44] : memref<30x1xf32, #tpu.memory_space<vmem>>, vector<30x1xf32>
      tpu.vector_store %arg13[%c0_43, %c0_44], %76 {strides = array<i32>} : memref<30x1xf32, #tpu.memory_space<vmem>>, vector<30x1xf32>,
      %c0_i32_45 = arith.constant 0 : i32
      %78 = arith.cmpi eq, %arg1, %c0_i32_45 : i32
      %79 = arith.extui %78 : i1 to i32
      %c0_i32_46 = arith.constant 0 : i32
      %80 = arith.cmpi ne, %79, %c0_i32_46 : i32
      scf.if %80 {
        %c0_47 = arith.constant 0 : index
        %c0_48 = arith.constant 0 : index
        %81 = vector.load %arg11[%c0_47, %c0_48] : memref<30x1xf32, #tpu.memory_space<vmem>>, vector<30x1xf32>
        %c0_49 = arith.constant 0 : index
        %c0_50 = arith.constant 0 : index
        %82 = vector.load %arg12[%c0_49, %c0_50] : memref<30x1xf32, #tpu.memory_space<vmem>>, vector<30x1xf32>
        %83 = math.log %82 : vector<30x1xf32>
        %84 = arith.addf %81, %83 : vector<30x1xf32>
        %c0_51 = arith.constant 0 : index
        %c0_52 = arith.constant 0 : index
        %85 = vector.load %arg13[%c0_51, %c0_52] : memref<30x1xf32, #tpu.memory_space<vmem>>, vector<30x1xf32>
        %86 = arith.subf %84, %85 : vector<30x1xf32>
        %c0_53 = arith.constant 0 : index
        %c0_54 = arith.constant 0 : index
        %87 = vector.load %arg9[%c0_53, %c0_54] : memref<30x1xf32, #tpu.memory_space<vmem>>, vector<30x1xf32>
        tpu.vector_store %arg9[%c0_53, %c0_54], %86 {strides = array<i32>} : memref<30x1xf32, #tpu.memory_space<vmem>>, vector<30x1xf32>,
      } else {
      }
    } else {
    }
    return
  }
  func.func @transform_0(%arg0: i32, %arg1: i32, %arg2: i32) -> (i32, i32) {
    %c0_i32 = arith.constant 0 : i32
    return %arg0, %arg2 : i32, i32
  }
  func.func @transform_1(%arg0: i32, %arg1: i32, %arg2: i32) -> (i32, i32) {
    %c0_i32 = arith.constant 0 : i32
    return %arg1, %arg2 : i32, i32
  }
  func.func @transform_2(%arg0: i32, %arg1: i32, %arg2: i32) -> (i32, i32) {
    %c0_i32 = arith.constant 0 : i32
    %c0_i32_0 = arith.constant 0 : i32
    %c0_i32_1 = arith.constant 0 : i32
    return %c0_i32, %c0_i32_0 : i32, i32
  }
  func.func @transform_3(%arg0: i32, %arg1: i32, %arg2: i32) -> (i32, i32) {
    %c0_i32 = arith.constant 0 : i32
    %c0_i32_0 = arith.constant 0 : i32
    %c0_i32_1 = arith.constant 0 : i32
    return %c0_i32, %c0_i32_0 : i32, i32
  }
  func.func @transform_4(%arg0: i32, %arg1: i32, %arg2: i32) -> (i32, i32) {
    %c0_i32 = arith.constant 0 : i32
    %c0_i32_0 = arith.constant 0 : i32
    return %arg0, %c0_i32 : i32, i32
  }
  func.func @transform_5(%arg0: i32, %arg1: i32, %arg2: i32) -> (i32, i32) {
    %c0_i32 = arith.constant 0 : i32
    return %arg0, %arg1 : i32, i32
  }
  func.func @transform_6(%arg0: i32, %arg1: i32, %arg2: i32) -> (i32, i32) {
    %c0_i32 = arith.constant 0 : i32
    %c0_i32_0 = arith.constant 0 : i32
    return %arg0, %c0_i32 : i32, i32
  }
}

</mosaic_0001>

<llo_original>
// kernel: _lambda_.11
$region0: #{_lambda_.11}
  #allocation0 [shape = 'u32[]', space=smem, size = 0x4, offset = 0x4, fixed_abs, tag = 'smem constant byte address 0x4 - core index']
  #allocation1 [shape = 'u32[144,128]{1,0:T(1,128)}', space=vmem, size = 0x12000, scoped, tag = 'internal scratch']
  #allocation2 [shape = 'f32[32,128]{1,0:T(8,128)}', space=vmem, size = 0x4000, scoped, tag = 'scratch operand']
  %s0 = inlined_call_operand.vmem [shape: bf16[32,128], index: 0, kind: input, shape index: {}]
  %s1 = inlined_call_operand.vmem [shape: bf16[128,384], index: 1, kind: input, shape index: {}]
  %s2 = inlined_call_operand.vmem [shape: bf16[1,128], index: 2, kind: input, shape index: {}]
  %s3 = inlined_call_operand.vmem [shape: bf16[1,128], index: 3, kind: input, shape index: {}]
  %s4 = inlined_call_operand.vmem [shape: bf16[1,384], index: 4, kind: input, shape index: {}]
  %s5 = inlined_call_operand.vmem [shape: bf16[32,384], index: 5, kind: output, shape index: {}]
  %s6 = sld [smem:[#allocation0]]
  $region139: #{_lambda_.11} parent=0
    _
  %s8 = ssub.s32 1, %s6
  %s9 = scalar_select 0, %s8, %s6
  $region1: #{_lambda_.11} parent=0
    #allocation3 [shape = 'u8[65536]{0}', space=vmem, size = 0x10000, scoped, tag = 'input window, operand 1']
    #allocation4 [shape = 'u8[16384]{0}', space=vmem, size = 0x4000, scoped, tag = 'output window, operand 0']
    loop: start=0, step=1, limit=5
    $region2: #{_lambda_.11} parent=1 // loop_pre_header
      _
    $region3: #{_lambda_.11} parent=1 // loop_header
      %s11 = sphi 0, %s15
      %p12 = scmp.ge.s32.totalorder %s11, 5
      %s18 = sphi 0, %s37
      %s19 = sphi 0, %s33
      %s20 = sphi 0, %s29
      %s21 = sphi 0, %s18
      %s22 = sphi 0, %s19
      %s23 = sphi 0, %s20
      %s24 = sphi 0, %s21
      %s25 = sphi 0, %s22
      %s26 = sphi 0, %s23
      %s42 = sphi 0, %s44
      %s45 = sphi 0, %s42
      %s46 = sphi 0, %s45
      %s62 = sphi 0, %s46
      %s70 = sphi 0, %s72
      %s73 = sphi 0, %s70
      %s74 = sphi 0, %s73
      %s90 = sphi 0, %s74
      %s96 = sphi 0, %s98
      %s99 = sphi 0, %s96
      %s100 = sphi 0, %s99
      %s116 = sphi 0, %s100
      %s122 = sphi 0, %s124
      %s125 = sphi 0, %s122
      %s126 = sphi 0, %s125
      %s142 = sphi 0, %s126
      %s148 = sphi 0, %s150
      %s151 = sphi 0, %s148
      %s152 = sphi 0, %s151
      %s168 = sphi 0, %s152
      %s176 = sphi 0, %s178
      %s179 = sphi 0, %s176
      %s180 = sphi 0, %s179
      %s196 = sphi 0, %s180
    $region4: #{_lambda_.11} parent=1 // loop_header_branch
      %14 = sbr.rel (%p12) target = $region8
    $region5: #{_lambda_.11} parent=1 // loop_body
      %s16 = ssub.s32 %s11, 1
      %s17 = ssub.s32 %s11, 2
      %s27 = sadd.s32 1, %s20
      %p28 = scmp.ge.s32.totalorder %s27, 1
      %s29 = scalar_select %p28, 0, %s27
      %s30 = sadd.s32 1, %s19
      %s31 = scalar_select %p28, %s30, %s19
      %p32 = scmp.ge.s32.totalorder %s31, 3
      %s33 = scalar_select %p32, 0, %s31
      %s34 = sadd.s32 1, %s18
      %s35 = scalar_select %p32, %s34, %s18
      %p36 = scmp.ge.s32.totalorder %s35, 1
      %s37 = scalar_select %p36, 0, %s35
      %s38 = ssub.s32 %s18, %s37
      %s39 = ssub.s32 %s20, %s29
      %s40 = sor.u32 %s38, %s39
      %p41 = scmp.eq.s32.totalorder %s40, 0
      %s43 = sadd.s32 %s42, 1
      %s44 = scalar_select %p41, %s42, %s43
      %p47 = pneg %p41
      %p48 = scmp.eq.s32.totalorder %s11, 2
      %p49 = por %p47, %p48
      %p50 = scmp.ne.s32.totalorder %s42, %s45
      %p51 = scmp.eq.s32.totalorder %s11, 0
      %p52 = por %p50, %p51
      %p53 = scmp.ne.s32.totalorder %s42, %s45
      %p54 = scmp.eq.s32.totalorder %s16, 2
      %p55 = por %p53, %p54
      %p56 = scmp.ne.s32.totalorder %s45, %s46
      %p57 = scmp.eq.s32.totalorder %s16, 0
      %p58 = por %p56, %p57
      %p59 = scmp.ne.s32.totalorder %s45, %s46
      %p60 = scmp.eq.s32.totalorder %s17, 2
      %p61 = por %p59, %p60
      %p63 = scmp.ne.s32.totalorder %s46, %s62
      %p64 = scmp.eq.s32.totalorder %s17, 0
      %p65 = por %p63, %p64
      %s66 = ssub.s32 %s20, %s29
      %s67 = ssub.s32 %s19, %s33
      %s68 = sor.u32 %s66, %s67
      %p69 = scmp.eq.s32.totalorder %s68, 0
      %s71 = sadd.s32 %s70, 1
      %s72 = scalar_select %p69, %s70, %s71
      %p75 = pneg %p69
      %p76 = scmp.eq.s32.totalorder %s11, 2
      %p77 = por %p75, %p76
      %p78 = scmp.ne.s32.totalorder %s70, %s73
      %p79 = scmp.eq.s32.totalorder %s11, 0
      %p80 = por %p78, %p79
      %p81 = scmp.ne.s32.totalorder %s70, %s73
      %p82 = scmp.eq.s32.totalorder %s16, 2
      %p83 = por %p81, %p82
      %p84 = scmp.ne.s32.totalorder %s73, %s74
      %p85 = scmp.eq.s32.totalorder %s16, 0
      %p86 = por %p84, %p85
      %p87 = scmp.ne.s32.totalorder %s73, %s74
      %p88 = scmp.eq.s32.totalorder %s17, 2
      %p89 = por %p87, %p88
      %p91 = scmp.ne.s32.totalorder %s74, %s90
      %p92 = scmp.eq.s32.totalorder %s17, 0
      %p93 = por %p91, %p92
      %s94 = ssub.s32 %s20, %s29
      %p95 = scmp.eq.s32.totalorder %s94, 0
      %s97 = sadd.s32 %s96, 1
      %s98 = scalar_select %p95, %s96, %s97
      %p101 = pneg %p95
      %p102 = scmp.eq.s32.totalorder %s11, 2
      %p103 = por %p101, %p102
      %p104 = scmp.ne.s32.totalorder %s96, %s99
      %p105 = scmp.eq.s32.totalorder %s11, 0
      %p106 = por %p104, %p105
      %p107 = scmp.ne.s32.totalorder %s96, %s99
      %p108 = scmp.eq.s32.totalorder %s16, 2
      %p109 = por %p107, %p108
      %p110 = scmp.ne.s32.totalorder %s99, %s100
      %p111 = scmp.eq.s32.totalorder %s16, 0
      %p112 = por %p110, %p111
      %p113 = scmp.ne.s32.totalorder %s99, %s100
      %p114 = scmp.eq.s32.totalorder %s17, 2
      %p115 = por %p113, %p114
      %p117 = scmp.ne.s32.totalorder %s100, %s116
      %p118 = scmp.eq.s32.totalorder %s17, 0
      %p119 = por %p117, %p118
      %s120 = ssub.s32 %s20, %s29
      %p121 = scmp.eq.s32.totalorder %s120, 0
      %s123 = sadd.s32 %s122, 1
      %s124 = scalar_select %p121, %s122, %s123
      %p127 = pneg %p121
      %p128 = scmp.eq.s32.totalorder %s11, 2
      %p129 = por %p127, %p128
      %p130 = scmp.ne.s32.totalorder %s122, %s125
      %p131 = scmp.eq.s32.totalorder %s11, 0
      %p132 = por %p130, %p131
      %p133 = scmp.ne.s32.totalorder %s122, %s125
      %p134 = scmp.eq.s32.totalorder %s16, 2
      %p135 = por %p133, %p134
      %p136 = scmp.ne.s32.totalorder %s125, %s126
      %p137 = scmp.eq.s32.totalorder %s16, 0
      %p138 = por %p136, %p137
      %p139 = scmp.ne.s32.totalorder %s125, %s126
      %p140 = scmp.eq.s32.totalorder %s17, 2
      %p141 = por %p139, %p140
      %p143 = scmp.ne.s32.totalorder %s126, %s142
      %p144 = scmp.eq.s32.totalorder %s17, 0
      %p145 = por %p143, %p144
      %s146 = ssub.s32 %s19, %s33
      %p147 = scmp.eq.s32.totalorder %s146, 0
      %s149 = sadd.s32 %s148, 1
      %s150 = scalar_select %p147, %s148, %s149
      %p153 = pneg %p147
      %p154 = scmp.eq.s32.totalorder %s11, 2
      %p155 = por %p153, %p154
      %p156 = scmp.ne.s32.totalorder %s148, %s151
      %p157 = scmp.eq.s32.totalorder %s11, 0
      %p158 = por %p156, %p157
      %p159 = scmp.ne.s32.totalorder %s148, %s151
      %p160 = scmp.eq.s32.totalorder %s16, 2
      %p161 = por %p159, %p160
      %p162 = scmp.ne.s32.totalorder %s151, %s152
      %p163 = scmp.eq.s32.totalorder %s16, 0
      %p164 = por %p162, %p163
      %p165 = scmp.ne.s32.totalorder %s151, %s152
      %p166 = scmp.eq.s32.totalorder %s17, 2
      %p167 = por %p165, %p166
      %p169 = scmp.ne.s32.totalorder %s152, %s168
      %p170 = scmp.eq.s32.totalorder %s17, 0
      %p171 = por %p169, %p170
      %s172 = ssub.s32 %s18, %s37
      %s173 = ssub.s32 %s19, %s33
      %s174 = sor.u32 %s172, %s173
      %p175 = scmp.eq.s32.totalorder %s174, 0
      %s177 = sadd.s32 %s176, 1
      %s178 = scalar_select %p175, %s176, %s177
      %p181 = pneg %p175
      %p182 = scmp.eq.s32.totalorder %s11, 2
      %p183 = por %p181, %p182
      %p184 = scmp.ne.s32.totalorder %s176, %s179
      %p185 = scmp.eq.s32.totalorder %s11, 0
      %p186 = por %p184, %p185
      %p187 = scmp.ne.s32.totalorder %s176, %s179
      %p188 = scmp.eq.s32.totalorder %s16, 2
      %p189 = por %p187, %p188
      %p190 = scmp.ne.s32.totalorder %s179, %s180
      %p191 = scmp.eq.s32.totalorder %s16, 0
      %p192 = por %p190, %p191
      %p193 = scmp.ne.s32.totalorder %s179, %s180
      %p194 = scmp.eq.s32.totalorder %s17, 2
      %p195 = por %p193, %p194
      %p197 = scmp.ne.s32.totalorder %s180, %s196
      %p198 = scmp.eq.s32.totalorder %s17, 0
      %p199 = por %p197, %p198
      %p200 = scmp.le.s32.totalorder 1, %s11
      %p201 = scmp.lt.s32.totalorder %s11, 4
      %p202 = pnand %p200, %p201
      %p203 = pneg %p202
      // Predicated region
      $region9: #{_lambda_.11} parent=5 // pred_check
        _
      $region10: #{_lambda_.11} parent=5 // pred_check_branch
        %205 = sbr.rel (%p202) target = $region12
      $region11: #{_lambda_.11} parent=5 // pred_region
        %s206 = ssub.s32 %s11, 1
        // Predicated region
        $region13: #{_lambda_.11} parent=11 // pred_check
          %p207 = pneg %p58
        $region14: #{_lambda_.11} parent=11 // pred_check_branch
          %209 = sbr.rel (%p207) target = $region16
        $region15: #{_lambda_.11} parent=11 // pred_region
          %s210 = smul.u32 4, %s21
          %p211 = scmp.lt.s32.totalorder %s210, 3
          %s212 = scalar_select %p211, %s210, 3
          %p213 = scmp.lt.s32.totalorder %s23, 0
          %s214 = scalar_select %p213, %s23, 0
          %s215 = sadd.s32 %s214, %s212
          %s216 = smul.addr %s215, 4
          %s217 = scalar_lea.vmem %s0, %s216
          %s218 = smul.u32 4, %s21
        $region16: #{_lambda_.11} parent=11 // pred_fallthru
          _
        // Predicated region
        $region17: #{_lambda_.11} parent=11 // pred_check
          %p219 = pneg %p112
        $region18: #{_lambda_.11} parent=11 // pred_check_branch
          %221 = sbr.rel (%p219) target = $region20
        $region19: #{_lambda_.11} parent=11 // pred_region
          %p222 = scmp.lt.s32.totalorder %s23, 0
          %s223 = scalar_select %p222, %s23, 0
          %s224 = scalar_lea.vmem %s2, %s223
        $region20: #{_lambda_.11} parent=11 // pred_fallthru
          _
        // Predicated region
        $region21: #{_lambda_.11} parent=11 // pred_check
          %p225 = pneg %p138
        $region22: #{_lambda_.11} parent=11 // pred_check_branch
          %227 = sbr.rel (%p225) target = $region24
        $region23: #{_lambda_.11} parent=11 // pred_region
          %p228 = scmp.lt.s32.totalorder %s23, 0
          %s229 = scalar_select %p228, %s23, 0
          %s230 = scalar_lea.vmem %s3, %s229
        $region24: #{_lambda_.11} parent=11 // pred_fallthru
          _
      $region12: #{_lambda_.11} parent=5 // pred_fallthru
        _
      %p231 = scmp.lt.s32.totalorder %s11, 3
      // Predicated region
      $region25: #{_lambda_.11} parent=5 // pred_check
        %p232 = pneg %p231
      $region26: #{_lambda_.11} parent=5 // pred_check_branch
        %234 = sbr.rel (%p232) target = $region28
      $region27: #{_lambda_.11} parent=5 // pred_region
        // Predicated region
        $region29: #{_lambda_.11} parent=27 // pred_check
          %p235 = pneg %p80
        $region30: #{_lambda_.11} parent=27 // pred_check_branch
          %237 = sbr.rel (%p235) target = $region32
        $region31: #{_lambda_.11} parent=27 // pred_region
          %s238 = sand.u32 %s70, 1
          %s239 = sand.u32 %s70, 1
          %s240 = smul.addr %s239, 64
          %s241 = scalar_lea.vmem [#allocation3], %s240
          %s242 = smul.u32 16, %s20
          %s243 = smul.addr %s242, 3
          %s244 = sadd.s32 %s19, %s243
          %s245 = smul.addr %s244, 4
          %s246 = scalar_lea.vmem %s1, %s245
          // Predicated region
          $region33: #{_lambda_.11} parent=31 // pred_check
            _
          $region34: #{_lambda_.11} parent=31 // pred_check_branch
            %248 = sbr.rel (0) target = $region36
          $region35: #{_lambda_.11} parent=31 // pred_region
            // Predicated region
            $region37: #{_lambda_.11} parent=35 // pred_check
              _
            $region38: #{_lambda_.11} parent=35 // pred_check_branch
              %250 = sbr.rel target = $region40
            $region39: #{_lambda_.11} parent=35 // pred_region
              // Predicated region
              $region52: #{_lambda_.11} parent=39 // pred_check
                _
              $region53: #{_lambda_.11} parent=39 // pred_check_branch
                %296 = sbr.rel (0) target = $region55
              $region54: #{_lambda_.11} parent=39 // pred_region
                loop: start=0, step=1, limit=1
                $region56: #{_lambda_.11} parent=54 // loop_pre_header
                  _
                $region57: #{_lambda_.11} parent=54 // loop_header
                  %s298 = sphi 0, %s302
                  %p299 = scmp.ge.s32.totalorder %s298, 1
                  %s303 = sphi %s246, %s246
                  %s304 = sphi %s241, %s241
                $region58: #{_lambda_.11} parent=54 // loop_header_branch
                  %301 = sbr.rel (%p299) target = $region62
                $region59: #{_lambda_.11} parent=54 // loop_body
                  _
                $region60: #{_lambda_.11} parent=54 // loop_footer
                  %s302 = sadd.s32 1, %s298
                $region61: #{_lambda_.11} parent=54 // loop_footer_branch
                  %297 = sbr.rel target = $region57
                $region62: #{_lambda_.11} parent=54 // loop_exit
                  _
                %s306 = ssub.s32 16, 1
                loop: start=0, step=1, limit=1
                $region63: #{_lambda_.11} parent=54 // loop_pre_header
                  _
                $region64: #{_lambda_.11} parent=54 // loop_header
                  %s308 = sphi 0, %s312
                  %p309 = scmp.ge.s32.totalorder %s308, 1
                  %s313 = sphi %s246, %s246
                  %s314 = sphi %s241, %s241
                $region65: #{_lambda_.11} parent=54 // loop_header_branch
                  %311 = sbr.rel (%p309) target = $region69
                $region66: #{_lambda_.11} parent=54 // loop_body
                  %v315 = vld [vmem:[%s313] sm:%s306]
                  %316 = vst [vmem:[%s314] sm:%s306] %v315
                  %v317 = vld [vmem:[%s313 + $0xc] sm:%s306]
                  %318 = vst [vmem:[%s314 + $0x4] sm:%s306] %v317
                  %v319 = vld [vmem:[%s313 + $0x18] sm:%s306]
                  %320 = vst [vmem:[%s314 + $0x8] sm:%s306] %v319
                  %v321 = vld [vmem:[%s313 + $0x24] sm:%s306]
                  %322 = vst [vmem:[%s314 + $0xc] sm:%s306] %v321
                  %v323 = vld [vmem:[%s313 + $0x30] sm:%s306]
                  %324 = vst [vmem:[%s314 + $0x10] sm:%s306] %v323
                  %v325 = vld [vmem:[%s313 + $0x3c] sm:%s306]
                  %326 = vst [vmem:[%s314 + $0x14] sm:%s306] %v325
                  %v327 = vld [vmem:[%s313 + $0x48] sm:%s306]
                  %328 = vst [vmem:[%s314 + $0x18] sm:%s306] %v327
                  %v329 = vld [vmem:[%s313 + $0x54] sm:%s306]
                  %330 = vst [vmem:[%s314 + $0x1c] sm:%s306] %v329
                  %v331 = vld [vmem:[%s313 + $0x60] sm:%s306]
                  %332 = vst [vmem:[%s314 + $0x20] sm:%s306] %v331
                  %v333 = vld [vmem:[%s313 + $0x6c] sm:%s306]
                  %334 = vst [vmem:[%s314 + $0x24] sm:%s306] %v333
                  %v335 = vld [vmem:[%s313 + $0x78] sm:%s306]
                  %336 = vst [vmem:[%s314 + $0x28] sm:%s306] %v335
                  %v337 = vld [vmem:[%s313 + $0x84] sm:%s306]
                  %338 = vst [vmem:[%s314 + $0x2c] sm:%s306] %v337
                  %v339 = vld [vmem:[%s313 + $0x90] sm:%s306]
                  %340 = vst [vmem:[%s314 + $0x30] sm:%s306] %v339
                  %v341 = vld [vmem:[%s313 + $0x9c] sm:%s306]
                  %342 = vst [vmem:[%s314 + $0x34] sm:%s306] %v341
                  %v343 = vld [vmem:[%s313 + $0xa8] sm:%s306]
                  %344 = vst [vmem:[%s314 + $0x38] sm:%s306] %v343
                  %v345 = vld [vmem:[%s313 + $0xb4] sm:%s306]
                  %346 = vst [vmem:[%s314 + $0x3c] sm:%s306] %v345
                $region67: #{_lambda_.11} parent=54 // loop_footer
                  %s312 = sadd.s32 1, %s308
                $region68: #{_lambda_.11} parent=54 // loop_footer_branch
                  %307 = sbr.rel target = $region64
                $region69: #{_lambda_.11} parent=54 // loop_exit
                  _
              $region55: #{_lambda_.11} parent=39 // pred_fallthru
                _
            $region40: #{_lambda_.11} parent=35 // pred_fallthru
              _
            // Predicated region
            $region41: #{_lambda_.11} parent=35 // pred_check
              _
            $region42: #{_lambda_.11} parent=35 // pred_check_branch
              %252 = sbr.rel (0) target = $region44
            $region43: #{_lambda_.11} parent=35 // pred_region
              %s254 = ssub.s32 16, 1
              loop: start=0, step=1, limit=1
              $region45: #{_lambda_.11} parent=43 // loop_pre_header
                _
              $region46: #{_lambda_.11} parent=43 // loop_header
                %s256 = sphi 0, %s260
                %p257 = scmp.ge.s32.totalorder %s256, 1
                %s261 = sphi %s246, %s246
                %s262 = sphi %s241, %s241
              $region47: #{_lambda_.11} parent=43 // loop_header_branch
                %259 = sbr.rel (%p257) target = $region51
              $region48: #{_lambda_.11} parent=43 // loop_body
                %v263 = vld [vmem:[%s261] sm:%s254]
                %264 = vst [vmem:[%s262] sm:%s254] %v263
                %v265 = vld [vmem:[%s261 + $0xc] sm:%s254]
                %266 = vst [vmem:[%s262 + $0x4] sm:%s254] %v265
                %v267 = vld [vmem:[%s261 + $0x18] sm:%s254]
                %268 = vst [vmem:[%s262 + $0x8] sm:%s254] %v267
                %v269 = vld [vmem:[%s261 + $0x24] sm:%s254]
                %270 = vst [vmem:[%s262 + $0xc] sm:%s254] %v269
                %v271 = vld [vmem:[%s261 + $0x30] sm:%s254]
                %272 = vst [vmem:[%s262 + $0x10] sm:%s254] %v271
                %v273 = vld [vmem:[%s261 + $0x3c] sm:%s254]
                %274 = vst [vmem:[%s262 + $0x14] sm:%s254] %v273
                %v275 = vld [vmem:[%s261 + $0x48] sm:%s254]
                %276 = vst [vmem:[%s262 + $0x18] sm:%s254] %v275
                %v277 = vld [vmem:[%s261 + $0x54] sm:%s254]
                %278 = vst [vmem:[%s262 + $0x1c] sm:%s254] %v277
                %v279 = vld [vmem:[%s261 + $0x60] sm:%s254]
                %280 = vst [vmem:[%s262 + $0x20] sm:%s254] %v279
                %v281 = vld [vmem:[%s261 + $0x6c] sm:%s254]
                %282 = vst [vmem:[%s262 + $0x24] sm:%s254] %v281
                %v283 = vld [vmem:[%s261 + $0x78] sm:%s254]
                %284 = vst [vmem:[%s262 + $0x28] sm:%s254] %v283
                %v285 = vld [vmem:[%s261 + $0x84] sm:%s254]
                %286 = vst [vmem:[%s262 + $0x2c] sm:%s254] %v285
                %v287 = vld [vmem:[%s261 + $0x90] sm:%s254]
                %288 = vst [vmem:[%s262 + $0x30] sm:%s254] %v287
                %v289 = vld [vmem:[%s261 + $0x9c] sm:%s254]
                %290 = vst [vmem:[%s262 + $0x34] sm:%s254] %v289
                %v291 = vld [vmem:[%s261 + $0xa8] sm:%s254]
                %292 = vst [vmem:[%s262 + $0x38] sm:%s254] %v291
                %v293 = vld [vmem:[%s261 + $0xb4] sm:%s254]
                %294 = vst [vmem:[%s262 + $0x3c] sm:%s254] %v293
              $region49: #{_lambda_.11} parent=43 // loop_footer
                %s260 = sadd.s32 1, %s256
              $region50: #{_lambda_.11} parent=43 // loop_footer_branch
                %255 = sbr.rel target = $region46
              $region51: #{_lambda_.11} parent=43 // loop_exit
                _
            $region44: #{_lambda_.11} parent=35 // pred_fallthru
              _
          $region36: #{_lambda_.11} parent=31 // pred_fallthru
            _
          %347 = vnop
        $region32: #{_lambda_.11} parent=27 // pred_fallthru
          _
        // Predicated region
        $region70: #{_lambda_.11} parent=27 // pred_check
          %p348 = pneg %p158
        $region71: #{_lambda_.11} parent=27 // pred_check_branch
          %350 = sbr.rel (%p348) target = $region73
        $region72: #{_lambda_.11} parent=27 // pred_region
          %p351 = scmp.lt.s32.totalorder %s19, 2
          %s352 = scalar_select %p351, %s19, 2
          %s353 = scalar_lea.vmem %s4, %s352
        $region73: #{_lambda_.11} parent=27 // pred_fallthru
          _
      $region28: #{_lambda_.11} parent=5 // pred_fallthru
        _
      %p354 = scmp.le.s32.totalorder 1, %s11
      %p355 = scmp.lt.s32.totalorder %s11, 4
      %p356 = pnand %p354, %p355
      %p357 = pneg %p356
      // Predicated region
      $region74: #{_lambda_.11} parent=5 // pred_check
        _
      $region75: #{_lambda_.11} parent=5 // pred_check_branch
        %359 = sbr.rel (%p356) target = $region77
      $region76: #{_lambda_.11} parent=5 // pred_region
        %s360 = ssub.s32 %s11, 1
        %s361 = sand.u32 %s73, 1
        %s362 = sand.u32 %s73, 1
        %s363 = smul.addr %s362, 64
        %s364 = scalar_lea.vmem [#allocation3], %s363
        // Predicated region
        $region78: #{_lambda_.11} parent=76 // pred_check
          %p365 = pneg %p86
        $region79: #{_lambda_.11} parent=76 // pred_check_branch
          %367 = sbr.rel (%p365) target = $region81
        $region80: #{_lambda_.11} parent=76 // pred_region
          _
        $region81: #{_lambda_.11} parent=76 // pred_fallthru
          _
        %s368 = smul.u32 4, %s21
        %p369 = scmp.lt.s32.totalorder %s368, 3
        %s370 = scalar_select %p369, %s368, 3
        %p371 = scmp.lt.s32.totalorder %s23, 0
        %s372 = scalar_select %p371, %s23, 0
        %s373 = sadd.s32 %s372, %s370
        %s374 = smul.addr %s373, 4
        %s375 = scalar_lea.vmem %s0, %s374
        %p376 = pneg %p58
        %p377 = pneg %p55
        %s378 = sand.u32 %s73, 1
        %s379 = sand.u32 %s73, 1
        %s380 = smul.addr %s379, 64
        %s381 = scalar_lea.vmem [#allocation3], %s380
        %p382 = pneg %p86
        %p383 = pneg %p83
        %p384 = scmp.lt.s32.totalorder %s23, 0
        %s385 = scalar_select %p384, %s23, 0
        %s386 = scalar_lea.vmem %s2, %s385
        %p387 = pneg %p112
        %p388 = pneg %p109
        %p389 = scmp.lt.s32.totalorder %s23, 0
        %s390 = scalar_select %p389, %s23, 0
        %s391 = scalar_lea.vmem %s3, %s390
        %p392 = pneg %p138
        %p393 = pneg %p135
        %p394 = scmp.lt.s32.totalorder %s22, 2
        %s395 = scalar_select %p394, %s22, 2
        %s396 = scalar_lea.vmem %s4, %s395
        %p397 = pneg %p164
        %p398 = pneg %p161
        %p399 = pneg %p192
        %p400 = pneg %p189
        %s401 = sand.u32 %s179, 1
        %s402 = sand.u32 %s179, 1
        %s403 = smul.addr %s402, 16
        %s404 = scalar_lea.vmem [#allocation4], %s403
        %s405 = smul.u32 4, %s21
        %p406 = scmp.lt.s32.totalorder %s405, 3
        %s407 = scalar_select %p406, %s405, 3
        %p408 = scmp.lt.s32.totalorder %s23, 0
        %s409 = scalar_select %p408, %s23, 0
        %s410 = sadd.s32 %s409, %s407
        %s411 = smul.addr %s410, 4
        %s412 = scalar_lea.vmem %s0, %s411
        %s413 = smul.u32 4, %s21
        %s414 = smul.u32 16, %s23
        %p415 = scmp.lt.s32.totalorder %s23, 0
        %s416 = scalar_select %p415, %s23, 0
        %s417 = scalar_lea.vmem %s2, %s416
        %p418 = scmp.lt.s32.totalorder %s23, 0
        %s419 = scalar_select %p418, %s23, 0
        %s420 = scalar_lea.vmem %s3, %s419
        %p421 = scmp.lt.s32.totalorder %s22, 2
        %s422 = scalar_select %p421, %s22, 2
        %s423 = scalar_lea.vmem %s4, %s422
        %s424 = smul.u32 4, %s21
        %p426 = scmp.eq.s32.totalorder %s23, 0
        // Predicated region
        $region82: #{_lambda_.11} parent=76 // pred_check
          %p427 = pneg %p426
        $region83: #{_lambda_.11} parent=76 // pred_check_branch
          %429 = sbr.rel (%p427) target = $region85
        $region84: #{_lambda_.11} parent=76 // pred_region
          %430 = vst [vmem:[#allocation2] sm:$0xff] 0.0
          %431 = vst [vmem:[#allocation2 + $0x8] sm:$0xff] 0.0
          %432 = vst [vmem:[#allocation2 + $0x10] sm:$0xff] 0.0
          %433 = vst [vmem:[#allocation2 + $0x18] sm:$0xff] 0.0
        $region85: #{_lambda_.11} parent=76 // pred_fallthru
          _
        %v434 = vld [vmem:[%s412] sm:$0xf]
        %v435 = vld [vmem:[%s412 + $0x4] sm:$0xf]
        %v436 = vld [vmem:[%s412 + $0x8] sm:$0xf]
        %v437 = vld [vmem:[%s412 + $0xc] sm:$0xf]
        %v438 = vunpack.c.l.bf16 %v434
        %v439 = vunpack.c.l.bf16 %v435
        %v440 = vunpack.c.l.bf16 %v436
        %v441 = vunpack.c.l.bf16 %v437
        %442 = vadd.xlane.f32.xlu0 %v438
        %v443 = vpop.xlane.xlu0 %442
        %444 = vadd.xlane.f32.xlu0 %v439
        %v445 = vpop.xlane.xlu0 %444
        %446 = vadd.xlane.f32.xlu0 %v440
        %v447 = vpop.xlane.xlu0 %446
        %448 = vadd.xlane.f32.xlu0 %v441
        %v449 = vpop.xlane.xlu0 %448
        %v450 = vrcp.pop 128.0
        %v451 = vmul.f32 %v443, %v450
        %v452 = vmul.f32 %v445, %v450
        %v453 = vmul.f32 %v447, %v450
        %v454 = vmul.f32 %v449, %v450
        %v455 = vsub.f32 %v438, %v451
        %v456 = vsub.f32 %v439, %v452
        %v457 = vsub.f32 %v440, %v453
        %v458 = vsub.f32 %v441, %v454
        %v459 = vmul.f32 %v455, %v455
        %v460 = vmul.f32 %v456, %v456
        %v461 = vmul.f32 %v457, %v457
        %v462 = vmul.f32 %v458, %v458
        %463 = vadd.xlane.f32.xlu0 %v459
        %v464 = vpop.xlane.xlu0 %463
        %465 = vadd.xlane.f32.xlu0 %v460
        %v466 = vpop.xlane.xlu0 %465
        %467 = vadd.xlane.f32.xlu0 %v461
        %v468 = vpop.xlane.xlu0 %467
        %469 = vadd.xlane.f32.xlu0 %v462
        %v470 = vpop.xlane.xlu0 %469
        %v471 = vmul.f32 %v464, %v450
        %v472 = vmul.f32 %v466, %v450
        %v473 = vmul.f32 %v468, %v450
        %v474 = vmul.f32 %v470, %v450
        %v475 = vadd.f32 %v471, 1e-05
        %v476 = vadd.f32 %v472, 1e-05
        %v477 = vadd.f32 %v473, 1e-05
        %v478 = vadd.f32 %v474, 1e-05
        %v479 = vrsqrt.pop %v475
        %v480 = vrsqrt.pop %v476
        %v481 = vrsqrt.pop %v477
        %v482 = vrsqrt.pop %v478
        %v483 = vmul.f32 %v455, %v479
        %v484 = vmul.f32 %v456, %v480
        %v485 = vmul.f32 %v457, %v481
        %v486 = vmul.f32 %v458, %v482
        %v487 = vld [vmem:[%s417] sm:$0x1]
        %v488 = vunpack.c.l.bf16 %v487
        %v489 = vlaneseq
        %v490 = vshrl.u32 %v489, 7
        %v491 = vsub.s32 0, %v490
        %v492 = vrot.slane %v488, %v491
        %v493 = vmul.f32 %v483, %v492
        %v494 = vmul.f32 %v484, %v492
        %v495 = vmul.f32 %v485, %v492
        %v496 = vmul.f32 %v486, %v492
        %v497 = vld [vmem:[%s420] sm:$0x1]
        %v498 = vunpack.c.l.bf16 %v497
        %v499 = vlaneseq
        %v500 = vshrl.u32 %v499, 7
        %v501 = vsub.s32 0, %v500
        %v502 = vrot.slane %v498, %v501
        %v503 = vadd.f32 %v493, %v502
        %v504 = vadd.f32 %v494, %v502
        %v505 = vadd.f32 %v495, %v502
        %v506 = vadd.f32 %v496, %v502
        %v507 = vpack.c.bf16 %v504, %v503
        %v508 = vpack.c.bf16 %v506, %v505
        %v509 = vld [vmem:[#allocation2] sm:$0xff]
        %v510 = vld [vmem:[#allocation2 + $0x8] sm:$0xff]
        %v511 = vld [vmem:[#allocation2 + $0x10] sm:$0xff]
        %v512 = vld [vmem:[#allocation2 + $0x18] sm:$0xff]
        %v513 = vld [vmem:[%s364] sm:$0xf]
        %v514 = vld [vmem:[%s364 + $0x4] sm:$0xf]
        %v515 = vld [vmem:[%s364 + $0x8] sm:$0xf]
        %v516 = vld [vmem:[%s364 + $0xc] sm:$0xf]
        %v517 = vld [vmem:[%s364 + $0x10] sm:$0xf]
        %v518 = vld [vmem:[%s364 + $0x14] sm:$0xf]
        %v519 = vld [vmem:[%s364 + $0x18] sm:$0xf]
        %v520 = vld [vmem:[%s364 + $0x1c] sm:$0xf]
        %v521 = vld [vmem:[%s364 + $0x20] sm:$0xf]
        %v522 = vld [vmem:[%s364 + $0x24] sm:$0xf]
        %v523 = vld [vmem:[%s364 + $0x28] sm:$0xf]
        %v524 = vld [vmem:[%s364 + $0x2c] sm:$0xf]
        %v525 = vld [vmem:[%s364 + $0x30] sm:$0xf]
        %v526 = vld [vmem:[%s364 + $0x34] sm:$0xf]
        %v527 = vld [vmem:[%s364 + $0x38] sm:$0xf]
        %v528 = vld [vmem:[%s364 + $0x3c] sm:$0xf]
        %v545 = vunpack.c.l.b16 %v513
        %v546 = vunpack.c.l.b16 %v514
        %v547 = vunpack.c.l.b16 %v515
        %v548 = vunpack.c.l.b16 %v516
        %v549 = vunpack.c.l.b16 %v517
        %v550 = vunpack.c.l.b16 %v518
        %v551 = vunpack.c.l.b16 %v519
        %v552 = vunpack.c.l.b16 %v520
        %v553 = vunpack.c.l.b16 %v521
        %v554 = vunpack.c.l.b16 %v522
        %v555 = vunpack.c.l.b16 %v523
        %v556 = vunpack.c.l.b16 %v524
        %v557 = vunpack.c.l.b16 %v525
        %v558 = vunpack.c.l.b16 %v526
        %v559 = vunpack.c.l.b16 %v527
        %v560 = vunpack.c.l.b16 %v528
        %v561 = vpack.c.b16 %v546, %v545
        %v562 = vpack.c.b16 %v548, %v547
        %v563 = vpack.c.b16 %v550, %v549
        %v564 = vpack.c.b16 %v552, %v551
        %v565 = vpack.c.b16 %v554, %v553
        %v566 = vpack.c.b16 %v556, %v555
        %v567 = vpack.c.b16 %v558, %v557
        %v568 = vpack.c.b16 %v560, %v559
        %577 = vmatprep.subr.bf16.mxu0 0
        %578 = vmatpush1.bf16.msra.mxu0 %v568
        %579 = vmatprep.subr.bf16.mxu0 0
        %580 = vmatpush1.bf16.msra.mxu0 %v567
        %581 = vmatprep.subr.bf16.mxu0 0
        %582 = vmatpush1.bf16.msra.mxu0 %v566
        %583 = vmatprep.subr.bf16.mxu0 0
        %584 = vmatpush1.bf16.msra.mxu0 %v565
        %585 = vmatprep.subr.bf16.mxu0 0
        %586 = vmatpush1.bf16.msra.mxu0 %v564
        %587 = vmatprep.subr.bf16.mxu0 0
        %588 = vmatpush1.bf16.msra.mxu0 %v563
        %589 = vmatprep.subr.bf16.mxu0 0
        %590 = vmatpush1.bf16.msra.mxu0 %v562
        %591 = vmatprep.subr.bf16.mxu0 0
        %592 = vmatpush1.bf16.msra.mxu0 %v561
        %593 = vmatprep.subr.bf16.mxu0 0
        %594 = vmatpush2.bf16.msra.mxu0 0
        %595 = vmatprep.subr.bf16.mxu0 0
        %596 = vmatpush2.bf16.msra.mxu0 0
        %597 = vmatprep.subr.bf16.mxu0 0
        %598 = vmatpush2.bf16.msra.mxu0 0
        %599 = vmatprep.subr.bf16.mxu0 0
        %600 = vmatpush2.bf16.msra.mxu0 0
        %601 = vmatprep.subr.bf16.mxu0 0
        %602 = vmatpush2.bf16.msra.mxu0 0
        %603 = vmatprep.subr.bf16.mxu0 0
        %604 = vmatpush2.bf16.msra.mxu0 0
        %605 = vmatprep.subr.bf16.mxu0 0
        %606 = vmatpush2.bf16.msra.mxu0 0
        %607 = vmatprep.subr.bf16.mxu0 0
        %608 = vmatpush2.bf16.msra.mxu0 0
        %609 = vmatprep.mubr.bf16.mxu0 0
        %610 = vmatmul.mubr.bf16.gmra.mxu0 %v507
        %v611 = vpop.f32.mrf.mxu0
        %v612 = vadd.f32 0.0, %v611
        %v613 = vpop.f32.mrf.mxu0
        %v614 = vpop.f32.mrf.mxu0
        %v615 = vadd.f32 0.0, %v614
        %v616 = vpop.f32.mrf.mxu0
        %617 = vmatprep.mubr.bf16.mxu0 0
        %618 = vmatmul.mubr.bf16.gmra.mxu0 %v508
        %v619 = vpop.f32.mrf.mxu0
        %v620 = vadd.f32 0.0, %v619
        %v621 = vpop.f32.mrf.mxu0
        %v622 = vpop.f32.mrf.mxu0
        %v623 = vadd.f32 0.0, %v622
        %v624 = vpop.f32.mrf.mxu0
        %625 = vdwg.mxu0
        %v626 = vadd.f32 %v509, %v612
        %v627 = vadd.f32 %v510, %v615
        %v628 = vadd.f32 %v511, %v620
        %v629 = vadd.f32 %v512, %v623
        %630 = vst [vmem:[#allocation2] sm:$0xff] %v626
        %631 = vst [vmem:[#allocation2 + $0x8] sm:$0xff] %v627
        %632 = vst [vmem:[#allocation2 + $0x10] sm:$0xff] %v628
        %633 = vst [vmem:[#allocation2 + $0x18] sm:$0xff] %v629
        // Predicated region
        $region86: #{_lambda_.11} parent=76 // pred_check
          %p634 = pneg %p426
        $region87: #{_lambda_.11} parent=76 // pred_check_branch
          %636 = sbr.rel (%p634) target = $region89
        $region88: #{_lambda_.11} parent=76 // pred_region
          %v637 = vld [vmem:[#allocation2] sm:$0xff]
          %v638 = vld [vmem:[#allocation2 + $0x8] sm:$0xff]
          %v639 = vld [vmem:[#allocation2 + $0x10] sm:$0xff]
          %v640 = vld [vmem:[#allocation2 + $0x18] sm:$0xff]
          %v641 = vld [vmem:[%s423] sm:$0x1]
          %v642 = vunpack.c.l.bf16 %v641
          %v643 = vlaneseq
          %v644 = vshrl.u32 %v643, 7
          %v645 = vsub.s32 0, %v644
          %v646 = vrot.slane %v642, %v645
          %v647 = vadd.f32 %v637, %v646
          %v648 = vadd.f32 %v638, %v646
          %v649 = vadd.f32 %v639, %v646
          %v650 = vadd.f32 %v640, %v646
          %v651 = vpack.c.bf16 %v648, %v647
          %v652 = vpack.c.bf16 %v650, %v649
          %v655 = vunpack.c.l.b16 %v651
          %v656 = vunpack.c.h.b16 %v651
          %v657 = vunpack.c.l.b16 %v652
          %v658 = vunpack.c.h.b16 %v652
          %v659 = vpack.c.b16 %v655, %v655
          %v660 = vpack.c.b16 %v656, %v656
          %v661 = vpack.c.b16 %v657, %v657
          %v662 = vpack.c.b16 %v658, %v658
          %667 = vst [vmem:[%s404] sm:$0xf] %v659
          %668 = vst [vmem:[%s404 + $0x4] sm:$0xf] %v660
          %669 = vst [vmem:[%s404 + $0x8] sm:$0xf] %v661
          %670 = vst [vmem:[%s404 + $0xc] sm:$0xf] %v662
        $region89: #{_lambda_.11} parent=76 // pred_fallthru
          _
        %s671 = sand.u32 %s179, 1
        %s672 = sand.u32 %s179, 1
        %s673 = smul.addr %s672, 16
        %s674 = scalar_lea.vmem [#allocation4], %s673
        // Predicated region
        $region90: #{_lambda_.11} parent=76 // pred_check
          %p675 = pneg %p189
        $region91: #{_lambda_.11} parent=76 // pred_check_branch
          %677 = sbr.rel (%p675) target = $region93
        $region92: #{_lambda_.11} parent=76 // pred_region
          %s678 = smul.u32 4, %s21
          %s679 = smul.addr %s678, 3
          %s680 = sadd.s32 %s22, %s679
          %s681 = smul.addr %s680, 4
          %s682 = scalar_lea.vmem %s5, %s681
          // Predicated region
          $region94: #{_lambda_.11} parent=92 // pred_check
            _
          $region95: #{_lambda_.11} parent=92 // pred_check_branch
            %684 = sbr.rel (0) target = $region97
          $region96: #{_lambda_.11} parent=92 // pred_region
            // Predicated region
            $region98: #{_lambda_.11} parent=96 // pred_check
              _
            $region99: #{_lambda_.11} parent=96 // pred_check_branch
              %686 = sbr.rel target = $region101
            $region100: #{_lambda_.11} parent=96 // pred_region
              // Predicated region
              $region113: #{_lambda_.11} parent=100 // pred_check
                _
              $region114: #{_lambda_.11} parent=100 // pred_check_branch
                %708 = sbr.rel (0) target = $region116
              $region115: #{_lambda_.11} parent=100 // pred_region
                loop: start=0, step=1, limit=1
                $region117: #{_lambda_.11} parent=115 // loop_pre_header
                  _
                $region118: #{_lambda_.11} parent=115 // loop_header
                  %s710 = sphi 0, %s714
                  %p711 = scmp.ge.s32.totalorder %s710, 1
                  %s715 = sphi %s674, %s674
                  %s716 = sphi %s682, %s682
                $region119: #{_lambda_.11} parent=115 // loop_header_branch
                  %713 = sbr.rel (%p711) target = $region123
                $region120: #{_lambda_.11} parent=115 // loop_body
                  _
                $region121: #{_lambda_.11} parent=115 // loop_footer
                  %s714 = sadd.s32 1, %s710
                $region122: #{_lambda_.11} parent=115 // loop_footer_branch
                  %709 = sbr.rel target = $region118
                $region123: #{_lambda_.11} parent=115 // loop_exit
                  _
                %s718 = ssub.s32 16, 1
                loop: start=0, step=1, limit=1
                $region124: #{_lambda_.11} parent=115 // loop_pre_header
                  _
                $region125: #{_lambda_.11} parent=115 // loop_header
                  %s720 = sphi 0, %s724
                  %p721 = scmp.ge.s32.totalorder %s720, 1
                  %s725 = sphi %s674, %s674
                  %s726 = sphi %s682, %s682
                $region126: #{_lambda_.11} parent=115 // loop_header_branch
                  %723 = sbr.rel (%p721) target = $region130
                $region127: #{_lambda_.11} parent=115 // loop_body
                  %v727 = vld [vmem:[%s725] sm:%s718]
                  %728 = vst [vmem:[%s726] sm:%s718] %v727
                  %v729 = vld [vmem:[%s725 + $0x4] sm:%s718]
                  %730 = vst [vmem:[%s726 + $0xc] sm:%s718] %v729
                  %v731 = vld [vmem:[%s725 + $0x8] sm:%s718]
                  %732 = vst [vmem:[%s726 + $0x18] sm:%s718] %v731
                  %v733 = vld [vmem:[%s725 + $0xc] sm:%s718]
                  %734 = vst [vmem:[%s726 + $0x24] sm:%s718] %v733
                $region128: #{_lambda_.11} parent=115 // loop_footer
                  %s724 = sadd.s32 1, %s720
                $region129: #{_lambda_.11} parent=115 // loop_footer_branch
                  %719 = sbr.rel target = $region125
                $region130: #{_lambda_.11} parent=115 // loop_exit
                  _
              $region116: #{_lambda_.11} parent=100 // pred_fallthru
                _
            $region101: #{_lambda_.11} parent=96 // pred_fallthru
              _
            // Predicated region
            $region102: #{_lambda_.11} parent=96 // pred_check
              _
            $region103: #{_lambda_.11} parent=96 // pred_check_branch
              %688 = sbr.rel (0) target = $region105
            $region104: #{_lambda_.11} parent=96 // pred_region
              %s690 = ssub.s32 16, 1
              loop: start=0, step=1, limit=1
              $region106: #{_lambda_.11} parent=104 // loop_pre_header
                _
              $region107: #{_lambda_.11} parent=104 // loop_header
                %s692 = sphi 0, %s696
                %p693 = scmp.ge.s32.totalorder %s692, 1
                %s697 = sphi %s674, %s674
                %s698 = sphi %s682, %s682
              $region108: #{_lambda_.11} parent=104 // loop_header_branch
                %695 = sbr.rel (%p693) target = $region112
              $region109: #{_lambda_.11} parent=104 // loop_body
                %v699 = vld [vmem:[%s697] sm:%s690]
                %700 = vst [vmem:[%s698] sm:%s690] %v699
                %v701 = vld [vmem:[%s697 + $0x4] sm:%s690]
                %702 = vst [vmem:[%s698 + $0xc] sm:%s690] %v701
                %v703 = vld [vmem:[%s697 + $0x8] sm:%s690]
                %704 = vst [vmem:[%s698 + $0x18] sm:%s690] %v703
                %v705 = vld [vmem:[%s697 + $0xc] sm:%s690]
                %706 = vst [vmem:[%s698 + $0x24] sm:%s690] %v705
              $region110: #{_lambda_.11} parent=104 // loop_footer
                %s696 = sadd.s32 1, %s692
              $region111: #{_lambda_.11} parent=104 // loop_footer_branch
                %691 = sbr.rel target = $region107
              $region112: #{_lambda_.11} parent=104 // loop_exit
                _
            $region105: #{_lambda_.11} parent=96 // pred_fallthru
              _
          $region97: #{_lambda_.11} parent=92 // pred_fallthru
            _
          %735 = vnop
        $region93: #{_lambda_.11} parent=76 // pred_fallthru
          _
      $region77: #{_lambda_.11} parent=5 // pred_fallthru
        _
      %p736 = scmp.le.s32.totalorder 2, %s11
      // Predicated region
      $region131: #{_lambda_.11} parent=5 // pred_check
        %p737 = pneg %p736
      $region132: #{_lambda_.11} parent=5 // pred_check_branch
        %739 = sbr.rel (%p737) target = $region134
      $region133: #{_lambda_.11} parent=5 // pred_region
        %s740 = ssub.s32 %s11, 2
        // Predicated region
        $region135: #{_lambda_.11} parent=133 // pred_check
          %p741 = pneg %p195
        $region136: #{_lambda_.11} parent=133 // pred_check_branch
          %743 = sbr.rel (%p741) target = $region138
        $region137: #{_lambda_.11} parent=133 // pred_region
          %s744 = sand.u32 %s180, 1
          %s745 = sand.u32 %s180, 1
          %s746 = smul.addr %s745, 16
          %s747 = scalar_lea.vmem [#allocation4], %s746
        $region138: #{_lambda_.11} parent=133 // pred_fallthru
          _
      $region134: #{_lambda_.11} parent=5 // pred_fallthru
        _
    $region6: #{_lambda_.11} parent=1 // loop_footer
      %s15 = sadd.s32 1, %s11
    $region7: #{_lambda_.11} parent=1 // loop_footer_branch
      %10 = sbr.rel target = $region3
    $region8: #{_lambda_.11} parent=1 // loop_exit
      _

// kernel: _lambda_.13
$region0: #{_lambda_.13}
  #allocation0 [shape = 'u32[]', space=smem, size = 0x4, offset = 0x4, fixed_abs, tag = 'smem constant byte address 0x4 - core index']
  #allocation1 [shape = 'u32[144,128]{1,0:T(1,128)}', space=vmem, size = 0x12000, scoped, tag = 'internal scratch']
  #allocation2 [shape = 'f32[32,128]{1,0:T(8,128)}', space=vmem, size = 0x4000, scoped, tag = 'scratch operand']
  %s0 = inlined_call_operand.vmem [shape: bf16[32,128], index: 0, kind: input, shape index: {}]
  %s1 = inlined_call_operand.vmem [shape: bf16[128,128], index: 1, kind: input, shape index: {}]
  %s2 = inlined_call_operand.vmem [shape: bf16[1,128], index: 2, kind: input, shape index: {}]
  %s3 = inlined_call_operand.vmem [shape: bf16[32,128], index: 3, kind: input, shape index: {}]
  %s4 = inlined_call_operand.vmem [shape: bf16[32,128], index: 4, kind: output, shape index: {}]
  %s5 = sld [smem:[#allocation0]]
  $region34: #{_lambda_.13} parent=0
    _
  %s7 = ssub.s32 1, %s5
  %s8 = scalar_select 0, %s7, %s5
  // Predicated region
  $region2: #{_lambda_.13} parent=0 // pred_check
    _
  $region3: #{_lambda_.13} parent=0 // pred_check_branch
    %10 = sbr.rel (0) target = $region5
  $region4: #{_lambda_.13} parent=0 // pred_region
    _
  $region5: #{_lambda_.13} parent=0 // pred_fallthru
    _
  // Predicated region
  $region6: #{_lambda_.13} parent=0 // pred_check
    _
  $region7: #{_lambda_.13} parent=0 // pred_check_branch
    %12 = sbr.rel (0) target = $region9
  $region8: #{_lambda_.13} parent=0 // pred_region
    _
  $region9: #{_lambda_.13} parent=0 // pred_fallthru
    _
  // Predicated region
  $region10: #{_lambda_.13} parent=0 // pred_check
    _
  $region11: #{_lambda_.13} parent=0 // pred_check_branch
    %14 = sbr.rel (0) target = $region13
  $region12: #{_lambda_.13} parent=0 // pred_region
    _
  $region13: #{_lambda_.13} parent=0 // pred_fallthru
    _
  // Predicated region
  $region14: #{_lambda_.13} parent=0 // pred_check
    _
  $region15: #{_lambda_.13} parent=0 // pred_check_branch
    %16 = sbr.rel (0) target = $region17
  $region16: #{_lambda_.13} parent=0 // pred_region
    _
  $region17: #{_lambda_.13} parent=0 // pred_fallthru
    _
  %p18 = scmp.eq.s32.totalorder 0, 0
  // Predicated region
  $region18: #{_lambda_.13} parent=0 // pred_check
    %p19 = pneg %p18
  $region19: #{_lambda_.13} parent=0 // pred_check_branch
    %21 = sbr.rel (%p19) target = $region21
  $region20: #{_lambda_.13} parent=0 // pred_region
    %22 = vst [vmem:[#allocation2] sm:$0xff] 0.0
    %23 = vst [vmem:[#allocation2 + $0x8] sm:$0xff] 0.0
    %24 = vst [vmem:[#allocation2 + $0x10] sm:$0xff] 0.0
    %25 = vst [vmem:[#allocation2 + $0x18] sm:$0xff] 0.0
  $region21: #{_lambda_.13} parent=0 // pred_fallthru
    _
  %v26 = vld [vmem:[%s0] sm:$0xf]
  %v27 = vld [vmem:[%s0 + $0x4] sm:$0xf]
  %v28 = vld [vmem:[%s0 + $0x8] sm:$0xf]
  %v29 = vld [vmem:[%s0 + $0xc] sm:$0xf]
  %v30 = vld [vmem:[#allocation2] sm:$0xff]
  %v31 = vld [vmem:[#allocation2 + $0x8] sm:$0xff]
  %v32 = vld [vmem:[#allocation2 + $0x10] sm:$0xff]
  %v33 = vld [vmem:[#allocation2 + $0x18] sm:$0xff]
  %v34 = vld [vmem:[%s1] sm:$0xf]
  %v35 = vld [vmem:[%s1 + $0x4] sm:$0xf]
  %v36 = vld [vmem:[%s1 + $0x8] sm:$0xf]
  %v37 = vld [vmem:[%s1 + $0xc] sm:$0xf]
  %v38 = vld [vmem:[%s1 + $0x10] sm:$0xf]
  %v39 = vld [vmem:[%s1 + $0x14] sm:$0xf]
  %v40 = vld [vmem:[%s1 + $0x18] sm:$0xf]
  %v41 = vld [vmem:[%s1 + $0x1c] sm:$0xf]
  %v42 = vld [vmem:[%s1 + $0x20] sm:$0xf]
  %v43 = vld [vmem:[%s1 + $0x24] sm:$0xf]
  %v44 = vld [vmem:[%s1 + $0x28] sm:$0xf]
  %v45 = vld [vmem:[%s1 + $0x2c] sm:$0xf]
  %v46 = vld [vmem:[%s1 + $0x30] sm:$0xf]
  %v47 = vld [vmem:[%s1 + $0x34] sm:$0xf]
  %v48 = vld [vmem:[%s1 + $0x38] sm:$0xf]
  %v49 = vld [vmem:[%s1 + $0x3c] sm:$0xf]
  %v54 = vunpack.c.l.b16 %v26
  %v55 = vunpack.c.l.b16 %v27
  %v56 = vunpack.c.l.b16 %v28
  %v57 = vunpack.c.l.b16 %v29
  %v58 = vpack.c.b16 %v55, %v54
  %v59 = vpack.c.b16 %v57, %v56
  %v78 = vunpack.c.l.b16 %v34
  %v79 = vunpack.c.l.b16 %v35
  %v80 = vunpack.c.l.b16 %v36
  %v81 = vunpack.c.l.b16 %v37
  %v82 = vunpack.c.l.b16 %v38
  %v83 = vunpack.c.l.b16 %v39
  %v84 = vunpack.c.l.b16 %v40
  %v85 = vunpack.c.l.b16 %v41
  %v86 = vunpack.c.l.b16 %v42
  %v87 = vunpack.c.l.b16 %v43
  %v88 = vunpack.c.l.b16 %v44
  %v89 = vunpack.c.l.b16 %v45
  %v90 = vunpack.c.l.b16 %v46
  %v91 = vunpack.c.l.b16 %v47
  %v92 = vunpack.c.l.b16 %v48
  %v93 = vunpack.c.l.b16 %v49
  %v94 = vpack.c.b16 %v79, %v78
  %v95 = vpack.c.b16 %v81, %v80
  %v96 = vpack.c.b16 %v83, %v82
  %v97 = vpack.c.b16 %v85, %v84
  %v98 = vpack.c.b16 %v87, %v86
  %v99 = vpack.c.b16 %v89, %v88
  %v100 = vpack.c.b16 %v91, %v90
  %v101 = vpack.c.b16 %v93, %v92
  %110 = vmatprep.subr.bf16.mxu0 0
  %111 = vmatpush1.bf16.msra.mxu0 %v101
  %112 = vmatprep.subr.bf16.mxu0 0
  %113 = vmatpush1.bf16.msra.mxu0 %v100
  %114 = vmatprep.subr.bf16.mxu0 0
  %115 = vmatpush1.bf16.msra.mxu0 %v99
  %116 = vmatprep.subr.bf16.mxu0 0
  %117 = vmatpush1.bf16.msra.mxu0 %v98
  %118 = vmatprep.subr.bf16.mxu0 0
  %119 = vmatpush1.bf16.msra.mxu0 %v97
  %120 = vmatprep.subr.bf16.mxu0 0
  %121 = vmatpush1.bf16.msra.mxu0 %v96
  %122 = vmatprep.subr.bf16.mxu0 0
  %123 = vmatpush1.bf16.msra.mxu0 %v95
  %124 = vmatprep.subr.bf16.mxu0 0
  %125 = vmatpush1.bf16.msra.mxu0 %v94
  %126 = vmatprep.subr.bf16.mxu0 0
  %127 = vmatpush2.bf16.msra.mxu0 0
  %128 = vmatprep.subr.bf16.mxu0 0
  %129 = vmatpush2.bf16.msra.mxu0 0
  %130 = vmatprep.subr.bf16.mxu0 0
  %131 = vmatpush2.bf16.msra.mxu0 0
  %132 = vmatprep.subr.bf16.mxu0 0
  %133 = vmatpush2.bf16.msra.mxu0 0
  %134 = vmatprep.subr.bf16.mxu0 0
  %135 = vmatpush2.bf16.msra.mxu0 0
  %136 = vmatprep.subr.bf16.mxu0 0
  %137 = vmatpush2.bf16.msra.mxu0 0
  %138 = vmatprep.subr.bf16.mxu0 0
  %139 = vmatpush2.bf16.msra.mxu0 0
  %140 = vmatprep.subr.bf16.mxu0 0
  %141 = vmatpush2.bf16.msra.mxu0 0
  %142 = vmatprep.mubr.bf16.mxu0 0
  %143 = vmatmul.mubr.bf16.gmra.mxu0 %v58
  %v144 = vpop.f32.mrf.mxu0
  %v145 = vadd.f32 0.0, %v144
  %v146 = vpop.f32.mrf.mxu0
  %v147 = vpop.f32.mrf.mxu0
  %v148 = vadd.f32 0.0, %v147
  %v149 = vpop.f32.mrf.mxu0
  %150 = vmatprep.mubr.bf16.mxu0 0
  %151 = vmatmul.mubr.bf16.gmra.mxu0 %v59
  %v152 = vpop.f32.mrf.mxu0
  %v153 = vadd.f32 0.0, %v152
  %v154 = vpop.f32.mrf.mxu0
  %v155 = vpop.f32.mrf.mxu0
  %v156 = vadd.f32 0.0, %v155
  %v157 = vpop.f32.mrf.mxu0
  %158 = vdwg.mxu0
  %v159 = vadd.f32 %v30, %v145
  %v160 = vadd.f32 %v31, %v148
  %v161 = vadd.f32 %v32, %v153
  %v162 = vadd.f32 %v33, %v156
  %163 = vst [vmem:[#allocation2] sm:$0xff] %v159
  %164 = vst [vmem:[#allocation2 + $0x8] sm:$0xff] %v160
  %165 = vst [vmem:[#allocation2 + $0x10] sm:$0xff] %v161
  %166 = vst [vmem:[#allocation2 + $0x18] sm:$0xff] %v162
  // Predicated region
  $region22: #{_lambda_.13} parent=0 // pred_check
    %p167 = pneg %p18
  $region23: #{_lambda_.13} parent=0 // pred_check_branch
    %169 = sbr.rel (%p167) target = $region25
  $region24: #{_lambda_.13} parent=0 // pred_region
    %v170 = vld [vmem:[#allocation2] sm:$0xff]
    %v171 = vld [vmem:[#allocation2 + $0x8] sm:$0xff]
    %v172 = vld [vmem:[#allocation2 + $0x10] sm:$0xff]
    %v173 = vld [vmem:[#allocation2 + $0x18] sm:$0xff]
    %v174 = vld [vmem:[%s2] sm:$0x1]
    %v175 = vunpack.c.l.bf16 %v174
    %v176 = vlaneseq
    %v177 = vshrl.u32 %v176, 7
    %v178 = vsub.s32 0, %v177
    %v179 = vrot.slane %v175, %v178
    %v180 = vadd.f32 %v170, %v179
    %v181 = vadd.f32 %v171, %v179
    %v182 = vadd.f32 %v172, %v179
    %v183 = vadd.f32 %v173, %v179
    %v184 = vld [vmem:[%s3] sm:$0xf]
    %v185 = vld [vmem:[%s3 + $0x4] sm:$0xf]
    %v186 = vld [vmem:[%s3 + $0x8] sm:$0xf]
    %v187 = vld [vmem:[%s3 + $0xc] sm:$0xf]
    %v188 = vunpack.c.l.bf16 %v184
    %v189 = vunpack.c.l.bf16 %v185
    %v190 = vunpack.c.l.bf16 %v186
    %v191 = vunpack.c.l.bf16 %v187
    %v192 = vadd.f32 %v180, %v188
    %v193 = vadd.f32 %v181, %v189
    %v194 = vadd.f32 %v182, %v190
    %v195 = vadd.f32 %v183, %v191
    %v196 = vpack.c.bf16 %v193, %v192
    %v197 = vpack.c.bf16 %v195, %v194
    %v200 = vunpack.c.l.b16 %v196
    %v201 = vunpack.c.h.b16 %v196
    %v202 = vunpack.c.l.b16 %v197
    %v203 = vunpack.c.h.b16 %v197
    %v204 = vpack.c.b16 %v200, %v200
    %v205 = vpack.c.b16 %v201, %v201
    %v206 = vpack.c.b16 %v202, %v202
    %v207 = vpack.c.b16 %v203, %v203
    %212 = vst [vmem:[%s4] sm:$0xf] %v204
    %213 = vst [vmem:[%s4 + $0x4] sm:$0xf] %v205
    %214 = vst [vmem:[%s4 + $0x8] sm:$0xf] %v206
    %215 = vst [vmem:[%s4 + $0xc] sm:$0xf] %v207
  $region25: #{_lambda_.13} parent=0 // pred_fallthru
    _
  // Predicated region
  $region26: #{_lambda_.13} parent=0 // pred_check
    _
  $region27: #{_lambda_.13} parent=0 // pred_check_branch
    %217 = sbr.rel (0) target = $region29
  $region28: #{_lambda_.13} parent=0 // pred_region
    _
  $region29: #{_lambda_.13} parent=0 // pred_fallthru
    _
  // Predicated region
  $region30: #{_lambda_.13} parent=0 // pred_check
    _
  $region31: #{_lambda_.13} parent=0 // pred_check_branch
    %219 = sbr.rel (0) target = $region33
  $region32: #{_lambda_.13} parent=0 // pred_region
    _
  $region33: #{_lambda_.13} parent=0 // pred_fallthru
    _

// kernel: _lambda_.14
$region0: #{_lambda_.14}
  #allocation0 [shape = 'u32[]', space=smem, size = 0x4, offset = 0x4, fixed_abs, tag = 'smem constant byte address 0x4 - core index']
  #allocation1 [shape = 'u32[144,128]{1,0:T(1,128)}', space=vmem, size = 0x12000, scoped, tag = 'internal scratch']
  #allocation2 [shape = 'f32[32,256]{1,0:T(8,128)}', space=vmem, size = 0x8000, scoped, tag = 'scratch operand']
  %s0 = inlined_call_operand.vmem [shape: bf16[32,128], index: 0, kind: input, shape index: {}]
  %s1 = inlined_call_operand.vmem [shape: bf16[128,512], index: 1, kind: input, shape index: {}]
  %s2 = inlined_call_operand.vmem [shape: bf16[1,128], index: 2, kind: input, shape index: {}]
  %s3 = inlined_call_operand.vmem [shape: bf16[1,128], index: 3, kind: input, shape index: {}]
  %s4 = inlined_call_operand.vmem [shape: bf16[1,512], index: 4, kind: input, shape index: {}]
  %s5 = inlined_call_operand.vmem [shape: bf16[32,512], index: 5, kind: output, shape index: {}]
  %s6 = sld [smem:[#allocation0]]
  $region133: #{_lambda_.14} parent=0
    _
  %s8 = ssub.s32 1, %s6
  %s9 = scalar_select 0, %s8, %s6
  $region1: #{_lambda_.14} parent=0
    #allocation3 [shape = 'u8[131072]{0}', space=vmem, size = 0x20000, scoped, tag = 'input window, operand 1']
    #allocation4 [shape = 'u8[32768]{0}', space=vmem, size = 0x8000, scoped, tag = 'output window, operand 0']
    loop: start=0, step=1, limit=4
    $region2: #{_lambda_.14} parent=1 // loop_pre_header
      _
    $region3: #{_lambda_.14} parent=1 // loop_header
      %s11 = sphi 0, %s15
      %p12 = scmp.ge.s32.totalorder %s11, 4
      %s18 = sphi 0, %s37
      %s19 = sphi 0, %s33
      %s20 = sphi 0, %s29
      %s21 = sphi 0, %s18
      %s22 = sphi 0, %s19
      %s23 = sphi 0, %s20
      %s24 = sphi 0, %s21
      %s25 = sphi 0, %s22
      %s26 = sphi 0, %s23
      %s42 = sphi 0, %s44
      %s45 = sphi 0, %s42
      %s46 = sphi 0, %s45
      %s62 = sphi 0, %s46
      %s70 = sphi 0, %s72
      %s73 = sphi 0, %s70
      %s74 = sphi 0, %s73
      %s90 = sphi 0, %s74
      %s96 = sphi 0, %s98
      %s99 = sphi 0, %s96
      %s100 = sphi 0, %s99
      %s116 = sphi 0, %s100
      %s122 = sphi 0, %s124
      %s125 = sphi 0, %s122
      %s126 = sphi 0, %s125
      %s142 = sphi 0, %s126
      %s148 = sphi 0, %s150
      %s151 = sphi 0, %s148
      %s152 = sphi 0, %s151
      %s168 = sphi 0, %s152
      %s176 = sphi 0, %s178
      %s179 = sphi 0, %s176
      %s180 = sphi 0, %s179
      %s196 = sphi 0, %s180
    $region4: #{_lambda_.14} parent=1 // loop_header_branch
      %14 = sbr.rel (%p12) target = $region8
    $region5: #{_lambda_.14} parent=1 // loop_body
      %s16 = ssub.s32 %s11, 1
      %s17 = ssub.s32 %s11, 2
      %s27 = sadd.s32 1, %s20
      %p28 = scmp.ge.s32.totalorder %s27, 1
      %s29 = scalar_select %p28, 0, %s27
      %s30 = sadd.s32 1, %s19
      %s31 = scalar_select %p28, %s30, %s19
      %p32 = scmp.ge.s32.totalorder %s31, 2
      %s33 = scalar_select %p32, 0, %s31
      %s34 = sadd.s32 1, %s18
      %s35 = scalar_select %p32, %s34, %s18
      %p36 = scmp.ge.s32.totalorder %s35, 1
      %s37 = scalar_select %p36, 0, %s35
      %s38 = ssub.s32 %s18, %s37
      %s39 = ssub.s32 %s20, %s29
      %s40 = sor.u32 %s38, %s39
      %p41 = scmp.eq.s32.totalorder %s40, 0
      %s43 = sadd.s32 %s42, 1
      %s44 = scalar_select %p41, %s42, %s43
      %p47 = pneg %p41
      %p48 = scmp.eq.s32.totalorder %s11, 1
      %p49 = por %p47, %p48
      %p50 = scmp.ne.s32.totalorder %s42, %s45
      %p51 = scmp.eq.s32.totalorder %s11, 0
      %p52 = por %p50, %p51
      %p53 = scmp.ne.s32.totalorder %s42, %s45
      %p54 = scmp.eq.s32.totalorder %s16, 1
      %p55 = por %p53, %p54
      %p56 = scmp.ne.s32.totalorder %s45, %s46
      %p57 = scmp.eq.s32.totalorder %s16, 0
      %p58 = por %p56, %p57
      %p59 = scmp.ne.s32.totalorder %s45, %s46
      %p60 = scmp.eq.s32.totalorder %s17, 1
      %p61 = por %p59, %p60
      %p63 = scmp.ne.s32.totalorder %s46, %s62
      %p64 = scmp.eq.s32.totalorder %s17, 0
      %p65 = por %p63, %p64
      %s66 = ssub.s32 %s20, %s29
      %s67 = ssub.s32 %s19, %s33
      %s68 = sor.u32 %s66, %s67
      %p69 = scmp.eq.s32.totalorder %s68, 0
      %s71 = sadd.s32 %s70, 1
      %s72 = scalar_select %p69, %s70, %s71
      %p75 = pneg %p69
      %p76 = scmp.eq.s32.totalorder %s11, 1
      %p77 = por %p75, %p76
      %p78 = scmp.ne.s32.totalorder %s70, %s73
      %p79 = scmp.eq.s32.totalorder %s11, 0
      %p80 = por %p78, %p79
      %p81 = scmp.ne.s32.totalorder %s70, %s73
      %p82 = scmp.eq.s32.totalorder %s16, 1
      %p83 = por %p81, %p82
      %p84 = scmp.ne.s32.totalorder %s73, %s74
      %p85 = scmp.eq.s32.totalorder %s16, 0
      %p86 = por %p84, %p85
      %p87 = scmp.ne.s32.totalorder %s73, %s74
      %p88 = scmp.eq.s32.totalorder %s17, 1
      %p89 = por %p87, %p88
      %p91 = scmp.ne.s32.totalorder %s74, %s90
      %p92 = scmp.eq.s32.totalorder %s17, 0
      %p93 = por %p91, %p92
      %s94 = ssub.s32 %s20, %s29
      %p95 = scmp.eq.s32.totalorder %s94, 0
      %s97 = sadd.s32 %s96, 1
      %s98 = scalar_select %p95, %s96, %s97
      %p101 = pneg %p95
      %p102 = scmp.eq.s32.totalorder %s11, 1
      %p103 = por %p101, %p102
      %p104 = scmp.ne.s32.totalorder %s96, %s99
      %p105 = scmp.eq.s32.totalorder %s11, 0
      %p106 = por %p104, %p105
      %p107 = scmp.ne.s32.totalorder %s96, %s99
      %p108 = scmp.eq.s32.totalorder %s16, 1
      %p109 = por %p107, %p108
      %p110 = scmp.ne.s32.totalorder %s99, %s100
      %p111 = scmp.eq.s32.totalorder %s16, 0
      %p112 = por %p110, %p111
      %p113 = scmp.ne.s32.totalorder %s99, %s100
      %p114 = scmp.eq.s32.totalorder %s17, 1
      %p115 = por %p113, %p114
      %p117 = scmp.ne.s32.totalorder %s100, %s116
      %p118 = scmp.eq.s32.totalorder %s17, 0
      %p119 = por %p117, %p118
      %s120 = ssub.s32 %s20, %s29
      %p121 = scmp.eq.s32.totalorder %s120, 0
      %s123 = sadd.s32 %s122, 1
      %s124 = scalar_select %p121, %s122, %s123
      %p127 = pneg %p121
      %p128 = scmp.eq.s32.totalorder %s11, 1
      %p129 = por %p127, %p128
      %p130 = scmp.ne.s32.totalorder %s122, %s125
      %p131 = scmp.eq.s32.totalorder %s11, 0
      %p132 = por %p130, %p131
      %p133 = scmp.ne.s32.totalorder %s122, %s125
      %p134 = scmp.eq.s32.totalorder %s16, 1
      %p135 = por %p133, %p134
      %p136 = scmp.ne.s32.totalorder %s125, %s126
      %p137 = scmp.eq.s32.totalorder %s16, 0
      %p138 = por %p136, %p137
      %p139 = scmp.ne.s32.totalorder %s125, %s126
      %p140 = scmp.eq.s32.totalorder %s17, 1
      %p141 = por %p139, %p140
      %p143 = scmp.ne.s32.totalorder %s126, %s142
      %p144 = scmp.eq.s32.totalorder %s17, 0
      %p145 = por %p143, %p144
      %s146 = ssub.s32 %s19, %s33
      %p147 = scmp.eq.s32.totalorder %s146, 0
      %s149 = sadd.s32 %s148, 1
      %s150 = scalar_select %p147, %s148, %s149
      %p153 = pneg %p147
      %p154 = scmp.eq.s32.totalorder %s11, 1
      %p155 = por %p153, %p154
      %p156 = scmp.ne.s32.totalorder %s148, %s151
      %p157 = scmp.eq.s32.totalorder %s11, 0
      %p158 = por %p156, %p157
      %p159 = scmp.ne.s32.totalorder %s148, %s151
      %p160 = scmp.eq.s32.totalorder %s16, 1
      %p161 = por %p159, %p160
      %p162 = scmp.ne.s32.totalorder %s151, %s152
      %p163 = scmp.eq.s32.totalorder %s16, 0
      %p164 = por %p162, %p163
      %p165 = scmp.ne.s32.totalorder %s151, %s152
      %p166 = scmp.eq.s32.totalorder %s17, 1
      %p167 = por %p165, %p166
      %p169 = scmp.ne.s32.totalorder %s152, %s168
      %p170 = scmp.eq.s32.totalorder %s17, 0
      %p171 = por %p169, %p170
      %s172 = ssub.s32 %s18, %s37
      %s173 = ssub.s32 %s19, %s33
      %s174 = sor.u32 %s172, %s173
      %p175 = scmp.eq.s32.totalorder %s174, 0
      %s177 = sadd.s32 %s176, 1
      %s178 = scalar_select %p175, %s176, %s177
      %p181 = pneg %p175
      %p182 = scmp.eq.s32.totalorder %s11, 1
      %p183 = por %p181, %p182
      %p184 = scmp.ne.s32.totalorder %s176, %s179
      %p185 = scmp.eq.s32.totalorder %s11, 0
      %p186 = por %p184, %p185
      %p187 = scmp.ne.s32.totalorder %s176, %s179
      %p188 = scmp.eq.s32.totalorder %s16, 1
      %p189 = por %p187, %p188
      %p190 = scmp.ne.s32.totalorder %s179, %s180
      %p191 = scmp.eq.s32.totalorder %s16, 0
      %p192 = por %p190, %p191
      %p193 = scmp.ne.s32.totalorder %s179, %s180
      %p194 = scmp.eq.s32.totalorder %s17, 1
      %p195 = por %p193, %p194
      %p197 = scmp.ne.s32.totalorder %s180, %s196
      %p198 = scmp.eq.s32.totalorder %s17, 0
      %p199 = por %p197, %p198
      %p200 = scmp.le.s32.totalorder 1, %s11
      %p201 = scmp.lt.s32.totalorder %s11, 3
      %p202 = pnand %p200, %p201
      %p203 = pneg %p202
      // Predicated region
      $region9: #{_lambda_.14} parent=5 // pred_check
        _
      $region10: #{_lambda_.14} parent=5 // pred_check_branch
        %205 = sbr.rel (%p202) target = $region12
      $region11: #{_lambda_.14} parent=5 // pred_region
        %s206 = ssub.s32 %s11, 1
        // Predicated region
        $region13: #{_lambda_.14} parent=11 // pred_check
          %p207 = pneg %p58
        $region14: #{_lambda_.14} parent=11 // pred_check_branch
          %209 = sbr.rel (%p207) target = $region16
        $region15: #{_lambda_.14} parent=11 // pred_region
          %s210 = smul.u32 4, %s21
          %p211 = scmp.lt.s32.totalorder %s210, 3
          %s212 = scalar_select %p211, %s210, 3
          %p213 = scmp.lt.s32.totalorder %s23, 0
          %s214 = scalar_select %p213, %s23, 0
          %s215 = sadd.s32 %s214, %s212
          %s216 = smul.addr %s215, 4
          %s217 = scalar_lea.vmem %s0, %s216
          %s218 = smul.u32 4, %s21
        $region16: #{_lambda_.14} parent=11 // pred_fallthru
          _
        // Predicated region
        $region17: #{_lambda_.14} parent=11 // pred_check
          %p219 = pneg %p112
        $region18: #{_lambda_.14} parent=11 // pred_check_branch
          %221 = sbr.rel (%p219) target = $region20
        $region19: #{_lambda_.14} parent=11 // pred_region
          %p222 = scmp.lt.s32.totalorder %s23, 0
          %s223 = scalar_select %p222, %s23, 0
          %s224 = scalar_lea.vmem %s2, %s223
        $region20: #{_lambda_.14} parent=11 // pred_fallthru
          _
        // Predicated region
        $region21: #{_lambda_.14} parent=11 // pred_check
          %p225 = pneg %p138
        $region22: #{_lambda_.14} parent=11 // pred_check_branch
          %227 = sbr.rel (%p225) target = $region24
        $region23: #{_lambda_.14} parent=11 // pred_region
          %p228 = scmp.lt.s32.totalorder %s23, 0
          %s229 = scalar_select %p228, %s23, 0
          %s230 = scalar_lea.vmem %s3, %s229
        $region24: #{_lambda_.14} parent=11 // pred_fallthru
          _
      $region12: #{_lambda_.14} parent=5 // pred_fallthru
        _
      %p231 = scmp.lt.s32.totalorder %s11, 2
      // Predicated region
      $region25: #{_lambda_.14} parent=5 // pred_check
        %p232 = pneg %p231
      $region26: #{_lambda_.14} parent=5 // pred_check_branch
        %234 = sbr.rel (%p232) target = $region28
      $region27: #{_lambda_.14} parent=5 // pred_region
        // Predicated region
        $region29: #{_lambda_.14} parent=27 // pred_check
          %p235 = pneg %p80
        $region30: #{_lambda_.14} parent=27 // pred_check_branch
          %237 = sbr.rel (%p235) target = $region32
        $region31: #{_lambda_.14} parent=27 // pred_region
          %s238 = sand.u32 %s70, 1
          %s239 = sand.u32 %s70, 1
          %s240 = smul.addr %s239, 128
          %s241 = scalar_lea.vmem [#allocation3], %s240
          %s242 = smul.u32 16, %s20
          %s243 = smul.u32 2, %s19
          %s244 = smul.addr %s242, 4
          %s245 = sadd.s32 %s243, %s244
          %s246 = smul.addr %s245, 4
          %s247 = scalar_lea.vmem %s1, %s246
          // Predicated region
          $region33: #{_lambda_.14} parent=31 // pred_check
            _
          $region34: #{_lambda_.14} parent=31 // pred_check_branch
            %249 = sbr.rel (0) target = $region36
          $region35: #{_lambda_.14} parent=31 // pred_region
            // Predicated region
            $region37: #{_lambda_.14} parent=35 // pred_check
              _
            $region38: #{_lambda_.14} parent=35 // pred_check_branch
              %251 = sbr.rel (0) target = $region40
            $region39: #{_lambda_.14} parent=35 // pred_region
              // Predicated region
              $region52: #{_lambda_.14} parent=39 // pred_check
                _
              $region53: #{_lambda_.14} parent=39 // pred_check_branch
                %297 = sbr.rel (0) target = $region55
              $region54: #{_lambda_.14} parent=39 // pred_region
                loop: start=0, step=1, limit=1
                $region56: #{_lambda_.14} parent=54 // loop_pre_header
                  _
                $region57: #{_lambda_.14} parent=54 // loop_header
                  %s299 = sphi 0, %s303
                  %p300 = scmp.ge.s32.totalorder %s299, 1
                  %s304 = sphi %s247, %s247
                  %s305 = sphi %s241, %s241
                $region58: #{_lambda_.14} parent=54 // loop_header_branch
                  %302 = sbr.rel (%p300) target = $region62
                $region59: #{_lambda_.14} parent=54 // loop_body
                  %v306 = vld [vmem:[%s304] sm:$0xff]
                  %307 = vst [vmem:[%s305] sm:$0xff] %v306
                  %v308 = vld [vmem:[%s304 + $0x10] sm:$0xff]
                  %309 = vst [vmem:[%s305 + $0x8] sm:$0xff] %v308
                  %v310 = vld [vmem:[%s304 + $0x20] sm:$0xff]
                  %311 = vst [vmem:[%s305 + $0x10] sm:$0xff] %v310
                  %v312 = vld [vmem:[%s304 + $0x30] sm:$0xff]
                  %313 = vst [vmem:[%s305 + $0x18] sm:$0xff] %v312
                  %v314 = vld [vmem:[%s304 + $0x40] sm:$0xff]
                  %315 = vst [vmem:[%s305 + $0x20] sm:$0xff] %v314
                  %v316 = vld [vmem:[%s304 + $0x50] sm:$0xff]
                  %317 = vst [vmem:[%s305 + $0x28] sm:$0xff] %v316
                  %v318 = vld [vmem:[%s304 + $0x60] sm:$0xff]
                  %319 = vst [vmem:[%s305 + $0x30] sm:$0xff] %v318
                  %v320 = vld [vmem:[%s304 + $0x70] sm:$0xff]
                  %321 = vst [vmem:[%s305 + $0x38] sm:$0xff] %v320
                  %v322 = vld [vmem:[%s304 + $0x80] sm:$0xff]
                  %323 = vst [vmem:[%s305 + $0x40] sm:$0xff] %v322
                  %v324 = vld [vmem:[%s304 + $0x90] sm:$0xff]
                  %325 = vst [vmem:[%s305 + $0x48] sm:$0xff] %v324
                  %v326 = vld [vmem:[%s304 + $0xa0] sm:$0xff]
                  %327 = vst [vmem:[%s305 + $0x50] sm:$0xff] %v326
                  %v328 = vld [vmem:[%s304 + $0xb0] sm:$0xff]
                  %329 = vst [vmem:[%s305 + $0x58] sm:$0xff] %v328
                  %v330 = vld [vmem:[%s304 + $0xc0] sm:$0xff]
                  %331 = vst [vmem:[%s305 + $0x60] sm:$0xff] %v330
                  %v332 = vld [vmem:[%s304 + $0xd0] sm:$0xff]
                  %333 = vst [vmem:[%s305 + $0x68] sm:$0xff] %v332
                  %v334 = vld [vmem:[%s304 + $0xe0] sm:$0xff]
                  %335 = vst [vmem:[%s305 + $0x70] sm:$0xff] %v334
                  %v336 = vld [vmem:[%s304 + $0xf0] sm:$0xff]
                  %337 = vst [vmem:[%s305 + $0x78] sm:$0xff] %v336
                $region60: #{_lambda_.14} parent=54 // loop_footer
                  %s303 = sadd.s32 1, %s299
                $region61: #{_lambda_.14} parent=54 // loop_footer_branch
                  %298 = sbr.rel target = $region57
                $region62: #{_lambda_.14} parent=54 // loop_exit
                  _
              $region55: #{_lambda_.14} parent=39 // pred_fallthru
                _
              // Predicated region
              $region63: #{_lambda_.14} parent=39 // pred_check
                _
              $region64: #{_lambda_.14} parent=39 // pred_check_branch
                %339 = sbr.rel target = $region66
              $region65: #{_lambda_.14} parent=39 // pred_region
                _
              $region66: #{_lambda_.14} parent=39 // pred_fallthru
                _
            $region40: #{_lambda_.14} parent=35 // pred_fallthru
              _
            // Predicated region
            $region41: #{_lambda_.14} parent=35 // pred_check
              _
            $region42: #{_lambda_.14} parent=35 // pred_check_branch
              %253 = sbr.rel target = $region44
            $region43: #{_lambda_.14} parent=35 // pred_region
              %s255 = ssub.s32 256, 1
              loop: start=0, step=1, limit=1
              $region45: #{_lambda_.14} parent=43 // loop_pre_header
                _
              $region46: #{_lambda_.14} parent=43 // loop_header
                %s257 = sphi 0, %s261
                %p258 = scmp.ge.s32.totalorder %s257, 1
                %s262 = sphi %s247, %s247
                %s263 = sphi %s241, %s241
              $region47: #{_lambda_.14} parent=43 // loop_header_branch
                %260 = sbr.rel (%p258) target = $region51
              $region48: #{_lambda_.14} parent=43 // loop_body
                %v264 = vld [vmem:[%s262] sm:%s255]
                %265 = vst [vmem:[%s263] sm:%s255] %v264
                %v266 = vld [vmem:[%s262 + $0x10] sm:%s255]
                %267 = vst [vmem:[%s263 + $0x8] sm:%s255] %v266
                %v268 = vld [vmem:[%s262 + $0x20] sm:%s255]
                %269 = vst [vmem:[%s263 + $0x10] sm:%s255] %v268
                %v270 = vld [vmem:[%s262 + $0x30] sm:%s255]
                %271 = vst [vmem:[%s263 + $0x18] sm:%s255] %v270
                %v272 = vld [vmem:[%s262 + $0x40] sm:%s255]
                %273 = vst [vmem:[%s263 + $0x20] sm:%s255] %v272
                %v274 = vld [vmem:[%s262 + $0x50] sm:%s255]
                %275 = vst [vmem:[%s263 + $0x28] sm:%s255] %v274
                %v276 = vld [vmem:[%s262 + $0x60] sm:%s255]
                %277 = vst [vmem:[%s263 + $0x30] sm:%s255] %v276
                %v278 = vld [vmem:[%s262 + $0x70] sm:%s255]
                %279 = vst [vmem:[%s263 + $0x38] sm:%s255] %v278
                %v280 = vld [vmem:[%s262 + $0x80] sm:%s255]
                %281 = vst [vmem:[%s263 + $0x40] sm:%s255] %v280
                %v282 = vld [vmem:[%s262 + $0x90] sm:%s255]
                %283 = vst [vmem:[%s263 + $0x48] sm:%s255] %v282
                %v284 = vld [vmem:[%s262 + $0xa0] sm:%s255]
                %285 = vst [vmem:[%s263 + $0x50] sm:%s255] %v284
                %v286 = vld [vmem:[%s262 + $0xb0] sm:%s255]
                %287 = vst [vmem:[%s263 + $0x58] sm:%s255] %v286
                %v288 = vld [vmem:[%s262 + $0xc0] sm:%s255]
                %289 = vst [vmem:[%s263 + $0x60] sm:%s255] %v288
                %v290 = vld [vmem:[%s262 + $0xd0] sm:%s255]
                %291 = vst [vmem:[%s263 + $0x68] sm:%s255] %v290
                %v292 = vld [vmem:[%s262 + $0xe0] sm:%s255]
                %293 = vst [vmem:[%s263 + $0x70] sm:%s255] %v292
                %v294 = vld [vmem:[%s262 + $0xf0] sm:%s255]
                %295 = vst [vmem:[%s263 + $0x78] sm:%s255] %v294
              $region49: #{_lambda_.14} parent=43 // loop_footer
                %s261 = sadd.s32 1, %s257
              $region50: #{_lambda_.14} parent=43 // loop_footer_branch
                %256 = sbr.rel target = $region46
              $region51: #{_lambda_.14} parent=43 // loop_exit
                _
            $region44: #{_lambda_.14} parent=35 // pred_fallthru
              _
          $region36: #{_lambda_.14} parent=31 // pred_fallthru
            _
          %340 = vnop
        $region32: #{_lambda_.14} parent=27 // pred_fallthru
          _
        // Predicated region
        $region67: #{_lambda_.14} parent=27 // pred_check
          %p341 = pneg %p158
        $region68: #{_lambda_.14} parent=27 // pred_check_branch
          %343 = sbr.rel (%p341) target = $region70
        $region69: #{_lambda_.14} parent=27 // pred_region
          %s344 = smul.u32 2, %s19
          %p345 = scmp.lt.s32.totalorder %s344, 3
          %s346 = scalar_select %p345, %s344, 3
          %s347 = scalar_lea.vmem %s4, %s346
          %s348 = smul.u32 2, %s19
        $region70: #{_lambda_.14} parent=27 // pred_fallthru
          _
      $region28: #{_lambda_.14} parent=5 // pred_fallthru
        _
      %p349 = scmp.le.s32.totalorder 1, %s11
      %p350 = scmp.lt.s32.totalorder %s11, 3
      %p351 = pnand %p349, %p350
      %p352 = pneg %p351
      // Predicated region
      $region71: #{_lambda_.14} parent=5 // pred_check
        _
      $region72: #{_lambda_.14} parent=5 // pred_check_branch
        %354 = sbr.rel (%p351) target = $region74
      $region73: #{_lambda_.14} parent=5 // pred_region
        %s355 = ssub.s32 %s11, 1
        %s356 = sand.u32 %s73, 1
        %s357 = sand.u32 %s73, 1
        %s358 = smul.addr %s357, 128
        %s359 = scalar_lea.vmem [#allocation3], %s358
        // Predicated region
        $region75: #{_lambda_.14} parent=73 // pred_check
          %p360 = pneg %p86
        $region76: #{_lambda_.14} parent=73 // pred_check_branch
          %362 = sbr.rel (%p360) target = $region78
        $region77: #{_lambda_.14} parent=73 // pred_region
          _
        $region78: #{_lambda_.14} parent=73 // pred_fallthru
          _
        %s363 = smul.u32 4, %s21
        %p364 = scmp.lt.s32.totalorder %s363, 3
        %s365 = scalar_select %p364, %s363, 3
        %p366 = scmp.lt.s32.totalorder %s23, 0
        %s367 = scalar_select %p366, %s23, 0
        %s368 = sadd.s32 %s367, %s365
        %s369 = smul.addr %s368, 4
        %s370 = scalar_lea.vmem %s0, %s369
        %p371 = pneg %p58
        %p372 = pneg %p55
        %s373 = sand.u32 %s73, 1
        %s374 = sand.u32 %s73, 1
        %s375 = smul.addr %s374, 128
        %s376 = scalar_lea.vmem [#allocation3], %s375
        %p377 = pneg %p86
        %p378 = pneg %p83
        %p379 = scmp.lt.s32.totalorder %s23, 0
        %s380 = scalar_select %p379, %s23, 0
        %s381 = scalar_lea.vmem %s2, %s380
        %p382 = pneg %p112
        %p383 = pneg %p109
        %p384 = scmp.lt.s32.totalorder %s23, 0
        %s385 = scalar_select %p384, %s23, 0
        %s386 = scalar_lea.vmem %s3, %s385
        %p387 = pneg %p138
        %p388 = pneg %p135
        %s389 = smul.u32 2, %s22
        %p390 = scmp.lt.s32.totalorder %s389, 3
        %s391 = scalar_select %p390, %s389, 3
        %s392 = scalar_lea.vmem %s4, %s391
        %p393 = pneg %p164
        %p394 = pneg %p161
        %p395 = pneg %p192
        %p396 = pneg %p189
        %s397 = sand.u32 %s179, 1
        %s398 = sand.u32 %s179, 1
        %s399 = smul.addr %s398, 32
        %s400 = scalar_lea.vmem [#allocation4], %s399
        %s401 = smul.u32 4, %s21
        %p402 = scmp.lt.s32.totalorder %s401, 3
        %s403 = scalar_select %p402, %s401, 3
        %p404 = scmp.lt.s32.totalorder %s23, 0
        %s405 = scalar_select %p404, %s23, 0
        %s406 = sadd.s32 %s405, %s403
        %s407 = smul.addr %s406, 4
        %s408 = scalar_lea.vmem %s0, %s407
        %s409 = smul.u32 4, %s21
        %s410 = smul.u32 16, %s23
        %s411 = smul.u32 2, %s22
        %p412 = scmp.lt.s32.totalorder %s23, 0
        %s413 = scalar_select %p412, %s23, 0
        %s414 = scalar_lea.vmem %s2, %s413
        %p415 = scmp.lt.s32.totalorder %s23, 0
        %s416 = scalar_select %p415, %s23, 0
        %s417 = scalar_lea.vmem %s3, %s416
        %s418 = smul.u32 2, %s22
        %p419 = scmp.lt.s32.totalorder %s418, 3
        %s420 = scalar_select %p419, %s418, 3
        %s421 = scalar_lea.vmem %s4, %s420
        %s422 = smul.u32 2, %s22
        %s423 = smul.u32 4, %s21
        %s424 = smul.u32 2, %s22
        %p426 = scmp.eq.s32.totalorder %s23, 0
        // Predicated region
        $region79: #{_lambda_.14} parent=73 // pred_check
          %p427 = pneg %p426
        $region80: #{_lambda_.14} parent=73 // pred_check_branch
          %429 = sbr.rel (%p427) target = $region82
        $region81: #{_lambda_.14} parent=73 // pred_region
          %430 = vst [vmem:[#allocation2] sm:$0xff] 0.0
          %431 = vst [vmem:[#allocation2 + $0x8] sm:$0xff] 0.0
          %432 = vst [vmem:[#allocation2 + $0x10] sm:$0xff] 0.0
          %433 = vst [vmem:[#allocation2 + $0x18] sm:$0xff] 0.0
          %434 = vst [vmem:[#allocation2 + $0x20] sm:$0xff] 0.0
          %435 = vst [vmem:[#allocation2 + $0x28] sm:$0xff] 0.0
          %436 = vst [vmem:[#allocation2 + $0x30] sm:$0xff] 0.0
          %437 = vst [vmem:[#allocation2 + $0x38] sm:$0xff] 0.0
        $region82: #{_lambda_.14} parent=73 // pred_fallthru
          _
        %v438 = vld [vmem:[%s408] sm:$0xf]
        %v439 = vld [vmem:[%s408 + $0x4] sm:$0xf]
        %v440 = vld [vmem:[%s408 + $0x8] sm:$0xf]
        %v441 = vld [vmem:[%s408 + $0xc] sm:$0xf]
        %v442 = vunpack.c.l.bf16 %v438
        %v443 = vunpack.c.l.bf16 %v439
        %v444 = vunpack.c.l.bf16 %v440
        %v445 = vunpack.c.l.bf16 %v441
        %446 = vadd.xlane.f32.xlu0 %v442
        %v447 = vpop.xlane.xlu0 %446
        %448 = vadd.xlane.f32.xlu0 %v443
        %v449 = vpop.xlane.xlu0 %448
        %450 = vadd.xlane.f32.xlu0 %v444
        %v451 = vpop.xlane.xlu0 %450
        %452 = vadd.xlane.f32.xlu0 %v445
        %v453 = vpop.xlane.xlu0 %452
        %v454 = vrcp.pop 128.0
        %v455 = vmul.f32 %v447, %v454
        %v456 = vmul.f32 %v449, %v454
        %v457 = vmul.f32 %v451, %v454
        %v458 = vmul.f32 %v453, %v454
        %v459 = vsub.f32 %v442, %v455
        %v460 = vsub.f32 %v443, %v456
        %v461 = vsub.f32 %v444, %v457
        %v462 = vsub.f32 %v445, %v458
        %v463 = vmul.f32 %v459, %v459
        %v464 = vmul.f32 %v460, %v460
        %v465 = vmul.f32 %v461, %v461
        %v466 = vmul.f32 %v462, %v462
        %467 = vadd.xlane.f32.xlu0 %v463
        %v468 = vpop.xlane.xlu0 %467
        %469 = vadd.xlane.f32.xlu0 %v464
        %v470 = vpop.xlane.xlu0 %469
        %471 = vadd.xlane.f32.xlu0 %v465
        %v472 = vpop.xlane.xlu0 %471
        %473 = vadd.xlane.f32.xlu0 %v466
        %v474 = vpop.xlane.xlu0 %473
        %v475 = vmul.f32 %v468, %v454
        %v476 = vmul.f32 %v470, %v454
        %v477 = vmul.f32 %v472, %v454
        %v478 = vmul.f32 %v474, %v454
        %v479 = vadd.f32 %v475, 1e-05
        %v480 = vadd.f32 %v476, 1e-05
        %v481 = vadd.f32 %v477, 1e-05
        %v482 = vadd.f32 %v478, 1e-05
        %v483 = vrsqrt.pop %v479
        %v484 = vrsqrt.pop %v480
        %v485 = vrsqrt.pop %v481
        %v486 = vrsqrt.pop %v482
        %v487 = vmul.f32 %v459, %v483
        %v488 = vmul.f32 %v460, %v484
        %v489 = vmul.f32 %v461, %v485
        %v490 = vmul.f32 %v462, %v486
        %v491 = vld [vmem:[%s414] sm:$0x1]
        %v492 = vunpack.c.l.bf16 %v491
        %v493 = vlaneseq
        %v494 = vshrl.u32 %v493, 7
        %v495 = vsub.s32 0, %v494
        %v496 = vrot.slane %v492, %v495
        %v497 = vmul.f32 %v487, %v496
        %v498 = vmul.f32 %v488, %v496
        %v499 = vmul.f32 %v489, %v496
        %v500 = vmul.f32 %v490, %v496
        %v501 = vld [vmem:[%s417] sm:$0x1]
        %v502 = vunpack.c.l.bf16 %v501
        %v503 = vlaneseq
        %v504 = vshrl.u32 %v503, 7
        %v505 = vsub.s32 0, %v504
        %v506 = vrot.slane %v502, %v505
        %v507 = vadd.f32 %v497, %v506
        %v508 = vadd.f32 %v498, %v506
        %v509 = vadd.f32 %v499, %v506
        %v510 = vadd.f32 %v500, %v506
        %v511 = vpack.c.bf16 %v508, %v507
        %v512 = vpack.c.bf16 %v510, %v509
        %v513 = vld [vmem:[#allocation2] sm:$0xff]
        %v514 = vld [vmem:[#allocation2 + $0x8] sm:$0xff]
        %v515 = vld [vmem:[#allocation2 + $0x10] sm:$0xff]
        %v516 = vld [vmem:[#allocation2 + $0x18] sm:$0xff]
        %v517 = vld [vmem:[#allocation2 + $0x20] sm:$0xff]
        %v518 = vld [vmem:[#allocation2 + $0x28] sm:$0xff]
        %v519 = vld [vmem:[#allocation2 + $0x30] sm:$0xff]
        %v520 = vld [vmem:[#allocation2 + $0x38] sm:$0xff]
        %v521 = vld [vmem:[%s359] sm:$0xff]
        %v522 = vld [vmem:[%s359 + $0x8] sm:$0xff]
        %v523 = vld [vmem:[%s359 + $0x10] sm:$0xff]
        %v524 = vld [vmem:[%s359 + $0x18] sm:$0xff]
        %v525 = vld [vmem:[%s359 + $0x20] sm:$0xff]
        %v526 = vld [vmem:[%s359 + $0x28] sm:$0xff]
        %v527 = vld [vmem:[%s359 + $0x30] sm:$0xff]
        %v528 = vld [vmem:[%s359 + $0x38] sm:$0xff]
        %v529 = vld [vmem:[%s359 + $0x40] sm:$0xff]
        %v530 = vld [vmem:[%s359 + $0x48] sm:$0xff]
        %v531 = vld [vmem:[%s359 + $0x50] sm:$0xff]
        %v532 = vld [vmem:[%s359 + $0x58] sm:$0xff]
        %v533 = vld [vmem:[%s359 + $0x60] sm:$0xff]
        %v534 = vld [vmem:[%s359 + $0x68] sm:$0xff]
        %v535 = vld [vmem:[%s359 + $0x70] sm:$0xff]
        %v536 = vld [vmem:[%s359 + $0x78] sm:$0xff]
        %v553 = vunpack.c.l.b16 %v521
        %v554 = vunpack.c.h.b16 %v521
        %v555 = vunpack.c.l.b16 %v522
        %v556 = vunpack.c.h.b16 %v522
        %v557 = vunpack.c.l.b16 %v523
        %v558 = vunpack.c.h.b16 %v523
        %v559 = vunpack.c.l.b16 %v524
        %v560 = vunpack.c.h.b16 %v524
        %v561 = vunpack.c.l.b16 %v525
        %v562 = vunpack.c.h.b16 %v525
        %v563 = vunpack.c.l.b16 %v526
        %v564 = vunpack.c.h.b16 %v526
        %v565 = vunpack.c.l.b16 %v527
        %v566 = vunpack.c.h.b16 %v527
        %v567 = vunpack.c.l.b16 %v528
        %v568 = vunpack.c.h.b16 %v528
        %v569 = vunpack.c.l.b16 %v529
        %v570 = vunpack.c.h.b16 %v529
        %v571 = vunpack.c.l.b16 %v530
        %v572 = vunpack.c.h.b16 %v530
        %v573 = vunpack.c.l.b16 %v531
        %v574 = vunpack.c.h.b16 %v531
        %v575 = vunpack.c.l.b16 %v532
        %v576 = vunpack.c.h.b16 %v532
        %v577 = vunpack.c.l.b16 %v533
        %v578 = vunpack.c.h.b16 %v533
        %v579 = vunpack.c.l.b16 %v534
        %v580 = vunpack.c.h.b16 %v534
        %v581 = vunpack.c.l.b16 %v535
        %v582 = vunpack.c.h.b16 %v535
        %v583 = vunpack.c.l.b16 %v536
        %v584 = vunpack.c.h.b16 %v536
        %v585 = vpack.c.b16 %v555, %v553
        %v586 = vpack.c.b16 %v556, %v554
        %v587 = vpack.c.b16 %v559, %v557
        %v588 = vpack.c.b16 %v560, %v558
        %v589 = vpack.c.b16 %v563, %v561
        %v590 = vpack.c.b16 %v564, %v562
        %v591 = vpack.c.b16 %v567, %v565
        %v592 = vpack.c.b16 %v568, %v566
        %v593 = vpack.c.b16 %v571, %v569
        %v594 = vpack.c.b16 %v572, %v570
        %v595 = vpack.c.b16 %v575, %v573
        %v596 = vpack.c.b16 %v576, %v574
        %v597 = vpack.c.b16 %v579, %v577
        %v598 = vpack.c.b16 %v580, %v578
        %v599 = vpack.c.b16 %v583, %v581
        %v600 = vpack.c.b16 %v584, %v582
        %617 = vmatprep.subr.bf16.mxu0 %v600
        %618 = vmatpush1.bf16.msra.mxu0 %v599
        %619 = vmatprep.subr.bf16.mxu0 %v598
        %620 = vmatpush1.bf16.msra.mxu0 %v597
        %621 = vmatprep.subr.bf16.mxu0 %v596
        %622 = vmatpush1.bf16.msra.mxu0 %v595
        %623 = vmatprep.subr.bf16.mxu0 %v594
        %624 = vmatpush1.bf16.msra.mxu0 %v593
        %625 = vmatprep.subr.bf16.mxu0 %v592
        %626 = vmatpush1.bf16.msra.mxu0 %v591
        %627 = vmatprep.subr.bf16.mxu0 %v590
        %628 = vmatpush1.bf16.msra.mxu0 %v589
        %629 = vmatprep.subr.bf16.mxu0 %v588
        %630 = vmatpush1.bf16.msra.mxu0 %v587
        %631 = vmatprep.subr.bf16.mxu0 %v586
        %632 = vmatpush1.bf16.msra.mxu0 %v585
        %633 = vmatprep.subr.bf16.mxu0 0
        %634 = vmatpush2.bf16.msra.mxu0 0
        %635 = vmatprep.subr.bf16.mxu0 0
        %636 = vmatpush2.bf16.msra.mxu0 0
        %637 = vmatprep.subr.bf16.mxu0 0
        %638 = vmatpush2.bf16.msra.mxu0 0
        %639 = vmatprep.subr.bf16.mxu0 0
        %640 = vmatpush2.bf16.msra.mxu0 0
        %641 = vmatprep.subr.bf16.mxu0 0
        %642 = vmatpush2.bf16.msra.mxu0 0
        %643 = vmatprep.subr.bf16.mxu0 0
        %644 = vmatpush2.bf16.msra.mxu0 0
        %645 = vmatprep.subr.bf16.mxu0 0
        %646 = vmatpush2.bf16.msra.mxu0 0
        %647 = vmatprep.subr.bf16.mxu0 0
        %648 = vmatpush2.bf16.msra.mxu0 0
        %649 = vmatprep.mubr.bf16.mxu0 0
        %650 = vmatmul.mubr.bf16.gmra.mxu0 %v511
        %v651 = vpop.f32.mrf.mxu0
        %v652 = vadd.f32 0.0, %v651
        %v653 = vpop.f32.mrf.mxu0
        %v654 = vadd.f32 0.0, %v653
        %v655 = vpop.f32.mrf.mxu0
        %v656 = vadd.f32 0.0, %v655
        %v657 = vpop.f32.mrf.mxu0
        %v658 = vadd.f32 0.0, %v657
        %659 = vmatprep.mubr.bf16.mxu0 0
        %660 = vmatmul.mubr.bf16.gmra.mxu0 %v512
        %v661 = vpop.f32.mrf.mxu0
        %v662 = vadd.f32 0.0, %v661
        %v663 = vpop.f32.mrf.mxu0
        %v664 = vadd.f32 0.0, %v663
        %v665 = vpop.f32.mrf.mxu0
        %v666 = vadd.f32 0.0, %v665
        %v667 = vpop.f32.mrf.mxu0
        %v668 = vadd.f32 0.0, %v667
        %669 = vdwg.mxu0
        %v670 = vadd.f32 %v513, %v652
        %v671 = vadd.f32 %v514, %v654
        %v672 = vadd.f32 %v515, %v656
        %v673 = vadd.f32 %v516, %v658
        %v674 = vadd.f32 %v517, %v662
        %v675 = vadd.f32 %v518, %v664
        %v676 = vadd.f32 %v519, %v666
        %v677 = vadd.f32 %v520, %v668
        %678 = vst [vmem:[#allocation2] sm:$0xff] %v670
        %679 = vst [vmem:[#allocation2 + $0x8] sm:$0xff] %v671
        %680 = vst [vmem:[#allocation2 + $0x10] sm:$0xff] %v672
        %681 = vst [vmem:[#allocation2 + $0x18] sm:$0xff] %v673
        %682 = vst [vmem:[#allocation2 + $0x20] sm:$0xff] %v674
        %683 = vst [vmem:[#allocation2 + $0x28] sm:$0xff] %v675
        %684 = vst [vmem:[#allocation2 + $0x30] sm:$0xff] %v676
        %685 = vst [vmem:[#allocation2 + $0x38] sm:$0xff] %v677
        // Predicated region
        $region83: #{_lambda_.14} parent=73 // pred_check
          %p686 = pneg %p426
        $region84: #{_lambda_.14} parent=73 // pred_check_branch
          %688 = sbr.rel (%p686) target = $region86
        $region85: #{_lambda_.14} parent=73 // pred_region
          %v689 = vld [vmem:[#allocation2] sm:$0xff]
          %v690 = vld [vmem:[#allocation2 + $0x8] sm:$0xff]
          %v691 = vld [vmem:[#allocation2 + $0x10] sm:$0xff]
          %v692 = vld [vmem:[#allocation2 + $0x18] sm:$0xff]
          %v693 = vld [vmem:[#allocation2 + $0x20] sm:$0xff]
          %v694 = vld [vmem:[#allocation2 + $0x28] sm:$0xff]
          %v695 = vld [vmem:[#allocation2 + $0x30] sm:$0xff]
          %v696 = vld [vmem:[#allocation2 + $0x38] sm:$0xff]
          %v697 = vld [vmem:[%s421] sm:$0x3]
          %v698 = vunpack.c.l.bf16 %v697
          %v700 = vlaneseq
          %v701 = vshrl.u32 %v700, 7
          %v702 = vsub.s32 0, %v701
          %v703 = vrot.slane %v698, %v702
          %v704 = vlaneseq
          %v705 = vshrl.u32 %v704, 7
          %v706 = vsub.s32 2, %v705
          %v707 = vrot.slane %v698, %v706
          %v710 = vlaneseq
          %v711 = vshrl.u32 %v710, 7
          %v712 = vsub.s32 0, %v711
          %v713 = vrot.slane %v703, %v712
          %v714 = vlaneseq
          %v715 = vshrl.u32 %v714, 7
          %v716 = vsub.s32 0, %v715
          %v717 = vrot.slane %v707, %v716
          %v718 = vadd.f32 %v689, %v713
          %v719 = vadd.f32 %v690, %v717
          %v720 = vadd.f32 %v691, %v713
          %v721 = vadd.f32 %v692, %v717
          %v722 = vadd.f32 %v693, %v713
          %v723 = vadd.f32 %v694, %v717
          %v724 = vadd.f32 %v695, %v713
          %v725 = vadd.f32 %v696, %v717
          %v726 = vmul.f32 %v718, 0.5
          %v727 = vmul.f32 %v719, 0.5
          %v728 = vmul.f32 %v720, 0.5
          %v729 = vmul.f32 %v721, 0.5
          %v730 = vmul.f32 %v722, 0.5
          %v731 = vmul.f32 %v723, 0.5
          %v732 = vmul.f32 %v724, 0.5
          %v733 = vmul.f32 %v725, 0.5
          %v734 = vmul.f32 %v718, 0.044715
          %v735 = vmul.f32 %v719, 0.044715
          %v736 = vmul.f32 %v720, 0.044715
          %v737 = vmul.f32 %v721, 0.044715
          %v738 = vmul.f32 %v722, 0.044715
          %v739 = vmul.f32 %v723, 0.044715
          %v740 = vmul.f32 %v724, 0.044715
          %v741 = vmul.f32 %v725, 0.044715
          %v742 = vmul.f32 %v734, %v718
          %v743 = vmul.f32 %v735, %v719
          %v744 = vmul.f32 %v736, %v720
          %v745 = vmul.f32 %v737, %v721
          %v746 = vmul.f32 %v738, %v722
          %v747 = vmul.f32 %v739, %v723
          %v748 = vmul.f32 %v740, %v724
          %v749 = vmul.f32 %v741, %v725
          %v750 = vmul.f32 %v742, %v718
          %v751 = vmul.f32 %v743, %v719
          %v752 = vmul.f32 %v744, %v720
          %v753 = vmul.f32 %v745, %v721
          %v754 = vmul.f32 %v746, %v722
          %v755 = vmul.f32 %v747, %v723
          %v756 = vmul.f32 %v748, %v724
          %v757 = vmul.f32 %v749, %v725
          %v758 = vadd.f32 %v718, %v750
          %v759 = vadd.f32 %v719, %v751
          %v760 = vadd.f32 %v720, %v752
          %v761 = vadd.f32 %v721, %v753
          %v762 = vadd.f32 %v722, %v754
          %v763 = vadd.f32 %v723, %v755
          %v764 = vadd.f32 %v724, %v756
          %v765 = vadd.f32 %v725, %v757
          %v766 = vmul.f32 %v758, 0.7978846
          %v767 = vmul.f32 %v759, 0.7978846
          %v768 = vmul.f32 %v760, 0.7978846
          %v769 = vmul.f32 %v761, 0.7978846
          %v770 = vmul.f32 %v762, 0.7978846
          %v771 = vmul.f32 %v763, 0.7978846
          %v772 = vmul.f32 %v764, 0.7978846
          %v773 = vmul.f32 %v765, 0.7978846
          %v774 = vtanh.pop %v766
          %v775 = vtanh.pop %v767
          %v776 = vtanh.pop %v768
          %v777 = vtanh.pop %v769
          %v778 = vtanh.pop %v770
          %v779 = vtanh.pop %v771
          %v780 = vtanh.pop %v772
          %v781 = vtanh.pop %v773
          %v782 = vadd.f32 %v774, 1.0
          %v783 = vadd.f32 %v775, 1.0
          %v784 = vadd.f32 %v776, 1.0
          %v785 = vadd.f32 %v777, 1.0
          %v786 = vadd.f32 %v778, 1.0
          %v787 = vadd.f32 %v779, 1.0
          %v788 = vadd.f32 %v780, 1.0
          %v789 = vadd.f32 %v781, 1.0
          %v790 = vmul.f32 %v726, %v782
          %v791 = vmul.f32 %v727, %v783
          %v792 = vmul.f32 %v728, %v784
          %v793 = vmul.f32 %v729, %v785
          %v794 = vmul.f32 %v730, %v786
          %v795 = vmul.f32 %v731, %v787
          %v796 = vmul.f32 %v732, %v788
          %v797 = vmul.f32 %v733, %v789
          %v798 = vpack.c.bf16 %v792, %v790
          %v799 = vpack.c.bf16 %v793, %v791
          %v800 = vpack.c.bf16 %v796, %v794
          %v801 = vpack.c.bf16 %v797, %v795
          %v806 = vunpack.c.l.b16 %v798
          %v807 = vunpack.c.l.b16 %v799
          %v808 = vunpack.c.h.b16 %v798
          %v809 = vunpack.c.h.b16 %v799
          %v810 = vunpack.c.l.b16 %v800
          %v811 = vunpack.c.l.b16 %v801
          %v812 = vunpack.c.h.b16 %v800
          %v813 = vunpack.c.h.b16 %v801
          %v814 = vpack.c.b16 %v807, %v806
          %v815 = vpack.c.b16 %v809, %v808
          %v816 = vpack.c.b16 %v811, %v810
          %v817 = vpack.c.b16 %v813, %v812
          %822 = vst [vmem:[%s400] sm:$0xff] %v814
          %823 = vst [vmem:[%s400 + $0x8] sm:$0xff] %v815
          %824 = vst [vmem:[%s400 + $0x10] sm:$0xff] %v816
          %825 = vst [vmem:[%s400 + $0x18] sm:$0xff] %v817
        $region86: #{_lambda_.14} parent=73 // pred_fallthru
          _
        %s826 = sand.u32 %s179, 1
        %s827 = sand.u32 %s179, 1
        %s828 = smul.addr %s827, 32
        %s829 = scalar_lea.vmem [#allocation4], %s828
        // Predicated region
        $region87: #{_lambda_.14} parent=73 // pred_check
          %p830 = pneg %p189
        $region88: #{_lambda_.14} parent=73 // pred_check_branch
          %832 = sbr.rel (%p830) target = $region90
        $region89: #{_lambda_.14} parent=73 // pred_region
          %s833 = smul.u32 4, %s21
          %s834 = smul.u32 2, %s22
          %s835 = smul.addr %s833, 4
          %s836 = sadd.s32 %s834, %s835
          %s837 = smul.addr %s836, 4
          %s838 = scalar_lea.vmem %s5, %s837
          // Predicated region
          $region91: #{_lambda_.14} parent=89 // pred_check
            _
          $region92: #{_lambda_.14} parent=89 // pred_check_branch
            %840 = sbr.rel (0) target = $region94
          $region93: #{_lambda_.14} parent=89 // pred_region
            // Predicated region
            $region95: #{_lambda_.14} parent=93 // pred_check
              _
            $region96: #{_lambda_.14} parent=93 // pred_check_branch
              %842 = sbr.rel (0) target = $region98
            $region97: #{_lambda_.14} parent=93 // pred_region
              // Predicated region
              $region110: #{_lambda_.14} parent=97 // pred_check
                _
              $region111: #{_lambda_.14} parent=97 // pred_check_branch
                %864 = sbr.rel (0) target = $region113
              $region112: #{_lambda_.14} parent=97 // pred_region
                loop: start=0, step=1, limit=1
                $region114: #{_lambda_.14} parent=112 // loop_pre_header
                  _
                $region115: #{_lambda_.14} parent=112 // loop_header
                  %s866 = sphi 0, %s870
                  %p867 = scmp.ge.s32.totalorder %s866, 1
                  %s871 = sphi %s829, %s829
                  %s872 = sphi %s838, %s838
                $region116: #{_lambda_.14} parent=112 // loop_header_branch
                  %869 = sbr.rel (%p867) target = $region120
                $region117: #{_lambda_.14} parent=112 // loop_body
                  %v873 = vld [vmem:[%s871] sm:$0xff]
                  %874 = vst [vmem:[%s872] sm:$0xff] %v873
                  %v875 = vld [vmem:[%s871 + $0x8] sm:$0xff]
                  %876 = vst [vmem:[%s872 + $0x10] sm:$0xff] %v875
                  %v877 = vld [vmem:[%s871 + $0x10] sm:$0xff]
                  %878 = vst [vmem:[%s872 + $0x20] sm:$0xff] %v877
                  %v879 = vld [vmem:[%s871 + $0x18] sm:$0xff]
                  %880 = vst [vmem:[%s872 + $0x30] sm:$0xff] %v879
                $region118: #{_lambda_.14} parent=112 // loop_footer
                  %s870 = sadd.s32 1, %s866
                $region119: #{_lambda_.14} parent=112 // loop_footer_branch
                  %865 = sbr.rel target = $region115
                $region120: #{_lambda_.14} parent=112 // loop_exit
                  _
              $region113: #{_lambda_.14} parent=97 // pred_fallthru
                _
              // Predicated region
              $region121: #{_lambda_.14} parent=97 // pred_check
                _
              $region122: #{_lambda_.14} parent=97 // pred_check_branch
                %882 = sbr.rel target = $region124
              $region123: #{_lambda_.14} parent=97 // pred_region
                _
              $region124: #{_lambda_.14} parent=97 // pred_fallthru
                _
            $region98: #{_lambda_.14} parent=93 // pred_fallthru
              _
            // Predicated region
            $region99: #{_lambda_.14} parent=93 // pred_check
              _
            $region100: #{_lambda_.14} parent=93 // pred_check_branch
              %844 = sbr.rel target = $region102
            $region101: #{_lambda_.14} parent=93 // pred_region
              %s846 = ssub.s32 256, 1
              loop: start=0, step=1, limit=1
              $region103: #{_lambda_.14} parent=101 // loop_pre_header
                _
              $region104: #{_lambda_.14} parent=101 // loop_header
                %s848 = sphi 0, %s852
                %p849 = scmp.ge.s32.totalorder %s848, 1
                %s853 = sphi %s829, %s829
                %s854 = sphi %s838, %s838
              $region105: #{_lambda_.14} parent=101 // loop_header_branch
                %851 = sbr.rel (%p849) target = $region109
              $region106: #{_lambda_.14} parent=101 // loop_body
                %v855 = vld [vmem:[%s853] sm:%s846]
                %856 = vst [vmem:[%s854] sm:%s846] %v855
                %v857 = vld [vmem:[%s853 + $0x8] sm:%s846]
                %858 = vst [vmem:[%s854 + $0x10] sm:%s846] %v857
                %v859 = vld [vmem:[%s853 + $0x10] sm:%s846]
                %860 = vst [vmem:[%s854 + $0x20] sm:%s846] %v859
                %v861 = vld [vmem:[%s853 + $0x18] sm:%s846]
                %862 = vst [vmem:[%s854 + $0x30] sm:%s846] %v861
              $region107: #{_lambda_.14} parent=101 // loop_footer
                %s852 = sadd.s32 1, %s848
              $region108: #{_lambda_.14} parent=101 // loop_footer_branch
                %847 = sbr.rel target = $region104
              $region109: #{_lambda_.14} parent=101 // loop_exit
                _
            $region102: #{_lambda_.14} parent=93 // pred_fallthru
              _
          $region94: #{_lambda_.14} parent=89 // pred_fallthru
            _
          %883 = vnop
        $region90: #{_lambda_.14} parent=73 // pred_fallthru
          _
      $region74: #{_lambda_.14} parent=5 // pred_fallthru
        _
      %p884 = scmp.le.s32.totalorder 2, %s11
      // Predicated region
      $region125: #{_lambda_.14} parent=5 // pred_check
        %p885 = pneg %p884
      $region126: #{_lambda_.14} parent=5 // pred_check_branch
        %887 = sbr.rel (%p885) target = $region128
      $region127: #{_lambda_.14} parent=5 // pred_region
        %s888 = ssub.s32 %s11, 2
        // Predicated region
        $region129: #{_lambda_.14} parent=127 // pred_check
          %p889 = pneg %p195
        $region130: #{_lambda_.14} parent=127 // pred_check_branch
          %891 = sbr.rel (%p889) target = $region132
        $region131: #{_lambda_.14} parent=127 // pred_region
          %s892 = sand.u32 %s180, 1
          %s893 = sand.u32 %s180, 1
          %s894 = smul.addr %s893, 32
          %s895 = scalar_lea.vmem [#allocation4], %s894
        $region132: #{_lambda_.14} parent=127 // pred_fallthru
          _
      $region128: #{_lambda_.14} parent=5 // pred_fallthru
        _
    $region6: #{_lambda_.14} parent=1 // loop_footer
      %s15 = sadd.s32 1, %s11
    $region7: #{_lambda_.14} parent=1 // loop_footer_branch
      %10 = sbr.rel target = $region3
    $region8: #{_lambda_.14} parent=1 // loop_exit
      _

// kernel: _lambda_.15
$region0: #{_lambda_.15}
  #allocation0 [shape = 'u32[]', space=smem, size = 0x4, offset = 0x4, fixed_abs, tag = 'smem constant byte address 0x4 - core index']
  #allocation1 [shape = 'u32[144,128]{1,0:T(1,128)}', space=vmem, size = 0x12000, scoped, tag = 'internal scratch']
  #allocation2 [shape = 'f32[32,128]{1,0:T(8,128)}', space=vmem, size = 0x4000, scoped, tag = 'scratch operand']
  %s0 = inlined_call_operand.vmem [shape: bf16[32,512], index: 0, kind: input, shape index: {}]
  %s1 = inlined_call_operand.vmem [shape: bf16[512,128], index: 1, kind: input, shape index: {}]
  %s2 = inlined_call_operand.vmem [shape: bf16[1,128], index: 2, kind: input, shape index: {}]
  %s3 = inlined_call_operand.vmem [shape: bf16[32,128], index: 3, kind: input, shape index: {}]
  %s4 = inlined_call_operand.vmem [shape: bf16[32,128], index: 4, kind: output, shape index: {}]
  %s5 = sld [smem:[#allocation0]]
  $region34: #{_lambda_.15} parent=0
    _
  %s7 = ssub.s32 1, %s5
  %s8 = scalar_select 0, %s7, %s5
  // Predicated region
  $region2: #{_lambda_.15} parent=0 // pred_check
    _
  $region3: #{_lambda_.15} parent=0 // pred_check_branch
    %10 = sbr.rel (0) target = $region5
  $region4: #{_lambda_.15} parent=0 // pred_region
    _
  $region5: #{_lambda_.15} parent=0 // pred_fallthru
    _
  // Predicated region
  $region6: #{_lambda_.15} parent=0 // pred_check
    _
  $region7: #{_lambda_.15} parent=0 // pred_check_branch
    %12 = sbr.rel (0) target = $region9
  $region8: #{_lambda_.15} parent=0 // pred_region
    _
  $region9: #{_lambda_.15} parent=0 // pred_fallthru
    _
  // Predicated region
  $region10: #{_lambda_.15} parent=0 // pred_check
    _
  $region11: #{_lambda_.15} parent=0 // pred_check_branch
    %14 = sbr.rel (0) target = $region13
  $region12: #{_lambda_.15} parent=0 // pred_region
    _
  $region13: #{_lambda_.15} parent=0 // pred_fallthru
    _
  // Predicated region
  $region14: #{_lambda_.15} parent=0 // pred_check
    _
  $region15: #{_lambda_.15} parent=0 // pred_check_branch
    %16 = sbr.rel (0) target = $region17
  $region16: #{_lambda_.15} parent=0 // pred_region
    _
  $region17: #{_lambda_.15} parent=0 // pred_fallthru
    _
  %p18 = scmp.eq.s32.totalorder 0, 0
  // Predicated region
  $region18: #{_lambda_.15} parent=0 // pred_check
    %p19 = pneg %p18
  $region19: #{_lambda_.15} parent=0 // pred_check_branch
    %21 = sbr.rel (%p19) target = $region21
  $region20: #{_lambda_.15} parent=0 // pred_region
    %22 = vst [vmem:[#allocation2] sm:$0xff] 0.0
    %23 = vst [vmem:[#allocation2 + $0x8] sm:$0xff] 0.0
    %24 = vst [vmem:[#allocation2 + $0x10] sm:$0xff] 0.0
    %25 = vst [vmem:[#allocation2 + $0x18] sm:$0xff] 0.0
  $region21: #{_lambda_.15} parent=0 // pred_fallthru
    _
  %v26 = vld [vmem:[%s0] sm:$0xff]
  %v27 = vld [vmem:[%s0 + $0x8] sm:$0xff]
  %v28 = vld [vmem:[%s0 + $0x10] sm:$0xff]
  %v29 = vld [vmem:[%s0 + $0x18] sm:$0xff]
  %v30 = vld [vmem:[%s0 + $0x20] sm:$0xff]
  %v31 = vld [vmem:[%s0 + $0x28] sm:$0xff]
  %v32 = vld [vmem:[%s0 + $0x30] sm:$0xff]
  %v33 = vld [vmem:[%s0 + $0x38] sm:$0xff]
  %v34 = vld [vmem:[#allocation2] sm:$0xff]
  %v35 = vld [vmem:[#allocation2 + $0x8] sm:$0xff]
  %v36 = vld [vmem:[#allocation2 + $0x10] sm:$0xff]
  %v37 = vld [vmem:[#allocation2 + $0x18] sm:$0xff]
  %v38 = vld [vmem:[%s1] sm:$0xf]
  %v39 = vld [vmem:[%s1 + $0x4] sm:$0xf]
  %v40 = vld [vmem:[%s1 + $0x8] sm:$0xf]
  %v41 = vld [vmem:[%s1 + $0xc] sm:$0xf]
  %v42 = vld [vmem:[%s1 + $0x10] sm:$0xf]
  %v43 = vld [vmem:[%s1 + $0x14] sm:$0xf]
  %v44 = vld [vmem:[%s1 + $0x18] sm:$0xf]
  %v45 = vld [vmem:[%s1 + $0x1c] sm:$0xf]
  %v46 = vld [vmem:[%s1 + $0x20] sm:$0xf]
  %v47 = vld [vmem:[%s1 + $0x24] sm:$0xf]
  %v48 = vld [vmem:[%s1 + $0x28] sm:$0xf]
  %v49 = vld [vmem:[%s1 + $0x2c] sm:$0xf]
  %v50 = vld [vmem:[%s1 + $0x30] sm:$0xf]
  %v51 = vld [vmem:[%s1 + $0x34] sm:$0xf]
  %v52 = vld [vmem:[%s1 + $0x38] sm:$0xf]
  %v53 = vld [vmem:[%s1 + $0x3c] sm:$0xf]
  %v54 = vld [vmem:[%s1 + $0x40] sm:$0xf]
  %v55 = vld [vmem:[%s1 + $0x44] sm:$0xf]
  %v56 = vld [vmem:[%s1 + $0x48] sm:$0xf]
  %v57 = vld [vmem:[%s1 + $0x4c] sm:$0xf]
  %v58 = vld [vmem:[%s1 + $0x50] sm:$0xf]
  %v59 = vld [vmem:[%s1 + $0x54] sm:$0xf]
  %v60 = vld [vmem:[%s1 + $0x58] sm:$0xf]
  %v61 = vld [vmem:[%s1 + $0x5c] sm:$0xf]
  %v62 = vld [vmem:[%s1 + $0x60] sm:$0xf]
  %v63 = vld [vmem:[%s1 + $0x64] sm:$0xf]
  %v64 = vld [vmem:[%s1 + $0x68] sm:$0xf]
  %v65 = vld [vmem:[%s1 + $0x6c] sm:$0xf]
  %v66 = vld [vmem:[%s1 + $0x70] sm:$0xf]
  %v67 = vld [vmem:[%s1 + $0x74] sm:$0xf]
  %v68 = vld [vmem:[%s1 + $0x78] sm:$0xf]
  %v69 = vld [vmem:[%s1 + $0x7c] sm:$0xf]
  %v70 = vld [vmem:[%s1 + $0x80] sm:$0xf]
  %v71 = vld [vmem:[%s1 + $0x84] sm:$0xf]
  %v72 = vld [vmem:[%s1 + $0x88] sm:$0xf]
  %v73 = vld [vmem:[%s1 + $0x8c] sm:$0xf]
  %v74 = vld [vmem:[%s1 + $0x90] sm:$0xf]
  %v75 = vld [vmem:[%s1 + $0x94] sm:$0xf]
  %v76 = vld [vmem:[%s1 + $0x98] sm:$0xf]
  %v77 = vld [vmem:[%s1 + $0x9c] sm:$0xf]
  %v78 = vld [vmem:[%s1 + $0xa0] sm:$0xf]
  %v79 = vld [vmem:[%s1 + $0xa4] sm:$0xf]
  %v80 = vld [vmem:[%s1 + $0xa8] sm:$0xf]
  %v81 = vld [vmem:[%s1 + $0xac] sm:$0xf]
  %v82 = vld [vmem:[%s1 + $0xb0] sm:$0xf]
  %v83 = vld [vmem:[%s1 + $0xb4] sm:$0xf]
  %v84 = vld [vmem:[%s1 + $0xb8] sm:$0xf]
  %v85 = vld [vmem:[%s1 + $0xbc] sm:$0xf]
  %v86 = vld [vmem:[%s1 + $0xc0] sm:$0xf]
  %v87 = vld [vmem:[%s1 + $0xc4] sm:$0xf]
  %v88 = vld [vmem:[%s1 + $0xc8] sm:$0xf]
  %v89 = vld [vmem:[%s1 + $0xcc] sm:$0xf]
  %v90 = vld [vmem:[%s1 + $0xd0] sm:$0xf]
  %v91 = vld [vmem:[%s1 + $0xd4] sm:$0xf]
  %v92 = vld [vmem:[%s1 + $0xd8] sm:$0xf]
  %v93 = vld [vmem:[%s1 + $0xdc] sm:$0xf]
  %v94 = vld [vmem:[%s1 + $0xe0] sm:$0xf]
  %v95 = vld [vmem:[%s1 + $0xe4] sm:$0xf]
  %v96 = vld [vmem:[%s1 + $0xe8] sm:$0xf]
  %v97 = vld [vmem:[%s1 + $0xec] sm:$0xf]
  %v98 = vld [vmem:[%s1 + $0xf0] sm:$0xf]
  %v99 = vld [vmem:[%s1 + $0xf4] sm:$0xf]
  %v100 = vld [vmem:[%s1 + $0xf8] sm:$0xf]
  %v101 = vld [vmem:[%s1 + $0xfc] sm:$0xf]
  %v110 = vunpack.c.l.b16 %v26
  %v111 = vunpack.c.h.b16 %v26
  %v112 = vunpack.c.l.b16 %v27
  %v113 = vunpack.c.h.b16 %v27
  %v114 = vunpack.c.l.b16 %v28
  %v115 = vunpack.c.h.b16 %v28
  %v116 = vunpack.c.l.b16 %v29
  %v117 = vunpack.c.h.b16 %v29
  %v118 = vunpack.c.l.b16 %v30
  %v119 = vunpack.c.h.b16 %v30
  %v120 = vunpack.c.l.b16 %v31
  %v121 = vunpack.c.h.b16 %v31
  %v122 = vunpack.c.l.b16 %v32
  %v123 = vunpack.c.h.b16 %v32
  %v124 = vunpack.c.l.b16 %v33
  %v125 = vunpack.c.h.b16 %v33
  %v126 = vpack.c.b16 %v114, %v110
  %v127 = vpack.c.b16 %v115, %v111
  %v128 = vpack.c.b16 %v116, %v112
  %v129 = vpack.c.b16 %v117, %v113
  %v130 = vpack.c.b16 %v122, %v118
  %v131 = vpack.c.b16 %v123, %v119
  %v132 = vpack.c.b16 %v124, %v120
  %v133 = vpack.c.b16 %v125, %v121
  %v206 = vunpack.c.l.b16 %v38
  %v207 = vunpack.c.l.b16 %v39
  %v208 = vunpack.c.l.b16 %v40
  %v209 = vunpack.c.l.b16 %v41
  %v210 = vunpack.c.l.b16 %v42
  %v211 = vunpack.c.l.b16 %v43
  %v212 = vunpack.c.l.b16 %v44
  %v213 = vunpack.c.l.b16 %v45
  %v214 = vunpack.c.l.b16 %v46
  %v215 = vunpack.c.l.b16 %v47
  %v216 = vunpack.c.l.b16 %v48
  %v217 = vunpack.c.l.b16 %v49
  %v218 = vunpack.c.l.b16 %v50
  %v219 = vunpack.c.l.b16 %v51
  %v220 = vunpack.c.l.b16 %v52
  %v221 = vunpack.c.l.b16 %v53
  %v222 = vunpack.c.l.b16 %v54
  %v223 = vunpack.c.l.b16 %v55
  %v224 = vunpack.c.l.b16 %v56
  %v225 = vunpack.c.l.b16 %v57
  %v226 = vunpack.c.l.b16 %v58
  %v227 = vunpack.c.l.b16 %v59
  %v228 = vunpack.c.l.b16 %v60
  %v229 = vunpack.c.l.b16 %v61
  %v230 = vunpack.c.l.b16 %v62
  %v231 = vunpack.c.l.b16 %v63
  %v232 = vunpack.c.l.b16 %v64
  %v233 = vunpack.c.l.b16 %v65
  %v234 = vunpack.c.l.b16 %v66
  %v235 = vunpack.c.l.b16 %v67
  %v236 = vunpack.c.l.b16 %v68
  %v237 = vunpack.c.l.b16 %v69
  %v238 = vunpack.c.l.b16 %v70
  %v239 = vunpack.c.l.b16 %v71
  %v240 = vunpack.c.l.b16 %v72
  %v241 = vunpack.c.l.b16 %v73
  %v242 = vunpack.c.l.b16 %v74
  %v243 = vunpack.c.l.b16 %v75
  %v244 = vunpack.c.l.b16 %v76
  %v245 = vunpack.c.l.b16 %v77
  %v246 = vunpack.c.l.b16 %v78
  %v247 = vunpack.c.l.b16 %v79
  %v248 = vunpack.c.l.b16 %v80
  %v249 = vunpack.c.l.b16 %v81
  %v250 = vunpack.c.l.b16 %v82
  %v251 = vunpack.c.l.b16 %v83
  %v252 = vunpack.c.l.b16 %v84
  %v253 = vunpack.c.l.b16 %v85
  %v254 = vunpack.c.l.b16 %v86
  %v255 = vunpack.c.l.b16 %v87
  %v256 = vunpack.c.l.b16 %v88
  %v257 = vunpack.c.l.b16 %v89
  %v258 = vunpack.c.l.b16 %v90
  %v259 = vunpack.c.l.b16 %v91
  %v260 = vunpack.c.l.b16 %v92
  %v261 = vunpack.c.l.b16 %v93
  %v262 = vunpack.c.l.b16 %v94
  %v263 = vunpack.c.l.b16 %v95
  %v264 = vunpack.c.l.b16 %v96
  %v265 = vunpack.c.l.b16 %v97
  %v266 = vunpack.c.l.b16 %v98
  %v267 = vunpack.c.l.b16 %v99
  %v268 = vunpack.c.l.b16 %v100
  %v269 = vunpack.c.l.b16 %v101
  %v270 = vpack.c.b16 %v207, %v206
  %v271 = vpack.c.b16 %v209, %v208
  %v272 = vpack.c.b16 %v211, %v210
  %v273 = vpack.c.b16 %v213, %v212
  %v274 = vpack.c.b16 %v215, %v214
  %v275 = vpack.c.b16 %v217, %v216
  %v276 = vpack.c.b16 %v219, %v218
  %v277 = vpack.c.b16 %v221, %v220
  %v278 = vpack.c.b16 %v223, %v222
  %v279 = vpack.c.b16 %v225, %v224
  %v280 = vpack.c.b16 %v227, %v226
  %v281 = vpack.c.b16 %v229, %v228
  %v282 = vpack.c.b16 %v231, %v230
  %v283 = vpack.c.b16 %v233, %v232
  %v284 = vpack.c.b16 %v235, %v234
  %v285 = vpack.c.b16 %v237, %v236
  %v286 = vpack.c.b16 %v239, %v238
  %v287 = vpack.c.b16 %v241, %v240
  %v288 = vpack.c.b16 %v243, %v242
  %v289 = vpack.c.b16 %v245, %v244
  %v290 = vpack.c.b16 %v247, %v246
  %v291 = vpack.c.b16 %v249, %v248
  %v292 = vpack.c.b16 %v251, %v250
  %v293 = vpack.c.b16 %v253, %v252
  %v294 = vpack.c.b16 %v255, %v254
  %v295 = vpack.c.b16 %v257, %v256
  %v296 = vpack.c.b16 %v259, %v258
  %v297 = vpack.c.b16 %v261, %v260
  %v298 = vpack.c.b16 %v263, %v262
  %v299 = vpack.c.b16 %v265, %v264
  %v300 = vpack.c.b16 %v267, %v266
  %v301 = vpack.c.b16 %v269, %v268
  %334 = vmatprep.subr.bf16.mxu0 0
  %335 = vmatpush1.bf16.msra.mxu0 %v277
  %336 = vmatprep.subr.bf16.mxu0 0
  %337 = vmatpush1.bf16.msra.mxu0 %v276
  %338 = vmatprep.subr.bf16.mxu0 0
  %339 = vmatpush1.bf16.msra.mxu0 %v275
  %340 = vmatprep.subr.bf16.mxu0 0
  %341 = vmatpush1.bf16.msra.mxu0 %v274
  %342 = vmatprep.subr.bf16.mxu0 0
  %343 = vmatpush1.bf16.msra.mxu0 %v273
  %344 = vmatprep.subr.bf16.mxu0 0
  %345 = vmatpush1.bf16.msra.mxu0 %v272
  %346 = vmatprep.subr.bf16.mxu0 0
  %347 = vmatpush1.bf16.msra.mxu0 %v271
  %348 = vmatprep.subr.bf16.mxu0 0
  %349 = vmatpush1.bf16.msra.mxu0 %v270
  %350 = vmatprep.subr.bf16.mxu0 0
  %351 = vmatpush2.bf16.msra.mxu0 %v285
  %352 = vmatprep.subr.bf16.mxu0 0
  %353 = vmatpush2.bf16.msra.mxu0 %v284
  %354 = vmatprep.subr.bf16.mxu0 0
  %355 = vmatpush2.bf16.msra.mxu0 %v283
  %356 = vmatprep.subr.bf16.mxu0 0
  %357 = vmatpush2.bf16.msra.mxu0 %v282
  %358 = vmatprep.subr.bf16.mxu0 0
  %359 = vmatpush2.bf16.msra.mxu0 %v281
  %360 = vmatprep.subr.bf16.mxu0 0
  %361 = vmatpush2.bf16.msra.mxu0 %v280
  %362 = vmatprep.subr.bf16.mxu0 0
  %363 = vmatpush2.bf16.msra.mxu0 %v279
  %364 = vmatprep.subr.bf16.mxu0 0
  %365 = vmatpush2.bf16.msra.mxu0 %v278
  %366 = vmatprep.mubr.bf16.mxu0 %v127
  %367 = vmatmul.mubr.bf16.gmra.mxu0 %v126
  %v368 = vpop.f32.mrf.mxu0
  %v369 = vadd.f32 0.0, %v368
  %v370 = vpop.f32.mrf.mxu0
  %v371 = vpop.f32.mrf.mxu0
  %v372 = vadd.f32 0.0, %v371
  %v373 = vpop.f32.mrf.mxu0
  %374 = vmatprep.mubr.bf16.mxu0 %v131
  %375 = vmatmul.mubr.bf16.gmra.mxu0 %v130
  %v376 = vpop.f32.mrf.mxu0
  %v377 = vadd.f32 0.0, %v376
  %v378 = vpop.f32.mrf.mxu0
  %v379 = vpop.f32.mrf.mxu0
  %v380 = vadd.f32 0.0, %v379
  %v381 = vpop.f32.mrf.mxu0
  %382 = vdwg.mxu0
  %383 = vmatprep.subr.bf16.mxu0 0
  %384 = vmatpush1.bf16.msra.mxu0 %v293
  %385 = vmatprep.subr.bf16.mxu0 0
  %386 = vmatpush1.bf16.msra.mxu0 %v292
  %387 = vmatprep.subr.bf16.mxu0 0
  %388 = vmatpush1.bf16.msra.mxu0 %v291
  %389 = vmatprep.subr.bf16.mxu0 0
  %390 = vmatpush1.bf16.msra.mxu0 %v290
  %391 = vmatprep.subr.bf16.mxu0 0
  %392 = vmatpush1.bf16.msra.mxu0 %v289
  %393 = vmatprep.subr.bf16.mxu0 0
  %394 = vmatpush1.bf16.msra.mxu0 %v288
  %395 = vmatprep.subr.bf16.mxu0 0
  %396 = vmatpush1.bf16.msra.mxu0 %v287
  %397 = vmatprep.subr.bf16.mxu0 0
  %398 = vmatpush1.bf16.msra.mxu0 %v286
  %399 = vmatprep.subr.bf16.mxu0 0
  %400 = vmatpush2.bf16.msra.mxu0 %v301
  %401 = vmatprep.subr.bf16.mxu0 0
  %402 = vmatpush2.bf16.msra.mxu0 %v300
  %403 = vmatprep.subr.bf16.mxu0 0
  %404 = vmatpush2.bf16.msra.mxu0 %v299
  %405 = vmatprep.subr.bf16.mxu0 0
  %406 = vmatpush2.bf16.msra.mxu0 %v298
  %407 = vmatprep.subr.bf16.mxu0 0
  %408 = vmatpush2.bf16.msra.mxu0 %v297
  %409 = vmatprep.subr.bf16.mxu0 0
  %410 = vmatpush2.bf16.msra.mxu0 %v296
  %411 = vmatprep.subr.bf16.mxu0 0
  %412 = vmatpush2.bf16.msra.mxu0 %v295
  %413 = vmatprep.subr.bf16.mxu0 0
  %414 = vmatpush2.bf16.msra.mxu0 %v294
  %415 = vmatprep.mubr.bf16.mxu0 %v129
  %416 = vmatmul.mubr.bf16.gmra.mxu0 %v128
  %v417 = vpop.f32.mrf.mxu0
  %v418 = vadd.f32 %v369, %v417
  %v419 = vpop.f32.mrf.mxu0
  %v420 = vpop.f32.mrf.mxu0
  %v421 = vadd.f32 %v372, %v420
  %v422 = vpop.f32.mrf.mxu0
  %423 = vmatprep.mubr.bf16.mxu0 %v133
  %424 = vmatmul.mubr.bf16.gmra.mxu0 %v132
  %v425 = vpop.f32.mrf.mxu0
  %v426 = vadd.f32 %v377, %v425
  %v427 = vpop.f32.mrf.mxu0
  %v428 = vpop.f32.mrf.mxu0
  %v429 = vadd.f32 %v380, %v428
  %v430 = vpop.f32.mrf.mxu0
  %431 = vdwg.mxu0
  %v432 = vadd.f32 %v34, %v418
  %v433 = vadd.f32 %v35, %v421
  %v434 = vadd.f32 %v36, %v426
  %v435 = vadd.f32 %v37, %v429
  %436 = vst [vmem:[#allocation2] sm:$0xff] %v432
  %437 = vst [vmem:[#allocation2 + $0x8] sm:$0xff] %v433
  %438 = vst [vmem:[#allocation2 + $0x10] sm:$0xff] %v434
  %439 = vst [vmem:[#allocation2 + $0x18] sm:$0xff] %v435
  // Predicated region
  $region22: #{_lambda_.15} parent=0 // pred_check
    %p440 = pneg %p18
  $region23: #{_lambda_.15} parent=0 // pred_check_branch
    %442 = sbr.rel (%p440) target = $region25
  $region24: #{_lambda_.15} parent=0 // pred_region
    %v443 = vld [vmem:[#allocation2] sm:$0xff]
    %v444 = vld [vmem:[#allocation2 + $0x8] sm:$0xff]
    %v445 = vld [vmem:[#allocation2 + $0x10] sm:$0xff]
    %v446 = vld [vmem:[#allocation2 + $0x18] sm:$0xff]
    %v447 = vld [vmem:[%s2] sm:$0x1]
    %v448 = vunpack.c.l.bf16 %v447
    %v449 = vlaneseq
    %v450 = vshrl.u32 %v449, 7
    %v451 = vsub.s32 0, %v450
    %v452 = vrot.slane %v448, %v451
    %v453 = vadd.f32 %v443, %v452
    %v454 = vadd.f32 %v444, %v452
    %v455 = vadd.f32 %v445, %v452
    %v456 = vadd.f32 %v446, %v452
    %v457 = vld [vmem:[%s3] sm:$0xf]
    %v458 = vld [vmem:[%s3 + $0x4] sm:$0xf]
    %v459 = vld [vmem:[%s3 + $0x8] sm:$0xf]
    %v460 = vld [vmem:[%s3 + $0xc] sm:$0xf]
    %v461 = vunpack.c.l.bf16 %v457
    %v462 = vunpack.c.l.bf16 %v458
    %v463 = vunpack.c.l.bf16 %v459
    %v464 = vunpack.c.l.bf16 %v460
    %v465 = vadd.f32 %v453, %v461
    %v466 = vadd.f32 %v454, %v462
    %v467 = vadd.f32 %v455, %v463
    %v468 = vadd.f32 %v456, %v464
    %v469 = vpack.c.bf16 %v466, %v465
    %v470 = vpack.c.bf16 %v468, %v467
    %v473 = vunpack.c.l.b16 %v469
    %v474 = vunpack.c.h.b16 %v469
    %v475 = vunpack.c.l.b16 %v470
    %v476 = vunpack.c.h.b16 %v470
    %v477 = vpack.c.b16 %v473, %v473
    %v478 = vpack.c.b16 %v474, %v474
    %v479 = vpack.c.b16 %v475, %v475
    %v480 = vpack.c.b16 %v476, %v476
    %485 = vst [vmem:[%s4] sm:$0xf] %v477
    %486 = vst [vmem:[%s4 + $0x4] sm:$0xf] %v478
    %487 = vst [vmem:[%s4 + $0x8] sm:$0xf] %v479
    %488 = vst [vmem:[%s4 + $0xc] sm:$0xf] %v480
  $region25: #{_lambda_.15} parent=0 // pred_fallthru
    _
  // Predicated region
  $region26: #{_lambda_.15} parent=0 // pred_check
    _
  $region27: #{_lambda_.15} parent=0 // pred_check_branch
    %490 = sbr.rel (0) target = $region29
  $region28: #{_lambda_.15} parent=0 // pred_region
    _
  $region29: #{_lambda_.15} parent=0 // pred_fallthru
    _
  // Predicated region
  $region30: #{_lambda_.15} parent=0 // pred_check
    _
  $region31: #{_lambda_.15} parent=0 // pred_check_branch
    %492 = sbr.rel (0) target = $region33
  $region32: #{_lambda_.15} parent=0 // pred_region
    _
  $region33: #{_lambda_.15} parent=0 // pred_fallthru
    _

// kernel: _lambda_.12
$region0: #{_lambda_.12}
  #allocation0 [shape = 'u32[]', space=smem, size = 0x4, offset = 0x4, fixed_abs, tag = 'smem constant byte address 0x4 - core index']
  #allocation1 [shape = 'u32[144,128]{1,0:T(1,128)}', space=vmem, size = 0x12000, scoped, tag = 'internal scratch']
  #allocation2 [shape = 'f32[4,16,1]{2,1,0:T(8,128)}', space=vmem, size = 0x8000, scoped, tag = 'scratch operand']
  #allocation3 [shape = 'f32[4,16,1]{2,1,0:T(8,128)}', space=vmem, size = 0x8000, scoped, tag = 'scratch operand']
  #allocation4 [shape = 'f32[16,128]{1,0:T(8,128)}', space=vmem, size = 0x2000, scoped, tag = 'scratch operand']
  %s0 = inlined_call_operand.vmem [shape: bf16[2,16,384], index: 0, kind: input, shape index: {}, may-alias: {0,1,2}]
  %s1 = inlined_call_operand.vmem [shape: bf16[2,16,384], index: 1, kind: input, shape index: {}, may-alias: {0,1,2}]
  %s2 = inlined_call_operand.vmem [shape: bf16[2,16,384], index: 2, kind: input, shape index: {}, may-alias: {0,1,2}]
  %s3 = inlined_call_operand.vmem [shape: bf16[2,16,128], index: 3, kind: output, shape index: {}]
  %s4 = sld [smem:[#allocation0]]
  $region184: #{_lambda_.12} parent=0
    _
  %s6 = ssub.s32 1, %s4
  %s7 = scalar_select 0, %s6, %s4
  $region1: #{_lambda_.12} parent=0
    #allocation5 [shape = 'u8[8192]{0}', space=vmem, size = 0x2000, scoped, tag = 'input window, operand 0']
    #allocation6 [shape = 'u8[8192]{0}', space=vmem, size = 0x2000, scoped, tag = 'input window, operand 1']
    #allocation7 [shape = 'u8[8192]{0}', space=vmem, size = 0x2000, scoped, tag = 'input window, operand 2']
    loop: start=0, step=1, limit=4
    $region2: #{_lambda_.12} parent=1 // loop_pre_header
      _
    $region3: #{_lambda_.12} parent=1 // loop_header
      %s9 = sphi 0, %s13
      %p10 = scmp.ge.s32.totalorder %s9, 4
      %s16 = sphi 0, %s35
      %s17 = sphi 0, %s31
      %s18 = sphi 0, %s27
      %s19 = sphi 0, %s16
      %s20 = sphi 0, %s17
      %s21 = sphi 0, %s18
      %s22 = sphi 0, %s19
      %s23 = sphi 0, %s20
      %s24 = sphi 0, %s21
      %s40 = sphi 0, %s42
      %s43 = sphi 0, %s40
      %s44 = sphi 0, %s43
      %s60 = sphi 0, %s44
      %s72 = sphi 0, %s74
      %s75 = sphi 0, %s72
      %s76 = sphi 0, %s75
      %s92 = sphi 0, %s76
      %s104 = sphi 0, %s106
      %s107 = sphi 0, %s104
      %s108 = sphi 0, %s107
      %s124 = sphi 0, %s108
      %s132 = sphi 0, %s134
      %s135 = sphi 0, %s132
      %s136 = sphi 0, %s135
      %s152 = sphi 0, %s136
    $region4: #{_lambda_.12} parent=1 // loop_header_branch
      %12 = sbr.rel (%p10) target = $region8
    $region5: #{_lambda_.12} parent=1 // loop_body
      %s14 = ssub.s32 %s9, 1
      %s15 = ssub.s32 %s9, 2
      %s25 = sadd.s32 1, %s18
      %p26 = scmp.ge.s32.totalorder %s25, 1
      %s27 = scalar_select %p26, 0, %s25
      %s28 = sadd.s32 1, %s17
      %s29 = scalar_select %p26, %s28, %s17
      %p30 = scmp.ge.s32.totalorder %s29, 1
      %s31 = scalar_select %p30, 0, %s29
      %s32 = sadd.s32 1, %s16
      %s33 = scalar_select %p30, %s32, %s16
      %p34 = scmp.ge.s32.totalorder %s33, 2
      %s35 = scalar_select %p34, 0, %s33
      %s36 = ssub.s32 %s16, %s35
      %s37 = ssub.s32 %s17, %s31
      %s38 = sor.u32 %s36, %s37
      %p39 = scmp.eq.s32.totalorder %s38, 0
      %s41 = sadd.s32 %s40, 1
      %s42 = scalar_select %p39, %s40, %s41
      %p45 = pneg %p39
      %p46 = scmp.eq.s32.totalorder %s9, 1
      %p47 = por %p45, %p46
      %p48 = scmp.ne.s32.totalorder %s40, %s43
      %p49 = scmp.eq.s32.totalorder %s9, 0
      %p50 = por %p48, %p49
      %p51 = scmp.ne.s32.totalorder %s40, %s43
      %p52 = scmp.eq.s32.totalorder %s14, 1
      %p53 = por %p51, %p52
      %p54 = scmp.ne.s32.totalorder %s43, %s44
      %p55 = scmp.eq.s32.totalorder %s14, 0
      %p56 = por %p54, %p55
      %p57 = scmp.ne.s32.totalorder %s43, %s44
      %p58 = scmp.eq.s32.totalorder %s15, 1
      %p59 = por %p57, %p58
      %p61 = scmp.ne.s32.totalorder %s44, %s60
      %p62 = scmp.eq.s32.totalorder %s15, 0
      %p63 = por %p61, %p62
      %p64 = scmp.lt.s32.totalorder %s18, %s17
      %s65 = scalar_select %p64, %s18, %s17
      %p66 = scmp.lt.s32.totalorder %s27, %s31
      %s67 = scalar_select %p66, %s27, %s31
      %s68 = ssub.s32 %s16, %s35
      %s69 = ssub.s32 %s65, %s67
      %s70 = sor.u32 %s68, %s69
      %p71 = scmp.eq.s32.totalorder %s70, 0
      %s73 = sadd.s32 %s72, 1
      %s74 = scalar_select %p71, %s72, %s73
      %p77 = pneg %p71
      %p78 = scmp.eq.s32.totalorder %s9, 1
      %p79 = por %p77, %p78
      %p80 = scmp.ne.s32.totalorder %s72, %s75
      %p81 = scmp.eq.s32.totalorder %s9, 0
      %p82 = por %p80, %p81
      %p83 = scmp.ne.s32.totalorder %s72, %s75
      %p84 = scmp.eq.s32.totalorder %s14, 1
      %p85 = por %p83, %p84
      %p86 = scmp.ne.s32.totalorder %s75, %s76
      %p87 = scmp.eq.s32.totalorder %s14, 0
      %p88 = por %p86, %p87
      %p89 = scmp.ne.s32.totalorder %s75, %s76
      %p90 = scmp.eq.s32.totalorder %s15, 1
      %p91 = por %p89, %p90
      %p93 = scmp.ne.s32.totalorder %s76, %s92
      %p94 = scmp.eq.s32.totalorder %s15, 0
      %p95 = por %p93, %p94
      %p96 = scmp.lt.s32.totalorder %s18, %s17
      %s97 = scalar_select %p96, %s18, %s17
      %p98 = scmp.lt.s32.totalorder %s27, %s31
      %s99 = scalar_select %p98, %s27, %s31
      %s100 = ssub.s32 %s16, %s35
      %s101 = ssub.s32 %s97, %s99
      %s102 = sor.u32 %s100, %s101
      %p103 = scmp.eq.s32.totalorder %s102, 0
      %s105 = sadd.s32 %s104, 1
      %s106 = scalar_select %p103, %s104, %s105
      %p109 = pneg %p103
      %p110 = scmp.eq.s32.totalorder %s9, 1
      %p111 = por %p109, %p110
      %p112 = scmp.ne.s32.totalorder %s104, %s107
      %p113 = scmp.eq.s32.totalorder %s9, 0
      %p114 = por %p112, %p113
      %p115 = scmp.ne.s32.totalorder %s104, %s107
      %p116 = scmp.eq.s32.totalorder %s14, 1
      %p117 = por %p115, %p116
      %p118 = scmp.ne.s32.totalorder %s107, %s108
      %p119 = scmp.eq.s32.totalorder %s14, 0
      %p120 = por %p118, %p119
      %p121 = scmp.ne.s32.totalorder %s107, %s108
      %p122 = scmp.eq.s32.totalorder %s15, 1
      %p123 = por %p121, %p122
      %p125 = scmp.ne.s32.totalorder %s108, %s124
      %p126 = scmp.eq.s32.totalorder %s15, 0
      %p127 = por %p125, %p126
      %s128 = ssub.s32 %s16, %s35
      %s129 = ssub.s32 %s17, %s31
      %s130 = sor.u32 %s128, %s129
      %p131 = scmp.eq.s32.totalorder %s130, 0
      %s133 = sadd.s32 %s132, 1
      %s134 = scalar_select %p131, %s132, %s133
      %p137 = pneg %p131
      %p138 = scmp.eq.s32.totalorder %s9, 1
      %p139 = por %p137, %p138
      %p140 = scmp.ne.s32.totalorder %s132, %s135
      %p141 = scmp.eq.s32.totalorder %s9, 0
      %p142 = por %p140, %p141
      %p143 = scmp.ne.s32.totalorder %s132, %s135
      %p144 = scmp.eq.s32.totalorder %s14, 1
      %p145 = por %p143, %p144
      %p146 = scmp.ne.s32.totalorder %s135, %s136
      %p147 = scmp.eq.s32.totalorder %s14, 0
      %p148 = por %p146, %p147
      %p149 = scmp.ne.s32.totalorder %s135, %s136
      %p150 = scmp.eq.s32.totalorder %s15, 1
      %p151 = por %p149, %p150
      %p153 = scmp.ne.s32.totalorder %s136, %s152
      %p154 = scmp.eq.s32.totalorder %s15, 0
      %p155 = por %p153, %p154
      %p156 = scmp.le.s32.totalorder 1, %s9
      %p157 = scmp.lt.s32.totalorder %s9, 3
      %p158 = pnand %p156, %p157
      %p159 = pneg %p158
      // Predicated region
      $region9: #{_lambda_.12} parent=5 // pred_check
        _
      $region10: #{_lambda_.12} parent=5 // pred_check_branch
        %161 = sbr.rel (%p158) target = $region12
      $region11: #{_lambda_.12} parent=5 // pred_region
        %s162 = ssub.s32 %s9, 1
      $region12: #{_lambda_.12} parent=5 // pred_fallthru
        _
      %p163 = scmp.lt.s32.totalorder %s9, 2
      // Predicated region
      $region13: #{_lambda_.12} parent=5 // pred_check
        %p164 = pneg %p163
      $region14: #{_lambda_.12} parent=5 // pred_check_branch
        %166 = sbr.rel (%p164) target = $region16
      $region15: #{_lambda_.12} parent=5 // pred_region
        // Predicated region
        $region17: #{_lambda_.12} parent=15 // pred_check
          %p167 = pneg %p50
        $region18: #{_lambda_.12} parent=15 // pred_check_branch
          %169 = sbr.rel (%p167) target = $region20
        $region19: #{_lambda_.12} parent=15 // pred_region
          %s170 = sand.u32 %s40, 1
          %s171 = sand.u32 %s40, 1
          %s172 = smul.addr %s171, 8
          %s173 = scalar_lea.vmem [#allocation5], %s172
          %s174 = smul.u32 2, %s17
          %s175 = smul.addr %s174, 3
          %s176 = smul.addr %s16, 6
          %s177 = sadd.s32 %s175, %s176
          %s178 = smul.addr %s177, 4
          %s179 = scalar_lea.vmem %s0, %s178
          // Predicated region
          $region21: #{_lambda_.12} parent=19 // pred_check
            _
          $region22: #{_lambda_.12} parent=19 // pred_check_branch
            %181 = sbr.rel (0) target = $region24
          $region23: #{_lambda_.12} parent=19 // pred_region
            // Predicated region
            $region25: #{_lambda_.12} parent=23 // pred_check
              _
            $region26: #{_lambda_.12} parent=23 // pred_check_branch
              %183 = sbr.rel target = $region28
            $region27: #{_lambda_.12} parent=23 // pred_region
              // Predicated region
              $region40: #{_lambda_.12} parent=27 // pred_check
                _
              $region41: #{_lambda_.12} parent=27 // pred_check_branch
                %201 = sbr.rel (0) target = $region43
              $region42: #{_lambda_.12} parent=27 // pred_region
                loop: start=0, step=1, limit=1
                $region44: #{_lambda_.12} parent=42 // loop_pre_header
                  _
                $region45: #{_lambda_.12} parent=42 // loop_header
                  %s203 = sphi 0, %s207
                  %p204 = scmp.ge.s32.totalorder %s203, 1
                  %s208 = sphi %s179, %s179
                  %s209 = sphi %s173, %s173
                $region46: #{_lambda_.12} parent=42 // loop_header_branch
                  %206 = sbr.rel (%p204) target = $region50
                $region47: #{_lambda_.12} parent=42 // loop_body
                  _
                $region48: #{_lambda_.12} parent=42 // loop_footer
                  %s207 = sadd.s32 1, %s203
                $region49: #{_lambda_.12} parent=42 // loop_footer_branch
                  %202 = sbr.rel target = $region45
                $region50: #{_lambda_.12} parent=42 // loop_exit
                  _
                %s211 = ssub.s32 16, 1
                loop: start=0, step=1, limit=1
                $region51: #{_lambda_.12} parent=42 // loop_pre_header
                  _
                $region52: #{_lambda_.12} parent=42 // loop_header
                  %s213 = sphi 0, %s217
                  %p214 = scmp.ge.s32.totalorder %s213, 1
                  %s218 = sphi %s179, %s179
                  %s219 = sphi %s173, %s173
                $region53: #{_lambda_.12} parent=42 // loop_header_branch
                  %216 = sbr.rel (%p214) target = $region57
                $region54: #{_lambda_.12} parent=42 // loop_body
                  %v220 = vld [vmem:[%s218] sm:%s211]
                  %221 = vst [vmem:[%s219] sm:%s211] %v220
                  %v222 = vld [vmem:[%s218 + $0xc] sm:%s211]
                  %223 = vst [vmem:[%s219 + $0x4] sm:%s211] %v222
                $region55: #{_lambda_.12} parent=42 // loop_footer
                  %s217 = sadd.s32 1, %s213
                $region56: #{_lambda_.12} parent=42 // loop_footer_branch
                  %212 = sbr.rel target = $region52
                $region57: #{_lambda_.12} parent=42 // loop_exit
                  _
              $region43: #{_lambda_.12} parent=27 // pred_fallthru
                _
            $region28: #{_lambda_.12} parent=23 // pred_fallthru
              _
            // Predicated region
            $region29: #{_lambda_.12} parent=23 // pred_check
              _
            $region30: #{_lambda_.12} parent=23 // pred_check_branch
              %185 = sbr.rel (0) target = $region32
            $region31: #{_lambda_.12} parent=23 // pred_region
              %s187 = ssub.s32 16, 1
              loop: start=0, step=1, limit=1
              $region33: #{_lambda_.12} parent=31 // loop_pre_header
                _
              $region34: #{_lambda_.12} parent=31 // loop_header
                %s189 = sphi 0, %s193
                %p190 = scmp.ge.s32.totalorder %s189, 1
                %s194 = sphi %s179, %s179
                %s195 = sphi %s173, %s173
              $region35: #{_lambda_.12} parent=31 // loop_header_branch
                %192 = sbr.rel (%p190) target = $region39
              $region36: #{_lambda_.12} parent=31 // loop_body
                %v196 = vld [vmem:[%s194] sm:%s187]
                %197 = vst [vmem:[%s195] sm:%s187] %v196
                %v198 = vld [vmem:[%s194 + $0xc] sm:%s187]
                %199 = vst [vmem:[%s195 + $0x4] sm:%s187] %v198
              $region37: #{_lambda_.12} parent=31 // loop_footer
                %s193 = sadd.s32 1, %s189
              $region38: #{_lambda_.12} parent=31 // loop_footer_branch
                %188 = sbr.rel target = $region34
              $region39: #{_lambda_.12} parent=31 // loop_exit
                _
            $region32: #{_lambda_.12} parent=23 // pred_fallthru
              _
          $region24: #{_lambda_.12} parent=19 // pred_fallthru
            _
          %224 = vnop
        $region20: #{_lambda_.12} parent=15 // pred_fallthru
          _
        // Predicated region
        $region58: #{_lambda_.12} parent=15 // pred_check
          %p225 = pneg %p82
        $region59: #{_lambda_.12} parent=15 // pred_check_branch
          %227 = sbr.rel (%p225) target = $region61
        $region60: #{_lambda_.12} parent=15 // pred_region
          %s228 = sand.u32 %s72, 1
          %s229 = sand.u32 %s72, 1
          %s230 = smul.addr %s229, 8
          %s231 = scalar_lea.vmem [#allocation6], %s230
          %p232 = scmp.lt.s32.totalorder %s18, %s17
          %s233 = scalar_select %p232, %s18, %s17
          %s234 = smul.u32 2, %s233
          %s235 = smul.addr %s234, 3
          %s236 = sadd.s32 1, %s235
          %s237 = smul.addr %s16, 6
          %s238 = sadd.s32 %s236, %s237
          %s239 = smul.addr %s238, 4
          %s240 = scalar_lea.vmem %s1, %s239
          // Predicated region
          $region62: #{_lambda_.12} parent=60 // pred_check
            _
          $region63: #{_lambda_.12} parent=60 // pred_check_branch
            %242 = sbr.rel (0) target = $region65
          $region64: #{_lambda_.12} parent=60 // pred_region
            // Predicated region
            $region66: #{_lambda_.12} parent=64 // pred_check
              _
            $region67: #{_lambda_.12} parent=64 // pred_check_branch
              %244 = sbr.rel target = $region69
            $region68: #{_lambda_.12} parent=64 // pred_region
              // Predicated region
              $region81: #{_lambda_.12} parent=68 // pred_check
                _
              $region82: #{_lambda_.12} parent=68 // pred_check_branch
                %262 = sbr.rel (0) target = $region84
              $region83: #{_lambda_.12} parent=68 // pred_region
                loop: start=0, step=1, limit=1
                $region85: #{_lambda_.12} parent=83 // loop_pre_header
                  _
                $region86: #{_lambda_.12} parent=83 // loop_header
                  %s264 = sphi 0, %s268
                  %p265 = scmp.ge.s32.totalorder %s264, 1
                  %s269 = sphi %s240, %s240
                  %s270 = sphi %s231, %s231
                $region87: #{_lambda_.12} parent=83 // loop_header_branch
                  %267 = sbr.rel (%p265) target = $region91
                $region88: #{_lambda_.12} parent=83 // loop_body
                  _
                $region89: #{_lambda_.12} parent=83 // loop_footer
                  %s268 = sadd.s32 1, %s264
                $region90: #{_lambda_.12} parent=83 // loop_footer_branch
                  %263 = sbr.rel target = $region86
                $region91: #{_lambda_.12} parent=83 // loop_exit
                  _
                %s272 = ssub.s32 16, 1
                loop: start=0, step=1, limit=1
                $region92: #{_lambda_.12} parent=83 // loop_pre_header
                  _
                $region93: #{_lambda_.12} parent=83 // loop_header
                  %s274 = sphi 0, %s278
                  %p275 = scmp.ge.s32.totalorder %s274, 1
                  %s279 = sphi %s240, %s240
                  %s280 = sphi %s231, %s231
                $region94: #{_lambda_.12} parent=83 // loop_header_branch
                  %277 = sbr.rel (%p275) target = $region98
                $region95: #{_lambda_.12} parent=83 // loop_body
                  %v281 = vld [vmem:[%s279] sm:%s272]
                  %282 = vst [vmem:[%s280] sm:%s272] %v281
                  %v283 = vld [vmem:[%s279 + $0xc] sm:%s272]
                  %284 = vst [vmem:[%s280 + $0x4] sm:%s272] %v283
                $region96: #{_lambda_.12} parent=83 // loop_footer
                  %s278 = sadd.s32 1, %s274
                $region97: #{_lambda_.12} parent=83 // loop_footer_branch
                  %273 = sbr.rel target = $region93
                $region98: #{_lambda_.12} parent=83 // loop_exit
                  _
              $region84: #{_lambda_.12} parent=68 // pred_fallthru
                _
            $region69: #{_lambda_.12} parent=64 // pred_fallthru
              _
            // Predicated region
            $region70: #{_lambda_.12} parent=64 // pred_check
              _
            $region71: #{_lambda_.12} parent=64 // pred_check_branch
              %246 = sbr.rel (0) target = $region73
            $region72: #{_lambda_.12} parent=64 // pred_region
              %s248 = ssub.s32 16, 1
              loop: start=0, step=1, limit=1
              $region74: #{_lambda_.12} parent=72 // loop_pre_header
                _
              $region75: #{_lambda_.12} parent=72 // loop_header
                %s250 = sphi 0, %s254
                %p251 = scmp.ge.s32.totalorder %s250, 1
                %s255 = sphi %s240, %s240
                %s256 = sphi %s231, %s231
              $region76: #{_lambda_.12} parent=72 // loop_header_branch
                %253 = sbr.rel (%p251) target = $region80
              $region77: #{_lambda_.12} parent=72 // loop_body
                %v257 = vld [vmem:[%s255] sm:%s248]
                %258 = vst [vmem:[%s256] sm:%s248] %v257
                %v259 = vld [vmem:[%s255 + $0xc] sm:%s248]
                %260 = vst [vmem:[%s256 + $0x4] sm:%s248] %v259
              $region78: #{_lambda_.12} parent=72 // loop_footer
                %s254 = sadd.s32 1, %s250
              $region79: #{_lambda_.12} parent=72 // loop_footer_branch
                %249 = sbr.rel target = $region75
              $region80: #{_lambda_.12} parent=72 // loop_exit
                _
            $region73: #{_lambda_.12} parent=64 // pred_fallthru
              _
          $region65: #{_lambda_.12} parent=60 // pred_fallthru
            _
          %285 = vnop
        $region61: #{_lambda_.12} parent=15 // pred_fallthru
          _
        // Predicated region
        $region99: #{_lambda_.12} parent=15 // pred_check
          %p286 = pneg %p114
        $region100: #{_lambda_.12} parent=15 // pred_check_branch
          %288 = sbr.rel (%p286) target = $region102
        $region101: #{_lambda_.12} parent=15 // pred_region
          %s289 = sand.u32 %s104, 1
          %s290 = sand.u32 %s104, 1
          %s291 = smul.addr %s290, 8
          %s292 = scalar_lea.vmem [#allocation7], %s291
          %p293 = scmp.lt.s32.totalorder %s18, %s17
          %s294 = scalar_select %p293, %s18, %s17
          %s295 = smul.u32 2, %s294
          %s296 = smul.addr %s295, 3
          %s297 = sadd.s32 2, %s296
          %s298 = smul.addr %s16, 6
          %s299 = sadd.s32 %s297, %s298
          %s300 = smul.addr %s299, 4
          %s301 = scalar_lea.vmem %s2, %s300
          // Predicated region
          $region103: #{_lambda_.12} parent=101 // pred_check
            _
          $region104: #{_lambda_.12} parent=101 // pred_check_branch
            %303 = sbr.rel (0) target = $region106
          $region105: #{_lambda_.12} parent=101 // pred_region
            // Predicated region
            $region107: #{_lambda_.12} parent=105 // pred_check
              _
            $region108: #{_lambda_.12} parent=105 // pred_check_branch
              %305 = sbr.rel target = $region110
            $region109: #{_lambda_.12} parent=105 // pred_region
              // Predicated region
              $region122: #{_lambda_.12} parent=109 // pred_check
                _
              $region123: #{_lambda_.12} parent=109 // pred_check_branch
                %323 = sbr.rel (0) target = $region125
              $region124: #{_lambda_.12} parent=109 // pred_region
                loop: start=0, step=1, limit=1
                $region126: #{_lambda_.12} parent=124 // loop_pre_header
                  _
                $region127: #{_lambda_.12} parent=124 // loop_header
                  %s325 = sphi 0, %s329
                  %p326 = scmp.ge.s32.totalorder %s325, 1
                  %s330 = sphi %s301, %s301
                  %s331 = sphi %s292, %s292
                $region128: #{_lambda_.12} parent=124 // loop_header_branch
                  %328 = sbr.rel (%p326) target = $region132
                $region129: #{_lambda_.12} parent=124 // loop_body
                  _
                $region130: #{_lambda_.12} parent=124 // loop_footer
                  %s329 = sadd.s32 1, %s325
                $region131: #{_lambda_.12} parent=124 // loop_footer_branch
                  %324 = sbr.rel target = $region127
                $region132: #{_lambda_.12} parent=124 // loop_exit
                  _
                %s333 = ssub.s32 16, 1
                loop: start=0, step=1, limit=1
                $region133: #{_lambda_.12} parent=124 // loop_pre_header
                  _
                $region134: #{_lambda_.12} parent=124 // loop_header
                  %s335 = sphi 0, %s339
                  %p336 = scmp.ge.s32.totalorder %s335, 1
                  %s340 = sphi %s301, %s301
                  %s341 = sphi %s292, %s292
                $region135: #{_lambda_.12} parent=124 // loop_header_branch
                  %338 = sbr.rel (%p336) target = $region139
                $region136: #{_lambda_.12} parent=124 // loop_body
                  %v342 = vld [vmem:[%s340] sm:%s333]
                  %343 = vst [vmem:[%s341] sm:%s333] %v342
                  %v344 = vld [vmem:[%s340 + $0xc] sm:%s333]
                  %345 = vst [vmem:[%s341 + $0x4] sm:%s333] %v344
                $region137: #{_lambda_.12} parent=124 // loop_footer
                  %s339 = sadd.s32 1, %s335
                $region138: #{_lambda_.12} parent=124 // loop_footer_branch
                  %334 = sbr.rel target = $region134
                $region139: #{_lambda_.12} parent=124 // loop_exit
                  _
              $region125: #{_lambda_.12} parent=109 // pred_fallthru
                _
            $region110: #{_lambda_.12} parent=105 // pred_fallthru
              _
            // Predicated region
            $region111: #{_lambda_.12} parent=105 // pred_check
              _
            $region112: #{_lambda_.12} parent=105 // pred_check_branch
              %307 = sbr.rel (0) target = $region114
            $region113: #{_lambda_.12} parent=105 // pred_region
              %s309 = ssub.s32 16, 1
              loop: start=0, step=1, limit=1
              $region115: #{_lambda_.12} parent=113 // loop_pre_header
                _
              $region116: #{_lambda_.12} parent=113 // loop_header
                %s311 = sphi 0, %s315
                %p312 = scmp.ge.s32.totalorder %s311, 1
                %s316 = sphi %s301, %s301
                %s317 = sphi %s292, %s292
              $region117: #{_lambda_.12} parent=113 // loop_header_branch
                %314 = sbr.rel (%p312) target = $region121
              $region118: #{_lambda_.12} parent=113 // loop_body
                %v318 = vld [vmem:[%s316] sm:%s309]
                %319 = vst [vmem:[%s317] sm:%s309] %v318
                %v320 = vld [vmem:[%s316 + $0xc] sm:%s309]
                %321 = vst [vmem:[%s317 + $0x4] sm:%s309] %v320
              $region119: #{_lambda_.12} parent=113 // loop_footer
                %s315 = sadd.s32 1, %s311
              $region120: #{_lambda_.12} parent=113 // loop_footer_branch
                %310 = sbr.rel target = $region116
              $region121: #{_lambda_.12} parent=113 // loop_exit
                _
            $region114: #{_lambda_.12} parent=105 // pred_fallthru
              _
          $region106: #{_lambda_.12} parent=101 // pred_fallthru
            _
          %346 = vnop
        $region102: #{_lambda_.12} parent=15 // pred_fallthru
          _
      $region16: #{_lambda_.12} parent=5 // pred_fallthru
        _
      %p347 = scmp.le.s32.totalorder 1, %s9
      %p348 = scmp.lt.s32.totalorder %s9, 3
      %p349 = pnand %p347, %p348
      %p350 = pneg %p349
      // Predicated region
      $region140: #{_lambda_.12} parent=5 // pred_check
        _
      $region141: #{_lambda_.12} parent=5 // pred_check_branch
        %352 = sbr.rel (%p349) target = $region143
      $region142: #{_lambda_.12} parent=5 // pred_region
        %s353 = ssub.s32 %s9, 1
        %s354 = sand.u32 %s43, 1
        %s355 = sand.u32 %s43, 1
        %s356 = smul.addr %s355, 8
        %s357 = scalar_lea.vmem [#allocation5], %s356
        // Predicated region
        $region144: #{_lambda_.12} parent=142 // pred_check
          %p358 = pneg %p56
        $region145: #{_lambda_.12} parent=142 // pred_check_branch
          %360 = sbr.rel (%p358) target = $region147
        $region146: #{_lambda_.12} parent=142 // pred_region
          _
        $region147: #{_lambda_.12} parent=142 // pred_fallthru
          _
        %s361 = sand.u32 %s75, 1
        %s362 = sand.u32 %s75, 1
        %s363 = smul.addr %s362, 8
        %s364 = scalar_lea.vmem [#allocation6], %s363
        // Predicated region
        $region148: #{_lambda_.12} parent=142 // pred_check
          %p365 = pneg %p88
        $region149: #{_lambda_.12} parent=142 // pred_check_branch
          %367 = sbr.rel (%p365) target = $region151
        $region150: #{_lambda_.12} parent=142 // pred_region
          _
        $region151: #{_lambda_.12} parent=142 // pred_fallthru
          _
        %s368 = sand.u32 %s107, 1
        %s369 = sand.u32 %s107, 1
        %s370 = smul.addr %s369, 8
        %s371 = scalar_lea.vmem [#allocation7], %s370
        // Predicated region
        $region152: #{_lambda_.12} parent=142 // pred_check
          %p372 = pneg %p120
        $region153: #{_lambda_.12} parent=142 // pred_check_branch
          %374 = sbr.rel (%p372) target = $region155
        $region154: #{_lambda_.12} parent=142 // pred_region
          _
        $region155: #{_lambda_.12} parent=142 // pred_fallthru
          _
        %s375 = sand.u32 %s43, 1
        %s376 = sand.u32 %s43, 1
        %s377 = smul.addr %s376, 8
        %s378 = scalar_lea.vmem [#allocation5], %s377
        %p379 = pneg %p56
        %p380 = pneg %p53
        %s381 = sand.u32 %s75, 1
        %s382 = sand.u32 %s75, 1
        %s383 = smul.addr %s382, 8
        %s384 = scalar_lea.vmem [#allocation6], %s383
        %p385 = pneg %p88
        %p386 = pneg %p85
        %s387 = sand.u32 %s107, 1
        %s388 = sand.u32 %s107, 1
        %s389 = smul.addr %s388, 8
        %s390 = scalar_lea.vmem [#allocation7], %s389
        %p391 = pneg %p120
        %p392 = pneg %p117
        %p393 = pneg %p148
        %p394 = pneg %p145
        %s395 = smul.u32 2, %s20
        %p396 = scmp.lt.s32.totalorder %s19, 1
        %s397 = scalar_select %p396, %s19, 1
        %p398 = scmp.lt.s32.totalorder %s395, 1
        %s399 = scalar_select %p398, %s395, 1
        %s400 = smul.addr %s397, 2
        %s401 = sadd.s32 %s399, %s400
        %s402 = smul.addr %s401, 4
        %s403 = scalar_lea.vmem %s3, %s402
        %s404 = smul.u32 2, %s20
        %p405 = scmp.lt.s32.totalorder %s21, %s20
        %s406 = scalar_select %p405, %s21, %s20
        %s407 = smul.u32 2, %s406
        %p408 = scmp.lt.s32.totalorder %s21, %s20
        %s409 = scalar_select %p408, %s21, %s20
        %s410 = smul.u32 2, %s409
        %s411 = smul.u32 2, %s20
        %p412 = scmp.lt.s32.totalorder %s19, 1
        %s413 = scalar_select %p412, %s19, 1
        %p414 = scmp.lt.s32.totalorder %s411, 1
        %s415 = scalar_select %p414, %s411, 1
        %s416 = smul.addr %s413, 2
        %s417 = sadd.s32 %s415, %s416
        %s418 = smul.addr %s417, 4
        %s419 = scalar_lea.vmem %s3, %s418
        %s420 = smul.u32 2, %s20
        %p422 = scmp.eq.s32.totalorder %s21, 0
        // Predicated region
        $region156: #{_lambda_.12} parent=142 // pred_check
          %p423 = pneg %p422
        $region157: #{_lambda_.12} parent=142 // pred_check_branch
          %425 = sbr.rel (%p423) target = $region159
        $region158: #{_lambda_.12} parent=142 // pred_region
          %vm426 = vcmask 7168
          %427 = vst.msk [vmem:[#allocation2] sm:$0xff] %vm426, -1e+30
          %428 = vst.msk [vmem:[#allocation2 + $0x8] sm:$0xff] %vm426, -1e+30
          %429 = vst.msk [vmem:[#allocation2 + $0x10] sm:$0xff] %vm426, -1e+30
          %430 = vst.msk [vmem:[#allocation2 + $0x18] sm:$0xff] %vm426, -1e+30
          %431 = vst.msk [vmem:[#allocation2 + $0x20] sm:$0xff] %vm426, -1e+30
          %432 = vst.msk [vmem:[#allocation2 + $0x28] sm:$0xff] %vm426, -1e+30
          %433 = vst.msk [vmem:[#allocation2 + $0x30] sm:$0xff] %vm426, -1e+30
          %434 = vst.msk [vmem:[#allocation2 + $0x38] sm:$0xff] %vm426, -1e+30
          %435 = vst.msk [vmem:[#allocation3] sm:$0xff] %vm426, 0.0
          %436 = vst.msk [vmem:[#allocation3 + $0x8] sm:$0xff] %vm426, 0.0
          %437 = vst.msk [vmem:[#allocation3 + $0x10] sm:$0xff] %vm426, 0.0
          %438 = vst.msk [vmem:[#allocation3 + $0x18] sm:$0xff] %vm426, 0.0
          %439 = vst.msk [vmem:[#allocation3 + $0x20] sm:$0xff] %vm426, 0.0
          %440 = vst.msk [vmem:[#allocation3 + $0x28] sm:$0xff] %vm426, 0.0
          %441 = vst.msk [vmem:[#allocation3 + $0x30] sm:$0xff] %vm426, 0.0
          %442 = vst.msk [vmem:[#allocation3 + $0x38] sm:$0xff] %vm426, 0.0
          %443 = vst [vmem:[#allocation4] sm:$0xff] 0.0
          %444 = vst [vmem:[#allocation4 + $0x8] sm:$0xff] 0.0
        $region159: #{_lambda_.12} parent=142 // pred_fallthru
          _
        %p445 = scmp.lt.s32.totalorder %s21, %s20
        // Predicated region
        $region160: #{_lambda_.12} parent=142 // pred_check
          %p446 = pneg %p445
        $region161: #{_lambda_.12} parent=142 // pred_check_branch
          %448 = sbr.rel (%p446) target = $region163
        $region162: #{_lambda_.12} parent=142 // pred_region
          %v449 = vld [vmem:[%s357] sm:$0xf]
          %v450 = vld [vmem:[%s357 + $0x4] sm:$0xf]
          %v451 = vunpack.c.l.bf16 %v449
          %v452 = vunpack.c.l.bf16 %v450
          %v453 = vmul.f32 %v451, 0.17677669
          %v454 = vmul.f32 %v452, 0.17677669
          %v455 = vpack.c.bf16 %v454, %v453
          %v456 = vld [vmem:[%s364] sm:$0xf]
          %v457 = vld [vmem:[%s364 + $0x4] sm:$0xf]
          %v458 = vld [vmem:[%s371] sm:$0xf]
          %v459 = vld [vmem:[%s371 + $0x4] sm:$0xf]
          %v462 = vunpack.c.l.b16 %v456
          %v463 = vunpack.c.l.b16 %v457
          %v464 = vpack.c.b16 %v463, %v462
          %vm465 = vcmask 261120
          %v467 = vsel %vm465, %v455, 0
          %v470 = vsel %vm465, %v464, 0
          %472 = vmatprep.subr.bf16.mxu0 0
          %473 = vmatpush1.bf16.xpose.msra.mxu0 0
          %474 = vmatprep.subr.bf16.mxu0 0
          %475 = vmatpush1.bf16.xpose.msra.mxu0 0
          %476 = vmatprep.subr.bf16.mxu0 0
          %477 = vmatpush1.bf16.xpose.msra.mxu0 0
          %478 = vmatprep.subr.bf16.mxu0 0
          %479 = vmatpush1.bf16.xpose.msra.mxu0 0
          %480 = vmatprep.subr.bf16.mxu0 0
          %481 = vmatpush1.bf16.xpose.msra.mxu0 0
          %482 = vmatprep.subr.bf16.mxu0 0
          %483 = vmatpush1.bf16.xpose.msra.mxu0 0
          %484 = vmatprep.subr.bf16.mxu0 0
          %485 = vmatpush1.bf16.xpose.msra.mxu0 0
          %486 = vmatprep.subr.bf16.mxu0 0
          %487 = vmatpush1.bf16.xpose.msra.mxu0 %v470
          %488 = vmatprep.subr.bf16.mxu0 0
          %489 = vmatpush2.bf16.xpose.msra.mxu0 0
          %490 = vmatprep.subr.bf16.mxu0 0
          %491 = vmatpush2.bf16.xpose.msra.mxu0 0
          %492 = vmatprep.subr.bf16.mxu0 0
          %493 = vmatpush2.bf16.xpose.msra.mxu0 0
          %494 = vmatprep.subr.bf16.mxu0 0
          %495 = vmatpush2.bf16.xpose.msra.mxu0 0
          %496 = vmatprep.subr.bf16.mxu0 0
          %497 = vmatpush2.bf16.xpose.msra.mxu0 0
          %498 = vmatprep.subr.bf16.mxu0 0
          %499 = vmatpush2.bf16.xpose.msra.mxu0 0
          %500 = vmatprep.subr.bf16.mxu0 0
          %501 = vmatpush2.bf16.xpose.msra.mxu0 0
          %502 = vmatprep.subr.bf16.mxu0 0
          %503 = vmatpush2.bf16.xpose.msra.mxu0 0
          %504 = vmatprep.mubr.bf16.mxu0 0
          %505 = vmatmul.mubr.bf16.gmra.mxu0 %v467
          %v506 = vpop.f32.mrf.mxu0
          %v507 = vadd.f32 0.0, %v506
          %v508 = vpop.f32.mrf.mxu0
          %v509 = vpop.f32.mrf.mxu0
          %v510 = vadd.f32 0.0, %v509
          %v511 = vpop.f32.mrf.mxu0
          %512 = vdwg.mxu0
          %v513 = vld [vmem:[#allocation2] sm:$0xff]
          %v514 = vld [vmem:[#allocation2 + $0x8] sm:$0xff]
          %vm515 = vcmask 130048
          %v516 = vsel %vm515, %v507, -inf
          %517 = vmax.xlane.f32.xlu0 %v516
          %v518 = vpop.xlane.xlu0 %517
          %v519 = vsel %vm515, %v510, -inf
          %520 = vmax.xlane.f32.xlu0 %v519
          %v521 = vpop.xlane.xlu0 %520
          %v522 = vmax.f32 %v513, %v518
          %v523 = vmax.f32 %v514, %v521
          %v524 = vsub.f32 %v513, %v522
          %v525 = vsub.f32 %v514, %v523
          %v526 = vmul.f32 %v524, 1.442695
          %v527 = vpow.pop %v526
          %v528 = vmul.f32 %v525, 1.442695
          %v529 = vpow.pop %v528
          %531 = vset.pattern.permute.xlu0 0
          %532 = vperm.xlu0 %531, %v522
          %v533 = vpop.permute.xlu0 %532
          %536 = vset.pattern.permute.xlu0 0
          %537 = vperm.xlu0 %536, %v523
          %v538 = vpop.permute.xlu0 %537
          %v540 = vsub.f32 %v507, %v533
          %v541 = vsub.f32 %v510, %v538
          %v542 = vmul.f32 %v540, 1.442695
          %v543 = vpow.pop %v542
          %v544 = vmul.f32 %v541, 1.442695
          %v545 = vpow.pop %v544
          %v546 = vld [vmem:[#allocation3] sm:$0xff]
          %v547 = vld [vmem:[#allocation3 + $0x8] sm:$0xff]
          %v548 = vmul.f32 %v527, %v546
          %v549 = vmul.f32 %v529, %v547
          %v550 = vsel %vm515, %v543, 0.0
          %551 = vadd.xlane.f32.xlu0 %v550
          %v552 = vpop.xlane.xlu0 %551
          %v553 = vsel %vm515, %v545, 0.0
          %554 = vadd.xlane.f32.xlu0 %v553
          %v555 = vpop.xlane.xlu0 %554
          %v556 = vadd.f32 %v548, %v552
          %v557 = vadd.f32 %v549, %v555
          %vm558 = vcmask 7168
          %559 = vst.msk [vmem:[#allocation3] sm:$0xff] %vm558, %v556
          %560 = vst.msk [vmem:[#allocation3 + $0x8] sm:$0xff] %vm558, %v557
          %v561 = vld [vmem:[#allocation4] sm:$0xff]
          %v562 = vld [vmem:[#allocation4 + $0x8] sm:$0xff]
          %564 = vset.pattern.permute.xlu0 0
          %565 = vperm.xlu0 %564, %v527
          %v566 = vpop.permute.xlu0 %565
          %569 = vset.pattern.permute.xlu0 0
          %570 = vperm.xlu0 %569, %v529
          %v571 = vpop.permute.xlu0 %570
          %v573 = vmul.f32 %v566, %v561
          %v574 = vmul.f32 %v571, %v562
          %v575 = vpack.c.bf16 %v545, %v543
          %v578 = vunpack.c.l.b16 %v458
          %v579 = vunpack.c.l.b16 %v459
          %v580 = vpack.c.b16 %v579, %v578
          %v583 = vsel %vm515, %v575, 0
          %585 = vmatprep.subr.bf16.mxu0 0
          %586 = vmatpush1.bf16.msra.mxu0 0
          %587 = vmatprep.subr.bf16.mxu0 0
          %588 = vmatpush1.bf16.msra.mxu0 0
          %589 = vmatprep.subr.bf16.mxu0 0
          %590 = vmatpush1.bf16.msra.mxu0 0
          %591 = vmatprep.subr.bf16.mxu0 0
          %592 = vmatpush1.bf16.msra.mxu0 0
          %593 = vmatprep.subr.bf16.mxu0 0
          %594 = vmatpush1.bf16.msra.mxu0 0
          %595 = vmatprep.subr.bf16.mxu0 0
          %596 = vmatpush1.bf16.msra.mxu0 0
          %597 = vmatprep.subr.bf16.mxu0 0
          %598 = vmatpush1.bf16.msra.mxu0 0
          %599 = vmatprep.subr.bf16.mxu0 0
          %600 = vmatpush1.bf16.msra.mxu0 %v580
          %601 = vmatprep.subr.bf16.mxu0 0
          %602 = vmatpush2.bf16.msra.mxu0 0
          %603 = vmatprep.subr.bf16.mxu0 0
          %604 = vmatpush2.bf16.msra.mxu0 0
          %605 = vmatprep.subr.bf16.mxu0 0
          %606 = vmatpush2.bf16.msra.mxu0 0
          %607 = vmatprep.subr.bf16.mxu0 0
          %608 = vmatpush2.bf16.msra.mxu0 0
          %609 = vmatprep.subr.bf16.mxu0 0
          %610 = vmatpush2.bf16.msra.mxu0 0
          %611 = vmatprep.subr.bf16.mxu0 0
          %612 = vmatpush2.bf16.msra.mxu0 0
          %613 = vmatprep.subr.bf16.mxu0 0
          %614 = vmatpush2.bf16.msra.mxu0 0
          %615 = vmatprep.subr.bf16.mxu0 0
          %616 = vmatpush2.bf16.msra.mxu0 0
          %617 = vmatprep.mubr.bf16.mxu0 0
          %618 = vmatmul.mubr.bf16.gmra.mxu0 %v583
          %v619 = vpop.f32.mrf.mxu0
          %v620 = vadd.f32 0.0, %v619
          %v621 = vpop.f32.mrf.mxu0
          %v622 = vpop.f32.mrf.mxu0
          %v623 = vadd.f32 0.0, %v622
          %v624 = vpop.f32.mrf.mxu0
          %625 = vdwg.mxu0
          %v626 = vadd.f32 %v573, %v620
          %v627 = vadd.f32 %v574, %v623
          %628 = vst.msk [vmem:[#allocation4] sm:$0xff] %vm465, %v626
          %629 = vst.msk [vmem:[#allocation4 + $0x8] sm:$0xff] %vm465, %v627
          %630 = vst.msk [vmem:[#allocation2] sm:$0xff] %vm558, %v522
          %631 = vst.msk [vmem:[#allocation2 + $0x8] sm:$0xff] %vm558, %v523
          %633 = vrot.lane.b32.xlu0 %v455, 96
          %v634 = vpop.permute.xlu0 %633
          %635 = vrot.lane.b32.xlu0 %v464, 96
          %v636 = vpop.permute.xlu0 %635
          %v638 = vsel %vm465, %v634, 0
          %v641 = vsel %vm465, %v636, 0
          %643 = vmatprep.subr.bf16.mxu0 0
          %644 = vmatpush1.bf16.xpose.msra.mxu0 0
          %645 = vmatprep.subr.bf16.mxu0 0
          %646 = vmatpush1.bf16.xpose.msra.mxu0 0
          %647 = vmatprep.subr.bf16.mxu0 0
          %648 = vmatpush1.bf16.xpose.msra.mxu0 0
          %649 = vmatprep.subr.bf16.mxu0 0
          %650 = vmatpush1.bf16.xpose.msra.mxu0 0
          %651 = vmatprep.subr.bf16.mxu0 0
          %652 = vmatpush1.bf16.xpose.msra.mxu0 0
          %653 = vmatprep.subr.bf16.mxu0 0
          %654 = vmatpush1.bf16.xpose.msra.mxu0 0
          %655 = vmatprep.subr.bf16.mxu0 0
          %656 = vmatpush1.bf16.xpose.msra.mxu0 0
          %657 = vmatprep.subr.bf16.mxu0 0
          %658 = vmatpush1.bf16.xpose.msra.mxu0 %v641
          %659 = vmatprep.subr.bf16.mxu0 0
          %660 = vmatpush2.bf16.xpose.msra.mxu0 0
          %661 = vmatprep.subr.bf16.mxu0 0
          %662 = vmatpush2.bf16.xpose.msra.mxu0 0
          %663 = vmatprep.subr.bf16.mxu0 0
          %664 = vmatpush2.bf16.xpose.msra.mxu0 0
          %665 = vmatprep.subr.bf16.mxu0 0
          %666 = vmatpush2.bf16.xpose.msra.mxu0 0
          %667 = vmatprep.subr.bf16.mxu0 0
          %668 = vmatpush2.bf16.xpose.msra.mxu0 0
          %669 = vmatprep.subr.bf16.mxu0 0
          %670 = vmatpush2.bf16.xpose.msra.mxu0 0
          %671 = vmatprep.subr.bf16.mxu0 0
          %672 = vmatpush2.bf16.xpose.msra.mxu0 0
          %673 = vmatprep.subr.bf16.mxu0 0
          %674 = vmatpush2.bf16.xpose.msra.mxu0 0
          %675 = vmatprep.mubr.bf16.mxu0 0
          %676 = vmatmul.mubr.bf16.gmra.mxu0 %v638
          %v677 = vpop.f32.mrf.mxu0
          %v678 = vadd.f32 0.0, %v677
          %v679 = vpop.f32.mrf.mxu0
          %v680 = vpop.f32.mrf.mxu0
          %v681 = vadd.f32 0.0, %v680
          %v682 = vpop.f32.mrf.mxu0
          %683 = vdwg.mxu0
          %s684 = scalar_lea.vmem [#allocation2], 16
          %v685 = vld [vmem:[%s684] sm:$0xff]
          %v686 = vld [vmem:[%s684 + $0x8] sm:$0xff]
          %v687 = vsel %vm515, %v678, -inf
          %688 = vmax.xlane.f32.xlu0 %v687
          %v689 = vpop.xlane.xlu0 %688
          %v690 = vsel %vm515, %v681, -inf
          %691 = vmax.xlane.f32.xlu0 %v690
          %v692 = vpop.xlane.xlu0 %691
          %v693 = vmax.f32 %v685, %v689
          %v694 = vmax.f32 %v686, %v692
          %v695 = vsub.f32 %v685, %v693
          %v696 = vsub.f32 %v686, %v694
          %v697 = vmul.f32 %v695, 1.442695
          %v698 = vpow.pop %v697
          %v699 = vmul.f32 %v696, 1.442695
          %v700 = vpow.pop %v699
          %702 = vset.pattern.permute.xlu0 0
          %703 = vperm.xlu0 %702, %v693
          %v704 = vpop.permute.xlu0 %703
          %707 = vset.pattern.permute.xlu0 0
          %708 = vperm.xlu0 %707, %v694
          %v709 = vpop.permute.xlu0 %708
          %v711 = vsub.f32 %v678, %v704
          %v712 = vsub.f32 %v681, %v709
          %v713 = vmul.f32 %v711, 1.442695
          %v714 = vpow.pop %v713
          %v715 = vmul.f32 %v712, 1.442695
          %v716 = vpow.pop %v715
          %s717 = scalar_lea.vmem [#allocation3], 16
          %v718 = vld [vmem:[%s717] sm:$0xff]
          %v719 = vld [vmem:[%s717 + $0x8] sm:$0xff]
          %v720 = vmul.f32 %v698, %v718
          %v721 = vmul.f32 %v700, %v719
          %v722 = vsel %vm515, %v714, 0.0
          %723 = vadd.xlane.f32.xlu0 %v722
          %v724 = vpop.xlane.xlu0 %723
          %v725 = vsel %vm515, %v716, 0.0
          %726 = vadd.xlane.f32.xlu0 %v725
          %v727 = vpop.xlane.xlu0 %726
          %v728 = vadd.f32 %v720, %v724
          %v729 = vadd.f32 %v721, %v727
          %730 = vst.msk [vmem:[%s717] sm:$0xff] %vm558, %v728
          %731 = vst.msk [vmem:[%s717 + $0x8] sm:$0xff] %vm558, %v729
          %v732 = vld [vmem:[#allocation4] sm:$0xff]
          %v733 = vld [vmem:[#allocation4 + $0x8] sm:$0xff]
          %735 = vset.pattern.permute.xlu0 0
          %736 = vperm.xlu0 %735, %v698
          %v737 = vpop.permute.xlu0 %736
          %740 = vset.pattern.permute.xlu0 0
          %741 = vperm.xlu0 %740, %v700
          %v742 = vpop.permute.xlu0 %741
          %v744 = vmul.f32 %v737, %v732
          %v745 = vmul.f32 %v742, %v733
          %v746 = vpack.c.bf16 %v716, %v714
          %747 = vrot.lane.b32.xlu0 %v580, 96
          %v748 = vpop.permute.xlu0 %747
          %v751 = vsel %vm515, %v746, 0
          %753 = vmatprep.subr.bf16.mxu0 0
          %754 = vmatpush1.bf16.msra.mxu0 0
          %755 = vmatprep.subr.bf16.mxu0 0
          %756 = vmatpush1.bf16.msra.mxu0 0
          %757 = vmatprep.subr.bf16.mxu0 0
          %758 = vmatpush1.bf16.msra.mxu0 0
          %759 = vmatprep.subr.bf16.mxu0 0
          %760 = vmatpush1.bf16.msra.mxu0 0
          %761 = vmatprep.subr.bf16.mxu0 0
          %762 = vmatpush1.bf16.msra.mxu0 0
          %763 = vmatprep.subr.bf16.mxu0 0
          %764 = vmatpush1.bf16.msra.mxu0 0
          %765 = vmatprep.subr.bf16.mxu0 0
          %766 = vmatpush1.bf16.msra.mxu0 0
          %767 = vmatprep.subr.bf16.mxu0 0
          %768 = vmatpush1.bf16.msra.mxu0 %v748
          %769 = vmatprep.subr.bf16.mxu0 0
          %770 = vmatpush2.bf16.msra.mxu0 0
          %771 = vmatprep.subr.bf16.mxu0 0
          %772 = vmatpush2.bf16.msra.mxu0 0
          %773 = vmatprep.subr.bf16.mxu0 0
          %774 = vmatpush2.bf16.msra.mxu0 0
          %775 = vmatprep.subr.bf16.mxu0 0
          %776 = vmatpush2.bf16.msra.mxu0 0
          %777 = vmatprep.subr.bf16.mxu0 0
          %778 = vmatpush2.bf16.msra.mxu0 0
          %779 = vmatprep.subr.bf16.mxu0 0
          %780 = vmatpush2.bf16.msra.mxu0 0
          %781 = vmatprep.subr.bf16.mxu0 0
          %782 = vmatpush2.bf16.msra.mxu0 0
          %783 = vmatprep.subr.bf16.mxu0 0
          %784 = vmatpush2.bf16.msra.mxu0 0
          %785 = vmatprep.mubr.bf16.mxu0 0
          %786 = vmatmul.mubr.bf16.gmra.mxu0 %v751
          %v787 = vpop.f32.mrf.mxu0
          %v788 = vadd.f32 0.0, %v787
          %v789 = vpop.f32.mrf.mxu0
          %v790 = vpop.f32.mrf.mxu0
          %v791 = vadd.f32 0.0, %v790
          %v792 = vpop.f32.mrf.mxu0
          %793 = vdwg.mxu0
          %796 = vrot.lane.b32.xlu0 %v788, 32
          %v797 = vpop.permute.xlu0 %796
          %798 = vrot.lane.b32.xlu0 %v791, 32
          %v799 = vpop.permute.xlu0 %798
          %v802 = vadd.f32 %v744, %v797
          %v803 = vadd.f32 %v745, %v799
          %vm804 = vcmask 523520
          %805 = vst.msk [vmem:[#allocation4] sm:$0xff] %vm804, %v802
          %806 = vst.msk [vmem:[#allocation4 + $0x8] sm:$0xff] %vm804, %v803
          %807 = vst.msk [vmem:[%s684] sm:$0xff] %vm558, %v693
          %808 = vst.msk [vmem:[%s684 + $0x8] sm:$0xff] %vm558, %v694
          %809 = vrot.lane.b32.xlu0 %v455, 64
          %v810 = vpop.permute.xlu0 %809
          %811 = vrot.lane.b32.xlu0 %v464, 64
          %v812 = vpop.permute.xlu0 %811
          %v814 = vsel %vm465, %v810, 0
          %v817 = vsel %vm465, %v812, 0
          %819 = vmatprep.subr.bf16.mxu0 0
          %820 = vmatpush1.bf16.xpose.msra.mxu0 0
          %821 = vmatprep.subr.bf16.mxu0 0
          %822 = vmatpush1.bf16.xpose.msra.mxu0 0
          %823 = vmatprep.subr.bf16.mxu0 0
          %824 = vmatpush1.bf16.xpose.msra.mxu0 0
          %825 = vmatprep.subr.bf16.mxu0 0
          %826 = vmatpush1.bf16.xpose.msra.mxu0 0
          %827 = vmatprep.subr.bf16.mxu0 0
          %828 = vmatpush1.bf16.xpose.msra.mxu0 0
          %829 = vmatprep.subr.bf16.mxu0 0
          %830 = vmatpush1.bf16.xpose.msra.mxu0 0
          %831 = vmatprep.subr.bf16.mxu0 0
          %832 = vmatpush1.bf16.xpose.msra.mxu0 0
          %833 = vmatprep.subr.bf16.mxu0 0
          %834 = vmatpush1.bf16.xpose.msra.mxu0 %v817
          %835 = vmatprep.subr.bf16.mxu0 0
          %836 = vmatpush2.bf16.xpose.msra.mxu0 0
          %837 = vmatprep.subr.bf16.mxu0 0
          %838 = vmatpush2.bf16.xpose.msra.mxu0 0
          %839 = vmatprep.subr.bf16.mxu0 0
          %840 = vmatpush2.bf16.xpose.msra.mxu0 0
          %841 = vmatprep.subr.bf16.mxu0 0
          %842 = vmatpush2.bf16.xpose.msra.mxu0 0
          %843 = vmatprep.subr.bf16.mxu0 0
          %844 = vmatpush2.bf16.xpose.msra.mxu0 0
          %845 = vmatprep.subr.bf16.mxu0 0
          %846 = vmatpush2.bf16.xpose.msra.mxu0 0
          %847 = vmatprep.subr.bf16.mxu0 0
          %848 = vmatpush2.bf16.xpose.msra.mxu0 0
          %849 = vmatprep.subr.bf16.mxu0 0
          %850 = vmatpush2.bf16.xpose.msra.mxu0 0
          %851 = vmatprep.mubr.bf16.mxu0 0
          %852 = vmatmul.mubr.bf16.gmra.mxu0 %v814
          %v853 = vpop.f32.mrf.mxu0
          %v854 = vadd.f32 0.0, %v853
          %v855 = vpop.f32.mrf.mxu0
          %v856 = vpop.f32.mrf.mxu0
          %v857 = vadd.f32 0.0, %v856
          %v858 = vpop.f32.mrf.mxu0
          %859 = vdwg.mxu0
          %s860 = scalar_lea.vmem [#allocation2], 32
          %v861 = vld [vmem:[%s860] sm:$0xff]
          %v862 = vld [vmem:[%s860 + $0x8] sm:$0xff]
          %v863 = vsel %vm515, %v854, -inf
          %864 = vmax.xlane.f32.xlu0 %v863
          %v865 = vpop.xlane.xlu0 %864
          %v866 = vsel %vm515, %v857, -inf
          %867 = vmax.xlane.f32.xlu0 %v866
          %v868 = vpop.xlane.xlu0 %867
          %v869 = vmax.f32 %v861, %v865
          %v870 = vmax.f32 %v862, %v868
          %v871 = vsub.f32 %v861, %v869
          %v872 = vsub.f32 %v862, %v870
          %v873 = vmul.f32 %v871, 1.442695
          %v874 = vpow.pop %v873
          %v875 = vmul.f32 %v872, 1.442695
          %v876 = vpow.pop %v875
          %878 = vset.pattern.permute.xlu0 0
          %879 = vperm.xlu0 %878, %v869
          %v880 = vpop.permute.xlu0 %879
          %883 = vset.pattern.permute.xlu0 0
          %884 = vperm.xlu0 %883, %v870
          %v885 = vpop.permute.xlu0 %884
          %v887 = vsub.f32 %v854, %v880
          %v888 = vsub.f32 %v857, %v885
          %v889 = vmul.f32 %v887, 1.442695
          %v890 = vpow.pop %v889
          %v891 = vmul.f32 %v888, 1.442695
          %v892 = vpow.pop %v891
          %s893 = scalar_lea.vmem [#allocation3], 32
          %v894 = vld [vmem:[%s893] sm:$0xff]
          %v895 = vld [vmem:[%s893 + $0x8] sm:$0xff]
          %v896 = vmul.f32 %v874, %v894
          %v897 = vmul.f32 %v876, %v895
          %v898 = vsel %vm515, %v890, 0.0
          %899 = vadd.xlane.f32.xlu0 %v898
          %v900 = vpop.xlane.xlu0 %899
          %v901 = vsel %vm515, %v892, 0.0
          %902 = vadd.xlane.f32.xlu0 %v901
          %v903 = vpop.xlane.xlu0 %902
          %v904 = vadd.f32 %v896, %v900
          %v905 = vadd.f32 %v897, %v903
          %906 = vst.msk [vmem:[%s893] sm:$0xff] %vm558, %v904
          %907 = vst.msk [vmem:[%s893 + $0x8] sm:$0xff] %vm558, %v905
          %v908 = vld [vmem:[#allocation4] sm:$0xff]
          %v909 = vld [vmem:[#allocation4 + $0x8] sm:$0xff]
          %911 = vset.pattern.permute.xlu0 0
          %912 = vperm.xlu0 %911, %v874
          %v913 = vpop.permute.xlu0 %912
          %916 = vset.pattern.permute.xlu0 0
          %917 = vperm.xlu0 %916, %v876
          %v918 = vpop.permute.xlu0 %917
          %v920 = vmul.f32 %v913, %v908
          %v921 = vmul.f32 %v918, %v909
          %v922 = vpack.c.bf16 %v892, %v890
          %923 = vrot.lane.b32.xlu0 %v580, 64
          %v924 = vpop.permute.xlu0 %923
          %v927 = vsel %vm515, %v922, 0
          %929 = vmatprep.subr.bf16.mxu0 0
          %930 = vmatpush1.bf16.msra.mxu0 0
          %931 = vmatprep.subr.bf16.mxu0 0
          %932 = vmatpush1.bf16.msra.mxu0 0
          %933 = vmatprep.subr.bf16.mxu0 0
          %934 = vmatpush1.bf16.msra.mxu0 0
          %935 = vmatprep.subr.bf16.mxu0 0
          %936 = vmatpush1.bf16.msra.mxu0 0
          %937 = vmatprep.subr.bf16.mxu0 0
          %938 = vmatpush1.bf16.msra.mxu0 0
          %939 = vmatprep.subr.bf16.mxu0 0
          %940 = vmatpush1.bf16.msra.mxu0 0
          %941 = vmatprep.subr.bf16.mxu0 0
          %942 = vmatpush1.bf16.msra.mxu0 0
          %943 = vmatprep.subr.bf16.mxu0 0
          %944 = vmatpush1.bf16.msra.mxu0 %v924
          %945 = vmatprep.subr.bf16.mxu0 0
          %946 = vmatpush2.bf16.msra.mxu0 0
          %947 = vmatprep.subr.bf16.mxu0 0
          %948 = vmatpush2.bf16.msra.mxu0 0
          %949 = vmatprep.subr.bf16.mxu0 0
          %950 = vmatpush2.bf16.msra.mxu0 0
          %951 = vmatprep.subr.bf16.mxu0 0
          %952 = vmatpush2.bf16.msra.mxu0 0
          %953 = vmatprep.subr.bf16.mxu0 0
          %954 = vmatpush2.bf16.msra.mxu0 0
          %955 = vmatprep.subr.bf16.mxu0 0
          %956 = vmatpush2.bf16.msra.mxu0 0
          %957 = vmatprep.subr.bf16.mxu0 0
          %958 = vmatpush2.bf16.msra.mxu0 0
          %959 = vmatprep.subr.bf16.mxu0 0
          %960 = vmatpush2.bf16.msra.mxu0 0
          %961 = vmatprep.mubr.bf16.mxu0 0
          %962 = vmatmul.mubr.bf16.gmra.mxu0 %v927
          %v963 = vpop.f32.mrf.mxu0
          %v964 = vadd.f32 0.0, %v963
          %v965 = vpop.f32.mrf.mxu0
          %v966 = vpop.f32.mrf.mxu0
          %v967 = vadd.f32 0.0, %v966
          %v968 = vpop.f32.mrf.mxu0
          %969 = vdwg.mxu0
          %972 = vrot.lane.b32.xlu0 %v964, 64
          %v973 = vpop.permute.xlu0 %972
          %974 = vrot.lane.b32.xlu0 %v967, 64
          %v975 = vpop.permute.xlu0 %974
          %v978 = vadd.f32 %v920, %v973
          %v979 = vadd.f32 %v921, %v975
          %vm980 = vcmask 785920
          %981 = vst.msk [vmem:[#allocation4] sm:$0xff] %vm980, %v978
          %982 = vst.msk [vmem:[#allocation4 + $0x8] sm:$0xff] %vm980, %v979
          %983 = vst.msk [vmem:[%s860] sm:$0xff] %vm558, %v869
          %984 = vst.msk [vmem:[%s860 + $0x8] sm:$0xff] %vm558, %v870
          %985 = vrot.lane.b32.xlu0 %v455, 32
          %v986 = vpop.permute.xlu0 %985
          %987 = vrot.lane.b32.xlu0 %v464, 32
          %v988 = vpop.permute.xlu0 %987
          %v990 = vsel %vm465, %v986, 0
          %v993 = vsel %vm465, %v988, 0
          %995 = vmatprep.subr.bf16.mxu0 0
          %996 = vmatpush1.bf16.xpose.msra.mxu0 0
          %997 = vmatprep.subr.bf16.mxu0 0
          %998 = vmatpush1.bf16.xpose.msra.mxu0 0
          %999 = vmatprep.subr.bf16.mxu0 0
          %1000 = vmatpush1.bf16.xpose.msra.mxu0 0
          %1001 = vmatprep.subr.bf16.mxu0 0
          %1002 = vmatpush1.bf16.xpose.msra.mxu0 0
          %1003 = vmatprep.subr.bf16.mxu0 0
          %1004 = vmatpush1.bf16.xpose.msra.mxu0 0
          %1005 = vmatprep.subr.bf16.mxu0 0
          %1006 = vmatpush1.bf16.xpose.msra.mxu0 0
          %1007 = vmatprep.subr.bf16.mxu0 0
          %1008 = vmatpush1.bf16.xpose.msra.mxu0 0
          %1009 = vmatprep.subr.bf16.mxu0 0
          %1010 = vmatpush1.bf16.xpose.msra.mxu0 %v993
          %1011 = vmatprep.subr.bf16.mxu0 0
          %1012 = vmatpush2.bf16.xpose.msra.mxu0 0
          %1013 = vmatprep.subr.bf16.mxu0 0
          %1014 = vmatpush2.bf16.xpose.msra.mxu0 0
          %1015 = vmatprep.subr.bf16.mxu0 0
          %1016 = vmatpush2.bf16.xpose.msra.mxu0 0
          %1017 = vmatprep.subr.bf16.mxu0 0
          %1018 = vmatpush2.bf16.xpose.msra.mxu0 0
          %1019 = vmatprep.subr.bf16.mxu0 0
          %1020 = vmatpush2.bf16.xpose.msra.mxu0 0
          %1021 = vmatprep.subr.bf16.mxu0 0
          %1022 = vmatpush2.bf16.xpose.msra.mxu0 0
          %1023 = vmatprep.subr.bf16.mxu0 0
          %1024 = vmatpush2.bf16.xpose.msra.mxu0 0
          %1025 = vmatprep.subr.bf16.mxu0 0
          %1026 = vmatpush2.bf16.xpose.msra.mxu0 0
          %1027 = vmatprep.mubr.bf16.mxu0 0
          %1028 = vmatmul.mubr.bf16.gmra.mxu0 %v990
          %v1029 = vpop.f32.mrf.mxu0
          %v1030 = vadd.f32 0.0, %v1029
          %v1031 = vpop.f32.mrf.mxu0
          %v1032 = vpop.f32.mrf.mxu0
          %v1033 = vadd.f32 0.0, %v1032
          %v1034 = vpop.f32.mrf.mxu0
          %1035 = vdwg.mxu0
          %s1036 = scalar_lea.vmem [#allocation2], 48
          %v1037 = vld [vmem:[%s1036] sm:$0xff]
          %v1038 = vld [vmem:[%s1036 + $0x8] sm:$0xff]
          %v1039 = vsel %vm515, %v1030, -inf
          %1040 = vmax.xlane.f32.xlu0 %v1039
          %v1041 = vpop.xlane.xlu0 %1040
          %v1042 = vsel %vm515, %v1033, -inf
          %1043 = vmax.xlane.f32.xlu0 %v1042
          %v1044 = vpop.xlane.xlu0 %1043
          %v1045 = vmax.f32 %v1037, %v1041
          %v1046 = vmax.f32 %v1038, %v1044
          %v1047 = vsub.f32 %v1037, %v1045
          %v1048 = vsub.f32 %v1038, %v1046
          %v1049 = vmul.f32 %v1047, 1.442695
          %v1050 = vpow.pop %v1049
          %v1051 = vmul.f32 %v1048, 1.442695
          %v1052 = vpow.pop %v1051
          %1054 = vset.pattern.permute.xlu0 0
          %1055 = vperm.xlu0 %1054, %v1045
          %v1056 = vpop.permute.xlu0 %1055
          %1059 = vset.pattern.permute.xlu0 0
          %1060 = vperm.xlu0 %1059, %v1046
          %v1061 = vpop.permute.xlu0 %1060
          %v1063 = vsub.f32 %v1030, %v1056
          %v1064 = vsub.f32 %v1033, %v1061
          %v1065 = vmul.f32 %v1063, 1.442695
          %v1066 = vpow.pop %v1065
          %v1067 = vmul.f32 %v1064, 1.442695
          %v1068 = vpow.pop %v1067
          %s1069 = scalar_lea.vmem [#allocation3], 48
          %v1070 = vld [vmem:[%s1069] sm:$0xff]
          %v1071 = vld [vmem:[%s1069 + $0x8] sm:$0xff]
          %v1072 = vmul.f32 %v1050, %v1070
          %v1073 = vmul.f32 %v1052, %v1071
          %v1074 = vsel %vm515, %v1066, 0.0
          %1075 = vadd.xlane.f32.xlu0 %v1074
          %v1076 = vpop.xlane.xlu0 %1075
          %v1077 = vsel %vm515, %v1068, 0.0
          %1078 = vadd.xlane.f32.xlu0 %v1077
          %v1079 = vpop.xlane.xlu0 %1078
          %v1080 = vadd.f32 %v1072, %v1076
          %v1081 = vadd.f32 %v1073, %v1079
          %1082 = vst.msk [vmem:[%s1069] sm:$0xff] %vm558, %v1080
          %1083 = vst.msk [vmem:[%s1069 + $0x8] sm:$0xff] %vm558, %v1081
          %v1084 = vld [vmem:[#allocation4] sm:$0xff]
          %v1085 = vld [vmem:[#allocation4 + $0x8] sm:$0xff]
          %1087 = vset.pattern.permute.xlu0 0
          %1088 = vperm.xlu0 %1087, %v1050
          %v1089 = vpop.permute.xlu0 %1088
          %1092 = vset.pattern.permute.xlu0 0
          %1093 = vperm.xlu0 %1092, %v1052
          %v1094 = vpop.permute.xlu0 %1093
          %v1096 = vmul.f32 %v1089, %v1084
          %v1097 = vmul.f32 %v1094, %v1085
          %v1098 = vpack.c.bf16 %v1068, %v1066
          %1099 = vrot.lane.b32.xlu0 %v580, 32
          %v1100 = vpop.permute.xlu0 %1099
          %v1103 = vsel %vm515, %v1098, 0
          %1105 = vmatprep.subr.bf16.mxu0 0
          %1106 = vmatpush1.bf16.msra.mxu0 0
          %1107 = vmatprep.subr.bf16.mxu0 0
          %1108 = vmatpush1.bf16.msra.mxu0 0
          %1109 = vmatprep.subr.bf16.mxu0 0
          %1110 = vmatpush1.bf16.msra.mxu0 0
          %1111 = vmatprep.subr.bf16.mxu0 0
          %1112 = vmatpush1.bf16.msra.mxu0 0
          %1113 = vmatprep.subr.bf16.mxu0 0
          %1114 = vmatpush1.bf16.msra.mxu0 0
          %1115 = vmatprep.subr.bf16.mxu0 0
          %1116 = vmatpush1.bf16.msra.mxu0 0
          %1117 = vmatprep.subr.bf16.mxu0 0
          %1118 = vmatpush1.bf16.msra.mxu0 0
          %1119 = vmatprep.subr.bf16.mxu0 0
          %1120 = vmatpush1.bf16.msra.mxu0 %v1100
          %1121 = vmatprep.subr.bf16.mxu0 0
          %1122 = vmatpush2.bf16.msra.mxu0 0
          %1123 = vmatprep.subr.bf16.mxu0 0
          %1124 = vmatpush2.bf16.msra.mxu0 0
          %1125 = vmatprep.subr.bf16.mxu0 0
          %1126 = vmatpush2.bf16.msra.mxu0 0
          %1127 = vmatprep.subr.bf16.mxu0 0
          %1128 = vmatpush2.bf16.msra.mxu0 0
          %1129 = vmatprep.subr.bf16.mxu0 0
          %1130 = vmatpush2.bf16.msra.mxu0 0
          %1131 = vmatprep.subr.bf16.mxu0 0
          %1132 = vmatpush2.bf16.msra.mxu0 0
          %1133 = vmatprep.subr.bf16.mxu0 0
          %1134 = vmatpush2.bf16.msra.mxu0 0
          %1135 = vmatprep.subr.bf16.mxu0 0
          %1136 = vmatpush2.bf16.msra.mxu0 0
          %1137 = vmatprep.mubr.bf16.mxu0 0
          %1138 = vmatmul.mubr.bf16.gmra.mxu0 %v1103
          %v1139 = vpop.f32.mrf.mxu0
          %v1140 = vadd.f32 0.0, %v1139
          %v1141 = vpop.f32.mrf.mxu0
          %v1142 = vpop.f32.mrf.mxu0
          %v1143 = vadd.f32 0.0, %v1142
          %v1144 = vpop.f32.mrf.mxu0
          %1145 = vdwg.mxu0
          %1148 = vrot.lane.b32.xlu0 %v1140, 96
          %v1149 = vpop.permute.xlu0 %1148
          %1150 = vrot.lane.b32.xlu0 %v1143, 96
          %v1151 = vpop.permute.xlu0 %1150
          %v1154 = vadd.f32 %v1096, %v1149
          %v1155 = vadd.f32 %v1097, %v1151
          %vm1156 = vcmask 1048320
          %1157 = vst.msk [vmem:[#allocation4] sm:$0xff] %vm1156, %v1154
          %1158 = vst.msk [vmem:[#allocation4 + $0x8] sm:$0xff] %vm1156, %v1155
          %1159 = vst.msk [vmem:[%s1036] sm:$0xff] %vm558, %v1045
          %1160 = vst.msk [vmem:[%s1036 + $0x8] sm:$0xff] %vm558, %v1046
        $region163: #{_lambda_.12} parent=142 // pred_fallthru
          _
        %p1161 = scmp.eq.s32.totalorder %s21, %s20
        // Predicated region
        $region164: #{_lambda_.12} parent=142 // pred_check
          %p1162 = pneg %p1161
        $region165: #{_lambda_.12} parent=142 // pred_check_branch
          %1164 = sbr.rel (%p1162) target = $region167
        $region166: #{_lambda_.12} parent=142 // pred_region
          %v1165 = vld [vmem:[%s357] sm:$0xf]
          %v1166 = vld [vmem:[%s357 + $0x4] sm:$0xf]
          %v1167 = vunpack.c.l.bf16 %v1165
          %v1168 = vunpack.c.l.bf16 %v1166
          %v1169 = vmul.f32 %v1167, 0.17677669
          %v1170 = vmul.f32 %v1168, 0.17677669
          %v1171 = vpack.c.bf16 %v1170, %v1169
          %v1172 = vld [vmem:[%s364] sm:$0xf]
          %v1173 = vld [vmem:[%s364 + $0x4] sm:$0xf]
          %v1174 = vld [vmem:[%s371] sm:$0xf]
          %v1175 = vld [vmem:[%s371 + $0x4] sm:$0xf]
          %s1176 = smul.u32 %s20, 16
          %v1177 = vlaneseq
          %v1178 = vshrl.u32 %v1177, 7
          %v1179 = vadd.s32 %v1178, 8
          %v1180 = vstv %s1176
          %v1181 = vadd.s32 %v1180, %v1178
          %v1182 = vadd.s32 %v1180, %v1179
          %s1183 = smul.u32 %s21, 16
          %v1184 = vlaneseq
          %v1185 = vand.u32 %v1184, 127
          %v1186 = vstv %s1183
          %v1187 = vadd.s32 %v1186, %v1185
          %vm1188 = vcmp.le.s32.totalorder %v1187, %v1181
          %vm1189 = vcmp.le.s32.totalorder %v1187, %v1182
          %v1192 = vunpack.c.l.b16 %v1172
          %v1193 = vunpack.c.l.b16 %v1173
          %v1194 = vpack.c.b16 %v1193, %v1192
          %vm1195 = vcmask 261120
          %v1197 = vsel %vm1195, %v1171, 0
          %v1200 = vsel %vm1195, %v1194, 0
          %1202 = vmatprep.subr.bf16.mxu0 0
          %1203 = vmatpush1.bf16.xpose.msra.mxu0 0
          %1204 = vmatprep.subr.bf16.mxu0 0
          %1205 = vmatpush1.bf16.xpose.msra.mxu0 0
          %1206 = vmatprep.subr.bf16.mxu0 0
          %1207 = vmatpush1.bf16.xpose.msra.mxu0 0
          %1208 = vmatprep.subr.bf16.mxu0 0
          %1209 = vmatpush1.bf16.xpose.msra.mxu0 0
          %1210 = vmatprep.subr.bf16.mxu0 0
          %1211 = vmatpush1.bf16.xpose.msra.mxu0 0
          %1212 = vmatprep.subr.bf16.mxu0 0
          %1213 = vmatpush1.bf16.xpose.msra.mxu0 0
          %1214 = vmatprep.subr.bf16.mxu0 0
          %1215 = vmatpush1.bf16.xpose.msra.mxu0 0
          %1216 = vmatprep.subr.bf16.mxu0 0
          %1217 = vmatpush1.bf16.xpose.msra.mxu0 %v1200
          %1218 = vmatprep.subr.bf16.mxu0 0
          %1219 = vmatpush2.bf16.xpose.msra.mxu0 0
          %1220 = vmatprep.subr.bf16.mxu0 0
          %1221 = vmatpush2.bf16.xpose.msra.mxu0 0
          %1222 = vmatprep.subr.bf16.mxu0 0
          %1223 = vmatpush2.bf16.xpose.msra.mxu0 0
          %1224 = vmatprep.subr.bf16.mxu0 0
          %1225 = vmatpush2.bf16.xpose.msra.mxu0 0
          %1226 = vmatprep.subr.bf16.mxu0 0
          %1227 = vmatpush2.bf16.xpose.msra.mxu0 0
          %1228 = vmatprep.subr.bf16.mxu0 0
          %1229 = vmatpush2.bf16.xpose.msra.mxu0 0
          %1230 = vmatprep.subr.bf16.mxu0 0
          %1231 = vmatpush2.bf16.xpose.msra.mxu0 0
          %1232 = vmatprep.subr.bf16.mxu0 0
          %1233 = vmatpush2.bf16.xpose.msra.mxu0 0
          %1234 = vmatprep.mubr.bf16.mxu0 0
          %1235 = vmatmul.mubr.bf16.gmra.mxu0 %v1197
          %v1236 = vpop.f32.mrf.mxu0
          %v1237 = vadd.f32 0.0, %v1236
          %v1238 = vpop.f32.mrf.mxu0
          %v1239 = vpop.f32.mrf.mxu0
          %v1240 = vadd.f32 0.0, %v1239
          %v1241 = vpop.f32.mrf.mxu0
          %1242 = vdwg.mxu0
          %v1243 = vsel %vm1188, %v1237, -1e+30
          %v1244 = vsel %vm1189, %v1240, -1e+30
          %v1245 = vld [vmem:[#allocation2] sm:$0xff]
          %v1246 = vld [vmem:[#allocation2 + $0x8] sm:$0xff]
          %vm1247 = vcmask 130048
          %v1248 = vsel %vm1247, %v1243, -inf
          %1249 = vmax.xlane.f32.xlu0 %v1248
          %v1250 = vpop.xlane.xlu0 %1249
          %v1251 = vsel %vm1247, %v1244, -inf
          %1252 = vmax.xlane.f32.xlu0 %v1251
          %v1253 = vpop.xlane.xlu0 %1252
          %v1254 = vmax.f32 %v1245, %v1250
          %v1255 = vmax.f32 %v1246, %v1253
          %v1256 = vsub.f32 %v1245, %v1254
          %v1257 = vsub.f32 %v1246, %v1255
          %v1258 = vmul.f32 %v1256, 1.442695
          %v1259 = vpow.pop %v1258
          %v1260 = vmul.f32 %v1257, 1.442695
          %v1261 = vpow.pop %v1260
          %1263 = vset.pattern.permute.xlu0 0
          %1264 = vperm.xlu0 %1263, %v1254
          %v1265 = vpop.permute.xlu0 %1264
          %1268 = vset.pattern.permute.xlu0 0
          %1269 = vperm.xlu0 %1268, %v1255
          %v1270 = vpop.permute.xlu0 %1269
          %v1272 = vsub.f32 %v1243, %v1265
          %v1273 = vsub.f32 %v1244, %v1270
          %v1274 = vmul.f32 %v1272, 1.442695
          %v1275 = vpow.pop %v1274
          %v1276 = vmul.f32 %v1273, 1.442695
          %v1277 = vpow.pop %v1276
          %v1278 = vld [vmem:[#allocation3] sm:$0xff]
          %v1279 = vld [vmem:[#allocation3 + $0x8] sm:$0xff]
          %v1280 = vmul.f32 %v1259, %v1278
          %v1281 = vmul.f32 %v1261, %v1279
          %v1282 = vsel %vm1247, %v1275, 0.0
          %1283 = vadd.xlane.f32.xlu0 %v1282
          %v1284 = vpop.xlane.xlu0 %1283
          %v1285 = vsel %vm1247, %v1277, 0.0
          %1286 = vadd.xlane.f32.xlu0 %v1285
          %v1287 = vpop.xlane.xlu0 %1286
          %v1288 = vadd.f32 %v1280, %v1284
          %v1289 = vadd.f32 %v1281, %v1287
          %vm1290 = vcmask 7168
          %1291 = vst.msk [vmem:[#allocation3] sm:$0xff] %vm1290, %v1288
          %1292 = vst.msk [vmem:[#allocation3 + $0x8] sm:$0xff] %vm1290, %v1289
          %v1293 = vld [vmem:[#allocation4] sm:$0xff]
          %v1294 = vld [vmem:[#allocation4 + $0x8] sm:$0xff]
          %1296 = vset.pattern.permute.xlu0 0
          %1297 = vperm.xlu0 %1296, %v1259
          %v1298 = vpop.permute.xlu0 %1297
          %1301 = vset.pattern.permute.xlu0 0
          %1302 = vperm.xlu0 %1301, %v1261
          %v1303 = vpop.permute.xlu0 %1302
          %v1305 = vmul.f32 %v1298, %v1293
          %v1306 = vmul.f32 %v1303, %v1294
          %v1307 = vpack.c.bf16 %v1277, %v1275
          %v1310 = vunpack.c.l.b16 %v1174
          %v1311 = vunpack.c.l.b16 %v1175
          %v1312 = vpack.c.b16 %v1311, %v1310
          %v1315 = vsel %vm1247, %v1307, 0
          %1317 = vmatprep.subr.bf16.mxu0 0
          %1318 = vmatpush1.bf16.msra.mxu0 0
          %1319 = vmatprep.subr.bf16.mxu0 0
          %1320 = vmatpush1.bf16.msra.mxu0 0
          %1321 = vmatprep.subr.bf16.mxu0 0
          %1322 = vmatpush1.bf16.msra.mxu0 0
          %1323 = vmatprep.subr.bf16.mxu0 0
          %1324 = vmatpush1.bf16.msra.mxu0 0
          %1325 = vmatprep.subr.bf16.mxu0 0
          %1326 = vmatpush1.bf16.msra.mxu0 0
          %1327 = vmatprep.subr.bf16.mxu0 0
          %1328 = vmatpush1.bf16.msra.mxu0 0
          %1329 = vmatprep.subr.bf16.mxu0 0
          %1330 = vmatpush1.bf16.msra.mxu0 0
          %1331 = vmatprep.subr.bf16.mxu0 0
          %1332 = vmatpush1.bf16.msra.mxu0 %v1312
          %1333 = vmatprep.subr.bf16.mxu0 0
          %1334 = vmatpush2.bf16.msra.mxu0 0
          %1335 = vmatprep.subr.bf16.mxu0 0
          %1336 = vmatpush2.bf16.msra.mxu0 0
          %1337 = vmatprep.subr.bf16.mxu0 0
          %1338 = vmatpush2.bf16.msra.mxu0 0
          %1339 = vmatprep.subr.bf16.mxu0 0
          %1340 = vmatpush2.bf16.msra.mxu0 0
          %1341 = vmatprep.subr.bf16.mxu0 0
          %1342 = vmatpush2.bf16.msra.mxu0 0
          %1343 = vmatprep.subr.bf16.mxu0 0
          %1344 = vmatpush2.bf16.msra.mxu0 0
          %1345 = vmatprep.subr.bf16.mxu0 0
          %1346 = vmatpush2.bf16.msra.mxu0 0
          %1347 = vmatprep.subr.bf16.mxu0 0
          %1348 = vmatpush2.bf16.msra.mxu0 0
          %1349 = vmatprep.mubr.bf16.mxu0 0
          %1350 = vmatmul.mubr.bf16.gmra.mxu0 %v1315
          %v1351 = vpop.f32.mrf.mxu0
          %v1352 = vadd.f32 0.0, %v1351
          %v1353 = vpop.f32.mrf.mxu0
          %v1354 = vpop.f32.mrf.mxu0
          %v1355 = vadd.f32 0.0, %v1354
          %v1356 = vpop.f32.mrf.mxu0
          %1357 = vdwg.mxu0
          %v1358 = vadd.f32 %v1305, %v1352
          %v1359 = vadd.f32 %v1306, %v1355
          %1360 = vst.msk [vmem:[#allocation4] sm:$0xff] %vm1195, %v1358
          %1361 = vst.msk [vmem:[#allocation4 + $0x8] sm:$0xff] %vm1195, %v1359
          %1362 = vst.msk [vmem:[#allocation2] sm:$0xff] %vm1290, %v1254
          %1363 = vst.msk [vmem:[#allocation2 + $0x8] sm:$0xff] %vm1290, %v1255
          %1365 = vrot.lane.b32.xlu0 %v1171, 96
          %v1366 = vpop.permute.xlu0 %1365
          %1367 = vrot.lane.b32.xlu0 %v1194, 96
          %v1368 = vpop.permute.xlu0 %1367
          %v1370 = vsel %vm1195, %v1366, 0
          %v1373 = vsel %vm1195, %v1368, 0
          %1375 = vmatprep.subr.bf16.mxu0 0
          %1376 = vmatpush1.bf16.xpose.msra.mxu0 0
          %1377 = vmatprep.subr.bf16.mxu0 0
          %1378 = vmatpush1.bf16.xpose.msra.mxu0 0
          %1379 = vmatprep.subr.bf16.mxu0 0
          %1380 = vmatpush1.bf16.xpose.msra.mxu0 0
          %1381 = vmatprep.subr.bf16.mxu0 0
          %1382 = vmatpush1.bf16.xpose.msra.mxu0 0
          %1383 = vmatprep.subr.bf16.mxu0 0
          %1384 = vmatpush1.bf16.xpose.msra.mxu0 0
          %1385 = vmatprep.subr.bf16.mxu0 0
          %1386 = vmatpush1.bf16.xpose.msra.mxu0 0
          %1387 = vmatprep.subr.bf16.mxu0 0
          %1388 = vmatpush1.bf16.xpose.msra.mxu0 0
          %1389 = vmatprep.subr.bf16.mxu0 0
          %1390 = vmatpush1.bf16.xpose.msra.mxu0 %v1373
          %1391 = vmatprep.subr.bf16.mxu0 0
          %1392 = vmatpush2.bf16.xpose.msra.mxu0 0
          %1393 = vmatprep.subr.bf16.mxu0 0
          %1394 = vmatpush2.bf16.xpose.msra.mxu0 0
          %1395 = vmatprep.subr.bf16.mxu0 0
          %1396 = vmatpush2.bf16.xpose.msra.mxu0 0
          %1397 = vmatprep.subr.bf16.mxu0 0
          %1398 = vmatpush2.bf16.xpose.msra.mxu0 0
          %1399 = vmatprep.subr.bf16.mxu0 0
          %1400 = vmatpush2.bf16.xpose.msra.mxu0 0
          %1401 = vmatprep.subr.bf16.mxu0 0
          %1402 = vmatpush2.bf16.xpose.msra.mxu0 0
          %1403 = vmatprep.subr.bf16.mxu0 0
          %1404 = vmatpush2.bf16.xpose.msra.mxu0 0
          %1405 = vmatprep.subr.bf16.mxu0 0
          %1406 = vmatpush2.bf16.xpose.msra.mxu0 0
          %1407 = vmatprep.mubr.bf16.mxu0 0
          %1408 = vmatmul.mubr.bf16.gmra.mxu0 %v1370
          %v1409 = vpop.f32.mrf.mxu0
          %v1410 = vadd.f32 0.0, %v1409
          %v1411 = vpop.f32.mrf.mxu0
          %v1412 = vpop.f32.mrf.mxu0
          %v1413 = vadd.f32 0.0, %v1412
          %v1414 = vpop.f32.mrf.mxu0
          %1415 = vdwg.mxu0
          %v1416 = vsel %vm1188, %v1410, -1e+30
          %v1417 = vsel %vm1189, %v1413, -1e+30
          %s1418 = scalar_lea.vmem [#allocation2], 16
          %v1419 = vld [vmem:[%s1418] sm:$0xff]
          %v1420 = vld [vmem:[%s1418 + $0x8] sm:$0xff]
          %v1421 = vsel %vm1247, %v1416, -inf
          %1422 = vmax.xlane.f32.xlu0 %v1421
          %v1423 = vpop.xlane.xlu0 %1422
          %v1424 = vsel %vm1247, %v1417, -inf
          %1425 = vmax.xlane.f32.xlu0 %v1424
          %v1426 = vpop.xlane.xlu0 %1425
          %v1427 = vmax.f32 %v1419, %v1423
          %v1428 = vmax.f32 %v1420, %v1426
          %v1429 = vsub.f32 %v1419, %v1427
          %v1430 = vsub.f32 %v1420, %v1428
          %v1431 = vmul.f32 %v1429, 1.442695
          %v1432 = vpow.pop %v1431
          %v1433 = vmul.f32 %v1430, 1.442695
          %v1434 = vpow.pop %v1433
          %1436 = vset.pattern.permute.xlu0 0
          %1437 = vperm.xlu0 %1436, %v1427
          %v1438 = vpop.permute.xlu0 %1437
          %1441 = vset.pattern.permute.xlu0 0
          %1442 = vperm.xlu0 %1441, %v1428
          %v1443 = vpop.permute.xlu0 %1442
          %v1445 = vsub.f32 %v1416, %v1438
          %v1446 = vsub.f32 %v1417, %v1443
          %v1447 = vmul.f32 %v1445, 1.442695
          %v1448 = vpow.pop %v1447
          %v1449 = vmul.f32 %v1446, 1.442695
          %v1450 = vpow.pop %v1449
          %s1451 = scalar_lea.vmem [#allocation3], 16
          %v1452 = vld [vmem:[%s1451] sm:$0xff]
          %v1453 = vld [vmem:[%s1451 + $0x8] sm:$0xff]
          %v1454 = vmul.f32 %v1432, %v1452
          %v1455 = vmul.f32 %v1434, %v1453
          %v1456 = vsel %vm1247, %v1448, 0.0
          %1457 = vadd.xlane.f32.xlu0 %v1456
          %v1458 = vpop.xlane.xlu0 %1457
          %v1459 = vsel %vm1247, %v1450, 0.0
          %1460 = vadd.xlane.f32.xlu0 %v1459
          %v1461 = vpop.xlane.xlu0 %1460
          %v1462 = vadd.f32 %v1454, %v1458
          %v1463 = vadd.f32 %v1455, %v1461
          %1464 = vst.msk [vmem:[%s1451] sm:$0xff] %vm1290, %v1462
          %1465 = vst.msk [vmem:[%s1451 + $0x8] sm:$0xff] %vm1290, %v1463
          %v1466 = vld [vmem:[#allocation4] sm:$0xff]
          %v1467 = vld [vmem:[#allocation4 + $0x8] sm:$0xff]
          %1469 = vset.pattern.permute.xlu0 0
          %1470 = vperm.xlu0 %1469, %v1432
          %v1471 = vpop.permute.xlu0 %1470
          %1474 = vset.pattern.permute.xlu0 0
          %1475 = vperm.xlu0 %1474, %v1434
          %v1476 = vpop.permute.xlu0 %1475
          %v1478 = vmul.f32 %v1471, %v1466
          %v1479 = vmul.f32 %v1476, %v1467
          %v1480 = vpack.c.bf16 %v1450, %v1448
          %1481 = vrot.lane.b32.xlu0 %v1312, 96
          %v1482 = vpop.permute.xlu0 %1481
          %v1485 = vsel %vm1247, %v1480, 0
          %1487 = vmatprep.subr.bf16.mxu0 0
          %1488 = vmatpush1.bf16.msra.mxu0 0
          %1489 = vmatprep.subr.bf16.mxu0 0
          %1490 = vmatpush1.bf16.msra.mxu0 0
          %1491 = vmatprep.subr.bf16.mxu0 0
          %1492 = vmatpush1.bf16.msra.mxu0 0
          %1493 = vmatprep.subr.bf16.mxu0 0
          %1494 = vmatpush1.bf16.msra.mxu0 0
          %1495 = vmatprep.subr.bf16.mxu0 0
          %1496 = vmatpush1.bf16.msra.mxu0 0
          %1497 = vmatprep.subr.bf16.mxu0 0
          %1498 = vmatpush1.bf16.msra.mxu0 0
          %1499 = vmatprep.subr.bf16.mxu0 0
          %1500 = vmatpush1.bf16.msra.mxu0 0
          %1501 = vmatprep.subr.bf16.mxu0 0
          %1502 = vmatpush1.bf16.msra.mxu0 %v1482
          %1503 = vmatprep.subr.bf16.mxu0 0
          %1504 = vmatpush2.bf16.msra.mxu0 0
          %1505 = vmatprep.subr.bf16.mxu0 0
          %1506 = vmatpush2.bf16.msra.mxu0 0
          %1507 = vmatprep.subr.bf16.mxu0 0
          %1508 = vmatpush2.bf16.msra.mxu0 0
          %1509 = vmatprep.subr.bf16.mxu0 0
          %1510 = vmatpush2.bf16.msra.mxu0 0
          %1511 = vmatprep.subr.bf16.mxu0 0
          %1512 = vmatpush2.bf16.msra.mxu0 0
          %1513 = vmatprep.subr.bf16.mxu0 0
          %1514 = vmatpush2.bf16.msra.mxu0 0
          %1515 = vmatprep.subr.bf16.mxu0 0
          %1516 = vmatpush2.bf16.msra.mxu0 0
          %1517 = vmatprep.subr.bf16.mxu0 0
          %1518 = vmatpush2.bf16.msra.mxu0 0
          %1519 = vmatprep.mubr.bf16.mxu0 0
          %1520 = vmatmul.mubr.bf16.gmra.mxu0 %v1485
          %v1521 = vpop.f32.mrf.mxu0
          %v1522 = vadd.f32 0.0, %v1521
          %v1523 = vpop.f32.mrf.mxu0
          %v1524 = vpop.f32.mrf.mxu0
          %v1525 = vadd.f32 0.0, %v1524
          %v1526 = vpop.f32.mrf.mxu0
          %1527 = vdwg.mxu0
          %1530 = vrot.lane.b32.xlu0 %v1522, 32
          %v1531 = vpop.permute.xlu0 %1530
          %1532 = vrot.lane.b32.xlu0 %v1525, 32
          %v1533 = vpop.permute.xlu0 %1532
          %v1536 = vadd.f32 %v1478, %v1531
          %v1537 = vadd.f32 %v1479, %v1533
          %vm1538 = vcmask 523520
          %1539 = vst.msk [vmem:[#allocation4] sm:$0xff] %vm1538, %v1536
          %1540 = vst.msk [vmem:[#allocation4 + $0x8] sm:$0xff] %vm1538, %v1537
          %1541 = vst.msk [vmem:[%s1418] sm:$0xff] %vm1290, %v1427
          %1542 = vst.msk [vmem:[%s1418 + $0x8] sm:$0xff] %vm1290, %v1428
          %1543 = vrot.lane.b32.xlu0 %v1171, 64
          %v1544 = vpop.permute.xlu0 %1543
          %1545 = vrot.lane.b32.xlu0 %v1194, 64
          %v1546 = vpop.permute.xlu0 %1545
          %v1548 = vsel %vm1195, %v1544, 0
          %v1551 = vsel %vm1195, %v1546, 0
          %1553 = vmatprep.subr.bf16.mxu0 0
          %1554 = vmatpush1.bf16.xpose.msra.mxu0 0
          %1555 = vmatprep.subr.bf16.mxu0 0
          %1556 = vmatpush1.bf16.xpose.msra.mxu0 0
          %1557 = vmatprep.subr.bf16.mxu0 0
          %1558 = vmatpush1.bf16.xpose.msra.mxu0 0
          %1559 = vmatprep.subr.bf16.mxu0 0
          %1560 = vmatpush1.bf16.xpose.msra.mxu0 0
          %1561 = vmatprep.subr.bf16.mxu0 0
          %1562 = vmatpush1.bf16.xpose.msra.mxu0 0
          %1563 = vmatprep.subr.bf16.mxu0 0
          %1564 = vmatpush1.bf16.xpose.msra.mxu0 0
          %1565 = vmatprep.subr.bf16.mxu0 0
          %1566 = vmatpush1.bf16.xpose.msra.mxu0 0
          %1567 = vmatprep.subr.bf16.mxu0 0
          %1568 = vmatpush1.bf16.xpose.msra.mxu0 %v1551
          %1569 = vmatprep.subr.bf16.mxu0 0
          %1570 = vmatpush2.bf16.xpose.msra.mxu0 0
          %1571 = vmatprep.subr.bf16.mxu0 0
          %1572 = vmatpush2.bf16.xpose.msra.mxu0 0
          %1573 = vmatprep.subr.bf16.mxu0 0
          %1574 = vmatpush2.bf16.xpose.msra.mxu0 0
          %1575 = vmatprep.subr.bf16.mxu0 0
          %1576 = vmatpush2.bf16.xpose.msra.mxu0 0
          %1577 = vmatprep.subr.bf16.mxu0 0
          %1578 = vmatpush2.bf16.xpose.msra.mxu0 0
          %1579 = vmatprep.subr.bf16.mxu0 0
          %1580 = vmatpush2.bf16.xpose.msra.mxu0 0
          %1581 = vmatprep.subr.bf16.mxu0 0
          %1582 = vmatpush2.bf16.xpose.msra.mxu0 0
          %1583 = vmatprep.subr.bf16.mxu0 0
          %1584 = vmatpush2.bf16.xpose.msra.mxu0 0
          %1585 = vmatprep.mubr.bf16.mxu0 0
          %1586 = vmatmul.mubr.bf16.gmra.mxu0 %v1548
          %v1587 = vpop.f32.mrf.mxu0
          %v1588 = vadd.f32 0.0, %v1587
          %v1589 = vpop.f32.mrf.mxu0
          %v1590 = vpop.f32.mrf.mxu0
          %v1591 = vadd.f32 0.0, %v1590
          %v1592 = vpop.f32.mrf.mxu0
          %1593 = vdwg.mxu0
          %v1594 = vsel %vm1188, %v1588, -1e+30
          %v1595 = vsel %vm1189, %v1591, -1e+30
          %s1596 = scalar_lea.vmem [#allocation2], 32
          %v1597 = vld [vmem:[%s1596] sm:$0xff]
          %v1598 = vld [vmem:[%s1596 + $0x8] sm:$0xff]
          %v1599 = vsel %vm1247, %v1594, -inf
          %1600 = vmax.xlane.f32.xlu0 %v1599
          %v1601 = vpop.xlane.xlu0 %1600
          %v1602 = vsel %vm1247, %v1595, -inf
          %1603 = vmax.xlane.f32.xlu0 %v1602
          %v1604 = vpop.xlane.xlu0 %1603
          %v1605 = vmax.f32 %v1597, %v1601
          %v1606 = vmax.f32 %v1598, %v1604
          %v1607 = vsub.f32 %v1597, %v1605
          %v1608 = vsub.f32 %v1598, %v1606
          %v1609 = vmul.f32 %v1607, 1.442695
          %v1610 = vpow.pop %v1609
          %v1611 = vmul.f32 %v1608, 1.442695
          %v1612 = vpow.pop %v1611
          %1614 = vset.pattern.permute.xlu0 0
          %1615 = vperm.xlu0 %1614, %v1605
          %v1616 = vpop.permute.xlu0 %1615
          %1619 = vset.pattern.permute.xlu0 0
          %1620 = vperm.xlu0 %1619, %v1606
          %v1621 = vpop.permute.xlu0 %1620
          %v1623 = vsub.f32 %v1594, %v1616
          %v1624 = vsub.f32 %v1595, %v1621
          %v1625 = vmul.f32 %v1623, 1.442695
          %v1626 = vpow.pop %v1625
          %v1627 = vmul.f32 %v1624, 1.442695
          %v1628 = vpow.pop %v1627
          %s1629 = scalar_lea.vmem [#allocation3], 32
          %v1630 = vld [vmem:[%s1629] sm:$0xff]
          %v1631 = vld [vmem:[%s1629 + $0x8] sm:$0xff]
          %v1632 = vmul.f32 %v1610, %v1630
          %v1633 = vmul.f32 %v1612, %v1631
          %v1634 = vsel %vm1247, %v1626, 0.0
          %1635 = vadd.xlane.f32.xlu0 %v1634
          %v1636 = vpop.xlane.xlu0 %1635
          %v1637 = vsel %vm1247, %v1628, 0.0
          %1638 = vadd.xlane.f32.xlu0 %v1637
          %v1639 = vpop.xlane.xlu0 %1638
          %v1640 = vadd.f32 %v1632, %v1636
          %v1641 = vadd.f32 %v1633, %v1639
          %1642 = vst.msk [vmem:[%s1629] sm:$0xff] %vm1290, %v1640
          %1643 = vst.msk [vmem:[%s1629 + $0x8] sm:$0xff] %vm1290, %v1641
          %v1644 = vld [vmem:[#allocation4] sm:$0xff]
          %v1645 = vld [vmem:[#allocation4 + $0x8] sm:$0xff]
          %1647 = vset.pattern.permute.xlu0 0
          %1648 = vperm.xlu0 %1647, %v1610
          %v1649 = vpop.permute.xlu0 %1648
          %1652 = vset.pattern.permute.xlu0 0
          %1653 = vperm.xlu0 %1652, %v1612
          %v1654 = vpop.permute.xlu0 %1653
          %v1656 = vmul.f32 %v1649, %v1644
          %v1657 = vmul.f32 %v1654, %v1645
          %v1658 = vpack.c.bf16 %v1628, %v1626
          %1659 = vrot.lane.b32.xlu0 %v1312, 64
          %v1660 = vpop.permute.xlu0 %1659
          %v1663 = vsel %vm1247, %v1658, 0
          %1665 = vmatprep.subr.bf16.mxu0 0
          %1666 = vmatpush1.bf16.msra.mxu0 0
          %1667 = vmatprep.subr.bf16.mxu0 0
          %1668 = vmatpush1.bf16.msra.mxu0 0
          %1669 = vmatprep.subr.bf16.mxu0 0
          %1670 = vmatpush1.bf16.msra.mxu0 0
          %1671 = vmatprep.subr.bf16.mxu0 0
          %1672 = vmatpush1.bf16.msra.mxu0 0
          %1673 = vmatprep.subr.bf16.mxu0 0
          %1674 = vmatpush1.bf16.msra.mxu0 0
          %1675 = vmatprep.subr.bf16.mxu0 0
          %1676 = vmatpush1.bf16.msra.mxu0 0
          %1677 = vmatprep.subr.bf16.mxu0 0
          %1678 = vmatpush1.bf16.msra.mxu0 0
          %1679 = vmatprep.subr.bf16.mxu0 0
          %1680 = vmatpush1.bf16.msra.mxu0 %v1660
          %1681 = vmatprep.subr.bf16.mxu0 0
          %1682 = vmatpush2.bf16.msra.mxu0 0
          %1683 = vmatprep.subr.bf16.mxu0 0
          %1684 = vmatpush2.bf16.msra.mxu0 0
          %1685 = vmatprep.subr.bf16.mxu0 0
          %1686 = vmatpush2.bf16.msra.mxu0 0
          %1687 = vmatprep.subr.bf16.mxu0 0
          %1688 = vmatpush2.bf16.msra.mxu0 0
          %1689 = vmatprep.subr.bf16.mxu0 0
          %1690 = vmatpush2.bf16.msra.mxu0 0
          %1691 = vmatprep.subr.bf16.mxu0 0
          %1692 = vmatpush2.bf16.msra.mxu0 0
          %1693 = vmatprep.subr.bf16.mxu0 0
          %1694 = vmatpush2.bf16.msra.mxu0 0
          %1695 = vmatprep.subr.bf16.mxu0 0
          %1696 = vmatpush2.bf16.msra.mxu0 0
          %1697 = vmatprep.mubr.bf16.mxu0 0
          %1698 = vmatmul.mubr.bf16.gmra.mxu0 %v1663
          %v1699 = vpop.f32.mrf.mxu0
          %v1700 = vadd.f32 0.0, %v1699
          %v1701 = vpop.f32.mrf.mxu0
          %v1702 = vpop.f32.mrf.mxu0
          %v1703 = vadd.f32 0.0, %v1702
          %v1704 = vpop.f32.mrf.mxu0
          %1705 = vdwg.mxu0
          %1708 = vrot.lane.b32.xlu0 %v1700, 64
          %v1709 = vpop.permute.xlu0 %1708
          %1710 = vrot.lane.b32.xlu0 %v1703, 64
          %v1711 = vpop.permute.xlu0 %1710
          %v1714 = vadd.f32 %v1656, %v1709
          %v1715 = vadd.f32 %v1657, %v1711
          %vm1716 = vcmask 785920
          %1717 = vst.msk [vmem:[#allocation4] sm:$0xff] %vm1716, %v1714
          %1718 = vst.msk [vmem:[#allocation4 + $0x8] sm:$0xff] %vm1716, %v1715
          %1719 = vst.msk [vmem:[%s1596] sm:$0xff] %vm1290, %v1605
          %1720 = vst.msk [vmem:[%s1596 + $0x8] sm:$0xff] %vm1290, %v1606
          %1721 = vrot.lane.b32.xlu0 %v1171, 32
          %v1722 = vpop.permute.xlu0 %1721
          %1723 = vrot.lane.b32.xlu0 %v1194, 32
          %v1724 = vpop.permute.xlu0 %1723
          %v1726 = vsel %vm1195, %v1722, 0
          %v1729 = vsel %vm1195, %v1724, 0
          %1731 = vmatprep.subr.bf16.mxu0 0
          %1732 = vmatpush1.bf16.xpose.msra.mxu0 0
          %1733 = vmatprep.subr.bf16.mxu0 0
          %1734 = vmatpush1.bf16.xpose.msra.mxu0 0
          %1735 = vmatprep.subr.bf16.mxu0 0
          %1736 = vmatpush1.bf16.xpose.msra.mxu0 0
          %1737 = vmatprep.subr.bf16.mxu0 0
          %1738 = vmatpush1.bf16.xpose.msra.mxu0 0
          %1739 = vmatprep.subr.bf16.mxu0 0
          %1740 = vmatpush1.bf16.xpose.msra.mxu0 0
          %1741 = vmatprep.subr.bf16.mxu0 0
          %1742 = vmatpush1.bf16.xpose.msra.mxu0 0
          %1743 = vmatprep.subr.bf16.mxu0 0
          %1744 = vmatpush1.bf16.xpose.msra.mxu0 0
          %1745 = vmatprep.subr.bf16.mxu0 0
          %1746 = vmatpush1.bf16.xpose.msra.mxu0 %v1729
          %1747 = vmatprep.subr.bf16.mxu0 0
          %1748 = vmatpush2.bf16.xpose.msra.mxu0 0
          %1749 = vmatprep.subr.bf16.mxu0 0
          %1750 = vmatpush2.bf16.xpose.msra.mxu0 0
          %1751 = vmatprep.subr.bf16.mxu0 0
          %1752 = vmatpush2.bf16.xpose.msra.mxu0 0
          %1753 = vmatprep.subr.bf16.mxu0 0
          %1754 = vmatpush2.bf16.xpose.msra.mxu0 0
          %1755 = vmatprep.subr.bf16.mxu0 0
          %1756 = vmatpush2.bf16.xpose.msra.mxu0 0
          %1757 = vmatprep.subr.bf16.mxu0 0
          %1758 = vmatpush2.bf16.xpose.msra.mxu0 0
          %1759 = vmatprep.subr.bf16.mxu0 0
          %1760 = vmatpush2.bf16.xpose.msra.mxu0 0
          %1761 = vmatprep.subr.bf16.mxu0 0
          %1762 = vmatpush2.bf16.xpose.msra.mxu0 0
          %1763 = vmatprep.mubr.bf16.mxu0 0
          %1764 = vmatmul.mubr.bf16.gmra.mxu0 %v1726
          %v1765 = vpop.f32.mrf.mxu0
          %v1766 = vadd.f32 0.0, %v1765
          %v1767 = vpop.f32.mrf.mxu0
          %v1768 = vpop.f32.mrf.mxu0
          %v1769 = vadd.f32 0.0, %v1768
          %v1770 = vpop.f32.mrf.mxu0
          %1771 = vdwg.mxu0
          %v1772 = vsel %vm1188, %v1766, -1e+30
          %v1773 = vsel %vm1189, %v1769, -1e+30
          %s1774 = scalar_lea.vmem [#allocation2], 48
          %v1775 = vld [vmem:[%s1774] sm:$0xff]
          %v1776 = vld [vmem:[%s1774 + $0x8] sm:$0xff]
          %v1777 = vsel %vm1247, %v1772, -inf
          %1778 = vmax.xlane.f32.xlu0 %v1777
          %v1779 = vpop.xlane.xlu0 %1778
          %v1780 = vsel %vm1247, %v1773, -inf
          %1781 = vmax.xlane.f32.xlu0 %v1780
          %v1782 = vpop.xlane.xlu0 %1781
          %v1783 = vmax.f32 %v1775, %v1779
          %v1784 = vmax.f32 %v1776, %v1782
          %v1785 = vsub.f32 %v1775, %v1783
          %v1786 = vsub.f32 %v1776, %v1784
          %v1787 = vmul.f32 %v1785, 1.442695
          %v1788 = vpow.pop %v1787
          %v1789 = vmul.f32 %v1786, 1.442695
          %v1790 = vpow.pop %v1789
          %1792 = vset.pattern.permute.xlu0 0
          %1793 = vperm.xlu0 %1792, %v1783
          %v1794 = vpop.permute.xlu0 %1793
          %1797 = vset.pattern.permute.xlu0 0
          %1798 = vperm.xlu0 %1797, %v1784
          %v1799 = vpop.permute.xlu0 %1798
          %v1801 = vsub.f32 %v1772, %v1794
          %v1802 = vsub.f32 %v1773, %v1799
          %v1803 = vmul.f32 %v1801, 1.442695
          %v1804 = vpow.pop %v1803
          %v1805 = vmul.f32 %v1802, 1.442695
          %v1806 = vpow.pop %v1805
          %s1807 = scalar_lea.vmem [#allocation3], 48
          %v1808 = vld [vmem:[%s1807] sm:$0xff]
          %v1809 = vld [vmem:[%s1807 + $0x8] sm:$0xff]
          %v1810 = vmul.f32 %v1788, %v1808
          %v1811 = vmul.f32 %v1790, %v1809
          %v1812 = vsel %vm1247, %v1804, 0.0
          %1813 = vadd.xlane.f32.xlu0 %v1812
          %v1814 = vpop.xlane.xlu0 %1813
          %v1815 = vsel %vm1247, %v1806, 0.0
          %1816 = vadd.xlane.f32.xlu0 %v1815
          %v1817 = vpop.xlane.xlu0 %1816
          %v1818 = vadd.f32 %v1810, %v1814
          %v1819 = vadd.f32 %v1811, %v1817
          %1820 = vst.msk [vmem:[%s1807] sm:$0xff] %vm1290, %v1818
          %1821 = vst.msk [vmem:[%s1807 + $0x8] sm:$0xff] %vm1290, %v1819
          %v1822 = vld [vmem:[#allocation4] sm:$0xff]
          %v1823 = vld [vmem:[#allocation4 + $0x8] sm:$0xff]
          %1825 = vset.pattern.permute.xlu0 0
          %1826 = vperm.xlu0 %1825, %v1788
          %v1827 = vpop.permute.xlu0 %1826
          %1830 = vset.pattern.permute.xlu0 0
          %1831 = vperm.xlu0 %1830, %v1790
          %v1832 = vpop.permute.xlu0 %1831
          %v1834 = vmul.f32 %v1827, %v1822
          %v1835 = vmul.f32 %v1832, %v1823
          %v1836 = vpack.c.bf16 %v1806, %v1804
          %1837 = vrot.lane.b32.xlu0 %v1312, 32
          %v1838 = vpop.permute.xlu0 %1837
          %v1841 = vsel %vm1247, %v1836, 0
          %1843 = vmatprep.subr.bf16.mxu0 0
          %1844 = vmatpush1.bf16.msra.mxu0 0
          %1845 = vmatprep.subr.bf16.mxu0 0
          %1846 = vmatpush1.bf16.msra.mxu0 0
          %1847 = vmatprep.subr.bf16.mxu0 0
          %1848 = vmatpush1.bf16.msra.mxu0 0
          %1849 = vmatprep.subr.bf16.mxu0 0
          %1850 = vmatpush1.bf16.msra.mxu0 0
          %1851 = vmatprep.subr.bf16.mxu0 0
          %1852 = vmatpush1.bf16.msra.mxu0 0
          %1853 = vmatprep.subr.bf16.mxu0 0
          %1854 = vmatpush1.bf16.msra.mxu0 0
          %1855 = vmatprep.subr.bf16.mxu0 0
          %1856 = vmatpush1.bf16.msra.mxu0 0
          %1857 = vmatprep.subr.bf16.mxu0 0
          %1858 = vmatpush1.bf16.msra.mxu0 %v1838
          %1859 = vmatprep.subr.bf16.mxu0 0
          %1860 = vmatpush2.bf16.msra.mxu0 0
          %1861 = vmatprep.subr.bf16.mxu0 0
          %1862 = vmatpush2.bf16.msra.mxu0 0
          %1863 = vmatprep.subr.bf16.mxu0 0
          %1864 = vmatpush2.bf16.msra.mxu0 0
          %1865 = vmatprep.subr.bf16.mxu0 0
          %1866 = vmatpush2.bf16.msra.mxu0 0
          %1867 = vmatprep.subr.bf16.mxu0 0
          %1868 = vmatpush2.bf16.msra.mxu0 0
          %1869 = vmatprep.subr.bf16.mxu0 0
          %1870 = vmatpush2.bf16.msra.mxu0 0
          %1871 = vmatprep.subr.bf16.mxu0 0
          %1872 = vmatpush2.bf16.msra.mxu0 0
          %1873 = vmatprep.subr.bf16.mxu0 0
          %1874 = vmatpush2.bf16.msra.mxu0 0
          %1875 = vmatprep.mubr.bf16.mxu0 0
          %1876 = vmatmul.mubr.bf16.gmra.mxu0 %v1841
          %v1877 = vpop.f32.mrf.mxu0
          %v1878 = vadd.f32 0.0, %v1877
          %v1879 = vpop.f32.mrf.mxu0
          %v1880 = vpop.f32.mrf.mxu0
          %v1881 = vadd.f32 0.0, %v1880
          %v1882 = vpop.f32.mrf.mxu0
          %1883 = vdwg.mxu0
          %1886 = vrot.lane.b32.xlu0 %v1878, 96
          %v1887 = vpop.permute.xlu0 %1886
          %1888 = vrot.lane.b32.xlu0 %v1881, 96
          %v1889 = vpop.permute.xlu0 %1888
          %v1892 = vadd.f32 %v1834, %v1887
          %v1893 = vadd.f32 %v1835, %v1889
          %vm1894 = vcmask 1048320
          %1895 = vst.msk [vmem:[#allocation4] sm:$0xff] %vm1894, %v1892
          %1896 = vst.msk [vmem:[#allocation4 + $0x8] sm:$0xff] %vm1894, %v1893
          %1897 = vst.msk [vmem:[%s1774] sm:$0xff] %vm1290, %v1783
          %1898 = vst.msk [vmem:[%s1774 + $0x8] sm:$0xff] %vm1290, %v1784
        $region167: #{_lambda_.12} parent=142 // pred_fallthru
          _
        // Predicated region
        $region168: #{_lambda_.12} parent=142 // pred_check
          %p1899 = pneg %p422
        $region169: #{_lambda_.12} parent=142 // pred_check_branch
          %1901 = sbr.rel (%p1899) target = $region171
        $region170: #{_lambda_.12} parent=142 // pred_region
          %v1902 = vld [vmem:[#allocation3] sm:$0xff]
          %v1903 = vld [vmem:[#allocation3 + $0x8] sm:$0xff]
          %v1904 = vrcp.pop %v1902
          %v1905 = vrcp.pop %v1903
          %v1906 = vld [vmem:[#allocation4] sm:$0xff]
          %v1907 = vld [vmem:[#allocation4 + $0x8] sm:$0xff]
          %1909 = vset.pattern.permute.xlu0 0
          %1910 = vperm.xlu0 %1909, %v1904
          %v1911 = vpop.permute.xlu0 %1910
          %1914 = vset.pattern.permute.xlu0 0
          %1915 = vperm.xlu0 %1914, %v1905
          %v1916 = vpop.permute.xlu0 %1915
          %v1918 = vmul.f32 %v1906, %v1911
          %v1919 = vmul.f32 %v1907, %v1916
          %vm1920 = vcmask 261120
          %1921 = vst.msk [vmem:[#allocation4] sm:$0xff] %vm1920, %v1918
          %1922 = vst.msk [vmem:[#allocation4 + $0x8] sm:$0xff] %vm1920, %v1919
          %s1923 = scalar_lea.vmem [#allocation3], 16
          %v1924 = vld [vmem:[%s1923] sm:$0xff]
          %v1925 = vld [vmem:[%s1923 + $0x8] sm:$0xff]
          %v1926 = vrcp.pop %v1924
          %v1927 = vrcp.pop %v1925
          %v1928 = vld [vmem:[#allocation4] sm:$0xff]
          %v1929 = vld [vmem:[#allocation4 + $0x8] sm:$0xff]
          %1931 = vset.pattern.permute.xlu0 0
          %1932 = vperm.xlu0 %1931, %v1926
          %v1933 = vpop.permute.xlu0 %1932
          %1936 = vset.pattern.permute.xlu0 0
          %1937 = vperm.xlu0 %1936, %v1927
          %v1938 = vpop.permute.xlu0 %1937
          %v1940 = vmul.f32 %v1928, %v1933
          %v1941 = vmul.f32 %v1929, %v1938
          %vm1942 = vcmask 523520
          %1943 = vst.msk [vmem:[#allocation4] sm:$0xff] %vm1942, %v1940
          %1944 = vst.msk [vmem:[#allocation4 + $0x8] sm:$0xff] %vm1942, %v1941
          %s1945 = scalar_lea.vmem [#allocation3], 32
          %v1946 = vld [vmem:[%s1945] sm:$0xff]
          %v1947 = vld [vmem:[%s1945 + $0x8] sm:$0xff]
          %v1948 = vrcp.pop %v1946
          %v1949 = vrcp.pop %v1947
          %v1950 = vld [vmem:[#allocation4] sm:$0xff]
          %v1951 = vld [vmem:[#allocation4 + $0x8] sm:$0xff]
          %1953 = vset.pattern.permute.xlu0 0
          %1954 = vperm.xlu0 %1953, %v1948
          %v1955 = vpop.permute.xlu0 %1954
          %1958 = vset.pattern.permute.xlu0 0
          %1959 = vperm.xlu0 %1958, %v1949
          %v1960 = vpop.permute.xlu0 %1959
          %v1962 = vmul.f32 %v1950, %v1955
          %v1963 = vmul.f32 %v1951, %v1960
          %vm1964 = vcmask 785920
          %1965 = vst.msk [vmem:[#allocation4] sm:$0xff] %vm1964, %v1962
          %1966 = vst.msk [vmem:[#allocation4 + $0x8] sm:$0xff] %vm1964, %v1963
          %s1967 = scalar_lea.vmem [#allocation3], 48
          %v1968 = vld [vmem:[%s1967] sm:$0xff]
          %v1969 = vld [vmem:[%s1967 + $0x8] sm:$0xff]
          %v1970 = vrcp.pop %v1968
          %v1971 = vrcp.pop %v1969
          %v1972 = vld [vmem:[#allocation4] sm:$0xff]
          %v1973 = vld [vmem:[#allocation4 + $0x8] sm:$0xff]
          %1975 = vset.pattern.permute.xlu0 0
          %1976 = vperm.xlu0 %1975, %v1970
          %v1977 = vpop.permute.xlu0 %1976
          %1980 = vset.pattern.permute.xlu0 0
          %1981 = vperm.xlu0 %1980, %v1971
          %v1982 = vpop.permute.xlu0 %1981
          %v1984 = vmul.f32 %v1972, %v1977
          %v1985 = vmul.f32 %v1973, %v1982
          %vm1986 = vcmask 1048320
          %1987 = vst.msk [vmem:[#allocation4] sm:$0xff] %vm1986, %v1984
          %1988 = vst.msk [vmem:[#allocation4 + $0x8] sm:$0xff] %vm1986, %v1985
          %v1989 = vld [vmem:[#allocation4] sm:$0xff]
          %v1990 = vld [vmem:[#allocation4 + $0x8] sm:$0xff]
          %v1991 = vpack.c.bf16 %v1990, %v1989
          %v1993 = vunpack.c.l.b16 %v1991
          %v1994 = vunpack.c.h.b16 %v1991
          %v1995 = vpack.c.b16 %v1993, %v1993
          %v1996 = vpack.c.b16 %v1994, %v1994
          %1999 = vst [vmem:[%s419] sm:$0xf] %v1995
          %2000 = vst [vmem:[%s419 + $0x4] sm:$0xf] %v1996
        $region171: #{_lambda_.12} parent=142 // pred_fallthru
          _
        %s2001 = smul.u32 2, %s20
        %p2002 = scmp.lt.s32.totalorder %s19, 1
        %s2003 = scalar_select %p2002, %s19, 1
        %p2004 = scmp.lt.s32.totalorder %s2001, 1
        %s2005 = scalar_select %p2004, %s2001, 1
        %s2006 = smul.addr %s2003, 2
        %s2007 = sadd.s32 %s2005, %s2006
        %s2008 = smul.addr %s2007, 4
        %s2009 = scalar_lea.vmem %s3, %s2008
        // Predicated region
        $region172: #{_lambda_.12} parent=142 // pred_check
          %p2010 = pneg %p145
        $region173: #{_lambda_.12} parent=142 // pred_check_branch
          %2012 = sbr.rel (%p2010) target = $region175
        $region174: #{_lambda_.12} parent=142 // pred_region
          %s2013 = smul.u32 2, %s20
        $region175: #{_lambda_.12} parent=142 // pred_fallthru
          _
      $region143: #{_lambda_.12} parent=5 // pred_fallthru
        _
      %p2014 = scmp.le.s32.totalorder 2, %s9
      // Predicated region
      $region176: #{_lambda_.12} parent=5 // pred_check
        %p2015 = pneg %p2014
      $region177: #{_lambda_.12} parent=5 // pred_check_branch
        %2017 = sbr.rel (%p2015) target = $region179
      $region178: #{_lambda_.12} parent=5 // pred_region
        %s2018 = ssub.s32 %s9, 2
        // Predicated region
        $region180: #{_lambda_.12} parent=178 // pred_check
          %p2019 = pneg %p151
        $region181: #{_lambda_.12} parent=178 // pred_check_branch
          %2021 = sbr.rel (%p2019) target = $region183
        $region182: #{_lambda_.12} parent=178 // pred_region
          %s2022 = smul.u32 2, %s23
          %p2023 = scmp.lt.s32.totalorder %s22, 1
          %s2024 = scalar_select %p2023, %s22, 1
          %p2025 = scmp.lt.s32.totalorder %s2022, 1
          %s2026 = scalar_select %p2025, %s2022, 1
          %s2027 = smul.addr %s2024, 2
          %s2028 = sadd.s32 %s2026, %s2027
          %s2029 = smul.addr %s2028, 4
          %s2030 = scalar_lea.vmem %s3, %s2029
        $region183: #{_lambda_.12} parent=178 // pred_fallthru
          _
      $region179: #{_lambda_.12} parent=5 // pred_fallthru
        _
    $region6: #{_lambda_.12} parent=1 // loop_footer
      %s13 = sadd.s32 1, %s9
    $region7: #{_lambda_.12} parent=1 // loop_footer_branch
      %8 = sbr.rel target = $region3
    $region8: #{_lambda_.12} parent=1 // loop_exit
      _

// kernel: _lambda_.21
$region0: #{_lambda_.21}
  #allocation0 [shape = 'u32[]', space=smem, size = 0x4, offset = 0x4, fixed_abs, tag = 'smem constant byte address 0x4 - core index']
  #allocation1 [shape = 'u32[144,128]{1,0:T(1,128)}', space=vmem, size = 0x12000, scoped, tag = 'internal scratch']
  #allocation2 [shape = 'f32[30,256]{1,0:T(8,128)}', space=vmem, size = 0x8000, scoped, tag = 'scratch operand']
  #allocation3 [shape = 'f32[30,1]{1,0:T(8,128)}', space=vmem, size = 0x4000, scoped, tag = 'scratch operand']
  #allocation4 [shape = 'f32[30,1]{1,0:T(8,128)}', space=vmem, size = 0x4000, scoped, tag = 'scratch operand']
  #allocation5 [shape = 'f32[30,1]{1,0:T(8,128)}', space=vmem, size = 0x4000, scoped, tag = 'scratch operand']
  %s0 = inlined_call_operand.vmem [shape: bf16[30,128], index: 0, kind: input, shape index: {}]
  %s1 = inlined_call_operand.vmem [shape: bf16[256,128], index: 1, kind: input, shape index: {}]
  %s2 = inlined_call_operand.vmem [shape: bf16[1,128], index: 2, kind: input, shape index: {}]
  %s3 = inlined_call_operand.vmem [shape: bf16[1,128], index: 3, kind: input, shape index: {}]
  %s4 = inlined_call_operand.vmem [shape: s32[30,1], index: 4, kind: input, shape index: {}]
  %s5 = inlined_call_operand.vmem [shape: bf16[30,256], index: 5, kind: output, shape index: {0}]
  %s6 = inlined_call_operand.vmem [shape: f32[30,1], index: 6, kind: output, shape index: {1}]
  %7 = xla_tuple %s5, %s6
  %s8 = sld [smem:[#allocation0]]
  $region54: #{_lambda_.21} parent=0
    _
  %s10 = ssub.s32 1, %s8
  %s11 = scalar_select 0, %s10, %s8
  // Predicated region
  $region2: #{_lambda_.21} parent=0 // pred_check
    _
  $region3: #{_lambda_.21} parent=0 // pred_check_branch
    %13 = sbr.rel (0) target = $region5
  $region4: #{_lambda_.21} parent=0 // pred_region
    _
  $region5: #{_lambda_.21} parent=0 // pred_fallthru
    _
  // Predicated region
  $region6: #{_lambda_.21} parent=0 // pred_check
    _
  $region7: #{_lambda_.21} parent=0 // pred_check_branch
    %15 = sbr.rel (0) target = $region9
  $region8: #{_lambda_.21} parent=0 // pred_region
    _
  $region9: #{_lambda_.21} parent=0 // pred_fallthru
    _
  // Predicated region
  $region10: #{_lambda_.21} parent=0 // pred_check
    _
  $region11: #{_lambda_.21} parent=0 // pred_check_branch
    %17 = sbr.rel (0) target = $region13
  $region12: #{_lambda_.21} parent=0 // pred_region
    _
  $region13: #{_lambda_.21} parent=0 // pred_fallthru
    _
  // Predicated region
  $region14: #{_lambda_.21} parent=0 // pred_check
    _
  $region15: #{_lambda_.21} parent=0 // pred_check_branch
    %19 = sbr.rel (0) target = $region17
  $region16: #{_lambda_.21} parent=0 // pred_region
    _
  $region17: #{_lambda_.21} parent=0 // pred_fallthru
    _
  // Predicated region
  $region18: #{_lambda_.21} parent=0 // pred_check
    _
  $region19: #{_lambda_.21} parent=0 // pred_check_branch
    %21 = sbr.rel (0) target = $region21
  $region20: #{_lambda_.21} parent=0 // pred_region
    _
  $region21: #{_lambda_.21} parent=0 // pred_fallthru
    _
  %p23 = scmp.eq.s32.totalorder 0, 0
  // Predicated region
  $region22: #{_lambda_.21} parent=0 // pred_check
    %p24 = pneg %p23
  $region23: #{_lambda_.21} parent=0 // pred_check_branch
    %26 = sbr.rel (%p24) target = $region25
  $region24: #{_lambda_.21} parent=0 // pred_region
    %27 = vst [vmem:[#allocation2] sm:$0xff] 0.0
    %28 = vst [vmem:[#allocation2 + $0x8] sm:$0xff] 0.0
    %29 = vst [vmem:[#allocation2 + $0x10] sm:$0xff] 0.0
    %30 = vst [vmem:[#allocation2 + $0x18] sm:$0xff] 0.0
    %31 = vst [vmem:[#allocation2 + $0x20] sm:$0xff] 0.0
    %32 = vst [vmem:[#allocation2 + $0x28] sm:$0xff] 0.0
    %33 = vst [vmem:[#allocation2 + $0x30] sm:$0x3f] 0.0
    %34 = vst [vmem:[#allocation2 + $0x38] sm:$0x3f] 0.0
  $region25: #{_lambda_.21} parent=0 // pred_fallthru
    _
  %v35 = vld [vmem:[%s0] sm:$0xf]
  %v36 = vld [vmem:[%s0 + $0x4] sm:$0xf]
  %v37 = vld [vmem:[%s0 + $0x8] sm:$0xf]
  %v38 = vld [vmem:[%s0 + $0xc] sm:$0x7]
  %v39 = vunpack.c.l.bf16 %v35
  %v40 = vunpack.c.l.bf16 %v36
  %v41 = vunpack.c.l.bf16 %v37
  %v42 = vunpack.c.l.bf16 %v38
  %43 = vadd.xlane.f32.xlu0 %v39
  %v44 = vpop.xlane.xlu0 %43
  %45 = vadd.xlane.f32.xlu0 %v40
  %v46 = vpop.xlane.xlu0 %45
  %47 = vadd.xlane.f32.xlu0 %v41
  %v48 = vpop.xlane.xlu0 %47
  %vm49 = vcmask 1045504
  %v50 = vsel %vm49, %v42, 0.0
  %51 = vadd.xlane.f32.xlu0 %v50
  %v52 = vpop.xlane.xlu0 %51
  %v53 = vrcp.pop 128.0
  %v54 = vmul.f32 %v44, %v53
  %v55 = vmul.f32 %v46, %v53
  %v56 = vmul.f32 %v48, %v53
  %v57 = vmul.f32 %v52, %v53
  %v58 = vsub.f32 %v39, %v54
  %v59 = vsub.f32 %v40, %v55
  %v60 = vsub.f32 %v41, %v56
  %v61 = vsub.f32 %v42, %v57
  %v62 = vmul.f32 %v58, %v58
  %v63 = vmul.f32 %v59, %v59
  %v64 = vmul.f32 %v60, %v60
  %v65 = vmul.f32 %v61, %v61
  %66 = vadd.xlane.f32.xlu0 %v62
  %v67 = vpop.xlane.xlu0 %66
  %68 = vadd.xlane.f32.xlu0 %v63
  %v69 = vpop.xlane.xlu0 %68
  %70 = vadd.xlane.f32.xlu0 %v64
  %v71 = vpop.xlane.xlu0 %70
  %v72 = vsel %vm49, %v65, 0.0
  %73 = vadd.xlane.f32.xlu0 %v72
  %v74 = vpop.xlane.xlu0 %73
  %v75 = vmul.f32 %v67, %v53
  %v76 = vmul.f32 %v69, %v53
  %v77 = vmul.f32 %v71, %v53
  %v78 = vmul.f32 %v74, %v53
  %v79 = vadd.f32 %v75, 1e-05
  %v80 = vadd.f32 %v76, 1e-05
  %v81 = vadd.f32 %v77, 1e-05
  %v82 = vadd.f32 %v78, 1e-05
  %v83 = vrsqrt.pop %v79
  %v84 = vrsqrt.pop %v80
  %v85 = vrsqrt.pop %v81
  %v86 = vrsqrt.pop %v82
  %v87 = vmul.f32 %v58, %v83
  %v88 = vmul.f32 %v59, %v84
  %v89 = vmul.f32 %v60, %v85
  %v90 = vmul.f32 %v61, %v86
  %v91 = vld [vmem:[%s2] sm:$0x1]
  %v92 = vunpack.c.l.bf16 %v91
  %v93 = vlaneseq
  %v94 = vshrl.u32 %v93, 7
  %v95 = vsub.s32 0, %v94
  %v96 = vrot.slane %v92, %v95
  %v97 = vmul.f32 %v87, %v96
  %v98 = vmul.f32 %v88, %v96
  %v99 = vmul.f32 %v89, %v96
  %v100 = vmul.f32 %v90, %v96
  %v101 = vld [vmem:[%s3] sm:$0x1]
  %v102 = vunpack.c.l.bf16 %v101
  %v103 = vlaneseq
  %v104 = vshrl.u32 %v103, 7
  %v105 = vsub.s32 0, %v104
  %v106 = vrot.slane %v102, %v105
  %v107 = vadd.f32 %v97, %v106
  %v108 = vadd.f32 %v98, %v106
  %v109 = vadd.f32 %v99, %v106
  %v110 = vadd.f32 %v100, %v106
  %v111 = vpack.c.bf16 %v108, %v107
  %v112 = vpack.c.bf16 %v110, %v109
  %v113 = vld [vmem:[#allocation2] sm:$0xff]
  %v114 = vld [vmem:[#allocation2 + $0x8] sm:$0xff]
  %v115 = vld [vmem:[#allocation2 + $0x10] sm:$0xff]
  %v116 = vld [vmem:[#allocation2 + $0x18] sm:$0xff]
  %v117 = vld [vmem:[#allocation2 + $0x20] sm:$0xff]
  %v118 = vld [vmem:[#allocation2 + $0x28] sm:$0xff]
  %v119 = vld [vmem:[#allocation2 + $0x30] sm:$0x3f]
  %v120 = vld [vmem:[#allocation2 + $0x38] sm:$0x3f]
  %v121 = vld [vmem:[%s1] sm:$0xf]
  %v122 = vld [vmem:[%s1 + $0x4] sm:$0xf]
  %v123 = vld [vmem:[%s1 + $0x8] sm:$0xf]
  %v124 = vld [vmem:[%s1 + $0xc] sm:$0xf]
  %v125 = vld [vmem:[%s1 + $0x10] sm:$0xf]
  %v126 = vld [vmem:[%s1 + $0x14] sm:$0xf]
  %v127 = vld [vmem:[%s1 + $0x18] sm:$0xf]
  %v128 = vld [vmem:[%s1 + $0x1c] sm:$0xf]
  %v129 = vld [vmem:[%s1 + $0x20] sm:$0xf]
  %v130 = vld [vmem:[%s1 + $0x24] sm:$0xf]
  %v131 = vld [vmem:[%s1 + $0x28] sm:$0xf]
  %v132 = vld [vmem:[%s1 + $0x2c] sm:$0xf]
  %v133 = vld [vmem:[%s1 + $0x30] sm:$0xf]
  %v134 = vld [vmem:[%s1 + $0x34] sm:$0xf]
  %v135 = vld [vmem:[%s1 + $0x38] sm:$0xf]
  %v136 = vld [vmem:[%s1 + $0x3c] sm:$0xf]
  %v137 = vld [vmem:[%s1 + $0x40] sm:$0xf]
  %v138 = vld [vmem:[%s1 + $0x44] sm:$0xf]
  %v139 = vld [vmem:[%s1 + $0x48] sm:$0xf]
  %v140 = vld [vmem:[%s1 + $0x4c] sm:$0xf]
  %v141 = vld [vmem:[%s1 + $0x50] sm:$0xf]
  %v142 = vld [vmem:[%s1 + $0x54] sm:$0xf]
  %v143 = vld [vmem:[%s1 + $0x58] sm:$0xf]
  %v144 = vld [vmem:[%s1 + $0x5c] sm:$0xf]
  %v145 = vld [vmem:[%s1 + $0x60] sm:$0xf]
  %v146 = vld [vmem:[%s1 + $0x64] sm:$0xf]
  %v147 = vld [vmem:[%s1 + $0x68] sm:$0xf]
  %v148 = vld [vmem:[%s1 + $0x6c] sm:$0xf]
  %v149 = vld [vmem:[%s1 + $0x70] sm:$0xf]
  %v150 = vld [vmem:[%s1 + $0x74] sm:$0xf]
  %v151 = vld [vmem:[%s1 + $0x78] sm:$0xf]
  %v152 = vld [vmem:[%s1 + $0x7c] sm:$0xf]
  %v185 = vunpack.c.l.b16 %v121
  %v186 = vunpack.c.l.b16 %v122
  %v187 = vunpack.c.l.b16 %v123
  %v188 = vunpack.c.l.b16 %v124
  %v189 = vunpack.c.l.b16 %v125
  %v190 = vunpack.c.l.b16 %v126
  %v191 = vunpack.c.l.b16 %v127
  %v192 = vunpack.c.l.b16 %v128
  %v193 = vunpack.c.l.b16 %v129
  %v194 = vunpack.c.l.b16 %v130
  %v195 = vunpack.c.l.b16 %v131
  %v196 = vunpack.c.l.b16 %v132
  %v197 = vunpack.c.l.b16 %v133
  %v198 = vunpack.c.l.b16 %v134
  %v199 = vunpack.c.l.b16 %v135
  %v200 = vunpack.c.l.b16 %v136
  %v201 = vunpack.c.l.b16 %v137
  %v202 = vunpack.c.l.b16 %v138
  %v203 = vunpack.c.l.b16 %v139
  %v204 = vunpack.c.l.b16 %v140
  %v205 = vunpack.c.l.b16 %v141
  %v206 = vunpack.c.l.b16 %v142
  %v207 = vunpack.c.l.b16 %v143
  %v208 = vunpack.c.l.b16 %v144
  %v209 = vunpack.c.l.b16 %v145
  %v210 = vunpack.c.l.b16 %v146
  %v211 = vunpack.c.l.b16 %v147
  %v212 = vunpack.c.l.b16 %v148
  %v213 = vunpack.c.l.b16 %v149
  %v214 = vunpack.c.l.b16 %v150
  %v215 = vunpack.c.l.b16 %v151
  %v216 = vunpack.c.l.b16 %v152
  %v217 = vpack.c.b16 %v186, %v185
  %v218 = vpack.c.b16 %v188, %v187
  %v219 = vpack.c.b16 %v190, %v189
  %v220 = vpack.c.b16 %v192, %v191
  %v221 = vpack.c.b16 %v194, %v193
  %v222 = vpack.c.b16 %v196, %v195
  %v223 = vpack.c.b16 %v198, %v197
  %v224 = vpack.c.b16 %v200, %v199
  %v225 = vpack.c.b16 %v202, %v201
  %v226 = vpack.c.b16 %v204, %v203
  %v227 = vpack.c.b16 %v206, %v205
  %v228 = vpack.c.b16 %v208, %v207
  %v229 = vpack.c.b16 %v210, %v209
  %v230 = vpack.c.b16 %v212, %v211
  %v231 = vpack.c.b16 %v214, %v213
  %v232 = vpack.c.b16 %v216, %v215
  %249 = vmatprep.subr.bf16.mxu0 0
  %250 = vmatpush1.bf16.xpose.msra.mxu0 %v224
  %251 = vmatprep.subr.bf16.mxu0 0
  %252 = vmatpush1.bf16.xpose.msra.mxu0 %v223
  %253 = vmatprep.subr.bf16.mxu0 0
  %254 = vmatpush1.bf16.xpose.msra.mxu0 %v222
  %255 = vmatprep.subr.bf16.mxu0 0
  %256 = vmatpush1.bf16.xpose.msra.mxu0 %v221
  %257 = vmatprep.subr.bf16.mxu0 0
  %258 = vmatpush1.bf16.xpose.msra.mxu0 %v220
  %259 = vmatprep.subr.bf16.mxu0 0
  %260 = vmatpush1.bf16.xpose.msra.mxu0 %v219
  %261 = vmatprep.subr.bf16.mxu0 0
  %262 = vmatpush1.bf16.xpose.msra.mxu0 %v218
  %263 = vmatprep.subr.bf16.mxu0 0
  %264 = vmatpush1.bf16.xpose.msra.mxu0 %v217
  %265 = vmatprep.subr.bf16.mxu0 0
  %266 = vmatpush2.bf16.xpose.msra.mxu0 %v232
  %267 = vmatprep.subr.bf16.mxu0 0
  %268 = vmatpush2.bf16.xpose.msra.mxu0 %v231
  %269 = vmatprep.subr.bf16.mxu0 0
  %270 = vmatpush2.bf16.xpose.msra.mxu0 %v230
  %271 = vmatprep.subr.bf16.mxu0 0
  %272 = vmatpush2.bf16.xpose.msra.mxu0 %v229
  %273 = vmatprep.subr.bf16.mxu0 0
  %274 = vmatpush2.bf16.xpose.msra.mxu0 %v228
  %275 = vmatprep.subr.bf16.mxu0 0
  %276 = vmatpush2.bf16.xpose.msra.mxu0 %v227
  %277 = vmatprep.subr.bf16.mxu0 0
  %278 = vmatpush2.bf16.xpose.msra.mxu0 %v226
  %279 = vmatprep.subr.bf16.mxu0 0
  %280 = vmatpush2.bf16.xpose.msra.mxu0 %v225
  %281 = vmatprep.mubr.bf16.mxu0 0
  %282 = vmatmul.mubr.bf16.gmra.mxu0 %v111
  %v283 = vpop.f32.mrf.mxu0
  %v284 = vadd.f32 0.0, %v283
  %v285 = vpop.f32.mrf.mxu0
  %v286 = vadd.f32 0.0, %v285
  %v287 = vpop.f32.mrf.mxu0
  %v288 = vadd.f32 0.0, %v287
  %v289 = vpop.f32.mrf.mxu0
  %v290 = vadd.f32 0.0, %v289
  %291 = vmatprep.mubr.bf16.mxu0 0
  %292 = vmatmul.mubr.bf16.gmra.mxu0 %v112
  %v293 = vpop.f32.mrf.mxu0
  %v294 = vadd.f32 0.0, %v293
  %v295 = vpop.f32.mrf.mxu0
  %v296 = vadd.f32 0.0, %v295
  %v297 = vpop.f32.mrf.mxu0
  %v298 = vadd.f32 0.0, %v297
  %v299 = vpop.f32.mrf.mxu0
  %v300 = vadd.f32 0.0, %v299
  %301 = vdwg.mxu0
  %v302 = vadd.f32 %v113, %v284
  %v303 = vadd.f32 %v114, %v286
  %v304 = vadd.f32 %v115, %v288
  %v305 = vadd.f32 %v116, %v290
  %v306 = vadd.f32 %v117, %v294
  %v307 = vadd.f32 %v118, %v296
  %v308 = vadd.f32 %v119, %v298
  %v309 = vadd.f32 %v120, %v300
  %310 = vst [vmem:[#allocation2] sm:$0xff] %v302
  %311 = vst [vmem:[#allocation2 + $0x8] sm:$0xff] %v303
  %312 = vst [vmem:[#allocation2 + $0x10] sm:$0xff] %v304
  %313 = vst [vmem:[#allocation2 + $0x18] sm:$0xff] %v305
  %314 = vst [vmem:[#allocation2 + $0x20] sm:$0xff] %v306
  %315 = vst [vmem:[#allocation2 + $0x28] sm:$0xff] %v307
  %316 = vst [vmem:[#allocation2 + $0x30] sm:$0x3f] %v308
  %317 = vst [vmem:[#allocation2 + $0x38] sm:$0x3f] %v309
  // Predicated region
  $region26: #{_lambda_.21} parent=0 // pred_check
    %p318 = pneg %p23
  $region27: #{_lambda_.21} parent=0 // pred_check_branch
    %320 = sbr.rel (%p318) target = $region29
  $region28: #{_lambda_.21} parent=0 // pred_region
    %v321 = vld [vmem:[#allocation2] sm:$0xff]
    %v322 = vld [vmem:[#allocation2 + $0x8] sm:$0xff]
    %v323 = vld [vmem:[#allocation2 + $0x10] sm:$0xff]
    %v324 = vld [vmem:[#allocation2 + $0x18] sm:$0xff]
    %v325 = vld [vmem:[#allocation2 + $0x20] sm:$0xff]
    %v326 = vld [vmem:[#allocation2 + $0x28] sm:$0xff]
    %v327 = vld [vmem:[#allocation2 + $0x30] sm:$0x3f]
    %v328 = vld [vmem:[#allocation2 + $0x38] sm:$0x3f]
    %v329 = vpack.c.bf16 %v323, %v321
    %v330 = vpack.c.bf16 %v324, %v322
    %v331 = vpack.c.bf16 %v327, %v325
    %v332 = vpack.c.bf16 %v328, %v326
    %v337 = vunpack.c.l.b16 %v329
    %v338 = vunpack.c.l.b16 %v330
    %v339 = vunpack.c.h.b16 %v329
    %v340 = vunpack.c.h.b16 %v330
    %v341 = vunpack.c.l.b16 %v331
    %v342 = vunpack.c.l.b16 %v332
    %v343 = vunpack.c.h.b16 %v331
    %v344 = vunpack.c.h.b16 %v332
    %v345 = vpack.c.b16 %v338, %v337
    %v346 = vpack.c.b16 %v340, %v339
    %v347 = vpack.c.b16 %v342, %v341
    %v348 = vpack.c.b16 %v344, %v343
    %353 = vst [vmem:[%s5] sm:$0xff] %v345
    %354 = vst [vmem:[%s5 + $0x8] sm:$0xff] %v346
    %355 = vst [vmem:[%s5 + $0x10] sm:$0xff] %v347
    %356 = vst [vmem:[%s5 + $0x18] sm:$0x77] %v348
    %p357 = scmp.eq.s32.totalorder 0, 0
    // Predicated region
    $region30: #{_lambda_.21} parent=28 // pred_check
      %p358 = pneg %p357
    $region31: #{_lambda_.21} parent=28 // pred_check_branch
      %360 = sbr.rel (%p358) target = $region33
    $region32: #{_lambda_.21} parent=28 // pred_region
      %vm361 = vcmask 7168
      %362 = vst.msk [vmem:[#allocation3] sm:$0xff] %vm361, -1e+30
      %363 = vst.msk [vmem:[#allocation3 + $0x8] sm:$0xff] %vm361, -1e+30
      %364 = vst.msk [vmem:[#allocation3 + $0x10] sm:$0xff] %vm361, -1e+30
      %vm365 = vcmask 5120
      %366 = vst.msk [vmem:[#allocation3 + $0x18] sm:$0x3f] %vm365, -1e+30
      %367 = vst.msk [vmem:[#allocation4] sm:$0xff] %vm361, 0.0
      %368 = vst.msk [vmem:[#allocation4 + $0x8] sm:$0xff] %vm361, 0.0
      %369 = vst.msk [vmem:[#allocation4 + $0x10] sm:$0xff] %vm361, 0.0
      %370 = vst.msk [vmem:[#allocation4 + $0x18] sm:$0x3f] %vm365, 0.0
      %371 = vst.msk [vmem:[#allocation5] sm:$0xff] %vm361, 0.0
      %372 = vst.msk [vmem:[#allocation5 + $0x8] sm:$0xff] %vm361, 0.0
      %373 = vst.msk [vmem:[#allocation5 + $0x10] sm:$0xff] %vm361, 0.0
      %374 = vst.msk [vmem:[#allocation5 + $0x18] sm:$0x3f] %vm365, 0.0
    $region33: #{_lambda_.21} parent=28 // pred_fallthru
      _
    %s375 = smul.u32 0, 256
    %v376 = vlaneseq
    %v377 = vand.u32 %v376, 127
    %v378 = vadd.s32 %v377, 128
    %v379 = vstv %s375
    %v380 = vadd.s32 %v379, %v377
    %v381 = vadd.s32 %v379, %v378
    %vm382 = vcmp.lt.s32.totalorder %v380, 256
    %vm383 = vcmp.lt.s32.totalorder %v381, 256
    %v384 = vsel %vm382, %v321, -1e+30
    %v385 = vsel %vm383, %v322, -1e+30
    %v386 = vsel %vm382, %v323, -1e+30
    %v387 = vsel %vm383, %v324, -1e+30
    %v388 = vsel %vm382, %v325, -1e+30
    %v389 = vsel %vm383, %v326, -1e+30
    %v390 = vsel %vm382, %v327, -1e+30
    %v391 = vsel %vm383, %v328, -1e+30
    %v392 = vld [vmem:[#allocation3] sm:$0xff]
    %v393 = vld [vmem:[#allocation3 + $0x8] sm:$0xff]
    %v394 = vld [vmem:[#allocation3 + $0x10] sm:$0xff]
    %v395 = vld [vmem:[#allocation3 + $0x18] sm:$0x3f]
    %v396 = vmax.f32 %v384, %v385
    %397 = vmax.xlane.f32.xlu0 %v396
    %v398 = vpop.xlane.xlu0 %397
    %v399 = vmax.f32 %v386, %v387
    %400 = vmax.xlane.f32.xlu0 %v399
    %v401 = vpop.xlane.xlu0 %400
    %v402 = vmax.f32 %v388, %v389
    %403 = vmax.xlane.f32.xlu0 %v402
    %v404 = vpop.xlane.xlu0 %403
    %v405 = vsel %vm49, %v390, -inf
    %v406 = vsel %vm49, %v391, -inf
    %v407 = vmax.f32 %v405, %v406
    %408 = vmax.xlane.f32.xlu0 %v407
    %v409 = vpop.xlane.xlu0 %408
    %v410 = vmax.f32 %v392, %v398
    %v411 = vmax.f32 %v393, %v401
    %v412 = vmax.f32 %v394, %v404
    %v413 = vmax.f32 %v395, %v409
    %v414 = vsub.f32 %v392, %v410
    %v415 = vsub.f32 %v393, %v411
    %v416 = vsub.f32 %v394, %v412
    %v417 = vsub.f32 %v395, %v413
    %v418 = vmul.f32 %v414, 1.442695
    %v419 = vpow.pop %v418
    %v420 = vmul.f32 %v415, 1.442695
    %v421 = vpow.pop %v420
    %v422 = vmul.f32 %v416, 1.442695
    %v423 = vpow.pop %v422
    %v424 = vmul.f32 %v417, 1.442695
    %v425 = vpow.pop %v424
    %v426 = vld [vmem:[#allocation4] sm:$0xff]
    %v427 = vld [vmem:[#allocation4 + $0x8] sm:$0xff]
    %v428 = vld [vmem:[#allocation4 + $0x10] sm:$0xff]
    %v429 = vld [vmem:[#allocation4 + $0x18] sm:$0x3f]
    %v430 = vmul.f32 %v419, %v426
    %v431 = vmul.f32 %v421, %v427
    %v432 = vmul.f32 %v423, %v428
    %v433 = vmul.f32 %v425, %v429
    %435 = vset.pattern.permute.xlu0 0
    %436 = vperm.xlu0 %435, %v410
    %v437 = vpop.permute.xlu0 %436
    %440 = vset.pattern.permute.xlu0 0
    %441 = vperm.xlu0 %440, %v411
    %v442 = vpop.permute.xlu0 %441
    %445 = vset.pattern.permute.xlu0 0
    %446 = vperm.xlu0 %445, %v412
    %v447 = vpop.permute.xlu0 %446
    %450 = vset.pattern.permute.xlu0 0
    %451 = vperm.xlu0 %450, %v413
    %v452 = vpop.permute.xlu0 %451
    %v454 = vsub.f32 %v384, %v437
    %v455 = vsub.f32 %v385, %v437
    %v456 = vsub.f32 %v386, %v442
    %v457 = vsub.f32 %v387, %v442
    %v458 = vsub.f32 %v388, %v447
    %v459 = vsub.f32 %v389, %v447
    %v460 = vsub.f32 %v390, %v452
    %v461 = vsub.f32 %v391, %v452
    %v462 = vmul.f32 %v454, 1.442695
    %v463 = vpow.pop %v462
    %v464 = vmul.f32 %v455, 1.442695
    %v465 = vpow.pop %v464
    %v466 = vmul.f32 %v456, 1.442695
    %v467 = vpow.pop %v466
    %v468 = vmul.f32 %v457, 1.442695
    %v469 = vpow.pop %v468
    %v470 = vmul.f32 %v458, 1.442695
    %v471 = vpow.pop %v470
    %v472 = vmul.f32 %v459, 1.442695
    %v473 = vpow.pop %v472
    %v474 = vmul.f32 %v460, 1.442695
    %v475 = vpow.pop %v474
    %v476 = vmul.f32 %v461, 1.442695
    %v477 = vpow.pop %v476
    %v478 = vadd.f32 %v463, %v465
    %479 = vadd.xlane.f32.xlu0 %v478
    %v480 = vpop.xlane.xlu0 %479
    %v481 = vadd.f32 %v467, %v469
    %482 = vadd.xlane.f32.xlu0 %v481
    %v483 = vpop.xlane.xlu0 %482
    %v484 = vadd.f32 %v471, %v473
    %485 = vadd.xlane.f32.xlu0 %v484
    %v486 = vpop.xlane.xlu0 %485
    %v487 = vsel %vm49, %v475, 0.0
    %v488 = vsel %vm49, %v477, 0.0
    %v489 = vadd.f32 %v487, %v488
    %490 = vadd.xlane.f32.xlu0 %v489
    %v491 = vpop.xlane.xlu0 %490
    %v492 = vadd.f32 %v430, %v480
    %v493 = vadd.f32 %v431, %v483
    %v494 = vadd.f32 %v432, %v486
    %v495 = vadd.f32 %v433, %v491
    %vm496 = vcmask 7168
    %497 = vst.msk [vmem:[#allocation4] sm:$0xff] %vm496, %v492
    %498 = vst.msk [vmem:[#allocation4 + $0x8] sm:$0xff] %vm496, %v493
    %499 = vst.msk [vmem:[#allocation4 + $0x10] sm:$0xff] %vm496, %v494
    %vm500 = vcmask 5120
    %501 = vst.msk [vmem:[#allocation4 + $0x18] sm:$0x3f] %vm500, %v495
    %502 = vst.msk [vmem:[#allocation3] sm:$0xff] %vm496, %v410
    %503 = vst.msk [vmem:[#allocation3 + $0x8] sm:$0xff] %vm496, %v411
    %504 = vst.msk [vmem:[#allocation3 + $0x10] sm:$0xff] %vm496, %v412
    %505 = vst.msk [vmem:[#allocation3 + $0x18] sm:$0x3f] %vm500, %v413
    %v506 = vld [vmem:[#allocation5] sm:$0xff]
    %v507 = vld [vmem:[#allocation5 + $0x8] sm:$0xff]
    %v508 = vld [vmem:[#allocation5 + $0x10] sm:$0xff]
    %v509 = vld [vmem:[#allocation5 + $0x18] sm:$0x3f]
    %v510 = vld [vmem:[%s4] sm:$0xff]
    %v511 = vld [vmem:[%s4 + $0x8] sm:$0xff]
    %v512 = vld [vmem:[%s4 + $0x10] sm:$0xff]
    %v513 = vld [vmem:[%s4 + $0x18] sm:$0x3f]
    %514 = vset.pattern.permute.xlu0 0
    %515 = vperm.xlu0 %514, %v510
    %v516 = vpop.permute.xlu0 %515
    %517 = vset.pattern.permute.xlu0 0
    %518 = vperm.xlu0 %517, %v511
    %v519 = vpop.permute.xlu0 %518
    %520 = vset.pattern.permute.xlu0 0
    %521 = vperm.xlu0 %520, %v512
    %v522 = vpop.permute.xlu0 %521
    %523 = vset.pattern.permute.xlu0 0
    %524 = vperm.xlu0 %523, %v513
    %v525 = vpop.permute.xlu0 %524
    %vm526 = vcmp.eq.s32.totalorder %v380, %v516
    %vm527 = vcmp.eq.s32.totalorder %v381, %v516
    %vm528 = vcmp.eq.s32.totalorder %v380, %v519
    %vm529 = vcmp.eq.s32.totalorder %v381, %v519
    %vm530 = vcmp.eq.s32.totalorder %v380, %v522
    %vm531 = vcmp.eq.s32.totalorder %v381, %v522
    %vm532 = vcmp.eq.s32.totalorder %v380, %v525
    %vm533 = vcmp.eq.s32.totalorder %v381, %v525
    %v534 = vsel %vm526, %v321, 0.0
    %v535 = vsel %vm527, %v322, 0.0
    %v536 = vsel %vm528, %v323, 0.0
    %v537 = vsel %vm529, %v324, 0.0
    %v538 = vsel %vm530, %v325, 0.0
    %v539 = vsel %vm531, %v326, 0.0
    %v540 = vsel %vm532, %v327, 0.0
    %v541 = vsel %vm533, %v328, 0.0
    %v542 = vadd.f32 %v534, %v535
    %543 = vadd.xlane.f32.xlu0 %v542
    %v544 = vpop.xlane.xlu0 %543
    %v545 = vadd.f32 %v536, %v537
    %546 = vadd.xlane.f32.xlu0 %v545
    %v547 = vpop.xlane.xlu0 %546
    %v548 = vadd.f32 %v538, %v539
    %549 = vadd.xlane.f32.xlu0 %v548
    %v550 = vpop.xlane.xlu0 %549
    %v551 = vsel %vm49, %v540, 0.0
    %v552 = vsel %vm49, %v541, 0.0
    %v553 = vadd.f32 %v551, %v552
    %554 = vadd.xlane.f32.xlu0 %v553
    %v555 = vpop.xlane.xlu0 %554
    %v556 = vadd.f32 %v506, %v544
    %v557 = vadd.f32 %v507, %v547
    %v558 = vadd.f32 %v508, %v550
    %v559 = vadd.f32 %v509, %v555
    %560 = vst.msk [vmem:[#allocation5] sm:$0xff] %vm496, %v556
    %561 = vst.msk [vmem:[#allocation5 + $0x8] sm:$0xff] %vm496, %v557
    %562 = vst.msk [vmem:[#allocation5 + $0x10] sm:$0xff] %vm496, %v558
    %563 = vst.msk [vmem:[#allocation5 + $0x18] sm:$0x3f] %vm500, %v559
    // Predicated region
    $region34: #{_lambda_.21} parent=28 // pred_check
      %p564 = pneg %p357
    $region35: #{_lambda_.21} parent=28 // pred_check_branch
      %566 = sbr.rel (%p564) target = $region37
    $region36: #{_lambda_.21} parent=28 // pred_region
      %v567 = vld [vmem:[#allocation3] sm:$0xff]
      %v568 = vld [vmem:[#allocation3 + $0x8] sm:$0xff]
      %v569 = vld [vmem:[#allocation3 + $0x10] sm:$0xff]
      %v570 = vld [vmem:[#allocation3 + $0x18] sm:$0x3f]
      %v571 = vld [vmem:[#allocation4] sm:$0xff]
      %v572 = vld [vmem:[#allocation4 + $0x8] sm:$0xff]
      %v573 = vld [vmem:[#allocation4 + $0x10] sm:$0xff]
      %v574 = vld [vmem:[#allocation4 + $0x18] sm:$0x3f]
      %v575 = vlog2.pop %v571
      %v576 = vmul.f32 %v575, 0.6931472
      %v577 = vlog2.pop %v572
      %v578 = vmul.f32 %v577, 0.6931472
      %v579 = vlog2.pop %v573
      %v580 = vmul.f32 %v579, 0.6931472
      %v581 = vlog2.pop %v574
      %v582 = vmul.f32 %v581, 0.6931472
      %v583 = vadd.f32 %v567, %v576
      %v584 = vadd.f32 %v568, %v578
      %v585 = vadd.f32 %v569, %v580
      %v586 = vadd.f32 %v570, %v582
      %v587 = vld [vmem:[#allocation5] sm:$0xff]
      %v588 = vld [vmem:[#allocation5 + $0x8] sm:$0xff]
      %v589 = vld [vmem:[#allocation5 + $0x10] sm:$0xff]
      %v590 = vld [vmem:[#allocation5 + $0x18] sm:$0x3f]
      %v591 = vsub.f32 %v583, %v587
      %v592 = vsub.f32 %v584, %v588
      %v593 = vsub.f32 %v585, %v589
      %v594 = vsub.f32 %v586, %v590
      %595 = vst.msk [vmem:[%s6] sm:$0xff] %vm496, %v591
      %596 = vst.msk [vmem:[%s6 + $0x8] sm:$0xff] %vm496, %v592
      %597 = vst.msk [vmem:[%s6 + $0x10] sm:$0xff] %vm496, %v593
      %598 = vst.msk [vmem:[%s6 + $0x18] sm:$0x3f] %vm500, %v594
    $region37: #{_lambda_.21} parent=28 // pred_fallthru
      _
  $region29: #{_lambda_.21} parent=0 // pred_fallthru
    _
  // Predicated region
  $region38: #{_lambda_.21} parent=0 // pred_check
    _
  $region39: #{_lambda_.21} parent=0 // pred_check_branch
    %600 = sbr.rel (0) target = $region41
  $region40: #{_lambda_.21} parent=0 // pred_region
    _
  $region41: #{_lambda_.21} parent=0 // pred_fallthru
    _
  // Predicated region
  $region42: #{_lambda_.21} parent=0 // pred_check
    _
  $region43: #{_lambda_.21} parent=0 // pred_check_branch
    %602 = sbr.rel (0) target = $region45
  $region44: #{_lambda_.21} parent=0 // pred_region
    _
  $region45: #{_lambda_.21} parent=0 // pred_fallthru
    _
  // Predicated region
  $region46: #{_lambda_.21} parent=0 // pred_check
    _
  $region47: #{_lambda_.21} parent=0 // pred_check_branch
    %604 = sbr.rel (0) target = $region49
  $region48: #{_lambda_.21} parent=0 // pred_region
    _
  $region49: #{_lambda_.21} parent=0 // pred_fallthru
    _
  // Predicated region
  $region50: #{_lambda_.21} parent=0 // pred_check
    _
  $region51: #{_lambda_.21} parent=0 // pred_check_branch
    %606 = sbr.rel (0) target = $region53
  $region52: #{_lambda_.21} parent=0 // pred_region
    _
  $region53: #{_lambda_.21} parent=0 // pred_fallthru
    _

</llo_original>
